<compile_context>
chip_gen: v7x
topology: tpu7x:2x2x1
jax: 0.10.0
libtpu: 0.0.40
codegen_flags: <defaults>
</compile_context>

<pallas_src>
import functools

import jax
import jax.numpy as jnp
from jax.experimental import pallas as pl
from jax.experimental.pallas import tpu as pltpu

_EPS = 1e-5  # PyTorch BatchNorm default eps
_PAR = pltpu.CompilerParams(dimension_semantics=("parallel",))


# ----------------------------------------------------------------------------
# in-kernel helper: 3x3 stride-1 "same" conv as W-direction im2col + 3 matmuls
# ----------------------------------------------------------------------------
def _conv3x3_s1(x_flat, W, w_ref, b_ref):
    """3x3 stride-1, pad-1 conv on a flat (H*W, C) f32 activation.

    x_flat: (H*W, C) f32, rows ordered m = h*W + w.
    w_ref : (3, 3*C, Cout) bf16 row-tap weights (K index = kj*C + c, BN scale folded).
    b_ref : (1, Cout) f32 folded BN shift.
    Returns (H*W, Cout) f32 pre-activation.
    """
    HW, C = x_flat.shape
    cout = w_ref.shape[-1]
    # Column (w +/- 1) shifts done directly on the flat layout: one sublane rotation
    # each way plus a row-boundary mask (the rotation wrap-around always lands on a
    # masked position, so it never leaks into the result).
    col = jax.lax.broadcasted_iota(jnp.int32, (HW, C), 0) % W
    left = jnp.where(col != 0, pltpu.roll(x_flat, shift=1, axis=0), 0.0)
    right = jnp.where(col != W - 1, pltpu.roll(x_flat, shift=HW - 1, axis=0), 0.0)
    # K = 3*C operand: [x(w-1) | x(w) | x(w+1)]; one zero row-block above and below
    # supplies the H-direction padding.  Kept f32 so every concat piece and tap slice
    # is sublane-tile aligned for both W=16 and W=8; the bf16 cast happens once per
    # contiguous, aligned tap slice right at the MXU operand.
    rows = jnp.concatenate([left, x_flat, right], axis=-1)          # (H*W, 3C)
    zrow = jnp.zeros((W, 3 * C), jnp.float32)
    flat = jnp.concatenate([zrow, rows, zrow], axis=0)              # ((H+2)*W, 3C)
    acc = jnp.broadcast_to(b_ref[...], (HW, cout))
    for ki in range(3):                                             # row taps, aligned slices
        acc = acc + jnp.dot(
            flat[ki * W:ki * W + HW, :].astype(jnp.bfloat16),
            w_ref[ki],
            preferred_element_type=jnp.float32,
        )
    return acc


# ----------------------------------------------------------------------------
# fused Pallas kernels
# ----------------------------------------------------------------------------
def _stage1_kernel(p_ref, sw_ref, sb_ref,
                   w1a_ref, b1a_ref, w2a_ref, b2a_ref,
                   w1b_ref, b1b_ref, w2b_ref, b2b_ref, o_ref):
    """Stem conv+BN+ReLU and both layer1 BasicBlocks; one image per grid step."""
    H, W, C = o_ref.shape
    # stem: 3x3 conv (pre-im2col'd, K padded 27->32) + BN + ReLU
    x = jnp.maximum(
        jnp.dot(p_ref[...], sw_ref[...], preferred_element_type=jnp.float32)
        + sb_ref[...], 0.0)                                          # (H*W, 64) f32
    # two BasicBlocks, stride 1, no downsample — intermediates never leave VMEM
    for w1, b1, w2, b2 in ((w1a_ref, b1a_ref, w2a_ref, b2a_ref),
                           (w1b_ref, b1b_ref, w2b_ref, b2b_ref)):
        y1 = jnp.maximum(_conv3x3_s1(x, W, w1, b1), 0.0)
        y2 = _conv3x3_s1(y1, W, w2, b2)
        x = jnp.maximum(y2 + x, 0.0)
    o_ref[...] = x.astype(o_ref.dtype).reshape(H, W, C)


def _stage2_kernel(H, W, p_ref, xds_ref, w1_ref, b1_ref, w2_ref, b2_ref,
                   wd_ref, bd_ref, w1b_ref, b1b_ref, w2b_ref, b2b_ref,
                   fcw_ref, fcb_ref, o_ref):
    """Both layer2 BasicBlocks (incl. stride-2 conv1 + 1x1 downsample) and the
    global-avg-pool + fc head; one image per grid step."""
    # block 2.0 — conv1 is the 3x3 stride-2 conv, run on pre-built im2col patches
    y1 = jnp.maximum(
        jnp.dot(p_ref[...], w1_ref[...], preferred_element_type=jnp.float32)
        + b1_ref[...], 0.0)                                          # (H*W, 128) f32
    y2 = _conv3x3_s1(y1, W, w2_ref, b2_ref)
    idn = jnp.dot(xds_ref[...], wd_ref[...],
                  preferred_element_type=jnp.float32) + bd_ref[...]  # 1x1 s2 downsample
    x = jnp.maximum(y2 + idn, 0.0)
    # block 2.1 — stride 1, no downsample
    y1 = jnp.maximum(_conv3x3_s1(x, W, w1b_ref, b1b_ref), 0.0)
    y2 = _conv3x3_s1(y1, W, w2b_ref, b2b_ref)
    x = jnp.maximum(y2 + x, 0.0)                                     # (H*W, 128) f32
    # head: fc is linear, so apply it per-position and average == avg-pool then fc
    logits = jnp.dot(x.astype(jnp.bfloat16), fcw_ref[...],
                     preferred_element_type=jnp.float32)             # (H*W, 128)
    o_ref[...] = (jnp.sum(logits, axis=0, keepdims=True) * (1.0 / (H * W))
                  + fcb_ref[...])


# ----------------------------------------------------------------------------
# wrapper-side parameter prep (BN folding, im2col weight layouts)
# ----------------------------------------------------------------------------
def _fold_bn(bn):
    scale = bn["gamma"] * jax.lax.rsqrt(bn["var"] + _EPS)
    shift = bn["beta"] - bn["mean"] * scale
    return scale, shift


def _prep_conv_rows(w_oihw, bn):
    """3x3 conv weight -> (3, 3*cin, cout) bf16 row-tap layout (K = kj*cin + c),
    BN scale folded in; plus the (1, cout) f32 BN shift."""
    scale, shift = _fold_bn(bn)
    cout, cin, kh, kw = w_oihw.shape
    w = jnp.transpose(w_oihw * scale[:, None, None, None], (2, 3, 1, 0))
    w = w.reshape(kh, kw * cin, cout)
    return w.astype(jnp.bfloat16), shift.reshape(1, cout).astype(jnp.float32)


def _prep_conv_flat(w_oihw, bn, k_pad=None):
    """conv weight -> (kh*kw*cin [padded to k_pad], cout) bf16 im2col layout
    (K = (ki*kw + kj)*cin + c), BN scale folded; plus the (1, cout) f32 BN shift."""
    scale, shift = _fold_bn(bn)
    cout, cin, kh, kw = w_oihw.shape
    w = jnp.transpose(w_oihw * scale[:, None, None, None], (2, 3, 1, 0))
    w = w.reshape(kh * kw * cin, cout)
    if k_pad is not None and k_pad > kh * kw * cin:
        w = jnp.pad(w, ((0, k_pad - kh * kw * cin), (0, 0)))
    return w.astype(jnp.bfloat16), shift.reshape(1, cout).astype(jnp.float32)


def _im2col(x_nhwc, ksize, stride, pad):
    """XLA-side im2col; ksize/stride/pad are static Python ints."""
    N, H, W, C = x_nhwc.shape
    xp = jnp.pad(x_nhwc, ((0, 0), (pad, pad), (pad, pad), (0, 0)))
    Ho = (H + 2 * pad - ksize) // stride + 1
    Wo = (W + 2 * pad - ksize) // stride + 1
    cols = []
    for ki in range(ksize):
        for kj in range(ksize):
            cols.append(xp[:, ki:ki + stride * Ho:stride, kj:kj + stride * Wo:stride, :])
    patches = jnp.concatenate(cols, axis=-1)                         # (N, Ho, Wo, k*k*C)
    return patches.reshape(N, Ho * Wo, ksize * ksize * C), Ho, Wo


def _full(shape):
    # Broadcast (non-batched) operand: same block every grid step -> fetched once.
    return pl.BlockSpec(shape, lambda n: (0,) * len(shape))


# ----------------------------------------------------------------------------
# pallas_call wrappers
# ----------------------------------------------------------------------------
def _stage1_call(x_nhwc, params):
    """One fused pallas_call: stem conv+BN+ReLU and both layer1 BasicBlocks."""
    N = x_nhwc.shape[0]
    C = 64
    STEM_K = 32                                                      # 9*3 = 27 -> 32
    sw, sb = _prep_conv_flat(params["conv1_w"], params["bn1"], k_pad=STEM_K)
    patches, Ho, Wo = _im2col(x_nhwc, 3, 1, 1)                       # (N, 256, 27)
    patches = jnp.pad(patches, ((0, 0), (0, 0), (0, STEM_K - patches.shape[-1])))
    patches = patches.astype(jnp.bfloat16)
    blk0, blk1 = params["layer1"]
    w1a, b1a = _prep_conv_rows(blk0["conv1_w"], blk0["bn1"])
    w2a, b2a = _prep_conv_rows(blk0["conv2_w"], blk0["bn2"])
    w1b, b1b = _prep_conv_rows(blk1["conv1_w"], blk1["bn1"])
    w2b, b2b = _prep_conv_rows(blk1["conv2_w"], blk1["bn2"])
    return pl.pallas_call(
        _stage1_kernel,
        out_shape=jax.ShapeDtypeStruct((N, Ho, Wo, C), jnp.bfloat16),
        grid=(N,),
        in_specs=[
            pl.BlockSpec((None, Ho * Wo, STEM_K), lambda n: (n, 0, 0)),
            _full((STEM_K, C)), _full((1, C)),
            _full((3, 3 * C, C)), _full((1, C)),
            _full((3, 3 * C, C)), _full((1, C)),
            _full((3, 3 * C, C)), _full((1, C)),
            _full((3, 3 * C, C)), _full((1, C)),
        ],
        out_specs=pl.BlockSpec((None, Ho, Wo, C), lambda n: (n, 0, 0, 0)),
        compiler_params=_PAR,
    )(patches, sw, sb, w1a, b1a, w2a, b2a, w1b, b1b, w2b, b2b)


def _stage2_call(a1, params):
    """One fused pallas_call: both layer2 blocks + global-avg-pool + fc head."""
    N, H, W, Cin = a1.shape                                          # (N, 16, 16, 64)
    Ho, Wo, C = H // 2, W // 2, 128
    blk0, blk1 = params["layer2"]
    w1, b1 = _prep_conv_flat(blk0["conv1_w"], blk0["bn1"])           # (576, 128)
    w2, b2 = _prep_conv_rows(blk0["conv2_w"], blk0["bn2"])           # (3, 384, 128)
    wd, bd = _prep_conv_flat(blk0["ds_w"], blk0["ds_bn"])            # (64, 128)
    w1b, b1b = _prep_conv_rows(blk1["conv1_w"], blk1["bn1"])
    w2b, b2b = _prep_conv_rows(blk1["conv2_w"], blk1["bn2"])
    num_classes = params["fc_w"].shape[1]
    fcw = jnp.pad(params["fc_w"], ((0, 0), (0, C - num_classes))).astype(jnp.bfloat16)
    fcb = jnp.pad(params["fc_b"], (0, C - num_classes)).reshape(1, C).astype(jnp.float32)
    # stride-2 conv patches + 1x1 stride-2 downsample input (tiny, bf16, XLA side)
    patches, _, _ = _im2col(a1, 3, 2, 1)                             # (N, 64, 576)
    xds = a1[:, ::2, ::2, :].reshape(N, Ho * Wo, Cin)                # (N, 64, 64)
    logits = pl.pallas_call(
        functools.partial(_stage2_kernel, Ho, Wo),
        out_shape=jax.ShapeDtypeStruct((N, 1, C), jnp.float32),
        grid=(N,),
        in_specs=[
            pl.BlockSpec((None, Ho * Wo, 9 * Cin), lambda n: (n, 0, 0)),
            pl.BlockSpec((None, Ho * Wo, Cin), lambda n: (n, 0, 0)),
            _full((9 * Cin, C)), _full((1, C)),
            _full((3, 3 * C, C)), _full((1, C)),
            _full((Cin, C)), _full((1, C)),
            _full((3, 3 * C, C)), _full((1, C)),
            _full((3, 3 * C, C)), _full((1, C)),
            _full((C, C)), _full((1, C)),
        ],
        out_specs=pl.BlockSpec((None, 1, C), lambda n: (n, 0, 0)),
        compiler_params=_PAR,
    )(patches, xds, w1, b1, w2, b2, wd, bd, w1b, b1b, w2b, b2b, fcw, fcb)
    return logits.reshape(N, C)[:, :num_classes]


# ----------------------------------------------------------------------------
# network forward
# ----------------------------------------------------------------------------
def simple_resnet_forward(params, x_nchw):
    x = jnp.transpose(x_nchw, (0, 2, 3, 1))                          # NCHW -> NHWC
    a1 = _stage1_call(x, params)                                     # (N,16,16,64) bf16
    return _stage2_call(a1, params)                                  # (N, num_classes)


# ----------------------------------------------------------------------------
# deterministic parameter init (shapes follow the PyTorch __init__)
# ----------------------------------------------------------------------------
def _init_conv(key, cout, cin, k):
    fan_in = cin * k * k
    std = (2.0 / fan_in) ** 0.5
    return jax.random.normal(key, (cout, cin, k, k), jnp.float32) * std


def _init_bn(key, c):
    k1, k2, k3, k4 = jax.random.split(key, 4)
    return dict(
        gamma=jax.random.uniform(k1, (c,), jnp.float32, 0.5, 1.5),
        beta=jax.random.normal(k2, (c,), jnp.float32) * 0.1,
        mean=jax.random.normal(k3, (c,), jnp.float32) * 0.1,
        var=jax.random.uniform(k4, (c,), jnp.float32, 0.5, 1.5),
    )


def _init_block(key, cin, cout, downsample):
    keys = jax.random.split(key, 6)
    p = dict(
        conv1_w=_init_conv(keys[0], cout, cin, 3),
        bn1=_init_bn(keys[1], cout),
        conv2_w=_init_conv(keys[2], cout, cout, 3),
        bn2=_init_bn(keys[3], cout),
    )
    if downsample:
        p["ds_w"] = _init_conv(keys[4], cout, cin, 1)
        p["ds_bn"] = _init_bn(keys[5], cout)
    return p


def init_params(key, num_classes=10):
    keys = jax.random.split(key, 8)
    return dict(
        conv1_w=_init_conv(keys[0], 64, 3, 3),
        bn1=_init_bn(keys[1], 64),
        layer1=[
            _init_block(keys[2], 64, 64, downsample=False),
            _init_block(keys[3], 64, 64, downsample=False),
        ],
        layer2=[
            _init_block(keys[4], 64, 128, downsample=True),          # stride-2 block
            _init_block(keys[5], 128, 128, downsample=False),
        ],
        fc_w=jax.random.normal(keys[6], (128, num_classes), jnp.float32)
        * (1.0 / 128.0) ** 0.5,
        fc_b=jax.random.normal(keys[7], (num_classes,), jnp.float32) * 0.01,
    )


# ----------------------------------------------------------------------------
if __name__ == "__main__":
    key = jax.random.PRNGKey(0)
    pkey, xkey = jax.random.split(key)
    params = init_params(pkey, num_classes=10)

    # Input matches the PyTorch convention: (N, C, H, W) = (2, 3, 16, 16)
    x = jax.random.normal(xkey, (2, 3, 16, 16), jnp.float32)

    fwd = jax.jit(simple_resnet_forward)
    out = jax.block_until_ready(fwd(params, x))

    assert out.shape == (2, 10) and out.dtype == jnp.float32
    print("KERNEL_OK")
</pallas_src>

<mosaic_0001>
module attributes {stable_mosaic.version = 11 : i64} {
  func.func @_stage1_kernel(%arg0: i32, %arg1: memref<1x256x32xbf16, #tpu.memory_space<vmem>>, %arg2: memref<32x64xbf16, #tpu.memory_space<vmem>>, %arg3: memref<1x64xf32, #tpu.memory_space<vmem>>, %arg4: memref<3x192x64xbf16, #tpu.memory_space<vmem>>, %arg5: memref<1x64xf32, #tpu.memory_space<vmem>>, %arg6: memref<3x192x64xbf16, #tpu.memory_space<vmem>>, %arg7: memref<1x64xf32, #tpu.memory_space<vmem>>, %arg8: memref<3x192x64xbf16, #tpu.memory_space<vmem>>, %arg9: memref<1x64xf32, #tpu.memory_space<vmem>>, %arg10: memref<3x192x64xbf16, #tpu.memory_space<vmem>>, %arg11: memref<1x64xf32, #tpu.memory_space<vmem>>, %arg12: memref<1x16x16x64xbf16, #tpu.memory_space<vmem>>) attributes {dimension_semantics = [#tpu.dimension_semantics<parallel>], iteration_bounds = array<i64: 2>, scalar_prefetch = 0 : i64, scratch_operands = 0 : i64, tpu.core_type = #tpu.core_type<tc>, window_params = [{transform_indices = @transform_0, window_bounds = array<i64: 1, 256, 32>}, {pipeline_mode = #tpu.pipeline_mode<synchronous>, transform_indices = @transform_1, window_bounds = array<i64: 32, 64>}, {pipeline_mode = #tpu.pipeline_mode<synchronous>, transform_indices = @transform_2, window_bounds = array<i64: 1, 64>}, {pipeline_mode = #tpu.pipeline_mode<synchronous>, transform_indices = @transform_3, window_bounds = array<i64: 3, 192, 64>}, {pipeline_mode = #tpu.pipeline_mode<synchronous>, transform_indices = @transform_4, window_bounds = array<i64: 1, 64>}, {pipeline_mode = #tpu.pipeline_mode<synchronous>, transform_indices = @transform_5, window_bounds = array<i64: 3, 192, 64>}, {pipeline_mode = #tpu.pipeline_mode<synchronous>, transform_indices = @transform_6, window_bounds = array<i64: 1, 64>}, {pipeline_mode = #tpu.pipeline_mode<synchronous>, transform_indices = @transform_7, window_bounds = array<i64: 3, 192, 64>}, {pipeline_mode = #tpu.pipeline_mode<synchronous>, transform_indices = @transform_8, window_bounds = array<i64: 1, 64>}, {pipeline_mode = #tpu.pipeline_mode<synchronous>, transform_indices = @transform_9, window_bounds = array<i64: 3, 192, 64>}, {pipeline_mode = #tpu.pipeline_mode<synchronous>, transform_indices = @transform_10, window_bounds = array<i64: 1, 64>}, {transform_indices = @transform_11, window_bounds = array<i64: 1, 16, 16, 64>}]} {
    %c0 = arith.constant 0 : index
    %c0_0 = arith.constant 0 : index
    %c0_1 = arith.constant 0 : index
    %0 = vector.load %arg1[%c0, %c0_0, %c0_1] : memref<1x256x32xbf16, #tpu.memory_space<vmem>>, vector<1x256x32xbf16>
    %1 = vector.shape_cast %0 : vector<1x256x32xbf16> to vector<256x32xbf16>
    %c0_2 = arith.constant 0 : index
    %c0_3 = arith.constant 0 : index
    %2 = vector.load %arg2[%c0_2, %c0_3] : memref<32x64xbf16, #tpu.memory_space<vmem>>, vector<32x64xbf16>
    %cst = arith.constant dense<0.000000e+00> : vector<256x64xf32>
    %3 = tpu.matmul %1, %2, %cst {dimension_numbers = #tpu.dot_dimension_numbers<[1], [0], [0], [1], [0, 0, 1, 1], [], []>} : vector<256x32xbf16>, vector<32x64xbf16>, vector<256x64xf32> -> vector<256x64xf32>
    %c0_4 = arith.constant 0 : index
    %c0_5 = arith.constant 0 : index
    %4 = vector.load %arg3[%c0_4, %c0_5] : memref<1x64xf32, #tpu.memory_space<vmem>>, vector<1x64xf32>
    %5 = vector.broadcast %4 : vector<1x64xf32> to vector<256x64xf32>
    %6 = arith.addf %3, %5 : vector<256x64xf32>
    %cst_6 = arith.constant 0.000000e+00 : f32
    %7 = vector.broadcast %cst_6 : f32 to vector<256x64xf32>
    %8 = arith.maximumf %6, %7 : vector<256x64xf32>
    %9 = tpu.iota {dimensions = array<i32: 0>} : vector<256x64xi32>
    %c16_i32 = arith.constant 16 : i32
    %c0_i32 = arith.constant 0 : i32
    %10 = arith.cmpi eq, %c16_i32, %c0_i32 : i32
    %c1_i32 = arith.constant 1 : i32
    %11 = arith.select %10, %c1_i32, %c16_i32 : i32
    %12 = vector.broadcast %11 : i32 to vector<256x64xi32>
    %13 = arith.remsi %9, %12 : vector<256x64xi32>
    %c0_i32_7 = arith.constant 0 : i32
    %14 = vector.broadcast %c0_i32_7 : i32 to vector<256x64xi32>
    %15 = arith.cmpi ne, %13, %14 : vector<256x64xi32>
    %c0_i32_8 = arith.constant 0 : i32
    %16 = vector.broadcast %c0_i32_8 : i32 to vector<256x64xi32>
    %17 = arith.cmpi slt, %13, %16 : vector<256x64xi32>
    %c0_i32_9 = arith.constant 0 : i32
    %18 = arith.cmpi slt, %11, %c0_i32_9 : i32
    %19 = vector.broadcast %18 : i1 to vector<256x64xi1>
    %20 = vector.broadcast %19 : vector<256x64xi1> to vector<256x64xi1>
    %21 = arith.xori %17, %20 : vector<256x64xi1>
    %22 = arith.andi %21, %15 : vector<256x64xi1>
    %23 = vector.broadcast %11 : i32 to vector<256x64xi32>
    %24 = arith.addi %13, %23 : vector<256x64xi32>
    %25 = arith.select %22, %24, %13 : vector<256x64xi1>, vector<256x64xi32>
    %c0_i32_10 = arith.constant 0 : i32
    %26 = vector.broadcast %c0_i32_10 : i32 to vector<256x64xi32>
    %27 = arith.cmpi ne, %25, %26 : vector<256x64xi32>
    %c1_i32_11 = arith.constant 1 : i32
    %28 = tpu.dynamic_rotate %8 by %c1_i32_11 dim 0 : vector<256x64xf32>, i32 -> vector<256x64xf32>
    %cst_12 = arith.constant 0.000000e+00 : f32
    %29 = vector.broadcast %cst_12 : f32 to vector<256x64xf32>
    %30 = arith.select %27, %28, %29 : vector<256x64xi1>, vector<256x64xf32>
    %c15_i32 = arith.constant 15 : i32
    %31 = vector.broadcast %c15_i32 : i32 to vector<256x64xi32>
    %32 = arith.cmpi ne, %25, %31 : vector<256x64xi32>
    %c255_i32 = arith.constant 255 : i32
    %33 = tpu.dynamic_rotate %8 by %c255_i32 dim 0 : vector<256x64xf32>, i32 -> vector<256x64xf32>
    %cst_13 = arith.constant 0.000000e+00 : f32
    %34 = vector.broadcast %cst_13 : f32 to vector<256x64xf32>
    %35 = arith.select %32, %33, %34 : vector<256x64xi1>, vector<256x64xf32>
    %36 = tpu.concatenate %30, %8, %35 in 1 : vector<256x64xf32>, vector<256x64xf32>, vector<256x64xf32> -> vector<256x192xf32>
    %cst_14 = arith.constant 0.000000e+00 : f32
    %37 = vector.broadcast %cst_14 : f32 to vector<16x192xf32>
    %38 = tpu.concatenate %37, %36, %37 in 0 : vector<16x192xf32>, vector<256x192xf32>, vector<16x192xf32> -> vector<288x192xf32>
    %c0_15 = arith.constant 0 : index
    %c0_16 = arith.constant 0 : index
    %39 = vector.load %arg5[%c0_15, %c0_16] : memref<1x64xf32, #tpu.memory_space<vmem>>, vector<1x64xf32>
    %40 = vector.shape_cast %39 : vector<1x64xf32> to vector<1x64xf32>
    %41 = vector.broadcast %40 : vector<1x64xf32> to vector<256x64xf32>
    %42 = vector.extract_strided_slice %38 {offsets = [0, 0], sizes = [256, 192], strides = [1, 1]} : vector<288x192xf32> to vector<256x192xf32>
    %43 = arith.truncf %42 : vector<256x192xf32> to vector<256x192xbf16>
    %c0_17 = arith.constant 0 : index
    %c0_18 = arith.constant 0 : index
    %c0_19 = arith.constant 0 : index
    %44 = vector.load %arg4[%c0_17, %c0_18, %c0_19] : memref<3x192x64xbf16, #tpu.memory_space<vmem>>, vector<1x192x64xbf16>
    %45 = vector.shape_cast %44 : vector<1x192x64xbf16> to vector<192x64xbf16>
    %cst_20 = arith.constant dense<0.000000e+00> : vector<256x64xf32>
    %46 = tpu.matmul %43, %45, %cst_20 {dimension_numbers = #tpu.dot_dimension_numbers<[1], [0], [0], [1], [0, 0, 1, 1], [], []>} : vector<256x192xbf16>, vector<192x64xbf16>, vector<256x64xf32> -> vector<256x64xf32>
    %47 = arith.addf %41, %46 : vector<256x64xf32>
    %48 = vector.extract_strided_slice %38 {offsets = [16, 0], sizes = [256, 192], strides = [1, 1]} : vector<288x192xf32> to vector<256x192xf32>
    %49 = arith.truncf %48 : vector<256x192xf32> to vector<256x192xbf16>
    %c1 = arith.constant 1 : index
    %c0_21 = arith.constant 0 : index
    %c0_22 = arith.constant 0 : index
    %50 = vector.load %arg4[%c1, %c0_21, %c0_22] : memref<3x192x64xbf16, #tpu.memory_space<vmem>>, vector<1x192x64xbf16>
    %51 = vector.shape_cast %50 : vector<1x192x64xbf16> to vector<192x64xbf16>
    %cst_23 = arith.constant dense<0.000000e+00> : vector<256x64xf32>
    %52 = tpu.matmul %49, %51, %cst_23 {dimension_numbers = #tpu.dot_dimension_numbers<[1], [0], [0], [1], [0, 0, 1, 1], [], []>} : vector<256x192xbf16>, vector<192x64xbf16>, vector<256x64xf32> -> vector<256x64xf32>
    %53 = arith.addf %47, %52 : vector<256x64xf32>
    %54 = vector.extract_strided_slice %38 {offsets = [32, 0], sizes = [256, 192], strides = [1, 1]} : vector<288x192xf32> to vector<256x192xf32>
    %55 = arith.truncf %54 : vector<256x192xf32> to vector<256x192xbf16>
    %c2 = arith.constant 2 : index
    %c0_24 = arith.constant 0 : index
    %c0_25 = arith.constant 0 : index
    %56 = vector.load %arg4[%c2, %c0_24, %c0_25] : memref<3x192x64xbf16, #tpu.memory_space<vmem>>, vector<1x192x64xbf16>
    %57 = vector.shape_cast %56 : vector<1x192x64xbf16> to vector<192x64xbf16>
    %cst_26 = arith.constant dense<0.000000e+00> : vector<256x64xf32>
    %58 = tpu.matmul %55, %57, %cst_26 {dimension_numbers = #tpu.dot_dimension_numbers<[1], [0], [0], [1], [0, 0, 1, 1], [], []>} : vector<256x192xbf16>, vector<192x64xbf16>, vector<256x64xf32> -> vector<256x64xf32>
    %59 = arith.addf %53, %58 : vector<256x64xf32>
    %cst_27 = arith.constant 0.000000e+00 : f32
    %60 = vector.broadcast %cst_27 : f32 to vector<256x64xf32>
    %61 = arith.maximumf %59, %60 : vector<256x64xf32>
    %62 = tpu.iota {dimensions = array<i32: 0>} : vector<256x64xi32>
    %c16_i32_28 = arith.constant 16 : i32
    %c0_i32_29 = arith.constant 0 : i32
    %63 = arith.cmpi eq, %c16_i32_28, %c0_i32_29 : i32
    %c1_i32_30 = arith.constant 1 : i32
    %64 = arith.select %63, %c1_i32_30, %c16_i32_28 : i32
    %65 = vector.broadcast %64 : i32 to vector<256x64xi32>
    %66 = arith.remsi %62, %65 : vector<256x64xi32>
    %c0_i32_31 = arith.constant 0 : i32
    %67 = vector.broadcast %c0_i32_31 : i32 to vector<256x64xi32>
    %68 = arith.cmpi ne, %66, %67 : vector<256x64xi32>
    %c0_i32_32 = arith.constant 0 : i32
    %69 = vector.broadcast %c0_i32_32 : i32 to vector<256x64xi32>
    %70 = arith.cmpi slt, %66, %69 : vector<256x64xi32>
    %c0_i32_33 = arith.constant 0 : i32
    %71 = arith.cmpi slt, %64, %c0_i32_33 : i32
    %72 = vector.broadcast %71 : i1 to vector<256x64xi1>
    %73 = vector.broadcast %72 : vector<256x64xi1> to vector<256x64xi1>
    %74 = arith.xori %70, %73 : vector<256x64xi1>
    %75 = arith.andi %74, %68 : vector<256x64xi1>
    %76 = vector.broadcast %64 : i32 to vector<256x64xi32>
    %77 = arith.addi %66, %76 : vector<256x64xi32>
    %78 = arith.select %75, %77, %66 : vector<256x64xi1>, vector<256x64xi32>
    %c0_i32_34 = arith.constant 0 : i32
    %79 = vector.broadcast %c0_i32_34 : i32 to vector<256x64xi32>
    %80 = arith.cmpi ne, %78, %79 : vector<256x64xi32>
    %c1_i32_35 = arith.constant 1 : i32
    %81 = tpu.dynamic_rotate %61 by %c1_i32_35 dim 0 : vector<256x64xf32>, i32 -> vector<256x64xf32>
    %cst_36 = arith.constant 0.000000e+00 : f32
    %82 = vector.broadcast %cst_36 : f32 to vector<256x64xf32>
    %83 = arith.select %80, %81, %82 : vector<256x64xi1>, vector<256x64xf32>
    %c15_i32_37 = arith.constant 15 : i32
    %84 = vector.broadcast %c15_i32_37 : i32 to vector<256x64xi32>
    %85 = arith.cmpi ne, %78, %84 : vector<256x64xi32>
    %c255_i32_38 = arith.constant 255 : i32
    %86 = tpu.dynamic_rotate %61 by %c255_i32_38 dim 0 : vector<256x64xf32>, i32 -> vector<256x64xf32>
    %cst_39 = arith.constant 0.000000e+00 : f32
    %87 = vector.broadcast %cst_39 : f32 to vector<256x64xf32>
    %88 = arith.select %85, %86, %87 : vector<256x64xi1>, vector<256x64xf32>
    %89 = tpu.concatenate %83, %61, %88 in 1 : vector<256x64xf32>, vector<256x64xf32>, vector<256x64xf32> -> vector<256x192xf32>
    %cst_40 = arith.constant 0.000000e+00 : f32
    %90 = vector.broadcast %cst_40 : f32 to vector<16x192xf32>
    %91 = tpu.concatenate %90, %89, %90 in 0 : vector<16x192xf32>, vector<256x192xf32>, vector<16x192xf32> -> vector<288x192xf32>
    %c0_41 = arith.constant 0 : index
    %c0_42 = arith.constant 0 : index
    %92 = vector.load %arg7[%c0_41, %c0_42] : memref<1x64xf32, #tpu.memory_space<vmem>>, vector<1x64xf32>
    %93 = vector.shape_cast %92 : vector<1x64xf32> to vector<1x64xf32>
    %94 = vector.broadcast %93 : vector<1x64xf32> to vector<256x64xf32>
    %95 = vector.extract_strided_slice %91 {offsets = [0, 0], sizes = [256, 192], strides = [1, 1]} : vector<288x192xf32> to vector<256x192xf32>
    %96 = arith.truncf %95 : vector<256x192xf32> to vector<256x192xbf16>
    %c0_43 = arith.constant 0 : index
    %c0_44 = arith.constant 0 : index
    %c0_45 = arith.constant 0 : index
    %97 = vector.load %arg6[%c0_43, %c0_44, %c0_45] : memref<3x192x64xbf16, #tpu.memory_space<vmem>>, vector<1x192x64xbf16>
    %98 = vector.shape_cast %97 : vector<1x192x64xbf16> to vector<192x64xbf16>
    %cst_46 = arith.constant dense<0.000000e+00> : vector<256x64xf32>
    %99 = tpu.matmul %96, %98, %cst_46 {dimension_numbers = #tpu.dot_dimension_numbers<[1], [0], [0], [1], [0, 0, 1, 1], [], []>} : vector<256x192xbf16>, vector<192x64xbf16>, vector<256x64xf32> -> vector<256x64xf32>
    %100 = arith.addf %94, %99 : vector<256x64xf32>
    %101 = vector.extract_strided_slice %91 {offsets = [16, 0], sizes = [256, 192], strides = [1, 1]} : vector<288x192xf32> to vector<256x192xf32>
    %102 = arith.truncf %101 : vector<256x192xf32> to vector<256x192xbf16>
    %c1_47 = arith.constant 1 : index
    %c0_48 = arith.constant 0 : index
    %c0_49 = arith.constant 0 : index
    %103 = vector.load %arg6[%c1_47, %c0_48, %c0_49] : memref<3x192x64xbf16, #tpu.memory_space<vmem>>, vector<1x192x64xbf16>
    %104 = vector.shape_cast %103 : vector<1x192x64xbf16> to vector<192x64xbf16>
    %cst_50 = arith.constant dense<0.000000e+00> : vector<256x64xf32>
    %105 = tpu.matmul %102, %104, %cst_50 {dimension_numbers = #tpu.dot_dimension_numbers<[1], [0], [0], [1], [0, 0, 1, 1], [], []>} : vector<256x192xbf16>, vector<192x64xbf16>, vector<256x64xf32> -> vector<256x64xf32>
    %106 = arith.addf %100, %105 : vector<256x64xf32>
    %107 = vector.extract_strided_slice %91 {offsets = [32, 0], sizes = [256, 192], strides = [1, 1]} : vector<288x192xf32> to vector<256x192xf32>
    %108 = arith.truncf %107 : vector<256x192xf32> to vector<256x192xbf16>
    %c2_51 = arith.constant 2 : index
    %c0_52 = arith.constant 0 : index
    %c0_53 = arith.constant 0 : index
    %109 = vector.load %arg6[%c2_51, %c0_52, %c0_53] : memref<3x192x64xbf16, #tpu.memory_space<vmem>>, vector<1x192x64xbf16>
    %110 = vector.shape_cast %109 : vector<1x192x64xbf16> to vector<192x64xbf16>
    %cst_54 = arith.constant dense<0.000000e+00> : vector<256x64xf32>
    %111 = tpu.matmul %108, %110, %cst_54 {dimension_numbers = #tpu.dot_dimension_numbers<[1], [0], [0], [1], [0, 0, 1, 1], [], []>} : vector<256x192xbf16>, vector<192x64xbf16>, vector<256x64xf32> -> vector<256x64xf32>
    %112 = arith.addf %106, %111 : vector<256x64xf32>
    %113 = arith.addf %112, %8 : vector<256x64xf32>
    %cst_55 = arith.constant 0.000000e+00 : f32
    %114 = vector.broadcast %cst_55 : f32 to vector<256x64xf32>
    %115 = arith.maximumf %113, %114 : vector<256x64xf32>
    %116 = tpu.iota {dimensions = array<i32: 0>} : vector<256x64xi32>
    %c16_i32_56 = arith.constant 16 : i32
    %c0_i32_57 = arith.constant 0 : i32
    %117 = arith.cmpi eq, %c16_i32_56, %c0_i32_57 : i32
    %c1_i32_58 = arith.constant 1 : i32
    %118 = arith.select %117, %c1_i32_58, %c16_i32_56 : i32
    %119 = vector.broadcast %118 : i32 to vector<256x64xi32>
    %120 = arith.remsi %116, %119 : vector<256x64xi32>
    %c0_i32_59 = arith.constant 0 : i32
    %121 = vector.broadcast %c0_i32_59 : i32 to vector<256x64xi32>
    %122 = arith.cmpi ne, %120, %121 : vector<256x64xi32>
    %c0_i32_60 = arith.constant 0 : i32
    %123 = vector.broadcast %c0_i32_60 : i32 to vector<256x64xi32>
    %124 = arith.cmpi slt, %120, %123 : vector<256x64xi32>
    %c0_i32_61 = arith.constant 0 : i32
    %125 = arith.cmpi slt, %118, %c0_i32_61 : i32
    %126 = vector.broadcast %125 : i1 to vector<256x64xi1>
    %127 = vector.broadcast %126 : vector<256x64xi1> to vector<256x64xi1>
    %128 = arith.xori %124, %127 : vector<256x64xi1>
    %129 = arith.andi %128, %122 : vector<256x64xi1>
    %130 = vector.broadcast %118 : i32 to vector<256x64xi32>
    %131 = arith.addi %120, %130 : vector<256x64xi32>
    %132 = arith.select %129, %131, %120 : vector<256x64xi1>, vector<256x64xi32>
    %c0_i32_62 = arith.constant 0 : i32
    %133 = vector.broadcast %c0_i32_62 : i32 to vector<256x64xi32>
    %134 = arith.cmpi ne, %132, %133 : vector<256x64xi32>
    %c1_i32_63 = arith.constant 1 : i32
    %135 = tpu.dynamic_rotate %115 by %c1_i32_63 dim 0 : vector<256x64xf32>, i32 -> vector<256x64xf32>
    %cst_64 = arith.constant 0.000000e+00 : f32
    %136 = vector.broadcast %cst_64 : f32 to vector<256x64xf32>
    %137 = arith.select %134, %135, %136 : vector<256x64xi1>, vector<256x64xf32>
    %c15_i32_65 = arith.constant 15 : i32
    %138 = vector.broadcast %c15_i32_65 : i32 to vector<256x64xi32>
    %139 = arith.cmpi ne, %132, %138 : vector<256x64xi32>
    %c255_i32_66 = arith.constant 255 : i32
    %140 = tpu.dynamic_rotate %115 by %c255_i32_66 dim 0 : vector<256x64xf32>, i32 -> vector<256x64xf32>
    %cst_67 = arith.constant 0.000000e+00 : f32
    %141 = vector.broadcast %cst_67 : f32 to vector<256x64xf32>
    %142 = arith.select %139, %140, %141 : vector<256x64xi1>, vector<256x64xf32>
    %143 = tpu.concatenate %137, %115, %142 in 1 : vector<256x64xf32>, vector<256x64xf32>, vector<256x64xf32> -> vector<256x192xf32>
    %cst_68 = arith.constant 0.000000e+00 : f32
    %144 = vector.broadcast %cst_68 : f32 to vector<16x192xf32>
    %145 = tpu.concatenate %144, %143, %144 in 0 : vector<16x192xf32>, vector<256x192xf32>, vector<16x192xf32> -> vector<288x192xf32>
    %c0_69 = arith.constant 0 : index
    %c0_70 = arith.constant 0 : index
    %146 = vector.load %arg9[%c0_69, %c0_70] : memref<1x64xf32, #tpu.memory_space<vmem>>, vector<1x64xf32>
    %147 = vector.shape_cast %146 : vector<1x64xf32> to vector<1x64xf32>
    %148 = vector.broadcast %147 : vector<1x64xf32> to vector<256x64xf32>
    %149 = vector.extract_strided_slice %145 {offsets = [0, 0], sizes = [256, 192], strides = [1, 1]} : vector<288x192xf32> to vector<256x192xf32>
    %150 = arith.truncf %149 : vector<256x192xf32> to vector<256x192xbf16>
    %c0_71 = arith.constant 0 : index
    %c0_72 = arith.constant 0 : index
    %c0_73 = arith.constant 0 : index
    %151 = vector.load %arg8[%c0_71, %c0_72, %c0_73] : memref<3x192x64xbf16, #tpu.memory_space<vmem>>, vector<1x192x64xbf16>
    %152 = vector.shape_cast %151 : vector<1x192x64xbf16> to vector<192x64xbf16>
    %cst_74 = arith.constant dense<0.000000e+00> : vector<256x64xf32>
    %153 = tpu.matmul %150, %152, %cst_74 {dimension_numbers = #tpu.dot_dimension_numbers<[1], [0], [0], [1], [0, 0, 1, 1], [], []>} : vector<256x192xbf16>, vector<192x64xbf16>, vector<256x64xf32> -> vector<256x64xf32>
    %154 = arith.addf %148, %153 : vector<256x64xf32>
    %155 = vector.extract_strided_slice %145 {offsets = [16, 0], sizes = [256, 192], strides = [1, 1]} : vector<288x192xf32> to vector<256x192xf32>
    %156 = arith.truncf %155 : vector<256x192xf32> to vector<256x192xbf16>
    %c1_75 = arith.constant 1 : index
    %c0_76 = arith.constant 0 : index
    %c0_77 = arith.constant 0 : index
    %157 = vector.load %arg8[%c1_75, %c0_76, %c0_77] : memref<3x192x64xbf16, #tpu.memory_space<vmem>>, vector<1x192x64xbf16>
    %158 = vector.shape_cast %157 : vector<1x192x64xbf16> to vector<192x64xbf16>
    %cst_78 = arith.constant dense<0.000000e+00> : vector<256x64xf32>
    %159 = tpu.matmul %156, %158, %cst_78 {dimension_numbers = #tpu.dot_dimension_numbers<[1], [0], [0], [1], [0, 0, 1, 1], [], []>} : vector<256x192xbf16>, vector<192x64xbf16>, vector<256x64xf32> -> vector<256x64xf32>
    %160 = arith.addf %154, %159 : vector<256x64xf32>
    %161 = vector.extract_strided_slice %145 {offsets = [32, 0], sizes = [256, 192], strides = [1, 1]} : vector<288x192xf32> to vector<256x192xf32>
    %162 = arith.truncf %161 : vector<256x192xf32> to vector<256x192xbf16>
    %c2_79 = arith.constant 2 : index
    %c0_80 = arith.constant 0 : index
    %c0_81 = arith.constant 0 : index
    %163 = vector.load %arg8[%c2_79, %c0_80, %c0_81] : memref<3x192x64xbf16, #tpu.memory_space<vmem>>, vector<1x192x64xbf16>
    %164 = vector.shape_cast %163 : vector<1x192x64xbf16> to vector<192x64xbf16>
    %cst_82 = arith.constant dense<0.000000e+00> : vector<256x64xf32>
    %165 = tpu.matmul %162, %164, %cst_82 {dimension_numbers = #tpu.dot_dimension_numbers<[1], [0], [0], [1], [0, 0, 1, 1], [], []>} : vector<256x192xbf16>, vector<192x64xbf16>, vector<256x64xf32> -> vector<256x64xf32>
    %166 = arith.addf %160, %165 : vector<256x64xf32>
    %cst_83 = arith.constant 0.000000e+00 : f32
    %167 = vector.broadcast %cst_83 : f32 to vector<256x64xf32>
    %168 = arith.maximumf %166, %167 : vector<256x64xf32>
    %169 = tpu.iota {dimensions = array<i32: 0>} : vector<256x64xi32>
    %c16_i32_84 = arith.constant 16 : i32
    %c0_i32_85 = arith.constant 0 : i32
    %170 = arith.cmpi eq, %c16_i32_84, %c0_i32_85 : i32
    %c1_i32_86 = arith.constant 1 : i32
    %171 = arith.select %170, %c1_i32_86, %c16_i32_84 : i32
    %172 = vector.broadcast %171 : i32 to vector<256x64xi32>
    %173 = arith.remsi %169, %172 : vector<256x64xi32>
    %c0_i32_87 = arith.constant 0 : i32
    %174 = vector.broadcast %c0_i32_87 : i32 to vector<256x64xi32>
    %175 = arith.cmpi ne, %173, %174 : vector<256x64xi32>
    %c0_i32_88 = arith.constant 0 : i32
    %176 = vector.broadcast %c0_i32_88 : i32 to vector<256x64xi32>
    %177 = arith.cmpi slt, %173, %176 : vector<256x64xi32>
    %c0_i32_89 = arith.constant 0 : i32
    %178 = arith.cmpi slt, %171, %c0_i32_89 : i32
    %179 = vector.broadcast %178 : i1 to vector<256x64xi1>
    %180 = vector.broadcast %179 : vector<256x64xi1> to vector<256x64xi1>
    %181 = arith.xori %177, %180 : vector<256x64xi1>
    %182 = arith.andi %181, %175 : vector<256x64xi1>
    %183 = vector.broadcast %171 : i32 to vector<256x64xi32>
    %184 = arith.addi %173, %183 : vector<256x64xi32>
    %185 = arith.select %182, %184, %173 : vector<256x64xi1>, vector<256x64xi32>
    %c0_i32_90 = arith.constant 0 : i32
    %186 = vector.broadcast %c0_i32_90 : i32 to vector<256x64xi32>
    %187 = arith.cmpi ne, %185, %186 : vector<256x64xi32>
    %c1_i32_91 = arith.constant 1 : i32
    %188 = tpu.dynamic_rotate %168 by %c1_i32_91 dim 0 : vector<256x64xf32>, i32 -> vector<256x64xf32>
    %cst_92 = arith.constant 0.000000e+00 : f32
    %189 = vector.broadcast %cst_92 : f32 to vector<256x64xf32>
    %190 = arith.select %187, %188, %189 : vector<256x64xi1>, vector<256x64xf32>
    %c15_i32_93 = arith.constant 15 : i32
    %191 = vector.broadcast %c15_i32_93 : i32 to vector<256x64xi32>
    %192 = arith.cmpi ne, %185, %191 : vector<256x64xi32>
    %c255_i32_94 = arith.constant 255 : i32
    %193 = tpu.dynamic_rotate %168 by %c255_i32_94 dim 0 : vector<256x64xf32>, i32 -> vector<256x64xf32>
    %cst_95 = arith.constant 0.000000e+00 : f32
    %194 = vector.broadcast %cst_95 : f32 to vector<256x64xf32>
    %195 = arith.select %192, %193, %194 : vector<256x64xi1>, vector<256x64xf32>
    %196 = tpu.concatenate %190, %168, %195 in 1 : vector<256x64xf32>, vector<256x64xf32>, vector<256x64xf32> -> vector<256x192xf32>
    %cst_96 = arith.constant 0.000000e+00 : f32
    %197 = vector.broadcast %cst_96 : f32 to vector<16x192xf32>
    %198 = tpu.concatenate %197, %196, %197 in 0 : vector<16x192xf32>, vector<256x192xf32>, vector<16x192xf32> -> vector<288x192xf32>
    %c0_97 = arith.constant 0 : index
    %c0_98 = arith.constant 0 : index
    %199 = vector.load %arg11[%c0_97, %c0_98] : memref<1x64xf32, #tpu.memory_space<vmem>>, vector<1x64xf32>
    %200 = vector.shape_cast %199 : vector<1x64xf32> to vector<1x64xf32>
    %201 = vector.broadcast %200 : vector<1x64xf32> to vector<256x64xf32>
    %202 = vector.extract_strided_slice %198 {offsets = [0, 0], sizes = [256, 192], strides = [1, 1]} : vector<288x192xf32> to vector<256x192xf32>
    %203 = arith.truncf %202 : vector<256x192xf32> to vector<256x192xbf16>
    %c0_99 = arith.constant 0 : index
    %c0_100 = arith.constant 0 : index
    %c0_101 = arith.constant 0 : index
    %204 = vector.load %arg10[%c0_99, %c0_100, %c0_101] : memref<3x192x64xbf16, #tpu.memory_space<vmem>>, vector<1x192x64xbf16>
    %205 = vector.shape_cast %204 : vector<1x192x64xbf16> to vector<192x64xbf16>
    %cst_102 = arith.constant dense<0.000000e+00> : vector<256x64xf32>
    %206 = tpu.matmul %203, %205, %cst_102 {dimension_numbers = #tpu.dot_dimension_numbers<[1], [0], [0], [1], [0, 0, 1, 1], [], []>} : vector<256x192xbf16>, vector<192x64xbf16>, vector<256x64xf32> -> vector<256x64xf32>
    %207 = arith.addf %201, %206 : vector<256x64xf32>
    %208 = vector.extract_strided_slice %198 {offsets = [16, 0], sizes = [256, 192], strides = [1, 1]} : vector<288x192xf32> to vector<256x192xf32>
    %209 = arith.truncf %208 : vector<256x192xf32> to vector<256x192xbf16>
    %c1_103 = arith.constant 1 : index
    %c0_104 = arith.constant 0 : index
    %c0_105 = arith.constant 0 : index
    %210 = vector.load %arg10[%c1_103, %c0_104, %c0_105] : memref<3x192x64xbf16, #tpu.memory_space<vmem>>, vector<1x192x64xbf16>
    %211 = vector.shape_cast %210 : vector<1x192x64xbf16> to vector<192x64xbf16>
    %cst_106 = arith.constant dense<0.000000e+00> : vector<256x64xf32>
    %212 = tpu.matmul %209, %211, %cst_106 {dimension_numbers = #tpu.dot_dimension_numbers<[1], [0], [0], [1], [0, 0, 1, 1], [], []>} : vector<256x192xbf16>, vector<192x64xbf16>, vector<256x64xf32> -> vector<256x64xf32>
    %213 = arith.addf %207, %212 : vector<256x64xf32>
    %214 = vector.extract_strided_slice %198 {offsets = [32, 0], sizes = [256, 192], strides = [1, 1]} : vector<288x192xf32> to vector<256x192xf32>
    %215 = arith.truncf %214 : vector<256x192xf32> to vector<256x192xbf16>
    %c2_107 = arith.constant 2 : index
    %c0_108 = arith.constant 0 : index
    %c0_109 = arith.constant 0 : index
    %216 = vector.load %arg10[%c2_107, %c0_108, %c0_109] : memref<3x192x64xbf16, #tpu.memory_space<vmem>>, vector<1x192x64xbf16>
    %217 = vector.shape_cast %216 : vector<1x192x64xbf16> to vector<192x64xbf16>
    %cst_110 = arith.constant dense<0.000000e+00> : vector<256x64xf32>
    %218 = tpu.matmul %215, %217, %cst_110 {dimension_numbers = #tpu.dot_dimension_numbers<[1], [0], [0], [1], [0, 0, 1, 1], [], []>} : vector<256x192xbf16>, vector<192x64xbf16>, vector<256x64xf32> -> vector<256x64xf32>
    %219 = arith.addf %213, %218 : vector<256x64xf32>
    %220 = arith.addf %219, %115 : vector<256x64xf32>
    %cst_111 = arith.constant 0.000000e+00 : f32
    %221 = vector.broadcast %cst_111 : f32 to vector<256x64xf32>
    %222 = arith.maximumf %220, %221 : vector<256x64xf32>
    %223 = arith.truncf %222 : vector<256x64xf32> to vector<256x64xbf16>
    %224 = vector.shape_cast %223 : vector<256x64xbf16> to vector<16x16x64xbf16>
    %c0_112 = arith.constant 0 : index
    %c0_113 = arith.constant 0 : index
    %c0_114 = arith.constant 0 : index
    %c0_115 = arith.constant 0 : index
    %225 = vector.load %arg12[%c0_112, %c0_113, %c0_114, %c0_115] : memref<1x16x16x64xbf16, #tpu.memory_space<vmem>>, vector<1x16x16x64xbf16>
    %226 = vector.shape_cast %225 : vector<1x16x16x64xbf16> to vector<16x16x64xbf16>
    %227 = vector.shape_cast %224 : vector<16x16x64xbf16> to vector<1x16x16x64xbf16>
    tpu.vector_store %arg12[%c0_112, %c0_113, %c0_114, %c0_115], %227 {strides = array<i32>} : memref<1x16x16x64xbf16, #tpu.memory_space<vmem>>, vector<1x16x16x64xbf16>,
    return
  }
  func.func @transform_0(%arg0: i32) -> (i32, i32, i32) {
    %c0_i32 = arith.constant 0 : i32
    %c0_i32_0 = arith.constant 0 : i32
    %c0_i32_1 = arith.constant 0 : i32
    return %arg0, %c0_i32, %c0_i32_0 : i32, i32, i32
  }
  func.func @transform_1(%arg0: i32) -> (i32, i32) {
    %c0_i32 = arith.constant 0 : i32
    %c0_i32_0 = arith.constant 0 : i32
    %c0_i32_1 = arith.constant 0 : i32
    return %c0_i32, %c0_i32_0 : i32, i32
  }
  func.func @transform_2(%arg0: i32) -> (i32, i32) {
    %c0_i32 = arith.constant 0 : i32
    %c0_i32_0 = arith.constant 0 : i32
    %c0_i32_1 = arith.constant 0 : i32
    return %c0_i32, %c0_i32_0 : i32, i32
  }
  func.func @transform_3(%arg0: i32) -> (i32, i32, i32) {
    %c0_i32 = arith.constant 0 : i32
    %c0_i32_0 = arith.constant 0 : i32
    %c0_i32_1 = arith.constant 0 : i32
    %c0_i32_2 = arith.constant 0 : i32
    return %c0_i32, %c0_i32_0, %c0_i32_1 : i32, i32, i32
  }
  func.func @transform_4(%arg0: i32) -> (i32, i32) {
    %c0_i32 = arith.constant 0 : i32
    %c0_i32_0 = arith.constant 0 : i32
    %c0_i32_1 = arith.constant 0 : i32
    return %c0_i32, %c0_i32_0 : i32, i32
  }
  func.func @transform_5(%arg0: i32) -> (i32, i32, i32) {
    %c0_i32 = arith.constant 0 : i32
    %c0_i32_0 = arith.constant 0 : i32
    %c0_i32_1 = arith.constant 0 : i32
    %c0_i32_2 = arith.constant 0 : i32
    return %c0_i32, %c0_i32_0, %c0_i32_1 : i32, i32, i32
  }
  func.func @transform_6(%arg0: i32) -> (i32, i32) {
    %c0_i32 = arith.constant 0 : i32
    %c0_i32_0 = arith.constant 0 : i32
    %c0_i32_1 = arith.constant 0 : i32
    return %c0_i32, %c0_i32_0 : i32, i32
  }
  func.func @transform_7(%arg0: i32) -> (i32, i32, i32) {
    %c0_i32 = arith.constant 0 : i32
    %c0_i32_0 = arith.constant 0 : i32
    %c0_i32_1 = arith.constant 0 : i32
    %c0_i32_2 = arith.constant 0 : i32
    return %c0_i32, %c0_i32_0, %c0_i32_1 : i32, i32, i32
  }
  func.func @transform_8(%arg0: i32) -> (i32, i32) {
    %c0_i32 = arith.constant 0 : i32
    %c0_i32_0 = arith.constant 0 : i32
    %c0_i32_1 = arith.constant 0 : i32
    return %c0_i32, %c0_i32_0 : i32, i32
  }
  func.func @transform_9(%arg0: i32) -> (i32, i32, i32) {
    %c0_i32 = arith.constant 0 : i32
    %c0_i32_0 = arith.constant 0 : i32
    %c0_i32_1 = arith.constant 0 : i32
    %c0_i32_2 = arith.constant 0 : i32
    return %c0_i32, %c0_i32_0, %c0_i32_1 : i32, i32, i32
  }
  func.func @transform_10(%arg0: i32) -> (i32, i32) {
    %c0_i32 = arith.constant 0 : i32
    %c0_i32_0 = arith.constant 0 : i32
    %c0_i32_1 = arith.constant 0 : i32
    return %c0_i32, %c0_i32_0 : i32, i32
  }
  func.func @transform_11(%arg0: i32) -> (i32, i32, i32, i32) {
    %c0_i32 = arith.constant 0 : i32
    %c0_i32_0 = arith.constant 0 : i32
    %c0_i32_1 = arith.constant 0 : i32
    %c0_i32_2 = arith.constant 0 : i32
    return %arg0, %c0_i32, %c0_i32_0, %c0_i32_1 : i32, i32, i32, i32
  }
}

module attributes {stable_mosaic.version = 11 : i64} {
  func.func @_stage2_kernel(%arg0: i32, %arg1: memref<1x64x576xbf16, #tpu.memory_space<vmem>>, %arg2: memref<1x64x64xbf16, #tpu.memory_space<vmem>>, %arg3: memref<576x128xbf16, #tpu.memory_space<vmem>>, %arg4: memref<1x128xf32, #tpu.memory_space<vmem>>, %arg5: memref<3x384x128xbf16, #tpu.memory_space<vmem>>, %arg6: memref<1x128xf32, #tpu.memory_space<vmem>>, %arg7: memref<64x128xbf16, #tpu.memory_space<vmem>>, %arg8: memref<1x128xf32, #tpu.memory_space<vmem>>, %arg9: memref<3x384x128xbf16, #tpu.memory_space<vmem>>, %arg10: memref<1x128xf32, #tpu.memory_space<vmem>>, %arg11: memref<3x384x128xbf16, #tpu.memory_space<vmem>>, %arg12: memref<1x128xf32, #tpu.memory_space<vmem>>, %arg13: memref<128x128xbf16, #tpu.memory_space<vmem>>, %arg14: memref<1x128xf32, #tpu.memory_space<vmem>>, %arg15: memref<1x1x128xf32, #tpu.memory_space<vmem>>) attributes {dimension_semantics = [#tpu.dimension_semantics<parallel>], iteration_bounds = array<i64: 2>, scalar_prefetch = 0 : i64, scratch_operands = 0 : i64, tpu.core_type = #tpu.core_type<tc>, window_params = [{transform_indices = @transform_0, window_bounds = array<i64: 1, 64, 576>}, {transform_indices = @transform_1, window_bounds = array<i64: 1, 64, 64>}, {pipeline_mode = #tpu.pipeline_mode<synchronous>, transform_indices = @transform_2, window_bounds = array<i64: 576, 128>}, {pipeline_mode = #tpu.pipeline_mode<synchronous>, transform_indices = @transform_3, window_bounds = array<i64: 1, 128>}, {pipeline_mode = #tpu.pipeline_mode<synchronous>, transform_indices = @transform_4, window_bounds = array<i64: 3, 384, 128>}, {pipeline_mode = #tpu.pipeline_mode<synchronous>, transform_indices = @transform_5, window_bounds = array<i64: 1, 128>}, {pipeline_mode = #tpu.pipeline_mode<synchronous>, transform_indices = @transform_6, window_bounds = array<i64: 64, 128>}, {pipeline_mode = #tpu.pipeline_mode<synchronous>, transform_indices = @transform_7, window_bounds = array<i64: 1, 128>}, {pipeline_mode = #tpu.pipeline_mode<synchronous>, transform_indices = @transform_8, window_bounds = array<i64: 3, 384, 128>}, {pipeline_mode = #tpu.pipeline_mode<synchronous>, transform_indices = @transform_9, window_bounds = array<i64: 1, 128>}, {pipeline_mode = #tpu.pipeline_mode<synchronous>, transform_indices = @transform_10, window_bounds = array<i64: 3, 384, 128>}, {pipeline_mode = #tpu.pipeline_mode<synchronous>, transform_indices = @transform_11, window_bounds = array<i64: 1, 128>}, {pipeline_mode = #tpu.pipeline_mode<synchronous>, transform_indices = @transform_12, window_bounds = array<i64: 128, 128>}, {pipeline_mode = #tpu.pipeline_mode<synchronous>, transform_indices = @transform_13, window_bounds = array<i64: 1, 128>}, {transform_indices = @transform_14, window_bounds = array<i64: 1, 1, 128>}]} {
    %c0 = arith.constant 0 : index
    %c0_0 = arith.constant 0 : index
    %c0_1 = arith.constant 0 : index
    %0 = vector.load %arg1[%c0, %c0_0, %c0_1] : memref<1x64x576xbf16, #tpu.memory_space<vmem>>, vector<1x64x576xbf16>
    %1 = vector.shape_cast %0 : vector<1x64x576xbf16> to vector<64x576xbf16>
    %c0_2 = arith.constant 0 : index
    %c0_3 = arith.constant 0 : index
    %2 = vector.load %arg3[%c0_2, %c0_3] : memref<576x128xbf16, #tpu.memory_space<vmem>>, vector<576x128xbf16>
    %cst = arith.constant dense<0.000000e+00> : vector<64x128xf32>
    %3 = tpu.matmul %1, %2, %cst {dimension_numbers = #tpu.dot_dimension_numbers<[1], [0], [0], [1], [0, 0, 1, 1], [], []>} : vector<64x576xbf16>, vector<576x128xbf16>, vector<64x128xf32> -> vector<64x128xf32>
    %c0_4 = arith.constant 0 : index
    %c0_5 = arith.constant 0 : index
    %4 = vector.load %arg4[%c0_4, %c0_5] : memref<1x128xf32, #tpu.memory_space<vmem>>, vector<1x128xf32>
    %5 = vector.broadcast %4 : vector<1x128xf32> to vector<64x128xf32>
    %6 = arith.addf %3, %5 : vector<64x128xf32>
    %cst_6 = arith.constant 0.000000e+00 : f32
    %7 = vector.broadcast %cst_6 : f32 to vector<64x128xf32>
    %8 = arith.maximumf %6, %7 : vector<64x128xf32>
    %9 = tpu.iota {dimensions = array<i32: 0>} : vector<64x128xi32>
    %c8_i32 = arith.constant 8 : i32
    %c0_i32 = arith.constant 0 : i32
    %10 = arith.cmpi eq, %c8_i32, %c0_i32 : i32
    %c1_i32 = arith.constant 1 : i32
    %11 = arith.select %10, %c1_i32, %c8_i32 : i32
    %12 = vector.broadcast %11 : i32 to vector<64x128xi32>
    %13 = arith.remsi %9, %12 : vector<64x128xi32>
    %c0_i32_7 = arith.constant 0 : i32
    %14 = vector.broadcast %c0_i32_7 : i32 to vector<64x128xi32>
    %15 = arith.cmpi ne, %13, %14 : vector<64x128xi32>
    %c0_i32_8 = arith.constant 0 : i32
    %16 = vector.broadcast %c0_i32_8 : i32 to vector<64x128xi32>
    %17 = arith.cmpi slt, %13, %16 : vector<64x128xi32>
    %c0_i32_9 = arith.constant 0 : i32
    %18 = arith.cmpi slt, %11, %c0_i32_9 : i32
    %19 = vector.broadcast %18 : i1 to vector<64x128xi1>
    %20 = vector.broadcast %19 : vector<64x128xi1> to vector<64x128xi1>
    %21 = arith.xori %17, %20 : vector<64x128xi1>
    %22 = arith.andi %21, %15 : vector<64x128xi1>
    %23 = vector.broadcast %11 : i32 to vector<64x128xi32>
    %24 = arith.addi %13, %23 : vector<64x128xi32>
    %25 = arith.select %22, %24, %13 : vector<64x128xi1>, vector<64x128xi32>
    %c0_i32_10 = arith.constant 0 : i32
    %26 = vector.broadcast %c0_i32_10 : i32 to vector<64x128xi32>
    %27 = arith.cmpi ne, %25, %26 : vector<64x128xi32>
    %c1_i32_11 = arith.constant 1 : i32
    %28 = tpu.dynamic_rotate %8 by %c1_i32_11 dim 0 : vector<64x128xf32>, i32 -> vector<64x128xf32>
    %cst_12 = arith.constant 0.000000e+00 : f32
    %29 = vector.broadcast %cst_12 : f32 to vector<64x128xf32>
    %30 = arith.select %27, %28, %29 : vector<64x128xi1>, vector<64x128xf32>
    %c7_i32 = arith.constant 7 : i32
    %31 = vector.broadcast %c7_i32 : i32 to vector<64x128xi32>
    %32 = arith.cmpi ne, %25, %31 : vector<64x128xi32>
    %c63_i32 = arith.constant 63 : i32
    %33 = tpu.dynamic_rotate %8 by %c63_i32 dim 0 : vector<64x128xf32>, i32 -> vector<64x128xf32>
    %cst_13 = arith.constant 0.000000e+00 : f32
    %34 = vector.broadcast %cst_13 : f32 to vector<64x128xf32>
    %35 = arith.select %32, %33, %34 : vector<64x128xi1>, vector<64x128xf32>
    %36 = tpu.concatenate %30, %8, %35 in 1 : vector<64x128xf32>, vector<64x128xf32>, vector<64x128xf32> -> vector<64x384xf32>
    %cst_14 = arith.constant 0.000000e+00 : f32
    %37 = vector.broadcast %cst_14 : f32 to vector<8x384xf32>
    %38 = tpu.concatenate %37, %36, %37 in 0 : vector<8x384xf32>, vector<64x384xf32>, vector<8x384xf32> -> vector<80x384xf32>
    %c0_15 = arith.constant 0 : index
    %c0_16 = arith.constant 0 : index
    %39 = vector.load %arg6[%c0_15, %c0_16] : memref<1x128xf32, #tpu.memory_space<vmem>>, vector<1x128xf32>
    %40 = vector.shape_cast %39 : vector<1x128xf32> to vector<1x128xf32>
    %41 = vector.broadcast %40 : vector<1x128xf32> to vector<64x128xf32>
    %42 = vector.extract_strided_slice %38 {offsets = [0, 0], sizes = [64, 384], strides = [1, 1]} : vector<80x384xf32> to vector<64x384xf32>
    %43 = arith.truncf %42 : vector<64x384xf32> to vector<64x384xbf16>
    %c0_17 = arith.constant 0 : index
    %c0_18 = arith.constant 0 : index
    %c0_19 = arith.constant 0 : index
    %44 = vector.load %arg5[%c0_17, %c0_18, %c0_19] : memref<3x384x128xbf16, #tpu.memory_space<vmem>>, vector<1x384x128xbf16>
    %45 = vector.shape_cast %44 : vector<1x384x128xbf16> to vector<384x128xbf16>
    %cst_20 = arith.constant dense<0.000000e+00> : vector<64x128xf32>
    %46 = tpu.matmul %43, %45, %cst_20 {dimension_numbers = #tpu.dot_dimension_numbers<[1], [0], [0], [1], [0, 0, 1, 1], [], []>} : vector<64x384xbf16>, vector<384x128xbf16>, vector<64x128xf32> -> vector<64x128xf32>
    %47 = arith.addf %41, %46 : vector<64x128xf32>
    %48 = vector.extract_strided_slice %38 {offsets = [8, 0], sizes = [64, 384], strides = [1, 1]} : vector<80x384xf32> to vector<64x384xf32>
    %49 = arith.truncf %48 : vector<64x384xf32> to vector<64x384xbf16>
    %c1 = arith.constant 1 : index
    %c0_21 = arith.constant 0 : index
    %c0_22 = arith.constant 0 : index
    %50 = vector.load %arg5[%c1, %c0_21, %c0_22] : memref<3x384x128xbf16, #tpu.memory_space<vmem>>, vector<1x384x128xbf16>
    %51 = vector.shape_cast %50 : vector<1x384x128xbf16> to vector<384x128xbf16>
    %cst_23 = arith.constant dense<0.000000e+00> : vector<64x128xf32>
    %52 = tpu.matmul %49, %51, %cst_23 {dimension_numbers = #tpu.dot_dimension_numbers<[1], [0], [0], [1], [0, 0, 1, 1], [], []>} : vector<64x384xbf16>, vector<384x128xbf16>, vector<64x128xf32> -> vector<64x128xf32>
    %53 = arith.addf %47, %52 : vector<64x128xf32>
    %54 = vector.extract_strided_slice %38 {offsets = [16, 0], sizes = [64, 384], strides = [1, 1]} : vector<80x384xf32> to vector<64x384xf32>
    %55 = arith.truncf %54 : vector<64x384xf32> to vector<64x384xbf16>
    %c2 = arith.constant 2 : index
    %c0_24 = arith.constant 0 : index
    %c0_25 = arith.constant 0 : index
    %56 = vector.load %arg5[%c2, %c0_24, %c0_25] : memref<3x384x128xbf16, #tpu.memory_space<vmem>>, vector<1x384x128xbf16>
    %57 = vector.shape_cast %56 : vector<1x384x128xbf16> to vector<384x128xbf16>
    %cst_26 = arith.constant dense<0.000000e+00> : vector<64x128xf32>
    %58 = tpu.matmul %55, %57, %cst_26 {dimension_numbers = #tpu.dot_dimension_numbers<[1], [0], [0], [1], [0, 0, 1, 1], [], []>} : vector<64x384xbf16>, vector<384x128xbf16>, vector<64x128xf32> -> vector<64x128xf32>
    %59 = arith.addf %53, %58 : vector<64x128xf32>
    %c0_27 = arith.constant 0 : index
    %c0_28 = arith.constant 0 : index
    %c0_29 = arith.constant 0 : index
    %60 = vector.load %arg2[%c0_27, %c0_28, %c0_29] : memref<1x64x64xbf16, #tpu.memory_space<vmem>>, vector<1x64x64xbf16>
    %61 = vector.shape_cast %60 : vector<1x64x64xbf16> to vector<64x64xbf16>
    %c0_30 = arith.constant 0 : index
    %c0_31 = arith.constant 0 : index
    %62 = vector.load %arg7[%c0_30, %c0_31] : memref<64x128xbf16, #tpu.memory_space<vmem>>, vector<64x128xbf16>
    %cst_32 = arith.constant dense<0.000000e+00> : vector<64x128xf32>
    %63 = tpu.matmul %61, %62, %cst_32 {dimension_numbers = #tpu.dot_dimension_numbers<[1], [0], [0], [1], [0, 0, 1, 1], [], []>} : vector<64x64xbf16>, vector<64x128xbf16>, vector<64x128xf32> -> vector<64x128xf32>
    %c0_33 = arith.constant 0 : index
    %c0_34 = arith.constant 0 : index
    %64 = vector.load %arg8[%c0_33, %c0_34] : memref<1x128xf32, #tpu.memory_space<vmem>>, vector<1x128xf32>
    %65 = vector.broadcast %64 : vector<1x128xf32> to vector<64x128xf32>
    %66 = arith.addf %63, %65 : vector<64x128xf32>
    %67 = arith.addf %59, %66 : vector<64x128xf32>
    %cst_35 = arith.constant 0.000000e+00 : f32
    %68 = vector.broadcast %cst_35 : f32 to vector<64x128xf32>
    %69 = arith.maximumf %67, %68 : vector<64x128xf32>
    %70 = tpu.iota {dimensions = array<i32: 0>} : vector<64x128xi32>
    %c8_i32_36 = arith.constant 8 : i32
    %c0_i32_37 = arith.constant 0 : i32
    %71 = arith.cmpi eq, %c8_i32_36, %c0_i32_37 : i32
    %c1_i32_38 = arith.constant 1 : i32
    %72 = arith.select %71, %c1_i32_38, %c8_i32_36 : i32
    %73 = vector.broadcast %72 : i32 to vector<64x128xi32>
    %74 = arith.remsi %70, %73 : vector<64x128xi32>
    %c0_i32_39 = arith.constant 0 : i32
    %75 = vector.broadcast %c0_i32_39 : i32 to vector<64x128xi32>
    %76 = arith.cmpi ne, %74, %75 : vector<64x128xi32>
    %c0_i32_40 = arith.constant 0 : i32
    %77 = vector.broadcast %c0_i32_40 : i32 to vector<64x128xi32>
    %78 = arith.cmpi slt, %74, %77 : vector<64x128xi32>
    %c0_i32_41 = arith.constant 0 : i32
    %79 = arith.cmpi slt, %72, %c0_i32_41 : i32
    %80 = vector.broadcast %79 : i1 to vector<64x128xi1>
    %81 = vector.broadcast %80 : vector<64x128xi1> to vector<64x128xi1>
    %82 = arith.xori %78, %81 : vector<64x128xi1>
    %83 = arith.andi %82, %76 : vector<64x128xi1>
    %84 = vector.broadcast %72 : i32 to vector<64x128xi32>
    %85 = arith.addi %74, %84 : vector<64x128xi32>
    %86 = arith.select %83, %85, %74 : vector<64x128xi1>, vector<64x128xi32>
    %c0_i32_42 = arith.constant 0 : i32
    %87 = vector.broadcast %c0_i32_42 : i32 to vector<64x128xi32>
    %88 = arith.cmpi ne, %86, %87 : vector<64x128xi32>
    %c1_i32_43 = arith.constant 1 : i32
    %89 = tpu.dynamic_rotate %69 by %c1_i32_43 dim 0 : vector<64x128xf32>, i32 -> vector<64x128xf32>
    %cst_44 = arith.constant 0.000000e+00 : f32
    %90 = vector.broadcast %cst_44 : f32 to vector<64x128xf32>
    %91 = arith.select %88, %89, %90 : vector<64x128xi1>, vector<64x128xf32>
    %c7_i32_45 = arith.constant 7 : i32
    %92 = vector.broadcast %c7_i32_45 : i32 to vector<64x128xi32>
    %93 = arith.cmpi ne, %86, %92 : vector<64x128xi32>
    %c63_i32_46 = arith.constant 63 : i32
    %94 = tpu.dynamic_rotate %69 by %c63_i32_46 dim 0 : vector<64x128xf32>, i32 -> vector<64x128xf32>
    %cst_47 = arith.constant 0.000000e+00 : f32
    %95 = vector.broadcast %cst_47 : f32 to vector<64x128xf32>
    %96 = arith.select %93, %94, %95 : vector<64x128xi1>, vector<64x128xf32>
    %97 = tpu.concatenate %91, %69, %96 in 1 : vector<64x128xf32>, vector<64x128xf32>, vector<64x128xf32> -> vector<64x384xf32>
    %cst_48 = arith.constant 0.000000e+00 : f32
    %98 = vector.broadcast %cst_48 : f32 to vector<8x384xf32>
    %99 = tpu.concatenate %98, %97, %98 in 0 : vector<8x384xf32>, vector<64x384xf32>, vector<8x384xf32> -> vector<80x384xf32>
    %c0_49 = arith.constant 0 : index
    %c0_50 = arith.constant 0 : index
    %100 = vector.load %arg10[%c0_49, %c0_50] : memref<1x128xf32, #tpu.memory_space<vmem>>, vector<1x128xf32>
    %101 = vector.shape_cast %100 : vector<1x128xf32> to vector<1x128xf32>
    %102 = vector.broadcast %101 : vector<1x128xf32> to vector<64x128xf32>
    %103 = vector.extract_strided_slice %99 {offsets = [0, 0], sizes = [64, 384], strides = [1, 1]} : vector<80x384xf32> to vector<64x384xf32>
    %104 = arith.truncf %103 : vector<64x384xf32> to vector<64x384xbf16>
    %c0_51 = arith.constant 0 : index
    %c0_52 = arith.constant 0 : index
    %c0_53 = arith.constant 0 : index
    %105 = vector.load %arg9[%c0_51, %c0_52, %c0_53] : memref<3x384x128xbf16, #tpu.memory_space<vmem>>, vector<1x384x128xbf16>
    %106 = vector.shape_cast %105 : vector<1x384x128xbf16> to vector<384x128xbf16>
    %cst_54 = arith.constant dense<0.000000e+00> : vector<64x128xf32>
    %107 = tpu.matmul %104, %106, %cst_54 {dimension_numbers = #tpu.dot_dimension_numbers<[1], [0], [0], [1], [0, 0, 1, 1], [], []>} : vector<64x384xbf16>, vector<384x128xbf16>, vector<64x128xf32> -> vector<64x128xf32>
    %108 = arith.addf %102, %107 : vector<64x128xf32>
    %109 = vector.extract_strided_slice %99 {offsets = [8, 0], sizes = [64, 384], strides = [1, 1]} : vector<80x384xf32> to vector<64x384xf32>
    %110 = arith.truncf %109 : vector<64x384xf32> to vector<64x384xbf16>
    %c1_55 = arith.constant 1 : index
    %c0_56 = arith.constant 0 : index
    %c0_57 = arith.constant 0 : index
    %111 = vector.load %arg9[%c1_55, %c0_56, %c0_57] : memref<3x384x128xbf16, #tpu.memory_space<vmem>>, vector<1x384x128xbf16>
    %112 = vector.shape_cast %111 : vector<1x384x128xbf16> to vector<384x128xbf16>
    %cst_58 = arith.constant dense<0.000000e+00> : vector<64x128xf32>
    %113 = tpu.matmul %110, %112, %cst_58 {dimension_numbers = #tpu.dot_dimension_numbers<[1], [0], [0], [1], [0, 0, 1, 1], [], []>} : vector<64x384xbf16>, vector<384x128xbf16>, vector<64x128xf32> -> vector<64x128xf32>
    %114 = arith.addf %108, %113 : vector<64x128xf32>
    %115 = vector.extract_strided_slice %99 {offsets = [16, 0], sizes = [64, 384], strides = [1, 1]} : vector<80x384xf32> to vector<64x384xf32>
    %116 = arith.truncf %115 : vector<64x384xf32> to vector<64x384xbf16>
    %c2_59 = arith.constant 2 : index
    %c0_60 = arith.constant 0 : index
    %c0_61 = arith.constant 0 : index
    %117 = vector.load %arg9[%c2_59, %c0_60, %c0_61] : memref<3x384x128xbf16, #tpu.memory_space<vmem>>, vector<1x384x128xbf16>
    %118 = vector.shape_cast %117 : vector<1x384x128xbf16> to vector<384x128xbf16>
    %cst_62 = arith.constant dense<0.000000e+00> : vector<64x128xf32>
    %119 = tpu.matmul %116, %118, %cst_62 {dimension_numbers = #tpu.dot_dimension_numbers<[1], [0], [0], [1], [0, 0, 1, 1], [], []>} : vector<64x384xbf16>, vector<384x128xbf16>, vector<64x128xf32> -> vector<64x128xf32>
    %120 = arith.addf %114, %119 : vector<64x128xf32>
    %cst_63 = arith.constant 0.000000e+00 : f32
    %121 = vector.broadcast %cst_63 : f32 to vector<64x128xf32>
    %122 = arith.maximumf %120, %121 : vector<64x128xf32>
    %123 = tpu.iota {dimensions = array<i32: 0>} : vector<64x128xi32>
    %c8_i32_64 = arith.constant 8 : i32
    %c0_i32_65 = arith.constant 0 : i32
    %124 = arith.cmpi eq, %c8_i32_64, %c0_i32_65 : i32
    %c1_i32_66 = arith.constant 1 : i32
    %125 = arith.select %124, %c1_i32_66, %c8_i32_64 : i32
    %126 = vector.broadcast %125 : i32 to vector<64x128xi32>
    %127 = arith.remsi %123, %126 : vector<64x128xi32>
    %c0_i32_67 = arith.constant 0 : i32
    %128 = vector.broadcast %c0_i32_67 : i32 to vector<64x128xi32>
    %129 = arith.cmpi ne, %127, %128 : vector<64x128xi32>
    %c0_i32_68 = arith.constant 0 : i32
    %130 = vector.broadcast %c0_i32_68 : i32 to vector<64x128xi32>
    %131 = arith.cmpi slt, %127, %130 : vector<64x128xi32>
    %c0_i32_69 = arith.constant 0 : i32
    %132 = arith.cmpi slt, %125, %c0_i32_69 : i32
    %133 = vector.broadcast %132 : i1 to vector<64x128xi1>
    %134 = vector.broadcast %133 : vector<64x128xi1> to vector<64x128xi1>
    %135 = arith.xori %131, %134 : vector<64x128xi1>
    %136 = arith.andi %135, %129 : vector<64x128xi1>
    %137 = vector.broadcast %125 : i32 to vector<64x128xi32>
    %138 = arith.addi %127, %137 : vector<64x128xi32>
    %139 = arith.select %136, %138, %127 : vector<64x128xi1>, vector<64x128xi32>
    %c0_i32_70 = arith.constant 0 : i32
    %140 = vector.broadcast %c0_i32_70 : i32 to vector<64x128xi32>
    %141 = arith.cmpi ne, %139, %140 : vector<64x128xi32>
    %c1_i32_71 = arith.constant 1 : i32
    %142 = tpu.dynamic_rotate %122 by %c1_i32_71 dim 0 : vector<64x128xf32>, i32 -> vector<64x128xf32>
    %cst_72 = arith.constant 0.000000e+00 : f32
    %143 = vector.broadcast %cst_72 : f32 to vector<64x128xf32>
    %144 = arith.select %141, %142, %143 : vector<64x128xi1>, vector<64x128xf32>
    %c7_i32_73 = arith.constant 7 : i32
    %145 = vector.broadcast %c7_i32_73 : i32 to vector<64x128xi32>
    %146 = arith.cmpi ne, %139, %145 : vector<64x128xi32>
    %c63_i32_74 = arith.constant 63 : i32
    %147 = tpu.dynamic_rotate %122 by %c63_i32_74 dim 0 : vector<64x128xf32>, i32 -> vector<64x128xf32>
    %cst_75 = arith.constant 0.000000e+00 : f32
    %148 = vector.broadcast %cst_75 : f32 to vector<64x128xf32>
    %149 = arith.select %146, %147, %148 : vector<64x128xi1>, vector<64x128xf32>
    %150 = tpu.concatenate %144, %122, %149 in 1 : vector<64x128xf32>, vector<64x128xf32>, vector<64x128xf32> -> vector<64x384xf32>
    %cst_76 = arith.constant 0.000000e+00 : f32
    %151 = vector.broadcast %cst_76 : f32 to vector<8x384xf32>
    %152 = tpu.concatenate %151, %150, %151 in 0 : vector<8x384xf32>, vector<64x384xf32>, vector<8x384xf32> -> vector<80x384xf32>
    %c0_77 = arith.constant 0 : index
    %c0_78 = arith.constant 0 : index
    %153 = vector.load %arg12[%c0_77, %c0_78] : memref<1x128xf32, #tpu.memory_space<vmem>>, vector<1x128xf32>
    %154 = vector.shape_cast %153 : vector<1x128xf32> to vector<1x128xf32>
    %155 = vector.broadcast %154 : vector<1x128xf32> to vector<64x128xf32>
    %156 = vector.extract_strided_slice %152 {offsets = [0, 0], sizes = [64, 384], strides = [1, 1]} : vector<80x384xf32> to vector<64x384xf32>
    %157 = arith.truncf %156 : vector<64x384xf32> to vector<64x384xbf16>
    %c0_79 = arith.constant 0 : index
    %c0_80 = arith.constant 0 : index
    %c0_81 = arith.constant 0 : index
    %158 = vector.load %arg11[%c0_79, %c0_80, %c0_81] : memref<3x384x128xbf16, #tpu.memory_space<vmem>>, vector<1x384x128xbf16>
    %159 = vector.shape_cast %158 : vector<1x384x128xbf16> to vector<384x128xbf16>
    %cst_82 = arith.constant dense<0.000000e+00> : vector<64x128xf32>
    %160 = tpu.matmul %157, %159, %cst_82 {dimension_numbers = #tpu.dot_dimension_numbers<[1], [0], [0], [1], [0, 0, 1, 1], [], []>} : vector<64x384xbf16>, vector<384x128xbf16>, vector<64x128xf32> -> vector<64x128xf32>
    %161 = arith.addf %155, %160 : vector<64x128xf32>
    %162 = vector.extract_strided_slice %152 {offsets = [8, 0], sizes = [64, 384], strides = [1, 1]} : vector<80x384xf32> to vector<64x384xf32>
    %163 = arith.truncf %162 : vector<64x384xf32> to vector<64x384xbf16>
    %c1_83 = arith.constant 1 : index
    %c0_84 = arith.constant 0 : index
    %c0_85 = arith.constant 0 : index
    %164 = vector.load %arg11[%c1_83, %c0_84, %c0_85] : memref<3x384x128xbf16, #tpu.memory_space<vmem>>, vector<1x384x128xbf16>
    %165 = vector.shape_cast %164 : vector<1x384x128xbf16> to vector<384x128xbf16>
    %cst_86 = arith.constant dense<0.000000e+00> : vector<64x128xf32>
    %166 = tpu.matmul %163, %165, %cst_86 {dimension_numbers = #tpu.dot_dimension_numbers<[1], [0], [0], [1], [0, 0, 1, 1], [], []>} : vector<64x384xbf16>, vector<384x128xbf16>, vector<64x128xf32> -> vector<64x128xf32>
    %167 = arith.addf %161, %166 : vector<64x128xf32>
    %168 = vector.extract_strided_slice %152 {offsets = [16, 0], sizes = [64, 384], strides = [1, 1]} : vector<80x384xf32> to vector<64x384xf32>
    %169 = arith.truncf %168 : vector<64x384xf32> to vector<64x384xbf16>
    %c2_87 = arith.constant 2 : index
    %c0_88 = arith.constant 0 : index
    %c0_89 = arith.constant 0 : index
    %170 = vector.load %arg11[%c2_87, %c0_88, %c0_89] : memref<3x384x128xbf16, #tpu.memory_space<vmem>>, vector<1x384x128xbf16>
    %171 = vector.shape_cast %170 : vector<1x384x128xbf16> to vector<384x128xbf16>
    %cst_90 = arith.constant dense<0.000000e+00> : vector<64x128xf32>
    %172 = tpu.matmul %169, %171, %cst_90 {dimension_numbers = #tpu.dot_dimension_numbers<[1], [0], [0], [1], [0, 0, 1, 1], [], []>} : vector<64x384xbf16>, vector<384x128xbf16>, vector<64x128xf32> -> vector<64x128xf32>
    %173 = arith.addf %167, %172 : vector<64x128xf32>
    %174 = arith.addf %173, %69 : vector<64x128xf32>
    %cst_91 = arith.constant 0.000000e+00 : f32
    %175 = vector.broadcast %cst_91 : f32 to vector<64x128xf32>
    %176 = arith.maximumf %174, %175 : vector<64x128xf32>
    %177 = arith.truncf %176 : vector<64x128xf32> to vector<64x128xbf16>
    %c0_92 = arith.constant 0 : index
    %c0_93 = arith.constant 0 : index
    %178 = vector.load %arg13[%c0_92, %c0_93] : memref<128x128xbf16, #tpu.memory_space<vmem>>, vector<128x128xbf16>
    %cst_94 = arith.constant dense<0.000000e+00> : vector<64x128xf32>
    %179 = tpu.matmul %177, %178, %cst_94 {dimension_numbers = #tpu.dot_dimension_numbers<[1], [0], [0], [1], [0, 0, 1, 1], [], []>} : vector<64x128xbf16>, vector<128x128xbf16>, vector<64x128xf32> -> vector<64x128xf32>
    %cst_95 = arith.constant dense<0.000000e+00> : vector<128xf32>
    %180 = vector.multi_reduction <add>, %179, %cst_95 [0] : vector<64x128xf32> to vector<128xf32>
    %181 = vector.shape_cast %180 : vector<128xf32> to vector<1x128xf32>
    %cst_96 = arith.constant 1.562500e-02 : f32
    %182 = vector.broadcast %cst_96 : f32 to vector<1x128xf32>
    %183 = arith.mulf %181, %182 : vector<1x128xf32>
    %c0_97 = arith.constant 0 : index
    %c0_98 = arith.constant 0 : index
    %184 = vector.load %arg14[%c0_97, %c0_98] : memref<1x128xf32, #tpu.memory_space<vmem>>, vector<1x128xf32>
    %185 = arith.addf %183, %184 : vector<1x128xf32>
    %c0_99 = arith.constant 0 : index
    %c0_100 = arith.constant 0 : index
    %c0_101 = arith.constant 0 : index
    %186 = vector.load %arg15[%c0_99, %c0_100, %c0_101] : memref<1x1x128xf32, #tpu.memory_space<vmem>>, vector<1x1x128xf32>
    %187 = vector.shape_cast %186 : vector<1x1x128xf32> to vector<1x128xf32>
    %188 = vector.shape_cast %185 : vector<1x128xf32> to vector<1x1x128xf32>
    tpu.vector_store %arg15[%c0_99, %c0_100, %c0_101], %188 {strides = array<i32>} : memref<1x1x128xf32, #tpu.memory_space<vmem>>, vector<1x1x128xf32>,
    return
  }
  func.func @transform_0(%arg0: i32) -> (i32, i32, i32) {
    %c0_i32 = arith.constant 0 : i32
    %c0_i32_0 = arith.constant 0 : i32
    %c0_i32_1 = arith.constant 0 : i32
    return %arg0, %c0_i32, %c0_i32_0 : i32, i32, i32
  }
  func.func @transform_1(%arg0: i32) -> (i32, i32, i32) {
    %c0_i32 = arith.constant 0 : i32
    %c0_i32_0 = arith.constant 0 : i32
    %c0_i32_1 = arith.constant 0 : i32
    return %arg0, %c0_i32, %c0_i32_0 : i32, i32, i32
  }
  func.func @transform_2(%arg0: i32) -> (i32, i32) {
    %c0_i32 = arith.constant 0 : i32
    %c0_i32_0 = arith.constant 0 : i32
    %c0_i32_1 = arith.constant 0 : i32
    return %c0_i32, %c0_i32_0 : i32, i32
  }
  func.func @transform_3(%arg0: i32) -> (i32, i32) {
    %c0_i32 = arith.constant 0 : i32
    %c0_i32_0 = arith.constant 0 : i32
    %c0_i32_1 = arith.constant 0 : i32
    return %c0_i32, %c0_i32_0 : i32, i32
  }
  func.func @transform_4(%arg0: i32) -> (i32, i32, i32) {
    %c0_i32 = arith.constant 0 : i32
    %c0_i32_0 = arith.constant 0 : i32
    %c0_i32_1 = arith.constant 0 : i32
    %c0_i32_2 = arith.constant 0 : i32
    return %c0_i32, %c0_i32_0, %c0_i32_1 : i32, i32, i32
  }
  func.func @transform_5(%arg0: i32) -> (i32, i32) {
    %c0_i32 = arith.constant 0 : i32
    %c0_i32_0 = arith.constant 0 : i32
    %c0_i32_1 = arith.constant 0 : i32
    return %c0_i32, %c0_i32_0 : i32, i32
  }
  func.func @transform_6(%arg0: i32) -> (i32, i32) {
    %c0_i32 = arith.constant 0 : i32
    %c0_i32_0 = arith.constant 0 : i32
    %c0_i32_1 = arith.constant 0 : i32
    return %c0_i32, %c0_i32_0 : i32, i32
  }
  func.func @transform_7(%arg0: i32) -> (i32, i32) {
    %c0_i32 = arith.constant 0 : i32
    %c0_i32_0 = arith.constant 0 : i32
    %c0_i32_1 = arith.constant 0 : i32
    return %c0_i32, %c0_i32_0 : i32, i32
  }
  func.func @transform_8(%arg0: i32) -> (i32, i32, i32) {
    %c0_i32 = arith.constant 0 : i32
    %c0_i32_0 = arith.constant 0 : i32
    %c0_i32_1 = arith.constant 0 : i32
    %c0_i32_2 = arith.constant 0 : i32
    return %c0_i32, %c0_i32_0, %c0_i32_1 : i32, i32, i32
  }
  func.func @transform_9(%arg0: i32) -> (i32, i32) {
    %c0_i32 = arith.constant 0 : i32
    %c0_i32_0 = arith.constant 0 : i32
    %c0_i32_1 = arith.constant 0 : i32
    return %c0_i32, %c0_i32_0 : i32, i32
  }
  func.func @transform_10(%arg0: i32) -> (i32, i32, i32) {
    %c0_i32 = arith.constant 0 : i32
    %c0_i32_0 = arith.constant 0 : i32
    %c0_i32_1 = arith.constant 0 : i32
    %c0_i32_2 = arith.constant 0 : i32
    return %c0_i32, %c0_i32_0, %c0_i32_1 : i32, i32, i32
  }
  func.func @transform_11(%arg0: i32) -> (i32, i32) {
    %c0_i32 = arith.constant 0 : i32
    %c0_i32_0 = arith.constant 0 : i32
    %c0_i32_1 = arith.constant 0 : i32
    return %c0_i32, %c0_i32_0 : i32, i32
  }
  func.func @transform_12(%arg0: i32) -> (i32, i32) {
    %c0_i32 = arith.constant 0 : i32
    %c0_i32_0 = arith.constant 0 : i32
    %c0_i32_1 = arith.constant 0 : i32
    return %c0_i32, %c0_i32_0 : i32, i32
  }
  func.func @transform_13(%arg0: i32) -> (i32, i32) {
    %c0_i32 = arith.constant 0 : i32
    %c0_i32_0 = arith.constant 0 : i32
    %c0_i32_1 = arith.constant 0 : i32
    return %c0_i32, %c0_i32_0 : i32, i32
  }
  func.func @transform_14(%arg0: i32) -> (i32, i32, i32) {
    %c0_i32 = arith.constant 0 : i32
    %c0_i32_0 = arith.constant 0 : i32
    %c0_i32_1 = arith.constant 0 : i32
    return %arg0, %c0_i32, %c0_i32_0 : i32, i32, i32
  }
}

</mosaic_0001>

<llo_original>
// kernel: simple_resnet_forward.2
$region0: #{simple_resnet_forward.2}
  #allocation0 [shape = 'u32[]', space=smem, size = 0x4, offset = 0x4, fixed_abs, tag = 'smem constant byte address 0x4 - core index']
  #allocation1 [shape = 'u32[144,128]{1,0:T(1,128)}', space=vmem, size = 0x12000, scoped, tag = 'internal scratch']
  %s0 = inlined_call_operand.vmem [shape: bf16[2,256,32], index: 0, kind: input, shape index: {}]
  %s1 = inlined_call_operand.vmem [shape: bf16[32,64], index: 1, kind: input, shape index: {}]
  %s2 = inlined_call_operand.vmem [shape: f32[1,64], index: 2, kind: input, shape index: {}]
  %s3 = inlined_call_operand.vmem [shape: bf16[3,192,64], index: 3, kind: input, shape index: {}]
  %s4 = inlined_call_operand.vmem [shape: f32[1,64], index: 4, kind: input, shape index: {}]
  %s5 = inlined_call_operand.vmem [shape: bf16[3,192,64], index: 5, kind: input, shape index: {}]
  %s6 = inlined_call_operand.vmem [shape: f32[1,64], index: 6, kind: input, shape index: {}]
  %s7 = inlined_call_operand.vmem [shape: bf16[3,192,64], index: 7, kind: input, shape index: {}]
  %s8 = inlined_call_operand.vmem [shape: f32[1,64], index: 8, kind: input, shape index: {}]
  %s9 = inlined_call_operand.vmem [shape: bf16[3,192,64], index: 9, kind: input, shape index: {}]
  %s10 = inlined_call_operand.vmem [shape: f32[1,64], index: 10, kind: input, shape index: {}]
  %s11 = inlined_call_operand.vmem [shape: bf16[2,16,16,64], index: 11, kind: output, shape index: {}]
  %s12 = sld [smem:[#allocation0]]
  $region77: #{simple_resnet_forward.2} parent=0
    _
  %s14 = ssub.s32 1, %s12
  %s15 = scalar_select 0, %s14, %s12
  loop: start=0, step=1, limit=4
  $region2: #{simple_resnet_forward.2} parent=0 // loop_pre_header
    _
  $region3: #{simple_resnet_forward.2} parent=0 // loop_header
    %s17 = sphi 0, %s21
    %p18 = scmp.ge.s32.totalorder %s17, 4
    %s27 = sphi 0, %s29
    %s30 = sphi 0, %s27
    %s31 = sphi 0, %s30
    %s47 = sphi 0, %s31
    %s51 = sphi 0, %s51
    %s53 = sphi 0, %s51
    %s54 = sphi 0, %s53
    %s68 = sphi 0, %s54
    %s72 = sphi 0, %s72
    %s74 = sphi 0, %s72
    %s75 = sphi 0, %s74
    %s89 = sphi 0, %s75
    %s93 = sphi 0, %s93
    %s95 = sphi 0, %s93
    %s96 = sphi 0, %s95
    %s110 = sphi 0, %s96
    %s114 = sphi 0, %s114
    %s116 = sphi 0, %s114
    %s117 = sphi 0, %s116
    %s131 = sphi 0, %s117
    %s135 = sphi 0, %s135
    %s137 = sphi 0, %s135
    %s138 = sphi 0, %s137
    %s152 = sphi 0, %s138
    %s156 = sphi 0, %s156
    %s158 = sphi 0, %s156
    %s159 = sphi 0, %s158
    %s173 = sphi 0, %s159
    %s177 = sphi 0, %s177
    %s179 = sphi 0, %s177
    %s180 = sphi 0, %s179
    %s194 = sphi 0, %s180
    %s198 = sphi 0, %s198
    %s200 = sphi 0, %s198
    %s201 = sphi 0, %s200
    %s215 = sphi 0, %s201
    %s219 = sphi 0, %s219
    %s221 = sphi 0, %s219
    %s222 = sphi 0, %s221
    %s236 = sphi 0, %s222
    %s240 = sphi 0, %s240
    %s242 = sphi 0, %s240
    %s243 = sphi 0, %s242
    %s257 = sphi 0, %s243
    %s263 = sphi 0, %s265
    %s266 = sphi 0, %s263
    %s267 = sphi 0, %s266
    %s283 = sphi 0, %s267
  $region4: #{simple_resnet_forward.2} parent=0 // loop_header_branch
    %20 = sbr.rel (%p18) target = $region8
  $region5: #{simple_resnet_forward.2} parent=0 // loop_body
    %s22 = ssub.s32 %s17, 1
    %s23 = ssub.s32 %s17, 2
    %s24 = sadd.s32 %s17, 1
    %s25 = ssub.s32 %s17, %s24
    %p26 = scmp.eq.s32.totalorder %s25, 0
    %s28 = sadd.s32 %s27, 1
    %s29 = scalar_select %p26, %s27, %s28
    %p32 = pneg %p26
    %p33 = scmp.eq.s32.totalorder %s17, 1
    %p34 = por %p32, %p33
    %p35 = scmp.ne.s32.totalorder %s27, %s30
    %p36 = scmp.eq.s32.totalorder %s17, 0
    %p37 = por %p35, %p36
    %p38 = scmp.ne.s32.totalorder %s27, %s30
    %p39 = scmp.eq.s32.totalorder %s22, 1
    %p40 = por %p38, %p39
    %p41 = scmp.ne.s32.totalorder %s30, %s31
    %p42 = scmp.eq.s32.totalorder %s22, 0
    %p43 = por %p41, %p42
    %p44 = scmp.ne.s32.totalorder %s30, %s31
    %p45 = scmp.eq.s32.totalorder %s23, 1
    %p46 = por %p44, %p45
    %p48 = scmp.ne.s32.totalorder %s31, %s47
    %p49 = scmp.eq.s32.totalorder %s23, 0
    %p50 = por %p48, %p49
    %s52 = sadd.s32 %s51, 1
    %p55 = scmp.eq.s32.totalorder %s17, 1
    %p56 = scmp.ne.s32.totalorder %s51, %s53
    %p57 = scmp.eq.s32.totalorder %s17, 0
    %p58 = por %p56, %p57
    %p59 = scmp.ne.s32.totalorder %s51, %s53
    %p60 = scmp.eq.s32.totalorder %s22, 1
    %p61 = por %p59, %p60
    %p62 = scmp.ne.s32.totalorder %s53, %s54
    %p63 = scmp.eq.s32.totalorder %s22, 0
    %p64 = por %p62, %p63
    %p65 = scmp.ne.s32.totalorder %s53, %s54
    %p66 = scmp.eq.s32.totalorder %s23, 1
    %p67 = por %p65, %p66
    %p69 = scmp.ne.s32.totalorder %s54, %s68
    %p70 = scmp.eq.s32.totalorder %s23, 0
    %p71 = por %p69, %p70
    %s73 = sadd.s32 %s72, 1
    %p76 = scmp.eq.s32.totalorder %s17, 1
    %p77 = scmp.ne.s32.totalorder %s72, %s74
    %p78 = scmp.eq.s32.totalorder %s17, 0
    %p79 = por %p77, %p78
    %p80 = scmp.ne.s32.totalorder %s72, %s74
    %p81 = scmp.eq.s32.totalorder %s22, 1
    %p82 = por %p80, %p81
    %p83 = scmp.ne.s32.totalorder %s74, %s75
    %p84 = scmp.eq.s32.totalorder %s22, 0
    %p85 = por %p83, %p84
    %p86 = scmp.ne.s32.totalorder %s74, %s75
    %p87 = scmp.eq.s32.totalorder %s23, 1
    %p88 = por %p86, %p87
    %p90 = scmp.ne.s32.totalorder %s75, %s89
    %p91 = scmp.eq.s32.totalorder %s23, 0
    %p92 = por %p90, %p91
    %s94 = sadd.s32 %s93, 1
    %p97 = scmp.eq.s32.totalorder %s17, 1
    %p98 = scmp.ne.s32.totalorder %s93, %s95
    %p99 = scmp.eq.s32.totalorder %s17, 0
    %p100 = por %p98, %p99
    %p101 = scmp.ne.s32.totalorder %s93, %s95
    %p102 = scmp.eq.s32.totalorder %s22, 1
    %p103 = por %p101, %p102
    %p104 = scmp.ne.s32.totalorder %s95, %s96
    %p105 = scmp.eq.s32.totalorder %s22, 0
    %p106 = por %p104, %p105
    %p107 = scmp.ne.s32.totalorder %s95, %s96
    %p108 = scmp.eq.s32.totalorder %s23, 1
    %p109 = por %p107, %p108
    %p111 = scmp.ne.s32.totalorder %s96, %s110
    %p112 = scmp.eq.s32.totalorder %s23, 0
    %p113 = por %p111, %p112
    %s115 = sadd.s32 %s114, 1
    %p118 = scmp.eq.s32.totalorder %s17, 1
    %p119 = scmp.ne.s32.totalorder %s114, %s116
    %p120 = scmp.eq.s32.totalorder %s17, 0
    %p121 = por %p119, %p120
    %p122 = scmp.ne.s32.totalorder %s114, %s116
    %p123 = scmp.eq.s32.totalorder %s22, 1
    %p124 = por %p122, %p123
    %p125 = scmp.ne.s32.totalorder %s116, %s117
    %p126 = scmp.eq.s32.totalorder %s22, 0
    %p127 = por %p125, %p126
    %p128 = scmp.ne.s32.totalorder %s116, %s117
    %p129 = scmp.eq.s32.totalorder %s23, 1
    %p130 = por %p128, %p129
    %p132 = scmp.ne.s32.totalorder %s117, %s131
    %p133 = scmp.eq.s32.totalorder %s23, 0
    %p134 = por %p132, %p133
    %s136 = sadd.s32 %s135, 1
    %p139 = scmp.eq.s32.totalorder %s17, 1
    %p140 = scmp.ne.s32.totalorder %s135, %s137
    %p141 = scmp.eq.s32.totalorder %s17, 0
    %p142 = por %p140, %p141
    %p143 = scmp.ne.s32.totalorder %s135, %s137
    %p144 = scmp.eq.s32.totalorder %s22, 1
    %p145 = por %p143, %p144
    %p146 = scmp.ne.s32.totalorder %s137, %s138
    %p147 = scmp.eq.s32.totalorder %s22, 0
    %p148 = por %p146, %p147
    %p149 = scmp.ne.s32.totalorder %s137, %s138
    %p150 = scmp.eq.s32.totalorder %s23, 1
    %p151 = por %p149, %p150
    %p153 = scmp.ne.s32.totalorder %s138, %s152
    %p154 = scmp.eq.s32.totalorder %s23, 0
    %p155 = por %p153, %p154
    %s157 = sadd.s32 %s156, 1
    %p160 = scmp.eq.s32.totalorder %s17, 1
    %p161 = scmp.ne.s32.totalorder %s156, %s158
    %p162 = scmp.eq.s32.totalorder %s17, 0
    %p163 = por %p161, %p162
    %p164 = scmp.ne.s32.totalorder %s156, %s158
    %p165 = scmp.eq.s32.totalorder %s22, 1
    %p166 = por %p164, %p165
    %p167 = scmp.ne.s32.totalorder %s158, %s159
    %p168 = scmp.eq.s32.totalorder %s22, 0
    %p169 = por %p167, %p168
    %p170 = scmp.ne.s32.totalorder %s158, %s159
    %p171 = scmp.eq.s32.totalorder %s23, 1
    %p172 = por %p170, %p171
    %p174 = scmp.ne.s32.totalorder %s159, %s173
    %p175 = scmp.eq.s32.totalorder %s23, 0
    %p176 = por %p174, %p175
    %s178 = sadd.s32 %s177, 1
    %p181 = scmp.eq.s32.totalorder %s17, 1
    %p182 = scmp.ne.s32.totalorder %s177, %s179
    %p183 = scmp.eq.s32.totalorder %s17, 0
    %p184 = por %p182, %p183
    %p185 = scmp.ne.s32.totalorder %s177, %s179
    %p186 = scmp.eq.s32.totalorder %s22, 1
    %p187 = por %p185, %p186
    %p188 = scmp.ne.s32.totalorder %s179, %s180
    %p189 = scmp.eq.s32.totalorder %s22, 0
    %p190 = por %p188, %p189
    %p191 = scmp.ne.s32.totalorder %s179, %s180
    %p192 = scmp.eq.s32.totalorder %s23, 1
    %p193 = por %p191, %p192
    %p195 = scmp.ne.s32.totalorder %s180, %s194
    %p196 = scmp.eq.s32.totalorder %s23, 0
    %p197 = por %p195, %p196
    %s199 = sadd.s32 %s198, 1
    %p202 = scmp.eq.s32.totalorder %s17, 1
    %p203 = scmp.ne.s32.totalorder %s198, %s200
    %p204 = scmp.eq.s32.totalorder %s17, 0
    %p205 = por %p203, %p204
    %p206 = scmp.ne.s32.totalorder %s198, %s200
    %p207 = scmp.eq.s32.totalorder %s22, 1
    %p208 = por %p206, %p207
    %p209 = scmp.ne.s32.totalorder %s200, %s201
    %p210 = scmp.eq.s32.totalorder %s22, 0
    %p211 = por %p209, %p210
    %p212 = scmp.ne.s32.totalorder %s200, %s201
    %p213 = scmp.eq.s32.totalorder %s23, 1
    %p214 = por %p212, %p213
    %p216 = scmp.ne.s32.totalorder %s201, %s215
    %p217 = scmp.eq.s32.totalorder %s23, 0
    %p218 = por %p216, %p217
    %s220 = sadd.s32 %s219, 1
    %p223 = scmp.eq.s32.totalorder %s17, 1
    %p224 = scmp.ne.s32.totalorder %s219, %s221
    %p225 = scmp.eq.s32.totalorder %s17, 0
    %p226 = por %p224, %p225
    %p227 = scmp.ne.s32.totalorder %s219, %s221
    %p228 = scmp.eq.s32.totalorder %s22, 1
    %p229 = por %p227, %p228
    %p230 = scmp.ne.s32.totalorder %s221, %s222
    %p231 = scmp.eq.s32.totalorder %s22, 0
    %p232 = por %p230, %p231
    %p233 = scmp.ne.s32.totalorder %s221, %s222
    %p234 = scmp.eq.s32.totalorder %s23, 1
    %p235 = por %p233, %p234
    %p237 = scmp.ne.s32.totalorder %s222, %s236
    %p238 = scmp.eq.s32.totalorder %s23, 0
    %p239 = por %p237, %p238
    %s241 = sadd.s32 %s240, 1
    %p244 = scmp.eq.s32.totalorder %s17, 1
    %p245 = scmp.ne.s32.totalorder %s240, %s242
    %p246 = scmp.eq.s32.totalorder %s17, 0
    %p247 = por %p245, %p246
    %p248 = scmp.ne.s32.totalorder %s240, %s242
    %p249 = scmp.eq.s32.totalorder %s22, 1
    %p250 = por %p248, %p249
    %p251 = scmp.ne.s32.totalorder %s242, %s243
    %p252 = scmp.eq.s32.totalorder %s22, 0
    %p253 = por %p251, %p252
    %p254 = scmp.ne.s32.totalorder %s242, %s243
    %p255 = scmp.eq.s32.totalorder %s23, 1
    %p256 = por %p254, %p255
    %p258 = scmp.ne.s32.totalorder %s243, %s257
    %p259 = scmp.eq.s32.totalorder %s23, 0
    %p260 = por %p258, %p259
    %s261 = ssub.s32 %s17, %s24
    %p262 = scmp.eq.s32.totalorder %s261, 0
    %s264 = sadd.s32 %s263, 1
    %s265 = scalar_select %p262, %s263, %s264
    %p268 = pneg %p262
    %p269 = scmp.eq.s32.totalorder %s17, 1
    %p270 = por %p268, %p269
    %p271 = scmp.ne.s32.totalorder %s263, %s266
    %p272 = scmp.eq.s32.totalorder %s17, 0
    %p273 = por %p271, %p272
    %p274 = scmp.ne.s32.totalorder %s263, %s266
    %p275 = scmp.eq.s32.totalorder %s22, 1
    %p276 = por %p274, %p275
    %p277 = scmp.ne.s32.totalorder %s266, %s267
    %p278 = scmp.eq.s32.totalorder %s22, 0
    %p279 = por %p277, %p278
    %p280 = scmp.ne.s32.totalorder %s266, %s267
    %p281 = scmp.eq.s32.totalorder %s23, 1
    %p282 = por %p280, %p281
    %p284 = scmp.ne.s32.totalorder %s267, %s283
    %p285 = scmp.eq.s32.totalorder %s23, 0
    %p286 = por %p284, %p285
    %p287 = scmp.le.s32.totalorder 1, %s17
    %p288 = scmp.lt.s32.totalorder %s17, 3
    %p289 = pnand %p287, %p288
    %p290 = pneg %p289
    // Predicated region
    $region9: #{simple_resnet_forward.2} parent=5 // pred_check
      _
    $region10: #{simple_resnet_forward.2} parent=5 // pred_check_branch
      %292 = sbr.rel (%p289) target = $region12
    $region11: #{simple_resnet_forward.2} parent=5 // pred_region
      %s293 = ssub.s32 %s17, 1
      // Predicated region
      $region13: #{simple_resnet_forward.2} parent=11 // pred_check
        %p294 = pneg %p64
      $region14: #{simple_resnet_forward.2} parent=11 // pred_check_branch
        %296 = sbr.rel (%p294) target = $region16
      $region15: #{simple_resnet_forward.2} parent=11 // pred_region
        _
      $region16: #{simple_resnet_forward.2} parent=11 // pred_fallthru
        _
      // Predicated region
      $region17: #{simple_resnet_forward.2} parent=11 // pred_check
        %p297 = pneg %p85
      $region18: #{simple_resnet_forward.2} parent=11 // pred_check_branch
        %299 = sbr.rel (%p297) target = $region20
      $region19: #{simple_resnet_forward.2} parent=11 // pred_region
        _
      $region20: #{simple_resnet_forward.2} parent=11 // pred_fallthru
        _
      // Predicated region
      $region21: #{simple_resnet_forward.2} parent=11 // pred_check
        %p300 = pneg %p106
      $region22: #{simple_resnet_forward.2} parent=11 // pred_check_branch
        %302 = sbr.rel (%p300) target = $region24
      $region23: #{simple_resnet_forward.2} parent=11 // pred_region
        _
      $region24: #{simple_resnet_forward.2} parent=11 // pred_fallthru
        _
      // Predicated region
      $region25: #{simple_resnet_forward.2} parent=11 // pred_check
        %p303 = pneg %p127
      $region26: #{simple_resnet_forward.2} parent=11 // pred_check_branch
        %305 = sbr.rel (%p303) target = $region28
      $region27: #{simple_resnet_forward.2} parent=11 // pred_region
        _
      $region28: #{simple_resnet_forward.2} parent=11 // pred_fallthru
        _
      // Predicated region
      $region29: #{simple_resnet_forward.2} parent=11 // pred_check
        %p306 = pneg %p148
      $region30: #{simple_resnet_forward.2} parent=11 // pred_check_branch
        %308 = sbr.rel (%p306) target = $region32
      $region31: #{simple_resnet_forward.2} parent=11 // pred_region
        _
      $region32: #{simple_resnet_forward.2} parent=11 // pred_fallthru
        _
      // Predicated region
      $region33: #{simple_resnet_forward.2} parent=11 // pred_check
        %p309 = pneg %p169
      $region34: #{simple_resnet_forward.2} parent=11 // pred_check_branch
        %311 = sbr.rel (%p309) target = $region36
      $region35: #{simple_resnet_forward.2} parent=11 // pred_region
        _
      $region36: #{simple_resnet_forward.2} parent=11 // pred_fallthru
        _
      // Predicated region
      $region37: #{simple_resnet_forward.2} parent=11 // pred_check
        %p312 = pneg %p190
      $region38: #{simple_resnet_forward.2} parent=11 // pred_check_branch
        %314 = sbr.rel (%p312) target = $region40
      $region39: #{simple_resnet_forward.2} parent=11 // pred_region
        _
      $region40: #{simple_resnet_forward.2} parent=11 // pred_fallthru
        _
      // Predicated region
      $region41: #{simple_resnet_forward.2} parent=11 // pred_check
        %p315 = pneg %p211
      $region42: #{simple_resnet_forward.2} parent=11 // pred_check_branch
        %317 = sbr.rel (%p315) target = $region44
      $region43: #{simple_resnet_forward.2} parent=11 // pred_region
        _
      $region44: #{simple_resnet_forward.2} parent=11 // pred_fallthru
        _
      // Predicated region
      $region45: #{simple_resnet_forward.2} parent=11 // pred_check
        %p318 = pneg %p232
      $region46: #{simple_resnet_forward.2} parent=11 // pred_check_branch
        %320 = sbr.rel (%p318) target = $region48
      $region47: #{simple_resnet_forward.2} parent=11 // pred_region
        _
      $region48: #{simple_resnet_forward.2} parent=11 // pred_fallthru
        _
      // Predicated region
      $region49: #{simple_resnet_forward.2} parent=11 // pred_check
        %p321 = pneg %p253
      $region50: #{simple_resnet_forward.2} parent=11 // pred_check_branch
        %323 = sbr.rel (%p321) target = $region52
      $region51: #{simple_resnet_forward.2} parent=11 // pred_region
        _
      $region52: #{simple_resnet_forward.2} parent=11 // pred_fallthru
        _
    $region12: #{simple_resnet_forward.2} parent=5 // pred_fallthru
      _
    %p324 = scmp.lt.s32.totalorder %s17, 2
    // Predicated region
    $region53: #{simple_resnet_forward.2} parent=5 // pred_check
      %p325 = pneg %p324
    $region54: #{simple_resnet_forward.2} parent=5 // pred_check_branch
      %327 = sbr.rel (%p325) target = $region56
    $region55: #{simple_resnet_forward.2} parent=5 // pred_region
      // Predicated region
      $region57: #{simple_resnet_forward.2} parent=55 // pred_check
        %p328 = pneg %p37
      $region58: #{simple_resnet_forward.2} parent=55 // pred_check_branch
        %330 = sbr.rel (%p328) target = $region60
      $region59: #{simple_resnet_forward.2} parent=55 // pred_region
        %p331 = scmp.lt.s32.totalorder %s17, 1
        %s332 = scalar_select %p331, %s17, 1
        %s333 = smul.addr %s332, 32
        %s334 = smul.addr %s333, 4
        %s335 = scalar_lea.vmem %s0, %s334
      $region60: #{simple_resnet_forward.2} parent=55 // pred_fallthru
        _
    $region56: #{simple_resnet_forward.2} parent=5 // pred_fallthru
      _
    %p336 = scmp.le.s32.totalorder 1, %s17
    %p337 = scmp.lt.s32.totalorder %s17, 3
    %p338 = pnand %p336, %p337
    %p339 = pneg %p338
    // Predicated region
    $region61: #{simple_resnet_forward.2} parent=5 // pred_check
      _
    $region62: #{simple_resnet_forward.2} parent=5 // pred_check_branch
      %341 = sbr.rel (%p338) target = $region64
    $region63: #{simple_resnet_forward.2} parent=5 // pred_region
      %s342 = ssub.s32 %s17, 1
      %p343 = scmp.lt.s32.totalorder %s22, 1
      %s344 = scalar_select %p343, %s22, 1
      %s345 = smul.addr %s344, 32
      %s346 = smul.addr %s345, 4
      %s347 = scalar_lea.vmem %s0, %s346
      %p348 = pneg %p43
      %p349 = pneg %p40
      %p350 = pneg %p64
      %p351 = pneg %p61
      %p352 = pneg %p85
      %p353 = pneg %p82
      %p354 = pneg %p106
      %p355 = pneg %p103
      %p356 = pneg %p127
      %p357 = pneg %p124
      %p358 = pneg %p148
      %p359 = pneg %p145
      %p360 = pneg %p169
      %p361 = pneg %p166
      %p362 = pneg %p190
      %p363 = pneg %p187
      %p364 = pneg %p211
      %p365 = pneg %p208
      %p366 = pneg %p232
      %p367 = pneg %p229
      %p368 = pneg %p253
      %p369 = pneg %p250
      %p370 = pneg %p279
      %p371 = pneg %p276
      %p372 = scmp.lt.s32.totalorder %s22, 1
      %s373 = scalar_select %p372, %s22, 1
      %s374 = smul.addr %s373, 32
      %s375 = smul.addr %s374, 4
      %s376 = scalar_lea.vmem %s11, %s375
      %p377 = scmp.lt.s32.totalorder %s22, 1
      %s378 = scalar_select %p377, %s22, 1
      %s379 = smul.addr %s378, 32
      %s380 = smul.addr %s379, 4
      %s381 = scalar_lea.vmem %s0, %s380
      %p382 = scmp.lt.s32.totalorder %s22, 1
      %s383 = scalar_select %p382, %s22, 1
      %s384 = smul.addr %s383, 32
      %s385 = smul.addr %s384, 4
      %s386 = scalar_lea.vmem %s11, %s385
      %v388 = vld [vmem:[%s381] sm:$0xf]
      %v389 = vld [vmem:[%s381 + $0x4] sm:$0xf]
      %v390 = vld [vmem:[%s381 + $0x8] sm:$0xf]
      %v391 = vld [vmem:[%s381 + $0xc] sm:$0xf]
      %v392 = vld [vmem:[%s381 + $0x10] sm:$0xf]
      %v393 = vld [vmem:[%s381 + $0x14] sm:$0xf]
      %v394 = vld [vmem:[%s381 + $0x18] sm:$0xf]
      %v395 = vld [vmem:[%s381 + $0x1c] sm:$0xf]
      %v396 = vld [vmem:[%s381 + $0x20] sm:$0xf]
      %v397 = vld [vmem:[%s381 + $0x24] sm:$0xf]
      %v398 = vld [vmem:[%s381 + $0x28] sm:$0xf]
      %v399 = vld [vmem:[%s381 + $0x2c] sm:$0xf]
      %v400 = vld [vmem:[%s381 + $0x30] sm:$0xf]
      %v401 = vld [vmem:[%s381 + $0x34] sm:$0xf]
      %v402 = vld [vmem:[%s381 + $0x38] sm:$0xf]
      %v403 = vld [vmem:[%s381 + $0x3c] sm:$0xf]
      %v404 = vld [vmem:[%s381 + $0x40] sm:$0xf]
      %v405 = vld [vmem:[%s381 + $0x44] sm:$0xf]
      %v406 = vld [vmem:[%s381 + $0x48] sm:$0xf]
      %v407 = vld [vmem:[%s381 + $0x4c] sm:$0xf]
      %v408 = vld [vmem:[%s381 + $0x50] sm:$0xf]
      %v409 = vld [vmem:[%s381 + $0x54] sm:$0xf]
      %v410 = vld [vmem:[%s381 + $0x58] sm:$0xf]
      %v411 = vld [vmem:[%s381 + $0x5c] sm:$0xf]
      %v412 = vld [vmem:[%s381 + $0x60] sm:$0xf]
      %v413 = vld [vmem:[%s381 + $0x64] sm:$0xf]
      %v414 = vld [vmem:[%s381 + $0x68] sm:$0xf]
      %v415 = vld [vmem:[%s381 + $0x6c] sm:$0xf]
      %v416 = vld [vmem:[%s381 + $0x70] sm:$0xf]
      %v417 = vld [vmem:[%s381 + $0x74] sm:$0xf]
      %v418 = vld [vmem:[%s381 + $0x78] sm:$0xf]
      %v419 = vld [vmem:[%s381 + $0x7c] sm:$0xf]
      %v420 = vld [vmem:[%s1] sm:$0xf]
      %v421 = vld [vmem:[%s1 + $0x4] sm:$0xf]
      %v422 = vld [vmem:[%s1 + $0x8] sm:$0xf]
      %v423 = vld [vmem:[%s1 + $0xc] sm:$0xf]
      %v424 = vld [vmem:[%s2] sm:$0x1]
      %v426 = vlaneseq
      %v427 = vshrl.u32 %v426, 7
      %v428 = vsub.s32 0, %v427
      %v429 = vrot.slane %v424, %v428
      %v463 = vunpack.c.l.b16 %v388
      %v464 = vunpack.c.l.b16 %v389
      %v465 = vunpack.c.l.b16 %v390
      %v466 = vunpack.c.l.b16 %v391
      %v467 = vunpack.c.l.b16 %v392
      %v468 = vunpack.c.l.b16 %v393
      %v469 = vunpack.c.l.b16 %v394
      %v470 = vunpack.c.l.b16 %v395
      %v471 = vunpack.c.l.b16 %v396
      %v472 = vunpack.c.l.b16 %v397
      %v473 = vunpack.c.l.b16 %v398
      %v474 = vunpack.c.l.b16 %v399
      %v475 = vunpack.c.l.b16 %v400
      %v476 = vunpack.c.l.b16 %v401
      %v477 = vunpack.c.l.b16 %v402
      %v478 = vunpack.c.l.b16 %v403
      %v479 = vunpack.c.l.b16 %v404
      %v480 = vunpack.c.l.b16 %v405
      %v481 = vunpack.c.l.b16 %v406
      %v482 = vunpack.c.l.b16 %v407
      %v483 = vunpack.c.l.b16 %v408
      %v484 = vunpack.c.l.b16 %v409
      %v485 = vunpack.c.l.b16 %v410
      %v486 = vunpack.c.l.b16 %v411
      %v487 = vunpack.c.l.b16 %v412
      %v488 = vunpack.c.l.b16 %v413
      %v489 = vunpack.c.l.b16 %v414
      %v490 = vunpack.c.l.b16 %v415
      %v491 = vunpack.c.l.b16 %v416
      %v492 = vunpack.c.l.b16 %v417
      %v493 = vunpack.c.l.b16 %v418
      %v494 = vunpack.c.l.b16 %v419
      %v495 = vpack.c.b16 %v464, %v463
      %v496 = vpack.c.b16 %v466, %v465
      %v497 = vpack.c.b16 %v468, %v467
      %v498 = vpack.c.b16 %v470, %v469
      %v499 = vpack.c.b16 %v472, %v471
      %v500 = vpack.c.b16 %v474, %v473
      %v501 = vpack.c.b16 %v476, %v475
      %v502 = vpack.c.b16 %v478, %v477
      %v503 = vpack.c.b16 %v480, %v479
      %v504 = vpack.c.b16 %v482, %v481
      %v505 = vpack.c.b16 %v484, %v483
      %v506 = vpack.c.b16 %v486, %v485
      %v507 = vpack.c.b16 %v488, %v487
      %v508 = vpack.c.b16 %v490, %v489
      %v509 = vpack.c.b16 %v492, %v491
      %v510 = vpack.c.b16 %v494, %v493
      %v515 = vunpack.c.l.b16 %v420
      %v516 = vunpack.c.l.b16 %v421
      %v517 = vunpack.c.l.b16 %v422
      %v518 = vunpack.c.l.b16 %v423
      %v519 = vpack.c.b16 %v516, %v515
      %v520 = vpack.c.b16 %v518, %v517
      %vm523 = vcmask 261120
      %v525 = vsel %vm523, %v495, 0
      %v528 = vsel %vm523, %v496, 0
      %v531 = vsel %vm523, %v497, 0
      %v534 = vsel %vm523, %v498, 0
      %v537 = vsel %vm523, %v499, 0
      %v540 = vsel %vm523, %v500, 0
      %v543 = vsel %vm523, %v501, 0
      %v546 = vsel %vm523, %v502, 0
      %v549 = vsel %vm523, %v503, 0
      %v552 = vsel %vm523, %v504, 0
      %v555 = vsel %vm523, %v505, 0
      %v558 = vsel %vm523, %v506, 0
      %v561 = vsel %vm523, %v507, 0
      %v564 = vsel %vm523, %v508, 0
      %v567 = vsel %vm523, %v509, 0
      %v570 = vsel %vm523, %v510, 0
      %572 = vmatprep.subr.bf16.mxu0 0
      %573 = vmatpush1.bf16.msra.mxu0 %v519
      %574 = vmatprep.subr.bf16.mxu0 0
      %575 = vmatpush1.bf16.msra.mxu0 %v520
      %576 = vmatprep.subr.bf16.mxu0 0
      %577 = vmatpush1.bf16.msra.mxu0 0
      %578 = vmatprep.subr.bf16.mxu0 0
      %579 = vmatpush1.bf16.msra.mxu0 0
      %580 = vmatprep.subr.bf16.mxu0 0
      %581 = vmatpush1.bf16.msra.mxu0 0
      %582 = vmatprep.subr.bf16.mxu0 0
      %583 = vmatpush1.bf16.msra.mxu0 0
      %584 = vmatprep.subr.bf16.mxu0 0
      %585 = vmatpush1.bf16.msra.mxu0 0
      %586 = vmatprep.subr.bf16.mxu0 0
      %587 = vmatpush1.bf16.msra.mxu0 0
      %588 = vmatprep.subr.bf16.mxu0 0
      %589 = vmatpush1.bf16.msra.mxu0 0
      %590 = vmatprep.subr.bf16.mxu0 0
      %591 = vmatpush1.bf16.msra.mxu0 0
      %592 = vmatprep.subr.bf16.mxu0 0
      %593 = vmatpush1.bf16.msra.mxu0 0
      %594 = vmatprep.subr.bf16.mxu0 0
      %595 = vmatpush1.bf16.msra.mxu0 0
      %596 = vmatprep.subr.bf16.mxu0 0
      %597 = vmatpush1.bf16.msra.mxu0 0
      %598 = vmatprep.subr.bf16.mxu0 0
      %599 = vmatpush1.bf16.msra.mxu0 0
      %600 = vmatprep.subr.bf16.mxu0 0
      %601 = vmatpush1.bf16.msra.mxu0 0
      %602 = vmatprep.subr.bf16.mxu0 0
      %603 = vmatpush1.bf16.msra.mxu0 0
      %604 = vmatprep.mubr.bf16.mxu0 0
      %605 = vmatmul.mubr.bf16.gmra.mrb[0].mxu0 %v525
      %v606 = vpop.f32.mrb[0].mxu0
      %v607 = vadd.f32 %v429, %v606
      %v608 = vpop.f32.mrb[0].mxu0
      %v609 = vpop.f32.mrb[0].mxu0
      %v610 = vadd.f32 %v429, %v609
      %v611 = vpop.f32.mrb[0].mxu0
      %612 = vmatprep.mubr.bf16.mxu0 0
      %613 = vmatmul.mubr.bf16.gmra.mrb[0].mxu0 %v528
      %v614 = vpop.f32.mrb[0].mxu0
      %v615 = vadd.f32 %v429, %v614
      %v616 = vpop.f32.mrb[0].mxu0
      %v617 = vpop.f32.mrb[0].mxu0
      %v618 = vadd.f32 %v429, %v617
      %v619 = vpop.f32.mrb[0].mxu0
      %620 = vmatprep.mubr.bf16.mxu0 0
      %621 = vmatmul.mubr.bf16.gmra.mrb[0].mxu0 %v531
      %v622 = vpop.f32.mrb[0].mxu0
      %v623 = vadd.f32 %v429, %v622
      %v624 = vpop.f32.mrb[0].mxu0
      %v625 = vpop.f32.mrb[0].mxu0
      %v626 = vadd.f32 %v429, %v625
      %v627 = vpop.f32.mrb[0].mxu0
      %628 = vmatprep.mubr.bf16.mxu0 0
      %629 = vmatmul.mubr.bf16.gmra.mrb[0].mxu0 %v534
      %v630 = vpop.f32.mrb[0].mxu0
      %v631 = vadd.f32 %v429, %v630
      %v632 = vpop.f32.mrb[0].mxu0
      %v633 = vpop.f32.mrb[0].mxu0
      %v634 = vadd.f32 %v429, %v633
      %v635 = vpop.f32.mrb[0].mxu0
      %636 = vmatprep.mubr.bf16.mxu0 0
      %637 = vmatmul.mubr.bf16.gmra.mrb[0].mxu0 %v537
      %v638 = vpop.f32.mrb[0].mxu0
      %v639 = vadd.f32 %v429, %v638
      %v640 = vpop.f32.mrb[0].mxu0
      %v641 = vpop.f32.mrb[0].mxu0
      %v642 = vadd.f32 %v429, %v641
      %v643 = vpop.f32.mrb[0].mxu0
      %644 = vmatprep.mubr.bf16.mxu0 0
      %645 = vmatmul.mubr.bf16.gmra.mrb[0].mxu0 %v540
      %v646 = vpop.f32.mrb[0].mxu0
      %v647 = vadd.f32 %v429, %v646
      %v648 = vpop.f32.mrb[0].mxu0
      %v649 = vpop.f32.mrb[0].mxu0
      %v650 = vadd.f32 %v429, %v649
      %v651 = vpop.f32.mrb[0].mxu0
      %652 = vmatprep.mubr.bf16.mxu0 0
      %653 = vmatmul.mubr.bf16.gmra.mrb[0].mxu0 %v543
      %v654 = vpop.f32.mrb[0].mxu0
      %v655 = vadd.f32 %v429, %v654
      %v656 = vpop.f32.mrb[0].mxu0
      %v657 = vpop.f32.mrb[0].mxu0
      %v658 = vadd.f32 %v429, %v657
      %v659 = vpop.f32.mrb[0].mxu0
      %660 = vmatprep.mubr.bf16.mxu0 0
      %661 = vmatmul.mubr.bf16.gmra.mrb[0].mxu0 %v546
      %v662 = vpop.f32.mrb[0].mxu0
      %v663 = vadd.f32 %v429, %v662
      %v664 = vpop.f32.mrb[0].mxu0
      %v665 = vpop.f32.mrb[0].mxu0
      %v666 = vadd.f32 %v429, %v665
      %v667 = vpop.f32.mrb[0].mxu0
      %668 = vmatprep.mubr.bf16.mxu0 0
      %669 = vmatmul.mubr.bf16.gmra.mrb[0].mxu0 %v549
      %v670 = vpop.f32.mrb[0].mxu0
      %v671 = vadd.f32 %v429, %v670
      %v672 = vpop.f32.mrb[0].mxu0
      %v673 = vpop.f32.mrb[0].mxu0
      %v674 = vadd.f32 %v429, %v673
      %v675 = vpop.f32.mrb[0].mxu0
      %676 = vmatprep.mubr.bf16.mxu0 0
      %677 = vmatmul.mubr.bf16.gmra.mrb[0].mxu0 %v552
      %v678 = vpop.f32.mrb[0].mxu0
      %v679 = vadd.f32 %v429, %v678
      %v680 = vpop.f32.mrb[0].mxu0
      %v681 = vpop.f32.mrb[0].mxu0
      %v682 = vadd.f32 %v429, %v681
      %v683 = vpop.f32.mrb[0].mxu0
      %684 = vmatprep.mubr.bf16.mxu0 0
      %685 = vmatmul.mubr.bf16.gmra.mrb[0].mxu0 %v555
      %v686 = vpop.f32.mrb[0].mxu0
      %v687 = vadd.f32 %v429, %v686
      %v688 = vpop.f32.mrb[0].mxu0
      %v689 = vpop.f32.mrb[0].mxu0
      %v690 = vadd.f32 %v429, %v689
      %v691 = vpop.f32.mrb[0].mxu0
      %692 = vmatprep.mubr.bf16.mxu0 0
      %693 = vmatmul.mubr.bf16.gmra.mrb[0].mxu0 %v558
      %v694 = vpop.f32.mrb[0].mxu0
      %v695 = vadd.f32 %v429, %v694
      %v696 = vpop.f32.mrb[0].mxu0
      %v697 = vpop.f32.mrb[0].mxu0
      %v698 = vadd.f32 %v429, %v697
      %v699 = vpop.f32.mrb[0].mxu0
      %700 = vmatprep.mubr.bf16.mxu0 0
      %701 = vmatmul.mubr.bf16.gmra.mrb[0].mxu0 %v561
      %v702 = vpop.f32.mrb[0].mxu0
      %v703 = vadd.f32 %v429, %v702
      %v704 = vpop.f32.mrb[0].mxu0
      %v705 = vpop.f32.mrb[0].mxu0
      %v706 = vadd.f32 %v429, %v705
      %v707 = vpop.f32.mrb[0].mxu0
      %708 = vmatprep.mubr.bf16.mxu0 0
      %709 = vmatmul.mubr.bf16.gmra.mrb[0].mxu0 %v564
      %v710 = vpop.f32.mrb[0].mxu0
      %v711 = vadd.f32 %v429, %v710
      %v712 = vpop.f32.mrb[0].mxu0
      %v713 = vpop.f32.mrb[0].mxu0
      %v714 = vadd.f32 %v429, %v713
      %v715 = vpop.f32.mrb[0].mxu0
      %716 = vmatprep.mubr.bf16.mxu0 0
      %717 = vmatmul.mubr.bf16.gmra.mrb[0].mxu0 %v567
      %v718 = vpop.f32.mrb[0].mxu0
      %v719 = vadd.f32 %v429, %v718
      %v720 = vpop.f32.mrb[0].mxu0
      %v721 = vpop.f32.mrb[0].mxu0
      %v722 = vadd.f32 %v429, %v721
      %v723 = vpop.f32.mrb[0].mxu0
      %724 = vmatprep.mubr.bf16.mxu0 0
      %725 = vmatmul.mubr.bf16.gmra.mrb[0].mxu0 %v570
      %v726 = vpop.f32.mrb[0].mxu0
      %v727 = vadd.f32 %v429, %v726
      %v728 = vpop.f32.mrb[0].mxu0
      %v729 = vpop.f32.mrb[0].mxu0
      %v730 = vadd.f32 %v429, %v729
      %v731 = vpop.f32.mrb[0].mxu0
      %732 = vdwg.mxu0
      %v733 = vmax.f32 %v607, 0.0
      %v734 = vmax.f32 %v610, 0.0
      %v735 = vmax.f32 %v615, 0.0
      %v736 = vmax.f32 %v618, 0.0
      %v737 = vmax.f32 %v623, 0.0
      %v738 = vmax.f32 %v626, 0.0
      %v739 = vmax.f32 %v631, 0.0
      %v740 = vmax.f32 %v634, 0.0
      %v741 = vmax.f32 %v639, 0.0
      %v742 = vmax.f32 %v642, 0.0
      %v743 = vmax.f32 %v647, 0.0
      %v744 = vmax.f32 %v650, 0.0
      %v745 = vmax.f32 %v655, 0.0
      %v746 = vmax.f32 %v658, 0.0
      %v747 = vmax.f32 %v663, 0.0
      %v748 = vmax.f32 %v666, 0.0
      %v749 = vmax.f32 %v671, 0.0
      %v750 = vmax.f32 %v674, 0.0
      %v751 = vmax.f32 %v679, 0.0
      %v752 = vmax.f32 %v682, 0.0
      %v753 = vmax.f32 %v687, 0.0
      %v754 = vmax.f32 %v690, 0.0
      %v755 = vmax.f32 %v695, 0.0
      %v756 = vmax.f32 %v698, 0.0
      %v757 = vmax.f32 %v703, 0.0
      %v758 = vmax.f32 %v706, 0.0
      %v759 = vmax.f32 %v711, 0.0
      %v760 = vmax.f32 %v714, 0.0
      %v761 = vmax.f32 %v719, 0.0
      %v762 = vmax.f32 %v722, 0.0
      %v763 = vmax.f32 %v727, 0.0
      %v764 = vmax.f32 %v730, 0.0
      %v765 = vlaneseq
      %v766 = vshrl.u32 %v765, 7
      %v767 = vadd.s32 %v766, 8
      %v768 = vadd.s32 %v766, 16
      %v769 = vadd.s32 %v766, 24
      %v770 = vadd.s32 %v766, 32
      %v771 = vadd.s32 %v766, 40
      %v772 = vadd.s32 %v766, 48
      %v773 = vadd.s32 %v766, 56
      %v774 = vadd.s32 %v766, 64
      %v775 = vadd.s32 %v766, 72
      %v776 = vadd.s32 %v766, 80
      %v777 = vadd.s32 %v766, 88
      %v778 = vadd.s32 %v766, 96
      %v779 = vadd.s32 %v766, 104
      %v780 = vadd.s32 %v766, 112
      %v781 = vadd.s32 %v766, 120
      %v782 = vadd.s32 %v766, 128
      %v783 = vadd.s32 %v766, 136
      %v784 = vadd.s32 %v766, 144
      %v785 = vadd.s32 %v766, 152
      %v786 = vadd.s32 %v766, 160
      %v787 = vadd.s32 %v766, 168
      %v788 = vadd.s32 %v766, 176
      %v789 = vadd.s32 %v766, 184
      %v790 = vadd.s32 %v766, 192
      %v791 = vadd.s32 %v766, 200
      %v792 = vadd.s32 %v766, 208
      %v793 = vadd.s32 %v766, 216
      %v794 = vadd.s32 %v766, 224
      %v795 = vadd.s32 %v766, 232
      %v796 = vadd.s32 %v766, 240
      %v797 = vadd.s32 %v766, 248
      %vm798 = vcmp.lt.s32.totalorder %v766, 0
      %v799 = vsub.s32 0, %v766
      %v800 = vsel %vm798, %v799, %v766
      %v801 = vshrl.u32 %v800, 4
      %v802 = vand.u32 %v800, 15
      %v803 = vsub.s32 0, %v802
      %v804 = vsel %vm798, %v803, %v802
      %vm805 = vcmp.lt.s32.totalorder %v767, 0
      %v806 = vsub.s32 0, %v767
      %v807 = vsel %vm805, %v806, %v767
      %v808 = vshrl.u32 %v807, 4
      %v809 = vand.u32 %v807, 15
      %v810 = vsub.s32 0, %v809
      %v811 = vsel %vm805, %v810, %v809
      %vm812 = vcmp.lt.s32.totalorder %v768, 0
      %v813 = vsub.s32 0, %v768
      %v814 = vsel %vm812, %v813, %v768
      %v815 = vshrl.u32 %v814, 4
      %v816 = vand.u32 %v814, 15
      %v817 = vsub.s32 0, %v816
      %v818 = vsel %vm812, %v817, %v816
      %vm819 = vcmp.lt.s32.totalorder %v769, 0
      %v820 = vsub.s32 0, %v769
      %v821 = vsel %vm819, %v820, %v769
      %v822 = vshrl.u32 %v821, 4
      %v823 = vand.u32 %v821, 15
      %v824 = vsub.s32 0, %v823
      %v825 = vsel %vm819, %v824, %v823
      %vm826 = vcmp.lt.s32.totalorder %v770, 0
      %v827 = vsub.s32 0, %v770
      %v828 = vsel %vm826, %v827, %v770
      %v829 = vshrl.u32 %v828, 4
      %v830 = vand.u32 %v828, 15
      %v831 = vsub.s32 0, %v830
      %v832 = vsel %vm826, %v831, %v830
      %vm833 = vcmp.lt.s32.totalorder %v771, 0
      %v834 = vsub.s32 0, %v771
      %v835 = vsel %vm833, %v834, %v771
      %v836 = vshrl.u32 %v835, 4
      %v837 = vand.u32 %v835, 15
      %v838 = vsub.s32 0, %v837
      %v839 = vsel %vm833, %v838, %v837
      %vm840 = vcmp.lt.s32.totalorder %v772, 0
      %v841 = vsub.s32 0, %v772
      %v842 = vsel %vm840, %v841, %v772
      %v843 = vshrl.u32 %v842, 4
      %v844 = vand.u32 %v842, 15
      %v845 = vsub.s32 0, %v844
      %v846 = vsel %vm840, %v845, %v844
      %vm847 = vcmp.lt.s32.totalorder %v773, 0
      %v848 = vsub.s32 0, %v773
      %v849 = vsel %vm847, %v848, %v773
      %v850 = vshrl.u32 %v849, 4
      %v851 = vand.u32 %v849, 15
      %v852 = vsub.s32 0, %v851
      %v853 = vsel %vm847, %v852, %v851
      %vm854 = vcmp.lt.s32.totalorder %v774, 0
      %v855 = vsub.s32 0, %v774
      %v856 = vsel %vm854, %v855, %v774
      %v857 = vshrl.u32 %v856, 4
      %v858 = vand.u32 %v856, 15
      %v859 = vsub.s32 0, %v858
      %v860 = vsel %vm854, %v859, %v858
      %vm861 = vcmp.lt.s32.totalorder %v775, 0
      %v862 = vsub.s32 0, %v775
      %v863 = vsel %vm861, %v862, %v775
      %v864 = vshrl.u32 %v863, 4
      %v865 = vand.u32 %v863, 15
      %v866 = vsub.s32 0, %v865
      %v867 = vsel %vm861, %v866, %v865
      %vm868 = vcmp.lt.s32.totalorder %v776, 0
      %v869 = vsub.s32 0, %v776
      %v870 = vsel %vm868, %v869, %v776
      %v871 = vshrl.u32 %v870, 4
      %v872 = vand.u32 %v870, 15
      %v873 = vsub.s32 0, %v872
      %v874 = vsel %vm868, %v873, %v872
      %vm875 = vcmp.lt.s32.totalorder %v777, 0
      %v876 = vsub.s32 0, %v777
      %v877 = vsel %vm875, %v876, %v777
      %v878 = vshrl.u32 %v877, 4
      %v879 = vand.u32 %v877, 15
      %v880 = vsub.s32 0, %v879
      %v881 = vsel %vm875, %v880, %v879
      %vm882 = vcmp.lt.s32.totalorder %v778, 0
      %v883 = vsub.s32 0, %v778
      %v884 = vsel %vm882, %v883, %v778
      %v885 = vshrl.u32 %v884, 4
      %v886 = vand.u32 %v884, 15
      %v887 = vsub.s32 0, %v886
      %v888 = vsel %vm882, %v887, %v886
      %vm889 = vcmp.lt.s32.totalorder %v779, 0
      %v890 = vsub.s32 0, %v779
      %v891 = vsel %vm889, %v890, %v779
      %v892 = vshrl.u32 %v891, 4
      %v893 = vand.u32 %v891, 15
      %v894 = vsub.s32 0, %v893
      %v895 = vsel %vm889, %v894, %v893
      %vm896 = vcmp.lt.s32.totalorder %v780, 0
      %v897 = vsub.s32 0, %v780
      %v898 = vsel %vm896, %v897, %v780
      %v899 = vshrl.u32 %v898, 4
      %v900 = vand.u32 %v898, 15
      %v901 = vsub.s32 0, %v900
      %v902 = vsel %vm896, %v901, %v900
      %vm903 = vcmp.lt.s32.totalorder %v781, 0
      %v904 = vsub.s32 0, %v781
      %v905 = vsel %vm903, %v904, %v781
      %v906 = vshrl.u32 %v905, 4
      %v907 = vand.u32 %v905, 15
      %v908 = vsub.s32 0, %v907
      %v909 = vsel %vm903, %v908, %v907
      %vm910 = vcmp.lt.s32.totalorder %v782, 0
      %v911 = vsub.s32 0, %v782
      %v912 = vsel %vm910, %v911, %v782
      %v913 = vshrl.u32 %v912, 4
      %v914 = vand.u32 %v912, 15
      %v915 = vsub.s32 0, %v914
      %v916 = vsel %vm910, %v915, %v914
      %vm917 = vcmp.lt.s32.totalorder %v783, 0
      %v918 = vsub.s32 0, %v783
      %v919 = vsel %vm917, %v918, %v783
      %v920 = vshrl.u32 %v919, 4
      %v921 = vand.u32 %v919, 15
      %v922 = vsub.s32 0, %v921
      %v923 = vsel %vm917, %v922, %v921
      %vm924 = vcmp.lt.s32.totalorder %v784, 0
      %v925 = vsub.s32 0, %v784
      %v926 = vsel %vm924, %v925, %v784
      %v927 = vshrl.u32 %v926, 4
      %v928 = vand.u32 %v926, 15
      %v929 = vsub.s32 0, %v928
      %v930 = vsel %vm924, %v929, %v928
      %vm931 = vcmp.lt.s32.totalorder %v785, 0
      %v932 = vsub.s32 0, %v785
      %v933 = vsel %vm931, %v932, %v785
      %v934 = vshrl.u32 %v933, 4
      %v935 = vand.u32 %v933, 15
      %v936 = vsub.s32 0, %v935
      %v937 = vsel %vm931, %v936, %v935
      %vm938 = vcmp.lt.s32.totalorder %v786, 0
      %v939 = vsub.s32 0, %v786
      %v940 = vsel %vm938, %v939, %v786
      %v941 = vshrl.u32 %v940, 4
      %v942 = vand.u32 %v940, 15
      %v943 = vsub.s32 0, %v942
      %v944 = vsel %vm938, %v943, %v942
      %vm945 = vcmp.lt.s32.totalorder %v787, 0
      %v946 = vsub.s32 0, %v787
      %v947 = vsel %vm945, %v946, %v787
      %v948 = vshrl.u32 %v947, 4
      %v949 = vand.u32 %v947, 15
      %v950 = vsub.s32 0, %v949
      %v951 = vsel %vm945, %v950, %v949
      %vm952 = vcmp.lt.s32.totalorder %v788, 0
      %v953 = vsub.s32 0, %v788
      %v954 = vsel %vm952, %v953, %v788
      %v955 = vshrl.u32 %v954, 4
      %v956 = vand.u32 %v954, 15
      %v957 = vsub.s32 0, %v956
      %v958 = vsel %vm952, %v957, %v956
      %vm959 = vcmp.lt.s32.totalorder %v789, 0
      %v960 = vsub.s32 0, %v789
      %v961 = vsel %vm959, %v960, %v789
      %v962 = vshrl.u32 %v961, 4
      %v963 = vand.u32 %v961, 15
      %v964 = vsub.s32 0, %v963
      %v965 = vsel %vm959, %v964, %v963
      %vm966 = vcmp.lt.s32.totalorder %v790, 0
      %v967 = vsub.s32 0, %v790
      %v968 = vsel %vm966, %v967, %v790
      %v969 = vshrl.u32 %v968, 4
      %v970 = vand.u32 %v968, 15
      %v971 = vsub.s32 0, %v970
      %v972 = vsel %vm966, %v971, %v970
      %vm973 = vcmp.lt.s32.totalorder %v791, 0
      %v974 = vsub.s32 0, %v791
      %v975 = vsel %vm973, %v974, %v791
      %v976 = vshrl.u32 %v975, 4
      %v977 = vand.u32 %v975, 15
      %v978 = vsub.s32 0, %v977
      %v979 = vsel %vm973, %v978, %v977
      %vm980 = vcmp.lt.s32.totalorder %v792, 0
      %v981 = vsub.s32 0, %v792
      %v982 = vsel %vm980, %v981, %v792
      %v983 = vshrl.u32 %v982, 4
      %v984 = vand.u32 %v982, 15
      %v985 = vsub.s32 0, %v984
      %v986 = vsel %vm980, %v985, %v984
      %vm987 = vcmp.lt.s32.totalorder %v793, 0
      %v988 = vsub.s32 0, %v793
      %v989 = vsel %vm987, %v988, %v793
      %v990 = vshrl.u32 %v989, 4
      %v991 = vand.u32 %v989, 15
      %v992 = vsub.s32 0, %v991
      %v993 = vsel %vm987, %v992, %v991
      %vm994 = vcmp.lt.s32.totalorder %v794, 0
      %v995 = vsub.s32 0, %v794
      %v996 = vsel %vm994, %v995, %v794
      %v997 = vshrl.u32 %v996, 4
      %v998 = vand.u32 %v996, 15
      %v999 = vsub.s32 0, %v998
      %v1000 = vsel %vm994, %v999, %v998
      %vm1001 = vcmp.lt.s32.totalorder %v795, 0
      %v1002 = vsub.s32 0, %v795
      %v1003 = vsel %vm1001, %v1002, %v795
      %v1004 = vshrl.u32 %v1003, 4
      %v1005 = vand.u32 %v1003, 15
      %v1006 = vsub.s32 0, %v1005
      %v1007 = vsel %vm1001, %v1006, %v1005
      %vm1008 = vcmp.lt.s32.totalorder %v796, 0
      %v1009 = vsub.s32 0, %v796
      %v1010 = vsel %vm1008, %v1009, %v796
      %v1011 = vshrl.u32 %v1010, 4
      %v1012 = vand.u32 %v1010, 15
      %v1013 = vsub.s32 0, %v1012
      %v1014 = vsel %vm1008, %v1013, %v1012
      %vm1015 = vcmp.lt.s32.totalorder %v797, 0
      %v1016 = vsub.s32 0, %v797
      %v1017 = vsel %vm1015, %v1016, %v797
      %v1018 = vshrl.u32 %v1017, 4
      %v1019 = vand.u32 %v1017, 15
      %v1020 = vsub.s32 0, %v1019
      %v1021 = vsel %vm1015, %v1020, %v1019
      %vm1022 = vcmp.ne.s32.totalorder %v804, 0
      %vm1023 = vcmp.ne.s32.totalorder %v811, 0
      %vm1024 = vcmp.ne.s32.totalorder %v818, 0
      %vm1025 = vcmp.ne.s32.totalorder %v825, 0
      %vm1026 = vcmp.ne.s32.totalorder %v832, 0
      %vm1027 = vcmp.ne.s32.totalorder %v839, 0
      %vm1028 = vcmp.ne.s32.totalorder %v846, 0
      %vm1029 = vcmp.ne.s32.totalorder %v853, 0
      %vm1030 = vcmp.ne.s32.totalorder %v860, 0
      %vm1031 = vcmp.ne.s32.totalorder %v867, 0
      %vm1032 = vcmp.ne.s32.totalorder %v874, 0
      %vm1033 = vcmp.ne.s32.totalorder %v881, 0
      %vm1034 = vcmp.ne.s32.totalorder %v888, 0
      %vm1035 = vcmp.ne.s32.totalorder %v895, 0
      %vm1036 = vcmp.ne.s32.totalorder %v902, 0
      %vm1037 = vcmp.ne.s32.totalorder %v909, 0
      %vm1038 = vcmp.ne.s32.totalorder %v916, 0
      %vm1039 = vcmp.ne.s32.totalorder %v923, 0
      %vm1040 = vcmp.ne.s32.totalorder %v930, 0
      %vm1041 = vcmp.ne.s32.totalorder %v937, 0
      %vm1042 = vcmp.ne.s32.totalorder %v944, 0
      %vm1043 = vcmp.ne.s32.totalorder %v951, 0
      %vm1044 = vcmp.ne.s32.totalorder %v958, 0
      %vm1045 = vcmp.ne.s32.totalorder %v965, 0
      %vm1046 = vcmp.ne.s32.totalorder %v972, 0
      %vm1047 = vcmp.ne.s32.totalorder %v979, 0
      %vm1048 = vcmp.ne.s32.totalorder %v986, 0
      %vm1049 = vcmp.ne.s32.totalorder %v993, 0
      %vm1050 = vcmp.ne.s32.totalorder %v1000, 0
      %vm1051 = vcmp.ne.s32.totalorder %v1007, 0
      %vm1052 = vcmp.ne.s32.totalorder %v1014, 0
      %vm1053 = vcmp.ne.s32.totalorder %v1021, 0
      %vm1054 = vcmp.lt.s32.totalorder %v804, 0
      %vm1055 = vcmp.lt.s32.totalorder %v811, 0
      %vm1056 = vcmp.lt.s32.totalorder %v818, 0
      %vm1057 = vcmp.lt.s32.totalorder %v825, 0
      %vm1058 = vcmp.lt.s32.totalorder %v832, 0
      %vm1059 = vcmp.lt.s32.totalorder %v839, 0
      %vm1060 = vcmp.lt.s32.totalorder %v846, 0
      %vm1061 = vcmp.lt.s32.totalorder %v853, 0
      %vm1062 = vcmp.lt.s32.totalorder %v860, 0
      %vm1063 = vcmp.lt.s32.totalorder %v867, 0
      %vm1064 = vcmp.lt.s32.totalorder %v874, 0
      %vm1065 = vcmp.lt.s32.totalorder %v881, 0
      %vm1066 = vcmp.lt.s32.totalorder %v888, 0
      %vm1067 = vcmp.lt.s32.totalorder %v895, 0
      %vm1068 = vcmp.lt.s32.totalorder %v902, 0
      %vm1069 = vcmp.lt.s32.totalorder %v909, 0
      %vm1070 = vcmp.lt.s32.totalorder %v916, 0
      %vm1071 = vcmp.lt.s32.totalorder %v923, 0
      %vm1072 = vcmp.lt.s32.totalorder %v930, 0
      %vm1073 = vcmp.lt.s32.totalorder %v937, 0
      %vm1074 = vcmp.lt.s32.totalorder %v944, 0
      %vm1075 = vcmp.lt.s32.totalorder %v951, 0
      %vm1076 = vcmp.lt.s32.totalorder %v958, 0
      %vm1077 = vcmp.lt.s32.totalorder %v965, 0
      %vm1078 = vcmp.lt.s32.totalorder %v972, 0
      %vm1079 = vcmp.lt.s32.totalorder %v979, 0
      %vm1080 = vcmp.lt.s32.totalorder %v986, 0
      %vm1081 = vcmp.lt.s32.totalorder %v993, 0
      %vm1082 = vcmp.lt.s32.totalorder %v1000, 0
      %vm1083 = vcmp.lt.s32.totalorder %v1007, 0
      %vm1084 = vcmp.lt.s32.totalorder %v1014, 0
      %vm1085 = vcmp.lt.s32.totalorder %v1021, 0
      %vm1086 = vmand %vm1054, %vm1022
      %vm1087 = vmand %vm1055, %vm1023
      %vm1088 = vmand %vm1056, %vm1024
      %vm1089 = vmand %vm1057, %vm1025
      %vm1090 = vmand %vm1058, %vm1026
      %vm1091 = vmand %vm1059, %vm1027
      %vm1092 = vmand %vm1060, %vm1028
      %vm1093 = vmand %vm1061, %vm1029
      %vm1094 = vmand %vm1062, %vm1030
      %vm1095 = vmand %vm1063, %vm1031
      %vm1096 = vmand %vm1064, %vm1032
      %vm1097 = vmand %vm1065, %vm1033
      %vm1098 = vmand %vm1066, %vm1034
      %vm1099 = vmand %vm1067, %vm1035
      %vm1100 = vmand %vm1068, %vm1036
      %vm1101 = vmand %vm1069, %vm1037
      %vm1102 = vmand %vm1070, %vm1038
      %vm1103 = vmand %vm1071, %vm1039
      %vm1104 = vmand %vm1072, %vm1040
      %vm1105 = vmand %vm1073, %vm1041
      %vm1106 = vmand %vm1074, %vm1042
      %vm1107 = vmand %vm1075, %vm1043
      %vm1108 = vmand %vm1076, %vm1044
      %vm1109 = vmand %vm1077, %vm1045
      %vm1110 = vmand %vm1078, %vm1046
      %vm1111 = vmand %vm1079, %vm1047
      %vm1112 = vmand %vm1080, %vm1048
      %vm1113 = vmand %vm1081, %vm1049
      %vm1114 = vmand %vm1082, %vm1050
      %vm1115 = vmand %vm1083, %vm1051
      %vm1116 = vmand %vm1084, %vm1052
      %vm1117 = vmand %vm1085, %vm1053
      %v1118 = vadd.s32 %v804, 16
      %v1119 = vadd.s32 %v811, 16
      %v1120 = vadd.s32 %v818, 16
      %v1121 = vadd.s32 %v825, 16
      %v1122 = vadd.s32 %v832, 16
      %v1123 = vadd.s32 %v839, 16
      %v1124 = vadd.s32 %v846, 16
      %v1125 = vadd.s32 %v853, 16
      %v1126 = vadd.s32 %v860, 16
      %v1127 = vadd.s32 %v867, 16
      %v1128 = vadd.s32 %v874, 16
      %v1129 = vadd.s32 %v881, 16
      %v1130 = vadd.s32 %v888, 16
      %v1131 = vadd.s32 %v895, 16
      %v1132 = vadd.s32 %v902, 16
      %v1133 = vadd.s32 %v909, 16
      %v1134 = vadd.s32 %v916, 16
      %v1135 = vadd.s32 %v923, 16
      %v1136 = vadd.s32 %v930, 16
      %v1137 = vadd.s32 %v937, 16
      %v1138 = vadd.s32 %v944, 16
      %v1139 = vadd.s32 %v951, 16
      %v1140 = vadd.s32 %v958, 16
      %v1141 = vadd.s32 %v965, 16
      %v1142 = vadd.s32 %v972, 16
      %v1143 = vadd.s32 %v979, 16
      %v1144 = vadd.s32 %v986, 16
      %v1145 = vadd.s32 %v993, 16
      %v1146 = vadd.s32 %v1000, 16
      %v1147 = vadd.s32 %v1007, 16
      %v1148 = vadd.s32 %v1014, 16
      %v1149 = vadd.s32 %v1021, 16
      %v1150 = vsel %vm1086, %v1118, %v804
      %v1151 = vsel %vm1087, %v1119, %v811
      %v1152 = vsel %vm1088, %v1120, %v818
      %v1153 = vsel %vm1089, %v1121, %v825
      %v1154 = vsel %vm1090, %v1122, %v832
      %v1155 = vsel %vm1091, %v1123, %v839
      %v1156 = vsel %vm1092, %v1124, %v846
      %v1157 = vsel %vm1093, %v1125, %v853
      %v1158 = vsel %vm1094, %v1126, %v860
      %v1159 = vsel %vm1095, %v1127, %v867
      %v1160 = vsel %vm1096, %v1128, %v874
      %v1161 = vsel %vm1097, %v1129, %v881
      %v1162 = vsel %vm1098, %v1130, %v888
      %v1163 = vsel %vm1099, %v1131, %v895
      %v1164 = vsel %vm1100, %v1132, %v902
      %v1165 = vsel %vm1101, %v1133, %v909
      %v1166 = vsel %vm1102, %v1134, %v916
      %v1167 = vsel %vm1103, %v1135, %v923
      %v1168 = vsel %vm1104, %v1136, %v930
      %v1169 = vsel %vm1105, %v1137, %v937
      %v1170 = vsel %vm1106, %v1138, %v944
      %v1171 = vsel %vm1107, %v1139, %v951
      %v1172 = vsel %vm1108, %v1140, %v958
      %v1173 = vsel %vm1109, %v1141, %v965
      %v1174 = vsel %vm1110, %v1142, %v972
      %v1175 = vsel %vm1111, %v1143, %v979
      %v1176 = vsel %vm1112, %v1144, %v986
      %v1177 = vsel %vm1113, %v1145, %v993
      %v1178 = vsel %vm1114, %v1146, %v1000
      %v1179 = vsel %vm1115, %v1147, %v1007
      %v1180 = vsel %vm1116, %v1148, %v1014
      %v1181 = vsel %vm1117, %v1149, %v1021
      %vm1182 = vcmp.ne.s32.totalorder %v1150, 0
      %vm1183 = vcmp.ne.s32.totalorder %v1151, 0
      %vm1184 = vcmp.ne.s32.totalorder %v1152, 0
      %vm1185 = vcmp.ne.s32.totalorder %v1153, 0
      %vm1186 = vcmp.ne.s32.totalorder %v1154, 0
      %vm1187 = vcmp.ne.s32.totalorder %v1155, 0
      %vm1188 = vcmp.ne.s32.totalorder %v1156, 0
      %vm1189 = vcmp.ne.s32.totalorder %v1157, 0
      %vm1190 = vcmp.ne.s32.totalorder %v1158, 0
      %vm1191 = vcmp.ne.s32.totalorder %v1159, 0
      %vm1192 = vcmp.ne.s32.totalorder %v1160, 0
      %vm1193 = vcmp.ne.s32.totalorder %v1161, 0
      %vm1194 = vcmp.ne.s32.totalorder %v1162, 0
      %vm1195 = vcmp.ne.s32.totalorder %v1163, 0
      %vm1196 = vcmp.ne.s32.totalorder %v1164, 0
      %vm1197 = vcmp.ne.s32.totalorder %v1165, 0
      %vm1198 = vcmp.ne.s32.totalorder %v1166, 0
      %vm1199 = vcmp.ne.s32.totalorder %v1167, 0
      %vm1200 = vcmp.ne.s32.totalorder %v1168, 0
      %vm1201 = vcmp.ne.s32.totalorder %v1169, 0
      %vm1202 = vcmp.ne.s32.totalorder %v1170, 0
      %vm1203 = vcmp.ne.s32.totalorder %v1171, 0
      %vm1204 = vcmp.ne.s32.totalorder %v1172, 0
      %vm1205 = vcmp.ne.s32.totalorder %v1173, 0
      %vm1206 = vcmp.ne.s32.totalorder %v1174, 0
      %vm1207 = vcmp.ne.s32.totalorder %v1175, 0
      %vm1208 = vcmp.ne.s32.totalorder %v1176, 0
      %vm1209 = vcmp.ne.s32.totalorder %v1177, 0
      %vm1210 = vcmp.ne.s32.totalorder %v1178, 0
      %vm1211 = vcmp.ne.s32.totalorder %v1179, 0
      %vm1212 = vcmp.ne.s32.totalorder %v1180, 0
      %vm1213 = vcmp.ne.s32.totalorder %v1181, 0
      %v1214 = vrot.slane %v733, 7
      %v1215 = vrot.slane %v734, 7
      %v1216 = vrot.slane %v735, 7
      %v1217 = vrot.slane %v736, 7
      %v1218 = vrot.slane %v737, 7
      %v1219 = vrot.slane %v738, 7
      %v1220 = vrot.slane %v739, 7
      %v1221 = vrot.slane %v740, 7
      %v1222 = vrot.slane %v741, 7
      %v1223 = vrot.slane %v742, 7
      %v1224 = vrot.slane %v743, 7
      %v1225 = vrot.slane %v744, 7
      %v1226 = vrot.slane %v745, 7
      %v1227 = vrot.slane %v746, 7
      %v1228 = vrot.slane %v747, 7
      %v1229 = vrot.slane %v748, 7
      %v1230 = vrot.slane %v749, 7
      %v1231 = vrot.slane %v750, 7
      %v1232 = vrot.slane %v751, 7
      %v1233 = vrot.slane %v752, 7
      %v1234 = vrot.slane %v753, 7
      %v1235 = vrot.slane %v754, 7
      %v1236 = vrot.slane %v755, 7
      %v1237 = vrot.slane %v756, 7
      %v1238 = vrot.slane %v757, 7
      %v1239 = vrot.slane %v758, 7
      %v1240 = vrot.slane %v759, 7
      %v1241 = vrot.slane %v760, 7
      %v1242 = vrot.slane %v761, 7
      %v1243 = vrot.slane %v762, 7
      %v1244 = vrot.slane %v763, 7
      %v1245 = vrot.slane %v764, 7
      %vm1246 = vcmp.lt.s32.totalorder %v766, 1
      %v1247 = vsel %vm1246, %v1244, %v1245
      %v1248 = vsel %vm1246, %v1243, %v1244
      %v1249 = vsel %vm1246, %v1242, %v1243
      %v1250 = vsel %vm1246, %v1241, %v1242
      %v1251 = vsel %vm1246, %v1240, %v1241
      %v1252 = vsel %vm1246, %v1239, %v1240
      %v1253 = vsel %vm1246, %v1238, %v1239
      %v1254 = vsel %vm1246, %v1237, %v1238
      %v1255 = vsel %vm1246, %v1236, %v1237
      %v1256 = vsel %vm1246, %v1235, %v1236
      %v1257 = vsel %vm1246, %v1234, %v1235
      %v1258 = vsel %vm1246, %v1233, %v1234
      %v1259 = vsel %vm1246, %v1232, %v1233
      %v1260 = vsel %vm1246, %v1231, %v1232
      %v1261 = vsel %vm1246, %v1230, %v1231
      %v1262 = vsel %vm1246, %v1229, %v1230
      %v1263 = vsel %vm1246, %v1228, %v1229
      %v1264 = vsel %vm1246, %v1227, %v1228
      %v1265 = vsel %vm1246, %v1226, %v1227
      %v1266 = vsel %vm1246, %v1225, %v1226
      %v1267 = vsel %vm1246, %v1224, %v1225
      %v1268 = vsel %vm1246, %v1223, %v1224
      %v1269 = vsel %vm1246, %v1222, %v1223
      %v1270 = vsel %vm1246, %v1221, %v1222
      %v1271 = vsel %vm1246, %v1220, %v1221
      %v1272 = vsel %vm1246, %v1219, %v1220
      %v1273 = vsel %vm1246, %v1218, %v1219
      %v1274 = vsel %vm1246, %v1217, %v1218
      %v1275 = vsel %vm1246, %v1216, %v1217
      %v1276 = vsel %vm1246, %v1215, %v1216
      %v1277 = vsel %vm1246, %v1214, %v1215
      %v1278 = vsel %vm1246, %v1245, %v1214
      %v1279 = vsel %vm1182, %v1278, 0.0
      %v1280 = vsel %vm1183, %v1277, 0.0
      %v1281 = vsel %vm1184, %v1276, 0.0
      %v1282 = vsel %vm1185, %v1275, 0.0
      %v1283 = vsel %vm1186, %v1274, 0.0
      %v1284 = vsel %vm1187, %v1273, 0.0
      %v1285 = vsel %vm1188, %v1272, 0.0
      %v1286 = vsel %vm1189, %v1271, 0.0
      %v1287 = vsel %vm1190, %v1270, 0.0
      %v1288 = vsel %vm1191, %v1269, 0.0
      %v1289 = vsel %vm1192, %v1268, 0.0
      %v1290 = vsel %vm1193, %v1267, 0.0
      %v1291 = vsel %vm1194, %v1266, 0.0
      %v1292 = vsel %vm1195, %v1265, 0.0
      %v1293 = vsel %vm1196, %v1264, 0.0
      %v1294 = vsel %vm1197, %v1263, 0.0
      %v1295 = vsel %vm1198, %v1262, 0.0
      %v1296 = vsel %vm1199, %v1261, 0.0
      %v1297 = vsel %vm1200, %v1260, 0.0
      %v1298 = vsel %vm1201, %v1259, 0.0
      %v1299 = vsel %vm1202, %v1258, 0.0
      %v1300 = vsel %vm1203, %v1257, 0.0
      %v1301 = vsel %vm1204, %v1256, 0.0
      %v1302 = vsel %vm1205, %v1255, 0.0
      %v1303 = vsel %vm1206, %v1254, 0.0
      %v1304 = vsel %vm1207, %v1253, 0.0
      %v1305 = vsel %vm1208, %v1252, 0.0
      %v1306 = vsel %vm1209, %v1251, 0.0
      %v1307 = vsel %vm1210, %v1250, 0.0
      %v1308 = vsel %vm1211, %v1249, 0.0
      %v1309 = vsel %vm1212, %v1248, 0.0
      %v1310 = vsel %vm1213, %v1247, 0.0
      %vm1311 = vcmp.ne.s32.totalorder %v1150, 15
      %vm1312 = vcmp.ne.s32.totalorder %v1151, 15
      %vm1313 = vcmp.ne.s32.totalorder %v1152, 15
      %vm1314 = vcmp.ne.s32.totalorder %v1153, 15
      %vm1315 = vcmp.ne.s32.totalorder %v1154, 15
      %vm1316 = vcmp.ne.s32.totalorder %v1155, 15
      %vm1317 = vcmp.ne.s32.totalorder %v1156, 15
      %vm1318 = vcmp.ne.s32.totalorder %v1157, 15
      %vm1319 = vcmp.ne.s32.totalorder %v1158, 15
      %vm1320 = vcmp.ne.s32.totalorder %v1159, 15
      %vm1321 = vcmp.ne.s32.totalorder %v1160, 15
      %vm1322 = vcmp.ne.s32.totalorder %v1161, 15
      %vm1323 = vcmp.ne.s32.totalorder %v1162, 15
      %vm1324 = vcmp.ne.s32.totalorder %v1163, 15
      %vm1325 = vcmp.ne.s32.totalorder %v1164, 15
      %vm1326 = vcmp.ne.s32.totalorder %v1165, 15
      %vm1327 = vcmp.ne.s32.totalorder %v1166, 15
      %vm1328 = vcmp.ne.s32.totalorder %v1167, 15
      %vm1329 = vcmp.ne.s32.totalorder %v1168, 15
      %vm1330 = vcmp.ne.s32.totalorder %v1169, 15
      %vm1331 = vcmp.ne.s32.totalorder %v1170, 15
      %vm1332 = vcmp.ne.s32.totalorder %v1171, 15
      %vm1333 = vcmp.ne.s32.totalorder %v1172, 15
      %vm1334 = vcmp.ne.s32.totalorder %v1173, 15
      %vm1335 = vcmp.ne.s32.totalorder %v1174, 15
      %vm1336 = vcmp.ne.s32.totalorder %v1175, 15
      %vm1337 = vcmp.ne.s32.totalorder %v1176, 15
      %vm1338 = vcmp.ne.s32.totalorder %v1177, 15
      %vm1339 = vcmp.ne.s32.totalorder %v1178, 15
      %vm1340 = vcmp.ne.s32.totalorder %v1179, 15
      %vm1341 = vcmp.ne.s32.totalorder %v1180, 15
      %vm1342 = vcmp.ne.s32.totalorder %v1181, 15
      %v1343 = vrot.slane %v733, 1
      %v1344 = vrot.slane %v734, 1
      %v1345 = vrot.slane %v735, 1
      %v1346 = vrot.slane %v736, 1
      %v1347 = vrot.slane %v737, 1
      %v1348 = vrot.slane %v738, 1
      %v1349 = vrot.slane %v739, 1
      %v1350 = vrot.slane %v740, 1
      %v1351 = vrot.slane %v741, 1
      %v1352 = vrot.slane %v742, 1
      %v1353 = vrot.slane %v743, 1
      %v1354 = vrot.slane %v744, 1
      %v1355 = vrot.slane %v745, 1
      %v1356 = vrot.slane %v746, 1
      %v1357 = vrot.slane %v747, 1
      %v1358 = vrot.slane %v748, 1
      %v1359 = vrot.slane %v749, 1
      %v1360 = vrot.slane %v750, 1
      %v1361 = vrot.slane %v751, 1
      %v1362 = vrot.slane %v752, 1
      %v1363 = vrot.slane %v753, 1
      %v1364 = vrot.slane %v754, 1
      %v1365 = vrot.slane %v755, 1
      %v1366 = vrot.slane %v756, 1
      %v1367 = vrot.slane %v757, 1
      %v1368 = vrot.slane %v758, 1
      %v1369 = vrot.slane %v759, 1
      %v1370 = vrot.slane %v760, 1
      %v1371 = vrot.slane %v761, 1
      %v1372 = vrot.slane %v762, 1
      %v1373 = vrot.slane %v763, 1
      %v1374 = vrot.slane %v764, 1
      %vm1375 = vcmp.lt.s32.totalorder %v766, 7
      %v1376 = vsel %vm1375, %v1373, %v1374
      %v1377 = vsel %vm1375, %v1372, %v1373
      %v1378 = vsel %vm1375, %v1371, %v1372
      %v1379 = vsel %vm1375, %v1370, %v1371
      %v1380 = vsel %vm1375, %v1369, %v1370
      %v1381 = vsel %vm1375, %v1368, %v1369
      %v1382 = vsel %vm1375, %v1367, %v1368
      %v1383 = vsel %vm1375, %v1366, %v1367
      %v1384 = vsel %vm1375, %v1365, %v1366
      %v1385 = vsel %vm1375, %v1364, %v1365
      %v1386 = vsel %vm1375, %v1363, %v1364
      %v1387 = vsel %vm1375, %v1362, %v1363
      %v1388 = vsel %vm1375, %v1361, %v1362
      %v1389 = vsel %vm1375, %v1360, %v1361
      %v1390 = vsel %vm1375, %v1359, %v1360
      %v1391 = vsel %vm1375, %v1358, %v1359
      %v1392 = vsel %vm1375, %v1357, %v1358
      %v1393 = vsel %vm1375, %v1356, %v1357
      %v1394 = vsel %vm1375, %v1355, %v1356
      %v1395 = vsel %vm1375, %v1354, %v1355
      %v1396 = vsel %vm1375, %v1353, %v1354
      %v1397 = vsel %vm1375, %v1352, %v1353
      %v1398 = vsel %vm1375, %v1351, %v1352
      %v1399 = vsel %vm1375, %v1350, %v1351
      %v1400 = vsel %vm1375, %v1349, %v1350
      %v1401 = vsel %vm1375, %v1348, %v1349
      %v1402 = vsel %vm1375, %v1347, %v1348
      %v1403 = vsel %vm1375, %v1346, %v1347
      %v1404 = vsel %vm1375, %v1345, %v1346
      %v1405 = vsel %vm1375, %v1344, %v1345
      %v1406 = vsel %vm1375, %v1343, %v1344
      %v1407 = vsel %vm1375, %v1374, %v1343
      %v1408 = vsel %vm1311, %v1406, 0.0
      %v1409 = vsel %vm1312, %v1405, 0.0
      %v1410 = vsel %vm1313, %v1404, 0.0
      %v1411 = vsel %vm1314, %v1403, 0.0
      %v1412 = vsel %vm1315, %v1402, 0.0
      %v1413 = vsel %vm1316, %v1401, 0.0
      %v1414 = vsel %vm1317, %v1400, 0.0
      %v1415 = vsel %vm1318, %v1399, 0.0
      %v1416 = vsel %vm1319, %v1398, 0.0
      %v1417 = vsel %vm1320, %v1397, 0.0
      %v1418 = vsel %vm1321, %v1396, 0.0
      %v1419 = vsel %vm1322, %v1395, 0.0
      %v1420 = vsel %vm1323, %v1394, 0.0
      %v1421 = vsel %vm1324, %v1393, 0.0
      %v1422 = vsel %vm1325, %v1392, 0.0
      %v1423 = vsel %vm1326, %v1391, 0.0
      %v1424 = vsel %vm1327, %v1390, 0.0
      %v1425 = vsel %vm1328, %v1389, 0.0
      %v1426 = vsel %vm1329, %v1388, 0.0
      %v1427 = vsel %vm1330, %v1387, 0.0
      %v1428 = vsel %vm1331, %v1386, 0.0
      %v1429 = vsel %vm1332, %v1385, 0.0
      %v1430 = vsel %vm1333, %v1384, 0.0
      %v1431 = vsel %vm1334, %v1383, 0.0
      %v1432 = vsel %vm1335, %v1382, 0.0
      %v1433 = vsel %vm1336, %v1381, 0.0
      %v1434 = vsel %vm1337, %v1380, 0.0
      %v1435 = vsel %vm1338, %v1379, 0.0
      %v1436 = vsel %vm1339, %v1378, 0.0
      %v1437 = vsel %vm1340, %v1377, 0.0
      %v1438 = vsel %vm1341, %v1376, 0.0
      %v1439 = vsel %vm1342, %v1407, 0.0
      %1472 = vrot.lane.b32.xlu0 %v733, 64
      %v1473 = vpop.permute.xlu0 %1472
      %1474 = vrot.lane.b32.xlu0 %v734, 64
      %v1475 = vpop.permute.xlu0 %1474
      %1476 = vrot.lane.b32.xlu0 %v735, 64
      %v1477 = vpop.permute.xlu0 %1476
      %1478 = vrot.lane.b32.xlu0 %v736, 64
      %v1479 = vpop.permute.xlu0 %1478
      %1480 = vrot.lane.b32.xlu0 %v737, 64
      %v1481 = vpop.permute.xlu0 %1480
      %1482 = vrot.lane.b32.xlu0 %v738, 64
      %v1483 = vpop.permute.xlu0 %1482
      %1484 = vrot.lane.b32.xlu0 %v739, 64
      %v1485 = vpop.permute.xlu0 %1484
      %1486 = vrot.lane.b32.xlu0 %v740, 64
      %v1487 = vpop.permute.xlu0 %1486
      %1488 = vrot.lane.b32.xlu0 %v741, 64
      %v1489 = vpop.permute.xlu0 %1488
      %1490 = vrot.lane.b32.xlu0 %v742, 64
      %v1491 = vpop.permute.xlu0 %1490
      %1492 = vrot.lane.b32.xlu0 %v743, 64
      %v1493 = vpop.permute.xlu0 %1492
      %1494 = vrot.lane.b32.xlu0 %v744, 64
      %v1495 = vpop.permute.xlu0 %1494
      %1496 = vrot.lane.b32.xlu0 %v745, 64
      %v1497 = vpop.permute.xlu0 %1496
      %1498 = vrot.lane.b32.xlu0 %v746, 64
      %v1499 = vpop.permute.xlu0 %1498
      %1500 = vrot.lane.b32.xlu0 %v747, 64
      %v1501 = vpop.permute.xlu0 %1500
      %1502 = vrot.lane.b32.xlu0 %v748, 64
      %v1503 = vpop.permute.xlu0 %1502
      %1504 = vrot.lane.b32.xlu0 %v749, 64
      %v1505 = vpop.permute.xlu0 %1504
      %1506 = vrot.lane.b32.xlu0 %v750, 64
      %v1507 = vpop.permute.xlu0 %1506
      %1508 = vrot.lane.b32.xlu0 %v751, 64
      %v1509 = vpop.permute.xlu0 %1508
      %1510 = vrot.lane.b32.xlu0 %v752, 64
      %v1511 = vpop.permute.xlu0 %1510
      %1512 = vrot.lane.b32.xlu0 %v753, 64
      %v1513 = vpop.permute.xlu0 %1512
      %1514 = vrot.lane.b32.xlu0 %v754, 64
      %v1515 = vpop.permute.xlu0 %1514
      %1516 = vrot.lane.b32.xlu0 %v755, 64
      %v1517 = vpop.permute.xlu0 %1516
      %1518 = vrot.lane.b32.xlu0 %v756, 64
      %v1519 = vpop.permute.xlu0 %1518
      %1520 = vrot.lane.b32.xlu0 %v757, 64
      %v1521 = vpop.permute.xlu0 %1520
      %1522 = vrot.lane.b32.xlu0 %v758, 64
      %v1523 = vpop.permute.xlu0 %1522
      %1524 = vrot.lane.b32.xlu0 %v759, 64
      %v1525 = vpop.permute.xlu0 %1524
      %1526 = vrot.lane.b32.xlu0 %v760, 64
      %v1527 = vpop.permute.xlu0 %1526
      %1528 = vrot.lane.b32.xlu0 %v761, 64
      %v1529 = vpop.permute.xlu0 %1528
      %1530 = vrot.lane.b32.xlu0 %v762, 64
      %v1531 = vpop.permute.xlu0 %1530
      %1532 = vrot.lane.b32.xlu0 %v763, 64
      %v1533 = vpop.permute.xlu0 %1532
      %1534 = vrot.lane.b32.xlu0 %v764, 64
      %v1535 = vpop.permute.xlu0 %1534
      %vm1568 = vcmask 523264
      %v1569 = vsel %vm1568, %v1279, %v1473
      %v1570 = vsel %vm1568, %v1280, %v1475
      %v1571 = vsel %vm1568, %v1281, %v1477
      %v1572 = vsel %vm1568, %v1282, %v1479
      %v1573 = vsel %vm1568, %v1283, %v1481
      %v1574 = vsel %vm1568, %v1284, %v1483
      %v1575 = vsel %vm1568, %v1285, %v1485
      %v1576 = vsel %vm1568, %v1286, %v1487
      %v1577 = vsel %vm1568, %v1287, %v1489
      %v1578 = vsel %vm1568, %v1288, %v1491
      %v1579 = vsel %vm1568, %v1289, %v1493
      %v1580 = vsel %vm1568, %v1290, %v1495
      %v1581 = vsel %vm1568, %v1291, %v1497
      %v1582 = vsel %vm1568, %v1292, %v1499
      %v1583 = vsel %vm1568, %v1293, %v1501
      %v1584 = vsel %vm1568, %v1294, %v1503
      %v1585 = vsel %vm1568, %v1295, %v1505
      %v1586 = vsel %vm1568, %v1296, %v1507
      %v1587 = vsel %vm1568, %v1297, %v1509
      %v1588 = vsel %vm1568, %v1298, %v1511
      %v1589 = vsel %vm1568, %v1299, %v1513
      %v1590 = vsel %vm1568, %v1300, %v1515
      %v1591 = vsel %vm1568, %v1301, %v1517
      %v1592 = vsel %vm1568, %v1302, %v1519
      %v1593 = vsel %vm1568, %v1303, %v1521
      %v1594 = vsel %vm1568, %v1304, %v1523
      %v1595 = vsel %vm1568, %v1305, %v1525
      %v1596 = vsel %vm1568, %v1306, %v1527
      %v1597 = vsel %vm1568, %v1307, %v1529
      %v1598 = vsel %vm1568, %v1308, %v1531
      %v1599 = vsel %vm1568, %v1309, %v1533
      %v1600 = vsel %vm1568, %v1310, %v1535
      %v1601 = vld [vmem:[%s4] sm:$0x1]
      %v1603 = vlaneseq
      %v1604 = vshrl.u32 %v1603, 7
      %v1605 = vsub.s32 0, %v1604
      %v1606 = vrot.slane %v1601, %v1605
      %v1608 = vpack.c.bf16 0.0, 0.0
      %v1609 = vpack.c.bf16 %v1570, %v1569
      %v1610 = vpack.c.bf16 %v1409, %v1408
      %v1611 = vpack.c.bf16 %v1572, %v1571
      %v1612 = vpack.c.bf16 %v1411, %v1410
      %v1613 = vpack.c.bf16 %v1574, %v1573
      %v1614 = vpack.c.bf16 %v1413, %v1412
      %v1615 = vpack.c.bf16 %v1576, %v1575
      %v1616 = vpack.c.bf16 %v1415, %v1414
      %v1617 = vpack.c.bf16 %v1578, %v1577
      %v1618 = vpack.c.bf16 %v1417, %v1416
      %v1619 = vpack.c.bf16 %v1580, %v1579
      %v1620 = vpack.c.bf16 %v1419, %v1418
      %v1621 = vpack.c.bf16 %v1582, %v1581
      %v1622 = vpack.c.bf16 %v1421, %v1420
      %v1623 = vpack.c.bf16 %v1584, %v1583
      %v1624 = vpack.c.bf16 %v1423, %v1422
      %v1625 = vpack.c.bf16 %v1586, %v1585
      %v1626 = vpack.c.bf16 %v1425, %v1424
      %v1627 = vpack.c.bf16 %v1588, %v1587
      %v1628 = vpack.c.bf16 %v1427, %v1426
      %v1629 = vpack.c.bf16 %v1590, %v1589
      %v1630 = vpack.c.bf16 %v1429, %v1428
      %v1631 = vpack.c.bf16 %v1592, %v1591
      %v1632 = vpack.c.bf16 %v1431, %v1430
      %v1633 = vpack.c.bf16 %v1594, %v1593
      %v1634 = vpack.c.bf16 %v1433, %v1432
      %v1635 = vpack.c.bf16 %v1596, %v1595
      %v1636 = vpack.c.bf16 %v1435, %v1434
      %v1637 = vpack.c.bf16 %v1598, %v1597
      %v1638 = vpack.c.bf16 %v1437, %v1436
      %v1639 = vld [vmem:[%s3] sm:$0xf]
      %v1640 = vld [vmem:[%s3 + $0x4] sm:$0xf]
      %v1641 = vld [vmem:[%s3 + $0x8] sm:$0xf]
      %v1642 = vld [vmem:[%s3 + $0xc] sm:$0xf]
      %v1643 = vld [vmem:[%s3 + $0x10] sm:$0xf]
      %v1644 = vld [vmem:[%s3 + $0x14] sm:$0xf]
      %v1645 = vld [vmem:[%s3 + $0x18] sm:$0xf]
      %v1646 = vld [vmem:[%s3 + $0x1c] sm:$0xf]
      %v1647 = vld [vmem:[%s3 + $0x20] sm:$0xf]
      %v1648 = vld [vmem:[%s3 + $0x24] sm:$0xf]
      %v1649 = vld [vmem:[%s3 + $0x28] sm:$0xf]
      %v1650 = vld [vmem:[%s3 + $0x2c] sm:$0xf]
      %v1651 = vld [vmem:[%s3 + $0x30] sm:$0xf]
      %v1652 = vld [vmem:[%s3 + $0x34] sm:$0xf]
      %v1653 = vld [vmem:[%s3 + $0x38] sm:$0xf]
      %v1654 = vld [vmem:[%s3 + $0x3c] sm:$0xf]
      %v1655 = vld [vmem:[%s3 + $0x40] sm:$0xf]
      %v1656 = vld [vmem:[%s3 + $0x44] sm:$0xf]
      %v1657 = vld [vmem:[%s3 + $0x48] sm:$0xf]
      %v1658 = vld [vmem:[%s3 + $0x4c] sm:$0xf]
      %v1659 = vld [vmem:[%s3 + $0x50] sm:$0xf]
      %v1660 = vld [vmem:[%s3 + $0x54] sm:$0xf]
      %v1661 = vld [vmem:[%s3 + $0x58] sm:$0xf]
      %v1662 = vld [vmem:[%s3 + $0x5c] sm:$0xf]
      %v1687 = vunpack.c.l.b16 %v1639
      %v1688 = vunpack.c.l.b16 %v1640
      %v1689 = vunpack.c.l.b16 %v1641
      %v1690 = vunpack.c.l.b16 %v1642
      %v1691 = vunpack.c.l.b16 %v1643
      %v1692 = vunpack.c.l.b16 %v1644
      %v1693 = vunpack.c.l.b16 %v1645
      %v1694 = vunpack.c.l.b16 %v1646
      %v1695 = vunpack.c.l.b16 %v1647
      %v1696 = vunpack.c.l.b16 %v1648
      %v1697 = vunpack.c.l.b16 %v1649
      %v1698 = vunpack.c.l.b16 %v1650
      %v1699 = vunpack.c.l.b16 %v1651
      %v1700 = vunpack.c.l.b16 %v1652
      %v1701 = vunpack.c.l.b16 %v1653
      %v1702 = vunpack.c.l.b16 %v1654
      %v1703 = vunpack.c.l.b16 %v1655
      %v1704 = vunpack.c.l.b16 %v1656
      %v1705 = vunpack.c.l.b16 %v1657
      %v1706 = vunpack.c.l.b16 %v1658
      %v1707 = vunpack.c.l.b16 %v1659
      %v1708 = vunpack.c.l.b16 %v1660
      %v1709 = vunpack.c.l.b16 %v1661
      %v1710 = vunpack.c.l.b16 %v1662
      %v1711 = vpack.c.b16 %v1688, %v1687
      %v1712 = vpack.c.b16 %v1690, %v1689
      %v1713 = vpack.c.b16 %v1692, %v1691
      %v1714 = vpack.c.b16 %v1694, %v1693
      %v1715 = vpack.c.b16 %v1696, %v1695
      %v1716 = vpack.c.b16 %v1698, %v1697
      %v1717 = vpack.c.b16 %v1700, %v1699
      %v1718 = vpack.c.b16 %v1702, %v1701
      %v1719 = vpack.c.b16 %v1704, %v1703
      %v1720 = vpack.c.b16 %v1706, %v1705
      %v1721 = vpack.c.b16 %v1708, %v1707
      %v1722 = vpack.c.b16 %v1710, %v1709
      %v1736 = vsel %vm1568, %v1608, 0
      %v1739 = vsel %vm1568, %v1610, 0
      %v1742 = vsel %vm1568, %v1612, 0
      %v1745 = vsel %vm1568, %v1614, 0
      %v1748 = vsel %vm1568, %v1616, 0
      %v1751 = vsel %vm1568, %v1618, 0
      %v1754 = vsel %vm1568, %v1620, 0
      %v1757 = vsel %vm1568, %v1622, 0
      %v1760 = vsel %vm1568, %v1624, 0
      %v1763 = vsel %vm1568, %v1626, 0
      %v1766 = vsel %vm1568, %v1628, 0
      %v1769 = vsel %vm1568, %v1630, 0
      %v1772 = vsel %vm1568, %v1632, 0
      %v1775 = vsel %vm1568, %v1634, 0
      %v1778 = vsel %vm1568, %v1636, 0
      %v1781 = vsel %vm1568, %v1638, 0
      %1783 = vmatprep.subr.bf16.mxu0 0
      %1784 = vmatpush1.bf16.msra.mxu0 %v1711
      %1785 = vmatprep.subr.bf16.mxu0 0
      %1786 = vmatpush1.bf16.msra.mxu0 %v1712
      %1787 = vmatprep.subr.bf16.mxu0 0
      %1788 = vmatpush1.bf16.msra.mxu0 %v1713
      %1789 = vmatprep.subr.bf16.mxu0 0
      %1790 = vmatpush1.bf16.msra.mxu0 %v1714
      %1791 = vmatprep.subr.bf16.mxu0 0
      %1792 = vmatpush1.bf16.msra.mxu0 %v1715
      %1793 = vmatprep.subr.bf16.mxu0 0
      %1794 = vmatpush1.bf16.msra.mxu0 %v1716
      %1795 = vmatprep.subr.bf16.mxu0 0
      %1796 = vmatpush1.bf16.msra.mxu0 %v1717
      %1797 = vmatprep.subr.bf16.mxu0 0
      %1798 = vmatpush1.bf16.msra.mxu0 %v1718
      %1799 = vmatprep.subr.bf16.mxu0 0
      %1800 = vmatpush1.bf16.msra.mxu0 %v1719
      %1801 = vmatprep.subr.bf16.mxu0 0
      %1802 = vmatpush1.bf16.msra.mxu0 %v1720
      %1803 = vmatprep.subr.bf16.mxu0 0
      %1804 = vmatpush1.bf16.msra.mxu0 %v1721
      %1805 = vmatprep.subr.bf16.mxu0 0
      %1806 = vmatpush1.bf16.msra.mxu0 %v1722
      %1807 = vmatprep.subr.bf16.mxu0 0
      %1808 = vmatpush1.bf16.msra.mxu0 0
      %1809 = vmatprep.subr.bf16.mxu0 0
      %1810 = vmatpush1.bf16.msra.mxu0 0
      %1811 = vmatprep.subr.bf16.mxu0 0
      %1812 = vmatpush1.bf16.msra.mxu0 0
      %1813 = vmatprep.subr.bf16.mxu0 0
      %1814 = vmatpush1.bf16.msra.mxu0 0
      %1815 = vmatprep.mubr.bf16.mxu0 %v1736
      %1816 = vmatmul.mubr.bf16.gmra.mrb[0].mxu0 %v1608
      %v1817 = vpop.f32.mrb[0].mxu0
      %v1818 = vadd.f32 0.0, %v1817
      %v1819 = vpop.f32.mrb[0].mxu0
      %v1820 = vpop.f32.mrb[0].mxu0
      %v1821 = vadd.f32 0.0, %v1820
      %v1822 = vpop.f32.mrb[0].mxu0
      %1823 = vmatprep.mubr.bf16.mxu0 %v1739
      %1824 = vmatmul.mubr.bf16.gmra.mrb[0].mxu0 %v1609
      %v1825 = vpop.f32.mrb[0].mxu0
      %v1826 = vadd.f32 0.0, %v1825
      %v1827 = vpop.f32.mrb[0].mxu0
      %v1828 = vpop.f32.mrb[0].mxu0
      %v1829 = vadd.f32 0.0, %v1828
      %v1830 = vpop.f32.mrb[0].mxu0
      %1831 = vmatprep.mubr.bf16.mxu0 %v1742
      %1832 = vmatmul.mubr.bf16.gmra.mrb[0].mxu0 %v1611
      %v1833 = vpop.f32.mrb[0].mxu0
      %v1834 = vadd.f32 0.0, %v1833
      %v1835 = vpop.f32.mrb[0].mxu0
      %v1836 = vpop.f32.mrb[0].mxu0
      %v1837 = vadd.f32 0.0, %v1836
      %v1838 = vpop.f32.mrb[0].mxu0
      %1839 = vmatprep.mubr.bf16.mxu0 %v1745
      %1840 = vmatmul.mubr.bf16.gmra.mrb[0].mxu0 %v1613
      %v1841 = vpop.f32.mrb[0].mxu0
      %v1842 = vadd.f32 0.0, %v1841
      %v1843 = vpop.f32.mrb[0].mxu0
      %v1844 = vpop.f32.mrb[0].mxu0
      %v1845 = vadd.f32 0.0, %v1844
      %v1846 = vpop.f32.mrb[0].mxu0
      %1847 = vmatprep.mubr.bf16.mxu0 %v1748
      %1848 = vmatmul.mubr.bf16.gmra.mrb[0].mxu0 %v1615
      %v1849 = vpop.f32.mrb[0].mxu0
      %v1850 = vadd.f32 0.0, %v1849
      %v1851 = vpop.f32.mrb[0].mxu0
      %v1852 = vpop.f32.mrb[0].mxu0
      %v1853 = vadd.f32 0.0, %v1852
      %v1854 = vpop.f32.mrb[0].mxu0
      %1855 = vmatprep.mubr.bf16.mxu0 %v1751
      %1856 = vmatmul.mubr.bf16.gmra.mrb[0].mxu0 %v1617
      %v1857 = vpop.f32.mrb[0].mxu0
      %v1858 = vadd.f32 0.0, %v1857
      %v1859 = vpop.f32.mrb[0].mxu0
      %v1860 = vpop.f32.mrb[0].mxu0
      %v1861 = vadd.f32 0.0, %v1860
      %v1862 = vpop.f32.mrb[0].mxu0
      %1863 = vmatprep.mubr.bf16.mxu0 %v1754
      %1864 = vmatmul.mubr.bf16.gmra.mrb[0].mxu0 %v1619
      %v1865 = vpop.f32.mrb[0].mxu0
      %v1866 = vadd.f32 0.0, %v1865
      %v1867 = vpop.f32.mrb[0].mxu0
      %v1868 = vpop.f32.mrb[0].mxu0
      %v1869 = vadd.f32 0.0, %v1868
      %v1870 = vpop.f32.mrb[0].mxu0
      %1871 = vmatprep.mubr.bf16.mxu0 %v1757
      %1872 = vmatmul.mubr.bf16.gmra.mrb[0].mxu0 %v1621
      %v1873 = vpop.f32.mrb[0].mxu0
      %v1874 = vadd.f32 0.0, %v1873
      %v1875 = vpop.f32.mrb[0].mxu0
      %v1876 = vpop.f32.mrb[0].mxu0
      %v1877 = vadd.f32 0.0, %v1876
      %v1878 = vpop.f32.mrb[0].mxu0
      %1879 = vmatprep.mubr.bf16.mxu0 %v1760
      %1880 = vmatmul.mubr.bf16.gmra.mrb[0].mxu0 %v1623
      %v1881 = vpop.f32.mrb[0].mxu0
      %v1882 = vadd.f32 0.0, %v1881
      %v1883 = vpop.f32.mrb[0].mxu0
      %v1884 = vpop.f32.mrb[0].mxu0
      %v1885 = vadd.f32 0.0, %v1884
      %v1886 = vpop.f32.mrb[0].mxu0
      %1887 = vmatprep.mubr.bf16.mxu0 %v1763
      %1888 = vmatmul.mubr.bf16.gmra.mrb[0].mxu0 %v1625
      %v1889 = vpop.f32.mrb[0].mxu0
      %v1890 = vadd.f32 0.0, %v1889
      %v1891 = vpop.f32.mrb[0].mxu0
      %v1892 = vpop.f32.mrb[0].mxu0
      %v1893 = vadd.f32 0.0, %v1892
      %v1894 = vpop.f32.mrb[0].mxu0
      %1895 = vmatprep.mubr.bf16.mxu0 %v1766
      %1896 = vmatmul.mubr.bf16.gmra.mrb[0].mxu0 %v1627
      %v1897 = vpop.f32.mrb[0].mxu0
      %v1898 = vadd.f32 0.0, %v1897
      %v1899 = vpop.f32.mrb[0].mxu0
      %v1900 = vpop.f32.mrb[0].mxu0
      %v1901 = vadd.f32 0.0, %v1900
      %v1902 = vpop.f32.mrb[0].mxu0
      %1903 = vmatprep.mubr.bf16.mxu0 %v1769
      %1904 = vmatmul.mubr.bf16.gmra.mrb[0].mxu0 %v1629
      %v1905 = vpop.f32.mrb[0].mxu0
      %v1906 = vadd.f32 0.0, %v1905
      %v1907 = vpop.f32.mrb[0].mxu0
      %v1908 = vpop.f32.mrb[0].mxu0
      %v1909 = vadd.f32 0.0, %v1908
      %v1910 = vpop.f32.mrb[0].mxu0
      %1911 = vmatprep.mubr.bf16.mxu0 %v1772
      %1912 = vmatmul.mubr.bf16.gmra.mrb[0].mxu0 %v1631
      %v1913 = vpop.f32.mrb[0].mxu0
      %v1914 = vadd.f32 0.0, %v1913
      %v1915 = vpop.f32.mrb[0].mxu0
      %v1916 = vpop.f32.mrb[0].mxu0
      %v1917 = vadd.f32 0.0, %v1916
      %v1918 = vpop.f32.mrb[0].mxu0
      %1919 = vmatprep.mubr.bf16.mxu0 %v1775
      %1920 = vmatmul.mubr.bf16.gmra.mrb[0].mxu0 %v1633
      %v1921 = vpop.f32.mrb[0].mxu0
      %v1922 = vadd.f32 0.0, %v1921
      %v1923 = vpop.f32.mrb[0].mxu0
      %v1924 = vpop.f32.mrb[0].mxu0
      %v1925 = vadd.f32 0.0, %v1924
      %v1926 = vpop.f32.mrb[0].mxu0
      %1927 = vmatprep.mubr.bf16.mxu0 %v1778
      %1928 = vmatmul.mubr.bf16.gmra.mrb[0].mxu0 %v1635
      %v1929 = vpop.f32.mrb[0].mxu0
      %v1930 = vadd.f32 0.0, %v1929
      %v1931 = vpop.f32.mrb[0].mxu0
      %v1932 = vpop.f32.mrb[0].mxu0
      %v1933 = vadd.f32 0.0, %v1932
      %v1934 = vpop.f32.mrb[0].mxu0
      %1935 = vmatprep.mubr.bf16.mxu0 %v1781
      %1936 = vmatmul.mubr.bf16.gmra.mrb[0].mxu0 %v1637
      %v1937 = vpop.f32.mrb[0].mxu0
      %v1938 = vadd.f32 0.0, %v1937
      %v1939 = vpop.f32.mrb[0].mxu0
      %v1940 = vpop.f32.mrb[0].mxu0
      %v1941 = vadd.f32 0.0, %v1940
      %v1942 = vpop.f32.mrb[0].mxu0
      %1943 = vdwg.mxu0
      %v1944 = vadd.f32 %v1606, %v1818
      %v1945 = vadd.f32 %v1606, %v1821
      %v1946 = vadd.f32 %v1606, %v1826
      %v1947 = vadd.f32 %v1606, %v1829
      %v1948 = vadd.f32 %v1606, %v1834
      %v1949 = vadd.f32 %v1606, %v1837
      %v1950 = vadd.f32 %v1606, %v1842
      %v1951 = vadd.f32 %v1606, %v1845
      %v1952 = vadd.f32 %v1606, %v1850
      %v1953 = vadd.f32 %v1606, %v1853
      %v1954 = vadd.f32 %v1606, %v1858
      %v1955 = vadd.f32 %v1606, %v1861
      %v1956 = vadd.f32 %v1606, %v1866
      %v1957 = vadd.f32 %v1606, %v1869
      %v1958 = vadd.f32 %v1606, %v1874
      %v1959 = vadd.f32 %v1606, %v1877
      %v1960 = vadd.f32 %v1606, %v1882
      %v1961 = vadd.f32 %v1606, %v1885
      %v1962 = vadd.f32 %v1606, %v1890
      %v1963 = vadd.f32 %v1606, %v1893
      %v1964 = vadd.f32 %v1606, %v1898
      %v1965 = vadd.f32 %v1606, %v1901
      %v1966 = vadd.f32 %v1606, %v1906
      %v1967 = vadd.f32 %v1606, %v1909
      %v1968 = vadd.f32 %v1606, %v1914
      %v1969 = vadd.f32 %v1606, %v1917
      %v1970 = vadd.f32 %v1606, %v1922
      %v1971 = vadd.f32 %v1606, %v1925
      %v1972 = vadd.f32 %v1606, %v1930
      %v1973 = vadd.f32 %v1606, %v1933
      %v1974 = vadd.f32 %v1606, %v1938
      %v1975 = vadd.f32 %v1606, %v1941
      %v1976 = vpack.c.bf16 %v1600, %v1599
      %v1977 = vpack.c.bf16 %v1439, %v1438
      %s1978 = scalar_lea.vmem %s3, 96
      %v1979 = vld [vmem:[%s1978] sm:$0xf]
      %v1980 = vld [vmem:[%s1978 + $0x4] sm:$0xf]
      %v1981 = vld [vmem:[%s1978 + $0x8] sm:$0xf]
      %v1982 = vld [vmem:[%s1978 + $0xc] sm:$0xf]
      %v1983 = vld [vmem:[%s1978 + $0x10] sm:$0xf]
      %v1984 = vld [vmem:[%s1978 + $0x14] sm:$0xf]
      %v1985 = vld [vmem:[%s1978 + $0x18] sm:$0xf]
      %v1986 = vld [vmem:[%s1978 + $0x1c] sm:$0xf]
      %v1987 = vld [vmem:[%s1978 + $0x20] sm:$0xf]
      %v1988 = vld [vmem:[%s1978 + $0x24] sm:$0xf]
      %v1989 = vld [vmem:[%s1978 + $0x28] sm:$0xf]
      %v1990 = vld [vmem:[%s1978 + $0x2c] sm:$0xf]
      %v1991 = vld [vmem:[%s1978 + $0x30] sm:$0xf]
      %v1992 = vld [vmem:[%s1978 + $0x34] sm:$0xf]
      %v1993 = vld [vmem:[%s1978 + $0x38] sm:$0xf]
      %v1994 = vld [vmem:[%s1978 + $0x3c] sm:$0xf]
      %v1995 = vld [vmem:[%s1978 + $0x40] sm:$0xf]
      %v1996 = vld [vmem:[%s1978 + $0x44] sm:$0xf]
      %v1997 = vld [vmem:[%s1978 + $0x48] sm:$0xf]
      %v1998 = vld [vmem:[%s1978 + $0x4c] sm:$0xf]
      %v1999 = vld [vmem:[%s1978 + $0x50] sm:$0xf]
      %v2000 = vld [vmem:[%s1978 + $0x54] sm:$0xf]
      %v2001 = vld [vmem:[%s1978 + $0x58] sm:$0xf]
      %v2002 = vld [vmem:[%s1978 + $0x5c] sm:$0xf]
      %v2027 = vunpack.c.l.b16 %v1979
      %v2028 = vunpack.c.l.b16 %v1980
      %v2029 = vunpack.c.l.b16 %v1981
      %v2030 = vunpack.c.l.b16 %v1982
      %v2031 = vunpack.c.l.b16 %v1983
      %v2032 = vunpack.c.l.b16 %v1984
      %v2033 = vunpack.c.l.b16 %v1985
      %v2034 = vunpack.c.l.b16 %v1986
      %v2035 = vunpack.c.l.b16 %v1987
      %v2036 = vunpack.c.l.b16 %v1988
      %v2037 = vunpack.c.l.b16 %v1989
      %v2038 = vunpack.c.l.b16 %v1990
      %v2039 = vunpack.c.l.b16 %v1991
      %v2040 = vunpack.c.l.b16 %v1992
      %v2041 = vunpack.c.l.b16 %v1993
      %v2042 = vunpack.c.l.b16 %v1994
      %v2043 = vunpack.c.l.b16 %v1995
      %v2044 = vunpack.c.l.b16 %v1996
      %v2045 = vunpack.c.l.b16 %v1997
      %v2046 = vunpack.c.l.b16 %v1998
      %v2047 = vunpack.c.l.b16 %v1999
      %v2048 = vunpack.c.l.b16 %v2000
      %v2049 = vunpack.c.l.b16 %v2001
      %v2050 = vunpack.c.l.b16 %v2002
      %v2051 = vpack.c.b16 %v2028, %v2027
      %v2052 = vpack.c.b16 %v2030, %v2029
      %v2053 = vpack.c.b16 %v2032, %v2031
      %v2054 = vpack.c.b16 %v2034, %v2033
      %v2055 = vpack.c.b16 %v2036, %v2035
      %v2056 = vpack.c.b16 %v2038, %v2037
      %v2057 = vpack.c.b16 %v2040, %v2039
      %v2058 = vpack.c.b16 %v2042, %v2041
      %v2059 = vpack.c.b16 %v2044, %v2043
      %v2060 = vpack.c.b16 %v2046, %v2045
      %v2061 = vpack.c.b16 %v2048, %v2047
      %v2062 = vpack.c.b16 %v2050, %v2049
      %v2076 = vsel %vm1568, %v1977, 0
      %2078 = vmatprep.subr.bf16.mxu0 0
      %2079 = vmatpush1.bf16.msra.mxu0 %v2051
      %2080 = vmatprep.subr.bf16.mxu0 0
      %2081 = vmatpush1.bf16.msra.mxu0 %v2052
      %2082 = vmatprep.subr.bf16.mxu0 0
      %2083 = vmatpush1.bf16.msra.mxu0 %v2053
      %2084 = vmatprep.subr.bf16.mxu0 0
      %2085 = vmatpush1.bf16.msra.mxu0 %v2054
      %2086 = vmatprep.subr.bf16.mxu0 0
      %2087 = vmatpush1.bf16.msra.mxu0 %v2055
      %2088 = vmatprep.subr.bf16.mxu0 0
      %2089 = vmatpush1.bf16.msra.mxu0 %v2056
      %2090 = vmatprep.subr.bf16.mxu0 0
      %2091 = vmatpush1.bf16.msra.mxu0 %v2057
      %2092 = vmatprep.subr.bf16.mxu0 0
      %2093 = vmatpush1.bf16.msra.mxu0 %v2058
      %2094 = vmatprep.subr.bf16.mxu0 0
      %2095 = vmatpush1.bf16.msra.mxu0 %v2059
      %2096 = vmatprep.subr.bf16.mxu0 0
      %2097 = vmatpush1.bf16.msra.mxu0 %v2060
      %2098 = vmatprep.subr.bf16.mxu0 0
      %2099 = vmatpush1.bf16.msra.mxu0 %v2061
      %2100 = vmatprep.subr.bf16.mxu0 0
      %2101 = vmatpush1.bf16.msra.mxu0 %v2062
      %2102 = vmatprep.subr.bf16.mxu0 0
      %2103 = vmatpush1.bf16.msra.mxu0 0
      %2104 = vmatprep.subr.bf16.mxu0 0
      %2105 = vmatpush1.bf16.msra.mxu0 0
      %2106 = vmatprep.subr.bf16.mxu0 0
      %2107 = vmatpush1.bf16.msra.mxu0 0
      %2108 = vmatprep.subr.bf16.mxu0 0
      %2109 = vmatpush1.bf16.msra.mxu0 0
      %2110 = vmatprep.mubr.bf16.mxu0 %v1739
      %2111 = vmatmul.mubr.bf16.gmra.mrb[0].mxu0 %v1609
      %v2112 = vpop.f32.mrb[0].mxu0
      %v2113 = vadd.f32 0.0, %v2112
      %v2114 = vpop.f32.mrb[0].mxu0
      %v2115 = vpop.f32.mrb[0].mxu0
      %v2116 = vadd.f32 0.0, %v2115
      %v2117 = vpop.f32.mrb[0].mxu0
      %2118 = vmatprep.mubr.bf16.mxu0 %v1742
      %2119 = vmatmul.mubr.bf16.gmra.mrb[0].mxu0 %v1611
      %v2120 = vpop.f32.mrb[0].mxu0
      %v2121 = vadd.f32 0.0, %v2120
      %v2122 = vpop.f32.mrb[0].mxu0
      %v2123 = vpop.f32.mrb[0].mxu0
      %v2124 = vadd.f32 0.0, %v2123
      %v2125 = vpop.f32.mrb[0].mxu0
      %2126 = vmatprep.mubr.bf16.mxu0 %v1745
      %2127 = vmatmul.mubr.bf16.gmra.mrb[0].mxu0 %v1613
      %v2128 = vpop.f32.mrb[0].mxu0
      %v2129 = vadd.f32 0.0, %v2128
      %v2130 = vpop.f32.mrb[0].mxu0
      %v2131 = vpop.f32.mrb[0].mxu0
      %v2132 = vadd.f32 0.0, %v2131
      %v2133 = vpop.f32.mrb[0].mxu0
      %2134 = vmatprep.mubr.bf16.mxu0 %v1748
      %2135 = vmatmul.mubr.bf16.gmra.mrb[0].mxu0 %v1615
      %v2136 = vpop.f32.mrb[0].mxu0
      %v2137 = vadd.f32 0.0, %v2136
      %v2138 = vpop.f32.mrb[0].mxu0
      %v2139 = vpop.f32.mrb[0].mxu0
      %v2140 = vadd.f32 0.0, %v2139
      %v2141 = vpop.f32.mrb[0].mxu0
      %2142 = vmatprep.mubr.bf16.mxu0 %v1751
      %2143 = vmatmul.mubr.bf16.gmra.mrb[0].mxu0 %v1617
      %v2144 = vpop.f32.mrb[0].mxu0
      %v2145 = vadd.f32 0.0, %v2144
      %v2146 = vpop.f32.mrb[0].mxu0
      %v2147 = vpop.f32.mrb[0].mxu0
      %v2148 = vadd.f32 0.0, %v2147
      %v2149 = vpop.f32.mrb[0].mxu0
      %2150 = vmatprep.mubr.bf16.mxu0 %v1754
      %2151 = vmatmul.mubr.bf16.gmra.mrb[0].mxu0 %v1619
      %v2152 = vpop.f32.mrb[0].mxu0
      %v2153 = vadd.f32 0.0, %v2152
      %v2154 = vpop.f32.mrb[0].mxu0
      %v2155 = vpop.f32.mrb[0].mxu0
      %v2156 = vadd.f32 0.0, %v2155
      %v2157 = vpop.f32.mrb[0].mxu0
      %2158 = vmatprep.mubr.bf16.mxu0 %v1757
      %2159 = vmatmul.mubr.bf16.gmra.mrb[0].mxu0 %v1621
      %v2160 = vpop.f32.mrb[0].mxu0
      %v2161 = vadd.f32 0.0, %v2160
      %v2162 = vpop.f32.mrb[0].mxu0
      %v2163 = vpop.f32.mrb[0].mxu0
      %v2164 = vadd.f32 0.0, %v2163
      %v2165 = vpop.f32.mrb[0].mxu0
      %2166 = vmatprep.mubr.bf16.mxu0 %v1760
      %2167 = vmatmul.mubr.bf16.gmra.mrb[0].mxu0 %v1623
      %v2168 = vpop.f32.mrb[0].mxu0
      %v2169 = vadd.f32 0.0, %v2168
      %v2170 = vpop.f32.mrb[0].mxu0
      %v2171 = vpop.f32.mrb[0].mxu0
      %v2172 = vadd.f32 0.0, %v2171
      %v2173 = vpop.f32.mrb[0].mxu0
      %2174 = vmatprep.mubr.bf16.mxu0 %v1763
      %2175 = vmatmul.mubr.bf16.gmra.mrb[0].mxu0 %v1625
      %v2176 = vpop.f32.mrb[0].mxu0
      %v2177 = vadd.f32 0.0, %v2176
      %v2178 = vpop.f32.mrb[0].mxu0
      %v2179 = vpop.f32.mrb[0].mxu0
      %v2180 = vadd.f32 0.0, %v2179
      %v2181 = vpop.f32.mrb[0].mxu0
      %2182 = vmatprep.mubr.bf16.mxu0 %v1766
      %2183 = vmatmul.mubr.bf16.gmra.mrb[0].mxu0 %v1627
      %v2184 = vpop.f32.mrb[0].mxu0
      %v2185 = vadd.f32 0.0, %v2184
      %v2186 = vpop.f32.mrb[0].mxu0
      %v2187 = vpop.f32.mrb[0].mxu0
      %v2188 = vadd.f32 0.0, %v2187
      %v2189 = vpop.f32.mrb[0].mxu0
      %2190 = vmatprep.mubr.bf16.mxu0 %v1769
      %2191 = vmatmul.mubr.bf16.gmra.mrb[0].mxu0 %v1629
      %v2192 = vpop.f32.mrb[0].mxu0
      %v2193 = vadd.f32 0.0, %v2192
      %v2194 = vpop.f32.mrb[0].mxu0
      %v2195 = vpop.f32.mrb[0].mxu0
      %v2196 = vadd.f32 0.0, %v2195
      %v2197 = vpop.f32.mrb[0].mxu0
      %2198 = vmatprep.mubr.bf16.mxu0 %v1772
      %2199 = vmatmul.mubr.bf16.gmra.mrb[0].mxu0 %v1631
      %v2200 = vpop.f32.mrb[0].mxu0
      %v2201 = vadd.f32 0.0, %v2200
      %v2202 = vpop.f32.mrb[0].mxu0
      %v2203 = vpop.f32.mrb[0].mxu0
      %v2204 = vadd.f32 0.0, %v2203
      %v2205 = vpop.f32.mrb[0].mxu0
      %2206 = vmatprep.mubr.bf16.mxu0 %v1775
      %2207 = vmatmul.mubr.bf16.gmra.mrb[0].mxu0 %v1633
      %v2208 = vpop.f32.mrb[0].mxu0
      %v2209 = vadd.f32 0.0, %v2208
      %v2210 = vpop.f32.mrb[0].mxu0
      %v2211 = vpop.f32.mrb[0].mxu0
      %v2212 = vadd.f32 0.0, %v2211
      %v2213 = vpop.f32.mrb[0].mxu0
      %2214 = vmatprep.mubr.bf16.mxu0 %v1778
      %2215 = vmatmul.mubr.bf16.gmra.mrb[0].mxu0 %v1635
      %v2216 = vpop.f32.mrb[0].mxu0
      %v2217 = vadd.f32 0.0, %v2216
      %v2218 = vpop.f32.mrb[0].mxu0
      %v2219 = vpop.f32.mrb[0].mxu0
      %v2220 = vadd.f32 0.0, %v2219
      %v2221 = vpop.f32.mrb[0].mxu0
      %2222 = vmatprep.mubr.bf16.mxu0 %v1781
      %2223 = vmatmul.mubr.bf16.gmra.mrb[0].mxu0 %v1637
      %v2224 = vpop.f32.mrb[0].mxu0
      %v2225 = vadd.f32 0.0, %v2224
      %v2226 = vpop.f32.mrb[0].mxu0
      %v2227 = vpop.f32.mrb[0].mxu0
      %v2228 = vadd.f32 0.0, %v2227
      %v2229 = vpop.f32.mrb[0].mxu0
      %2230 = vmatprep.mubr.bf16.mxu0 %v2076
      %2231 = vmatmul.mubr.bf16.gmra.mrb[0].mxu0 %v1976
      %v2232 = vpop.f32.mrb[0].mxu0
      %v2233 = vadd.f32 0.0, %v2232
      %v2234 = vpop.f32.mrb[0].mxu0
      %v2235 = vpop.f32.mrb[0].mxu0
      %v2236 = vadd.f32 0.0, %v2235
      %v2237 = vpop.f32.mrb[0].mxu0
      %2238 = vdwg.mxu0
      %v2239 = vadd.f32 %v1944, %v2113
      %v2240 = vadd.f32 %v1945, %v2116
      %v2241 = vadd.f32 %v1946, %v2121
      %v2242 = vadd.f32 %v1947, %v2124
      %v2243 = vadd.f32 %v1948, %v2129
      %v2244 = vadd.f32 %v1949, %v2132
      %v2245 = vadd.f32 %v1950, %v2137
      %v2246 = vadd.f32 %v1951, %v2140
      %v2247 = vadd.f32 %v1952, %v2145
      %v2248 = vadd.f32 %v1953, %v2148
      %v2249 = vadd.f32 %v1954, %v2153
      %v2250 = vadd.f32 %v1955, %v2156
      %v2251 = vadd.f32 %v1956, %v2161
      %v2252 = vadd.f32 %v1957, %v2164
      %v2253 = vadd.f32 %v1958, %v2169
      %v2254 = vadd.f32 %v1959, %v2172
      %v2255 = vadd.f32 %v1960, %v2177
      %v2256 = vadd.f32 %v1961, %v2180
      %v2257 = vadd.f32 %v1962, %v2185
      %v2258 = vadd.f32 %v1963, %v2188
      %v2259 = vadd.f32 %v1964, %v2193
      %v2260 = vadd.f32 %v1965, %v2196
      %v2261 = vadd.f32 %v1966, %v2201
      %v2262 = vadd.f32 %v1967, %v2204
      %v2263 = vadd.f32 %v1968, %v2209
      %v2264 = vadd.f32 %v1969, %v2212
      %v2265 = vadd.f32 %v1970, %v2217
      %v2266 = vadd.f32 %v1971, %v2220
      %v2267 = vadd.f32 %v1972, %v2225
      %v2268 = vadd.f32 %v1973, %v2228
      %v2269 = vadd.f32 %v1974, %v2233
      %v2270 = vadd.f32 %v1975, %v2236
      %s2271 = scalar_lea.vmem %s3, 192
      %v2272 = vld [vmem:[%s2271] sm:$0xf]
      %v2273 = vld [vmem:[%s2271 + $0x4] sm:$0xf]
      %v2274 = vld [vmem:[%s2271 + $0x8] sm:$0xf]
      %v2275 = vld [vmem:[%s2271 + $0xc] sm:$0xf]
      %v2276 = vld [vmem:[%s2271 + $0x10] sm:$0xf]
      %v2277 = vld [vmem:[%s2271 + $0x14] sm:$0xf]
      %v2278 = vld [vmem:[%s2271 + $0x18] sm:$0xf]
      %v2279 = vld [vmem:[%s2271 + $0x1c] sm:$0xf]
      %v2280 = vld [vmem:[%s2271 + $0x20] sm:$0xf]
      %v2281 = vld [vmem:[%s2271 + $0x24] sm:$0xf]
      %v2282 = vld [vmem:[%s2271 + $0x28] sm:$0xf]
      %v2283 = vld [vmem:[%s2271 + $0x2c] sm:$0xf]
      %v2284 = vld [vmem:[%s2271 + $0x30] sm:$0xf]
      %v2285 = vld [vmem:[%s2271 + $0x34] sm:$0xf]
      %v2286 = vld [vmem:[%s2271 + $0x38] sm:$0xf]
      %v2287 = vld [vmem:[%s2271 + $0x3c] sm:$0xf]
      %v2288 = vld [vmem:[%s2271 + $0x40] sm:$0xf]
      %v2289 = vld [vmem:[%s2271 + $0x44] sm:$0xf]
      %v2290 = vld [vmem:[%s2271 + $0x48] sm:$0xf]
      %v2291 = vld [vmem:[%s2271 + $0x4c] sm:$0xf]
      %v2292 = vld [vmem:[%s2271 + $0x50] sm:$0xf]
      %v2293 = vld [vmem:[%s2271 + $0x54] sm:$0xf]
      %v2294 = vld [vmem:[%s2271 + $0x58] sm:$0xf]
      %v2295 = vld [vmem:[%s2271 + $0x5c] sm:$0xf]
      %v2320 = vunpack.c.l.b16 %v2272
      %v2321 = vunpack.c.l.b16 %v2273
      %v2322 = vunpack.c.l.b16 %v2274
      %v2323 = vunpack.c.l.b16 %v2275
      %v2324 = vunpack.c.l.b16 %v2276
      %v2325 = vunpack.c.l.b16 %v2277
      %v2326 = vunpack.c.l.b16 %v2278
      %v2327 = vunpack.c.l.b16 %v2279
      %v2328 = vunpack.c.l.b16 %v2280
      %v2329 = vunpack.c.l.b16 %v2281
      %v2330 = vunpack.c.l.b16 %v2282
      %v2331 = vunpack.c.l.b16 %v2283
      %v2332 = vunpack.c.l.b16 %v2284
      %v2333 = vunpack.c.l.b16 %v2285
      %v2334 = vunpack.c.l.b16 %v2286
      %v2335 = vunpack.c.l.b16 %v2287
      %v2336 = vunpack.c.l.b16 %v2288
      %v2337 = vunpack.c.l.b16 %v2289
      %v2338 = vunpack.c.l.b16 %v2290
      %v2339 = vunpack.c.l.b16 %v2291
      %v2340 = vunpack.c.l.b16 %v2292
      %v2341 = vunpack.c.l.b16 %v2293
      %v2342 = vunpack.c.l.b16 %v2294
      %v2343 = vunpack.c.l.b16 %v2295
      %v2344 = vpack.c.b16 %v2321, %v2320
      %v2345 = vpack.c.b16 %v2323, %v2322
      %v2346 = vpack.c.b16 %v2325, %v2324
      %v2347 = vpack.c.b16 %v2327, %v2326
      %v2348 = vpack.c.b16 %v2329, %v2328
      %v2349 = vpack.c.b16 %v2331, %v2330
      %v2350 = vpack.c.b16 %v2333, %v2332
      %v2351 = vpack.c.b16 %v2335, %v2334
      %v2352 = vpack.c.b16 %v2337, %v2336
      %v2353 = vpack.c.b16 %v2339, %v2338
      %v2354 = vpack.c.b16 %v2341, %v2340
      %v2355 = vpack.c.b16 %v2343, %v2342
      %2368 = vmatprep.subr.bf16.mxu0 0
      %2369 = vmatpush1.bf16.msra.mxu0 %v2344
      %2370 = vmatprep.subr.bf16.mxu0 0
      %2371 = vmatpush1.bf16.msra.mxu0 %v2345
      %2372 = vmatprep.subr.bf16.mxu0 0
      %2373 = vmatpush1.bf16.msra.mxu0 %v2346
      %2374 = vmatprep.subr.bf16.mxu0 0
      %2375 = vmatpush1.bf16.msra.mxu0 %v2347
      %2376 = vmatprep.subr.bf16.mxu0 0
      %2377 = vmatpush1.bf16.msra.mxu0 %v2348
      %2378 = vmatprep.subr.bf16.mxu0 0
      %2379 = vmatpush1.bf16.msra.mxu0 %v2349
      %2380 = vmatprep.subr.bf16.mxu0 0
      %2381 = vmatpush1.bf16.msra.mxu0 %v2350
      %2382 = vmatprep.subr.bf16.mxu0 0
      %2383 = vmatpush1.bf16.msra.mxu0 %v2351
      %2384 = vmatprep.subr.bf16.mxu0 0
      %2385 = vmatpush1.bf16.msra.mxu0 %v2352
      %2386 = vmatprep.subr.bf16.mxu0 0
      %2387 = vmatpush1.bf16.msra.mxu0 %v2353
      %2388 = vmatprep.subr.bf16.mxu0 0
      %2389 = vmatpush1.bf16.msra.mxu0 %v2354
      %2390 = vmatprep.subr.bf16.mxu0 0
      %2391 = vmatpush1.bf16.msra.mxu0 %v2355
      %2392 = vmatprep.subr.bf16.mxu0 0
      %2393 = vmatpush1.bf16.msra.mxu0 0
      %2394 = vmatprep.subr.bf16.mxu0 0
      %2395 = vmatpush1.bf16.msra.mxu0 0
      %2396 = vmatprep.subr.bf16.mxu0 0
      %2397 = vmatpush1.bf16.msra.mxu0 0
      %2398 = vmatprep.subr.bf16.mxu0 0
      %2399 = vmatpush1.bf16.msra.mxu0 0
      %2400 = vmatprep.mubr.bf16.mxu0 %v1742
      %2401 = vmatmul.mubr.bf16.gmra.mrb[0].mxu0 %v1611
      %v2402 = vpop.f32.mrb[0].mxu0
      %v2403 = vadd.f32 0.0, %v2402
      %v2404 = vpop.f32.mrb[0].mxu0
      %v2405 = vpop.f32.mrb[0].mxu0
      %v2406 = vadd.f32 0.0, %v2405
      %v2407 = vpop.f32.mrb[0].mxu0
      %2408 = vmatprep.mubr.bf16.mxu0 %v1745
      %2409 = vmatmul.mubr.bf16.gmra.mrb[0].mxu0 %v1613
      %v2410 = vpop.f32.mrb[0].mxu0
      %v2411 = vadd.f32 0.0, %v2410
      %v2412 = vpop.f32.mrb[0].mxu0
      %v2413 = vpop.f32.mrb[0].mxu0
      %v2414 = vadd.f32 0.0, %v2413
      %v2415 = vpop.f32.mrb[0].mxu0
      %2416 = vmatprep.mubr.bf16.mxu0 %v1748
      %2417 = vmatmul.mubr.bf16.gmra.mrb[0].mxu0 %v1615
      %v2418 = vpop.f32.mrb[0].mxu0
      %v2419 = vadd.f32 0.0, %v2418
      %v2420 = vpop.f32.mrb[0].mxu0
      %v2421 = vpop.f32.mrb[0].mxu0
      %v2422 = vadd.f32 0.0, %v2421
      %v2423 = vpop.f32.mrb[0].mxu0
      %2424 = vmatprep.mubr.bf16.mxu0 %v1751
      %2425 = vmatmul.mubr.bf16.gmra.mrb[0].mxu0 %v1617
      %v2426 = vpop.f32.mrb[0].mxu0
      %v2427 = vadd.f32 0.0, %v2426
      %v2428 = vpop.f32.mrb[0].mxu0
      %v2429 = vpop.f32.mrb[0].mxu0
      %v2430 = vadd.f32 0.0, %v2429
      %v2431 = vpop.f32.mrb[0].mxu0
      %2432 = vmatprep.mubr.bf16.mxu0 %v1754
      %2433 = vmatmul.mubr.bf16.gmra.mrb[0].mxu0 %v1619
      %v2434 = vpop.f32.mrb[0].mxu0
      %v2435 = vadd.f32 0.0, %v2434
      %v2436 = vpop.f32.mrb[0].mxu0
      %v2437 = vpop.f32.mrb[0].mxu0
      %v2438 = vadd.f32 0.0, %v2437
      %v2439 = vpop.f32.mrb[0].mxu0
      %2440 = vmatprep.mubr.bf16.mxu0 %v1757
      %2441 = vmatmul.mubr.bf16.gmra.mrb[0].mxu0 %v1621
      %v2442 = vpop.f32.mrb[0].mxu0
      %v2443 = vadd.f32 0.0, %v2442
      %v2444 = vpop.f32.mrb[0].mxu0
      %v2445 = vpop.f32.mrb[0].mxu0
      %v2446 = vadd.f32 0.0, %v2445
      %v2447 = vpop.f32.mrb[0].mxu0
      %2448 = vmatprep.mubr.bf16.mxu0 %v1760
      %2449 = vmatmul.mubr.bf16.gmra.mrb[0].mxu0 %v1623
      %v2450 = vpop.f32.mrb[0].mxu0
      %v2451 = vadd.f32 0.0, %v2450
      %v2452 = vpop.f32.mrb[0].mxu0
      %v2453 = vpop.f32.mrb[0].mxu0
      %v2454 = vadd.f32 0.0, %v2453
      %v2455 = vpop.f32.mrb[0].mxu0
      %2456 = vmatprep.mubr.bf16.mxu0 %v1763
      %2457 = vmatmul.mubr.bf16.gmra.mrb[0].mxu0 %v1625
      %v2458 = vpop.f32.mrb[0].mxu0
      %v2459 = vadd.f32 0.0, %v2458
      %v2460 = vpop.f32.mrb[0].mxu0
      %v2461 = vpop.f32.mrb[0].mxu0
      %v2462 = vadd.f32 0.0, %v2461
      %v2463 = vpop.f32.mrb[0].mxu0
      %2464 = vmatprep.mubr.bf16.mxu0 %v1766
      %2465 = vmatmul.mubr.bf16.gmra.mrb[0].mxu0 %v1627
      %v2466 = vpop.f32.mrb[0].mxu0
      %v2467 = vadd.f32 0.0, %v2466
      %v2468 = vpop.f32.mrb[0].mxu0
      %v2469 = vpop.f32.mrb[0].mxu0
      %v2470 = vadd.f32 0.0, %v2469
      %v2471 = vpop.f32.mrb[0].mxu0
      %2472 = vmatprep.mubr.bf16.mxu0 %v1769
      %2473 = vmatmul.mubr.bf16.gmra.mrb[0].mxu0 %v1629
      %v2474 = vpop.f32.mrb[0].mxu0
      %v2475 = vadd.f32 0.0, %v2474
      %v2476 = vpop.f32.mrb[0].mxu0
      %v2477 = vpop.f32.mrb[0].mxu0
      %v2478 = vadd.f32 0.0, %v2477
      %v2479 = vpop.f32.mrb[0].mxu0
      %2480 = vmatprep.mubr.bf16.mxu0 %v1772
      %2481 = vmatmul.mubr.bf16.gmra.mrb[0].mxu0 %v1631
      %v2482 = vpop.f32.mrb[0].mxu0
      %v2483 = vadd.f32 0.0, %v2482
      %v2484 = vpop.f32.mrb[0].mxu0
      %v2485 = vpop.f32.mrb[0].mxu0
      %v2486 = vadd.f32 0.0, %v2485
      %v2487 = vpop.f32.mrb[0].mxu0
      %2488 = vmatprep.mubr.bf16.mxu0 %v1775
      %2489 = vmatmul.mubr.bf16.gmra.mrb[0].mxu0 %v1633
      %v2490 = vpop.f32.mrb[0].mxu0
      %v2491 = vadd.f32 0.0, %v2490
      %v2492 = vpop.f32.mrb[0].mxu0
      %v2493 = vpop.f32.mrb[0].mxu0
      %v2494 = vadd.f32 0.0, %v2493
      %v2495 = vpop.f32.mrb[0].mxu0
      %2496 = vmatprep.mubr.bf16.mxu0 %v1778
      %2497 = vmatmul.mubr.bf16.gmra.mrb[0].mxu0 %v1635
      %v2498 = vpop.f32.mrb[0].mxu0
      %v2499 = vadd.f32 0.0, %v2498
      %v2500 = vpop.f32.mrb[0].mxu0
      %v2501 = vpop.f32.mrb[0].mxu0
      %v2502 = vadd.f32 0.0, %v2501
      %v2503 = vpop.f32.mrb[0].mxu0
      %2504 = vmatprep.mubr.bf16.mxu0 %v1781
      %2505 = vmatmul.mubr.bf16.gmra.mrb[0].mxu0 %v1637
      %v2506 = vpop.f32.mrb[0].mxu0
      %v2507 = vadd.f32 0.0, %v2506
      %v2508 = vpop.f32.mrb[0].mxu0
      %v2509 = vpop.f32.mrb[0].mxu0
      %v2510 = vadd.f32 0.0, %v2509
      %v2511 = vpop.f32.mrb[0].mxu0
      %2512 = vmatprep.mubr.bf16.mxu0 %v2076
      %2513 = vmatmul.mubr.bf16.gmra.mrb[0].mxu0 %v1976
      %v2514 = vpop.f32.mrb[0].mxu0
      %v2515 = vadd.f32 0.0, %v2514
      %v2516 = vpop.f32.mrb[0].mxu0
      %v2517 = vpop.f32.mrb[0].mxu0
      %v2518 = vadd.f32 0.0, %v2517
      %v2519 = vpop.f32.mrb[0].mxu0
      %2520 = vmatprep.mubr.bf16.mxu0 %v1736
      %2521 = vmatmul.mubr.bf16.gmra.mrb[0].mxu0 %v1608
      %v2522 = vpop.f32.mrb[0].mxu0
      %v2523 = vadd.f32 0.0, %v2522
      %v2524 = vpop.f32.mrb[0].mxu0
      %v2525 = vpop.f32.mrb[0].mxu0
      %v2526 = vadd.f32 0.0, %v2525
      %v2527 = vpop.f32.mrb[0].mxu0
      %2528 = vdwg.mxu0
      %v2529 = vadd.f32 %v2239, %v2403
      %v2530 = vadd.f32 %v2240, %v2406
      %v2531 = vadd.f32 %v2241, %v2411
      %v2532 = vadd.f32 %v2242, %v2414
      %v2533 = vadd.f32 %v2243, %v2419
      %v2534 = vadd.f32 %v2244, %v2422
      %v2535 = vadd.f32 %v2245, %v2427
      %v2536 = vadd.f32 %v2246, %v2430
      %v2537 = vadd.f32 %v2247, %v2435
      %v2538 = vadd.f32 %v2248, %v2438
      %v2539 = vadd.f32 %v2249, %v2443
      %v2540 = vadd.f32 %v2250, %v2446
      %v2541 = vadd.f32 %v2251, %v2451
      %v2542 = vadd.f32 %v2252, %v2454
      %v2543 = vadd.f32 %v2253, %v2459
      %v2544 = vadd.f32 %v2254, %v2462
      %v2545 = vadd.f32 %v2255, %v2467
      %v2546 = vadd.f32 %v2256, %v2470
      %v2547 = vadd.f32 %v2257, %v2475
      %v2548 = vadd.f32 %v2258, %v2478
      %v2549 = vadd.f32 %v2259, %v2483
      %v2550 = vadd.f32 %v2260, %v2486
      %v2551 = vadd.f32 %v2261, %v2491
      %v2552 = vadd.f32 %v2262, %v2494
      %v2553 = vadd.f32 %v2263, %v2499
      %v2554 = vadd.f32 %v2264, %v2502
      %v2555 = vadd.f32 %v2265, %v2507
      %v2556 = vadd.f32 %v2266, %v2510
      %v2557 = vadd.f32 %v2267, %v2515
      %v2558 = vadd.f32 %v2268, %v2518
      %v2559 = vadd.f32 %v2269, %v2523
      %v2560 = vadd.f32 %v2270, %v2526
      %v2561 = vmax.f32 %v2529, 0.0
      %v2562 = vmax.f32 %v2530, 0.0
      %v2563 = vmax.f32 %v2531, 0.0
      %v2564 = vmax.f32 %v2532, 0.0
      %v2565 = vmax.f32 %v2533, 0.0
      %v2566 = vmax.f32 %v2534, 0.0
      %v2567 = vmax.f32 %v2535, 0.0
      %v2568 = vmax.f32 %v2536, 0.0
      %v2569 = vmax.f32 %v2537, 0.0
      %v2570 = vmax.f32 %v2538, 0.0
      %v2571 = vmax.f32 %v2539, 0.0
      %v2572 = vmax.f32 %v2540, 0.0
      %v2573 = vmax.f32 %v2541, 0.0
      %v2574 = vmax.f32 %v2542, 0.0
      %v2575 = vmax.f32 %v2543, 0.0
      %v2576 = vmax.f32 %v2544, 0.0
      %v2577 = vmax.f32 %v2545, 0.0
      %v2578 = vmax.f32 %v2546, 0.0
      %v2579 = vmax.f32 %v2547, 0.0
      %v2580 = vmax.f32 %v2548, 0.0
      %v2581 = vmax.f32 %v2549, 0.0
      %v2582 = vmax.f32 %v2550, 0.0
      %v2583 = vmax.f32 %v2551, 0.0
      %v2584 = vmax.f32 %v2552, 0.0
      %v2585 = vmax.f32 %v2553, 0.0
      %v2586 = vmax.f32 %v2554, 0.0
      %v2587 = vmax.f32 %v2555, 0.0
      %v2588 = vmax.f32 %v2556, 0.0
      %v2589 = vmax.f32 %v2557, 0.0
      %v2590 = vmax.f32 %v2558, 0.0
      %v2591 = vmax.f32 %v2559, 0.0
      %v2592 = vmax.f32 %v2560, 0.0
      %v2593 = vrot.slane %v2561, 7
      %v2594 = vrot.slane %v2562, 7
      %v2595 = vrot.slane %v2563, 7
      %v2596 = vrot.slane %v2564, 7
      %v2597 = vrot.slane %v2565, 7
      %v2598 = vrot.slane %v2566, 7
      %v2599 = vrot.slane %v2567, 7
      %v2600 = vrot.slane %v2568, 7
      %v2601 = vrot.slane %v2569, 7
      %v2602 = vrot.slane %v2570, 7
      %v2603 = vrot.slane %v2571, 7
      %v2604 = vrot.slane %v2572, 7
      %v2605 = vrot.slane %v2573, 7
      %v2606 = vrot.slane %v2574, 7
      %v2607 = vrot.slane %v2575, 7
      %v2608 = vrot.slane %v2576, 7
      %v2609 = vrot.slane %v2577, 7
      %v2610 = vrot.slane %v2578, 7
      %v2611 = vrot.slane %v2579, 7
      %v2612 = vrot.slane %v2580, 7
      %v2613 = vrot.slane %v2581, 7
      %v2614 = vrot.slane %v2582, 7
      %v2615 = vrot.slane %v2583, 7
      %v2616 = vrot.slane %v2584, 7
      %v2617 = vrot.slane %v2585, 7
      %v2618 = vrot.slane %v2586, 7
      %v2619 = vrot.slane %v2587, 7
      %v2620 = vrot.slane %v2588, 7
      %v2621 = vrot.slane %v2589, 7
      %v2622 = vrot.slane %v2590, 7
      %v2623 = vrot.slane %v2591, 7
      %v2624 = vrot.slane %v2592, 7
      %v2625 = vsel %vm1246, %v2623, %v2624
      %v2626 = vsel %vm1246, %v2622, %v2623
      %v2627 = vsel %vm1246, %v2621, %v2622
      %v2628 = vsel %vm1246, %v2620, %v2621
      %v2629 = vsel %vm1246, %v2619, %v2620
      %v2630 = vsel %vm1246, %v2618, %v2619
      %v2631 = vsel %vm1246, %v2617, %v2618
      %v2632 = vsel %vm1246, %v2616, %v2617
      %v2633 = vsel %vm1246, %v2615, %v2616
      %v2634 = vsel %vm1246, %v2614, %v2615
      %v2635 = vsel %vm1246, %v2613, %v2614
      %v2636 = vsel %vm1246, %v2612, %v2613
      %v2637 = vsel %vm1246, %v2611, %v2612
      %v2638 = vsel %vm1246, %v2610, %v2611
      %v2639 = vsel %vm1246, %v2609, %v2610
      %v2640 = vsel %vm1246, %v2608, %v2609
      %v2641 = vsel %vm1246, %v2607, %v2608
      %v2642 = vsel %vm1246, %v2606, %v2607
      %v2643 = vsel %vm1246, %v2605, %v2606
      %v2644 = vsel %vm1246, %v2604, %v2605
      %v2645 = vsel %vm1246, %v2603, %v2604
      %v2646 = vsel %vm1246, %v2602, %v2603
      %v2647 = vsel %vm1246, %v2601, %v2602
      %v2648 = vsel %vm1246, %v2600, %v2601
      %v2649 = vsel %vm1246, %v2599, %v2600
      %v2650 = vsel %vm1246, %v2598, %v2599
      %v2651 = vsel %vm1246, %v2597, %v2598
      %v2652 = vsel %vm1246, %v2596, %v2597
      %v2653 = vsel %vm1246, %v2595, %v2596
      %v2654 = vsel %vm1246, %v2594, %v2595
      %v2655 = vsel %vm1246, %v2593, %v2594
      %v2656 = vsel %vm1246, %v2624, %v2593
      %v2657 = vsel %vm1182, %v2656, 0.0
      %v2658 = vsel %vm1183, %v2655, 0.0
      %v2659 = vsel %vm1184, %v2654, 0.0
      %v2660 = vsel %vm1185, %v2653, 0.0
      %v2661 = vsel %vm1186, %v2652, 0.0
      %v2662 = vsel %vm1187, %v2651, 0.0
      %v2663 = vsel %vm1188, %v2650, 0.0
      %v2664 = vsel %vm1189, %v2649, 0.0
      %v2665 = vsel %vm1190, %v2648, 0.0
      %v2666 = vsel %vm1191, %v2647, 0.0
      %v2667 = vsel %vm1192, %v2646, 0.0
      %v2668 = vsel %vm1193, %v2645, 0.0
      %v2669 = vsel %vm1194, %v2644, 0.0
      %v2670 = vsel %vm1195, %v2643, 0.0
      %v2671 = vsel %vm1196, %v2642, 0.0
      %v2672 = vsel %vm1197, %v2641, 0.0
      %v2673 = vsel %vm1198, %v2640, 0.0
      %v2674 = vsel %vm1199, %v2639, 0.0
      %v2675 = vsel %vm1200, %v2638, 0.0
      %v2676 = vsel %vm1201, %v2637, 0.0
      %v2677 = vsel %vm1202, %v2636, 0.0
      %v2678 = vsel %vm1203, %v2635, 0.0
      %v2679 = vsel %vm1204, %v2634, 0.0
      %v2680 = vsel %vm1205, %v2633, 0.0
      %v2681 = vsel %vm1206, %v2632, 0.0
      %v2682 = vsel %vm1207, %v2631, 0.0
      %v2683 = vsel %vm1208, %v2630, 0.0
      %v2684 = vsel %vm1209, %v2629, 0.0
      %v2685 = vsel %vm1210, %v2628, 0.0
      %v2686 = vsel %vm1211, %v2627, 0.0
      %v2687 = vsel %vm1212, %v2626, 0.0
      %v2688 = vsel %vm1213, %v2625, 0.0
      %v2689 = vrot.slane %v2561, 1
      %v2690 = vrot.slane %v2562, 1
      %v2691 = vrot.slane %v2563, 1
      %v2692 = vrot.slane %v2564, 1
      %v2693 = vrot.slane %v2565, 1
      %v2694 = vrot.slane %v2566, 1
      %v2695 = vrot.slane %v2567, 1
      %v2696 = vrot.slane %v2568, 1
      %v2697 = vrot.slane %v2569, 1
      %v2698 = vrot.slane %v2570, 1
      %v2699 = vrot.slane %v2571, 1
      %v2700 = vrot.slane %v2572, 1
      %v2701 = vrot.slane %v2573, 1
      %v2702 = vrot.slane %v2574, 1
      %v2703 = vrot.slane %v2575, 1
      %v2704 = vrot.slane %v2576, 1
      %v2705 = vrot.slane %v2577, 1
      %v2706 = vrot.slane %v2578, 1
      %v2707 = vrot.slane %v2579, 1
      %v2708 = vrot.slane %v2580, 1
      %v2709 = vrot.slane %v2581, 1
      %v2710 = vrot.slane %v2582, 1
      %v2711 = vrot.slane %v2583, 1
      %v2712 = vrot.slane %v2584, 1
      %v2713 = vrot.slane %v2585, 1
      %v2714 = vrot.slane %v2586, 1
      %v2715 = vrot.slane %v2587, 1
      %v2716 = vrot.slane %v2588, 1
      %v2717 = vrot.slane %v2589, 1
      %v2718 = vrot.slane %v2590, 1
      %v2719 = vrot.slane %v2591, 1
      %v2720 = vrot.slane %v2592, 1
      %v2721 = vsel %vm1375, %v2719, %v2720
      %v2722 = vsel %vm1375, %v2718, %v2719
      %v2723 = vsel %vm1375, %v2717, %v2718
      %v2724 = vsel %vm1375, %v2716, %v2717
      %v2725 = vsel %vm1375, %v2715, %v2716
      %v2726 = vsel %vm1375, %v2714, %v2715
      %v2727 = vsel %vm1375, %v2713, %v2714
      %v2728 = vsel %vm1375, %v2712, %v2713
      %v2729 = vsel %vm1375, %v2711, %v2712
      %v2730 = vsel %vm1375, %v2710, %v2711
      %v2731 = vsel %vm1375, %v2709, %v2710
      %v2732 = vsel %vm1375, %v2708, %v2709
      %v2733 = vsel %vm1375, %v2707, %v2708
      %v2734 = vsel %vm1375, %v2706, %v2707
      %v2735 = vsel %vm1375, %v2705, %v2706
      %v2736 = vsel %vm1375, %v2704, %v2705
      %v2737 = vsel %vm1375, %v2703, %v2704
      %v2738 = vsel %vm1375, %v2702, %v2703
      %v2739 = vsel %vm1375, %v2701, %v2702
      %v2740 = vsel %vm1375, %v2700, %v2701
      %v2741 = vsel %vm1375, %v2699, %v2700
      %v2742 = vsel %vm1375, %v2698, %v2699
      %v2743 = vsel %vm1375, %v2697, %v2698
      %v2744 = vsel %vm1375, %v2696, %v2697
      %v2745 = vsel %vm1375, %v2695, %v2696
      %v2746 = vsel %vm1375, %v2694, %v2695
      %v2747 = vsel %vm1375, %v2693, %v2694
      %v2748 = vsel %vm1375, %v2692, %v2693
      %v2749 = vsel %vm1375, %v2691, %v2692
      %v2750 = vsel %vm1375, %v2690, %v2691
      %v2751 = vsel %vm1375, %v2689, %v2690
      %v2752 = vsel %vm1375, %v2720, %v2689
      %v2753 = vsel %vm1311, %v2751, 0.0
      %v2754 = vsel %vm1312, %v2750, 0.0
      %v2755 = vsel %vm1313, %v2749, 0.0
      %v2756 = vsel %vm1314, %v2748, 0.0
      %v2757 = vsel %vm1315, %v2747, 0.0
      %v2758 = vsel %vm1316, %v2746, 0.0
      %v2759 = vsel %vm1317, %v2745, 0.0
      %v2760 = vsel %vm1318, %v2744, 0.0
      %v2761 = vsel %vm1319, %v2743, 0.0
      %v2762 = vsel %vm1320, %v2742, 0.0
      %v2763 = vsel %vm1321, %v2741, 0.0
      %v2764 = vsel %vm1322, %v2740, 0.0
      %v2765 = vsel %vm1323, %v2739, 0.0
      %v2766 = vsel %vm1324, %v2738, 0.0
      %v2767 = vsel %vm1325, %v2737, 0.0
      %v2768 = vsel %vm1326, %v2736, 0.0
      %v2769 = vsel %vm1327, %v2735, 0.0
      %v2770 = vsel %vm1328, %v2734, 0.0
      %v2771 = vsel %vm1329, %v2733, 0.0
      %v2772 = vsel %vm1330, %v2732, 0.0
      %v2773 = vsel %vm1331, %v2731, 0.0
      %v2774 = vsel %vm1332, %v2730, 0.0
      %v2775 = vsel %vm1333, %v2729, 0.0
      %v2776 = vsel %vm1334, %v2728, 0.0
      %v2777 = vsel %vm1335, %v2727, 0.0
      %v2778 = vsel %vm1336, %v2726, 0.0
      %v2779 = vsel %vm1337, %v2725, 0.0
      %v2780 = vsel %vm1338, %v2724, 0.0
      %v2781 = vsel %vm1339, %v2723, 0.0
      %v2782 = vsel %vm1340, %v2722, 0.0
      %v2783 = vsel %vm1341, %v2721, 0.0
      %v2784 = vsel %vm1342, %v2752, 0.0
      %2817 = vrot.lane.b32.xlu0 %v2561, 64
      %v2818 = vpop.permute.xlu0 %2817
      %2819 = vrot.lane.b32.xlu0 %v2562, 64
      %v2820 = vpop.permute.xlu0 %2819
      %2821 = vrot.lane.b32.xlu0 %v2563, 64
      %v2822 = vpop.permute.xlu0 %2821
      %2823 = vrot.lane.b32.xlu0 %v2564, 64
      %v2824 = vpop.permute.xlu0 %2823
      %2825 = vrot.lane.b32.xlu0 %v2565, 64
      %v2826 = vpop.permute.xlu0 %2825
      %2827 = vrot.lane.b32.xlu0 %v2566, 64
      %v2828 = vpop.permute.xlu0 %2827
      %2829 = vrot.lane.b32.xlu0 %v2567, 64
      %v2830 = vpop.permute.xlu0 %2829
      %2831 = vrot.lane.b32.xlu0 %v2568, 64
      %v2832 = vpop.permute.xlu0 %2831
      %2833 = vrot.lane.b32.xlu0 %v2569, 64
      %v2834 = vpop.permute.xlu0 %2833
      %2835 = vrot.lane.b32.xlu0 %v2570, 64
      %v2836 = vpop.permute.xlu0 %2835
      %2837 = vrot.lane.b32.xlu0 %v2571, 64
      %v2838 = vpop.permute.xlu0 %2837
      %2839 = vrot.lane.b32.xlu0 %v2572, 64
      %v2840 = vpop.permute.xlu0 %2839
      %2841 = vrot.lane.b32.xlu0 %v2573, 64
      %v2842 = vpop.permute.xlu0 %2841
      %2843 = vrot.lane.b32.xlu0 %v2574, 64
      %v2844 = vpop.permute.xlu0 %2843
      %2845 = vrot.lane.b32.xlu0 %v2575, 64
      %v2846 = vpop.permute.xlu0 %2845
      %2847 = vrot.lane.b32.xlu0 %v2576, 64
      %v2848 = vpop.permute.xlu0 %2847
      %2849 = vrot.lane.b32.xlu0 %v2577, 64
      %v2850 = vpop.permute.xlu0 %2849
      %2851 = vrot.lane.b32.xlu0 %v2578, 64
      %v2852 = vpop.permute.xlu0 %2851
      %2853 = vrot.lane.b32.xlu0 %v2579, 64
      %v2854 = vpop.permute.xlu0 %2853
      %2855 = vrot.lane.b32.xlu0 %v2580, 64
      %v2856 = vpop.permute.xlu0 %2855
      %2857 = vrot.lane.b32.xlu0 %v2581, 64
      %v2858 = vpop.permute.xlu0 %2857
      %2859 = vrot.lane.b32.xlu0 %v2582, 64
      %v2860 = vpop.permute.xlu0 %2859
      %2861 = vrot.lane.b32.xlu0 %v2583, 64
      %v2862 = vpop.permute.xlu0 %2861
      %2863 = vrot.lane.b32.xlu0 %v2584, 64
      %v2864 = vpop.permute.xlu0 %2863
      %2865 = vrot.lane.b32.xlu0 %v2585, 64
      %v2866 = vpop.permute.xlu0 %2865
      %2867 = vrot.lane.b32.xlu0 %v2586, 64
      %v2868 = vpop.permute.xlu0 %2867
      %2869 = vrot.lane.b32.xlu0 %v2587, 64
      %v2870 = vpop.permute.xlu0 %2869
      %2871 = vrot.lane.b32.xlu0 %v2588, 64
      %v2872 = vpop.permute.xlu0 %2871
      %2873 = vrot.lane.b32.xlu0 %v2589, 64
      %v2874 = vpop.permute.xlu0 %2873
      %2875 = vrot.lane.b32.xlu0 %v2590, 64
      %v2876 = vpop.permute.xlu0 %2875
      %2877 = vrot.lane.b32.xlu0 %v2591, 64
      %v2878 = vpop.permute.xlu0 %2877
      %2879 = vrot.lane.b32.xlu0 %v2592, 64
      %v2880 = vpop.permute.xlu0 %2879
      %v2913 = vsel %vm1568, %v2657, %v2818
      %v2914 = vsel %vm1568, %v2658, %v2820
      %v2915 = vsel %vm1568, %v2659, %v2822
      %v2916 = vsel %vm1568, %v2660, %v2824
      %v2917 = vsel %vm1568, %v2661, %v2826
      %v2918 = vsel %vm1568, %v2662, %v2828
      %v2919 = vsel %vm1568, %v2663, %v2830
      %v2920 = vsel %vm1568, %v2664, %v2832
      %v2921 = vsel %vm1568, %v2665, %v2834
      %v2922 = vsel %vm1568, %v2666, %v2836
      %v2923 = vsel %vm1568, %v2667, %v2838
      %v2924 = vsel %vm1568, %v2668, %v2840
      %v2925 = vsel %vm1568, %v2669, %v2842
      %v2926 = vsel %vm1568, %v2670, %v2844
      %v2927 = vsel %vm1568, %v2671, %v2846
      %v2928 = vsel %vm1568, %v2672, %v2848
      %v2929 = vsel %vm1568, %v2673, %v2850
      %v2930 = vsel %vm1568, %v2674, %v2852
      %v2931 = vsel %vm1568, %v2675, %v2854
      %v2932 = vsel %vm1568, %v2676, %v2856
      %v2933 = vsel %vm1568, %v2677, %v2858
      %v2934 = vsel %vm1568, %v2678, %v2860
      %v2935 = vsel %vm1568, %v2679, %v2862
      %v2936 = vsel %vm1568, %v2680, %v2864
      %v2937 = vsel %vm1568, %v2681, %v2866
      %v2938 = vsel %vm1568, %v2682, %v2868
      %v2939 = vsel %vm1568, %v2683, %v2870
      %v2940 = vsel %vm1568, %v2684, %v2872
      %v2941 = vsel %vm1568, %v2685, %v2874
      %v2942 = vsel %vm1568, %v2686, %v2876
      %v2943 = vsel %vm1568, %v2687, %v2878
      %v2944 = vsel %vm1568, %v2688, %v2880
      %v2945 = vld [vmem:[%s6] sm:$0x1]
      %v2947 = vlaneseq
      %v2948 = vshrl.u32 %v2947, 7
      %v2949 = vsub.s32 0, %v2948
      %v2950 = vrot.slane %v2945, %v2949
      %v2952 = vpack.c.bf16 %v2914, %v2913
      %v2953 = vpack.c.bf16 %v2754, %v2753
      %v2954 = vpack.c.bf16 %v2916, %v2915
      %v2955 = vpack.c.bf16 %v2756, %v2755
      %v2956 = vpack.c.bf16 %v2918, %v2917
      %v2957 = vpack.c.bf16 %v2758, %v2757
      %v2958 = vpack.c.bf16 %v2920, %v2919
      %v2959 = vpack.c.bf16 %v2760, %v2759
      %v2960 = vpack.c.bf16 %v2922, %v2921
      %v2961 = vpack.c.bf16 %v2762, %v2761
      %v2962 = vpack.c.bf16 %v2924, %v2923
      %v2963 = vpack.c.bf16 %v2764, %v2763
      %v2964 = vpack.c.bf16 %v2926, %v2925
      %v2965 = vpack.c.bf16 %v2766, %v2765
      %v2966 = vpack.c.bf16 %v2928, %v2927
      %v2967 = vpack.c.bf16 %v2768, %v2767
      %v2968 = vpack.c.bf16 %v2930, %v2929
      %v2969 = vpack.c.bf16 %v2770, %v2769
      %v2970 = vpack.c.bf16 %v2932, %v2931
      %v2971 = vpack.c.bf16 %v2772, %v2771
      %v2972 = vpack.c.bf16 %v2934, %v2933
      %v2973 = vpack.c.bf16 %v2774, %v2773
      %v2974 = vpack.c.bf16 %v2936, %v2935
      %v2975 = vpack.c.bf16 %v2776, %v2775
      %v2976 = vpack.c.bf16 %v2938, %v2937
      %v2977 = vpack.c.bf16 %v2778, %v2777
      %v2978 = vpack.c.bf16 %v2940, %v2939
      %v2979 = vpack.c.bf16 %v2780, %v2779
      %v2980 = vpack.c.bf16 %v2942, %v2941
      %v2981 = vpack.c.bf16 %v2782, %v2781
      %v2982 = vld [vmem:[%s5] sm:$0xf]
      %v2983 = vld [vmem:[%s5 + $0x4] sm:$0xf]
      %v2984 = vld [vmem:[%s5 + $0x8] sm:$0xf]
      %v2985 = vld [vmem:[%s5 + $0xc] sm:$0xf]
      %v2986 = vld [vmem:[%s5 + $0x10] sm:$0xf]
      %v2987 = vld [vmem:[%s5 + $0x14] sm:$0xf]
      %v2988 = vld [vmem:[%s5 + $0x18] sm:$0xf]
      %v2989 = vld [vmem:[%s5 + $0x1c] sm:$0xf]
      %v2990 = vld [vmem:[%s5 + $0x20] sm:$0xf]
      %v2991 = vld [vmem:[%s5 + $0x24] sm:$0xf]
      %v2992 = vld [vmem:[%s5 + $0x28] sm:$0xf]
      %v2993 = vld [vmem:[%s5 + $0x2c] sm:$0xf]
      %v2994 = vld [vmem:[%s5 + $0x30] sm:$0xf]
      %v2995 = vld [vmem:[%s5 + $0x34] sm:$0xf]
      %v2996 = vld [vmem:[%s5 + $0x38] sm:$0xf]
      %v2997 = vld [vmem:[%s5 + $0x3c] sm:$0xf]
      %v2998 = vld [vmem:[%s5 + $0x40] sm:$0xf]
      %v2999 = vld [vmem:[%s5 + $0x44] sm:$0xf]
      %v3000 = vld [vmem:[%s5 + $0x48] sm:$0xf]
      %v3001 = vld [vmem:[%s5 + $0x4c] sm:$0xf]
      %v3002 = vld [vmem:[%s5 + $0x50] sm:$0xf]
      %v3003 = vld [vmem:[%s5 + $0x54] sm:$0xf]
      %v3004 = vld [vmem:[%s5 + $0x58] sm:$0xf]
      %v3005 = vld [vmem:[%s5 + $0x5c] sm:$0xf]
      %v3030 = vunpack.c.l.b16 %v2982
      %v3031 = vunpack.c.l.b16 %v2983
      %v3032 = vunpack.c.l.b16 %v2984
      %v3033 = vunpack.c.l.b16 %v2985
      %v3034 = vunpack.c.l.b16 %v2986
      %v3035 = vunpack.c.l.b16 %v2987
      %v3036 = vunpack.c.l.b16 %v2988
      %v3037 = vunpack.c.l.b16 %v2989
      %v3038 = vunpack.c.l.b16 %v2990
      %v3039 = vunpack.c.l.b16 %v2991
      %v3040 = vunpack.c.l.b16 %v2992
      %v3041 = vunpack.c.l.b16 %v2993
      %v3042 = vunpack.c.l.b16 %v2994
      %v3043 = vunpack.c.l.b16 %v2995
      %v3044 = vunpack.c.l.b16 %v2996
      %v3045 = vunpack.c.l.b16 %v2997
      %v3046 = vunpack.c.l.b16 %v2998
      %v3047 = vunpack.c.l.b16 %v2999
      %v3048 = vunpack.c.l.b16 %v3000
      %v3049 = vunpack.c.l.b16 %v3001
      %v3050 = vunpack.c.l.b16 %v3002
      %v3051 = vunpack.c.l.b16 %v3003
      %v3052 = vunpack.c.l.b16 %v3004
      %v3053 = vunpack.c.l.b16 %v3005
      %v3054 = vpack.c.b16 %v3031, %v3030
      %v3055 = vpack.c.b16 %v3033, %v3032
      %v3056 = vpack.c.b16 %v3035, %v3034
      %v3057 = vpack.c.b16 %v3037, %v3036
      %v3058 = vpack.c.b16 %v3039, %v3038
      %v3059 = vpack.c.b16 %v3041, %v3040
      %v3060 = vpack.c.b16 %v3043, %v3042
      %v3061 = vpack.c.b16 %v3045, %v3044
      %v3062 = vpack.c.b16 %v3047, %v3046
      %v3063 = vpack.c.b16 %v3049, %v3048
      %v3064 = vpack.c.b16 %v3051, %v3050
      %v3065 = vpack.c.b16 %v3053, %v3052
      %v3079 = vsel %vm1568, %v2953, 0
      %v3082 = vsel %vm1568, %v2955, 0
      %v3085 = vsel %vm1568, %v2957, 0
      %v3088 = vsel %vm1568, %v2959, 0
      %v3091 = vsel %vm1568, %v2961, 0
      %v3094 = vsel %vm1568, %v2963, 0
      %v3097 = vsel %vm1568, %v2965, 0
      %v3100 = vsel %vm1568, %v2967, 0
      %v3103 = vsel %vm1568, %v2969, 0
      %v3106 = vsel %vm1568, %v2971, 0
      %v3109 = vsel %vm1568, %v2973, 0
      %v3112 = vsel %vm1568, %v2975, 0
      %v3115 = vsel %vm1568, %v2977, 0
      %v3118 = vsel %vm1568, %v2979, 0
      %v3121 = vsel %vm1568, %v2981, 0
      %3123 = vmatprep.subr.bf16.mxu0 0
      %3124 = vmatpush1.bf16.msra.mxu0 %v3054
      %3125 = vmatprep.subr.bf16.mxu0 0
      %3126 = vmatpush1.bf16.msra.mxu0 %v3055
      %3127 = vmatprep.subr.bf16.mxu0 0
      %3128 = vmatpush1.bf16.msra.mxu0 %v3056
      %3129 = vmatprep.subr.bf16.mxu0 0
      %3130 = vmatpush1.bf16.msra.mxu0 %v3057
      %3131 = vmatprep.subr.bf16.mxu0 0
      %3132 = vmatpush1.bf16.msra.mxu0 %v3058
      %3133 = vmatprep.subr.bf16.mxu0 0
      %3134 = vmatpush1.bf16.msra.mxu0 %v3059
      %3135 = vmatprep.subr.bf16.mxu0 0
      %3136 = vmatpush1.bf16.msra.mxu0 %v3060
      %3137 = vmatprep.subr.bf16.mxu0 0
      %3138 = vmatpush1.bf16.msra.mxu0 %v3061
      %3139 = vmatprep.subr.bf16.mxu0 0
      %3140 = vmatpush1.bf16.msra.mxu0 %v3062
      %3141 = vmatprep.subr.bf16.mxu0 0
      %3142 = vmatpush1.bf16.msra.mxu0 %v3063
      %3143 = vmatprep.subr.bf16.mxu0 0
      %3144 = vmatpush1.bf16.msra.mxu0 %v3064
      %3145 = vmatprep.subr.bf16.mxu0 0
      %3146 = vmatpush1.bf16.msra.mxu0 %v3065
      %3147 = vmatprep.subr.bf16.mxu0 0
      %3148 = vmatpush1.bf16.msra.mxu0 0
      %3149 = vmatprep.subr.bf16.mxu0 0
      %3150 = vmatpush1.bf16.msra.mxu0 0
      %3151 = vmatprep.subr.bf16.mxu0 0
      %3152 = vmatpush1.bf16.msra.mxu0 0
      %3153 = vmatprep.subr.bf16.mxu0 0
      %3154 = vmatpush1.bf16.msra.mxu0 0
      %3155 = vmatprep.mubr.bf16.mxu0 %v1736
      %3156 = vmatmul.mubr.bf16.gmra.mrb[0].mxu0 %v1608
      %v3157 = vpop.f32.mrb[0].mxu0
      %v3158 = vadd.f32 0.0, %v3157
      %v3159 = vpop.f32.mrb[0].mxu0
      %v3160 = vpop.f32.mrb[0].mxu0
      %v3161 = vadd.f32 0.0, %v3160
      %v3162 = vpop.f32.mrb[0].mxu0
      %3163 = vmatprep.mubr.bf16.mxu0 %v3079
      %3164 = vmatmul.mubr.bf16.gmra.mrb[0].mxu0 %v2952
      %v3165 = vpop.f32.mrb[0].mxu0
      %v3166 = vadd.f32 0.0, %v3165
      %v3167 = vpop.f32.mrb[0].mxu0
      %v3168 = vpop.f32.mrb[0].mxu0
      %v3169 = vadd.f32 0.0, %v3168
      %v3170 = vpop.f32.mrb[0].mxu0
      %3171 = vmatprep.mubr.bf16.mxu0 %v3082
      %3172 = vmatmul.mubr.bf16.gmra.mrb[0].mxu0 %v2954
      %v3173 = vpop.f32.mrb[0].mxu0
      %v3174 = vadd.f32 0.0, %v3173
      %v3175 = vpop.f32.mrb[0].mxu0
      %v3176 = vpop.f32.mrb[0].mxu0
      %v3177 = vadd.f32 0.0, %v3176
      %v3178 = vpop.f32.mrb[0].mxu0
      %3179 = vmatprep.mubr.bf16.mxu0 %v3085
      %3180 = vmatmul.mubr.bf16.gmra.mrb[0].mxu0 %v2956
      %v3181 = vpop.f32.mrb[0].mxu0
      %v3182 = vadd.f32 0.0, %v3181
      %v3183 = vpop.f32.mrb[0].mxu0
      %v3184 = vpop.f32.mrb[0].mxu0
      %v3185 = vadd.f32 0.0, %v3184
      %v3186 = vpop.f32.mrb[0].mxu0
      %3187 = vmatprep.mubr.bf16.mxu0 %v3088
      %3188 = vmatmul.mubr.bf16.gmra.mrb[0].mxu0 %v2958
      %v3189 = vpop.f32.mrb[0].mxu0
      %v3190 = vadd.f32 0.0, %v3189
      %v3191 = vpop.f32.mrb[0].mxu0
      %v3192 = vpop.f32.mrb[0].mxu0
      %v3193 = vadd.f32 0.0, %v3192
      %v3194 = vpop.f32.mrb[0].mxu0
      %3195 = vmatprep.mubr.bf16.mxu0 %v3091
      %3196 = vmatmul.mubr.bf16.gmra.mrb[0].mxu0 %v2960
      %v3197 = vpop.f32.mrb[0].mxu0
      %v3198 = vadd.f32 0.0, %v3197
      %v3199 = vpop.f32.mrb[0].mxu0
      %v3200 = vpop.f32.mrb[0].mxu0
      %v3201 = vadd.f32 0.0, %v3200
      %v3202 = vpop.f32.mrb[0].mxu0
      %3203 = vmatprep.mubr.bf16.mxu0 %v3094
      %3204 = vmatmul.mubr.bf16.gmra.mrb[0].mxu0 %v2962
      %v3205 = vpop.f32.mrb[0].mxu0
      %v3206 = vadd.f32 0.0, %v3205
      %v3207 = vpop.f32.mrb[0].mxu0
      %v3208 = vpop.f32.mrb[0].mxu0
      %v3209 = vadd.f32 0.0, %v3208
      %v3210 = vpop.f32.mrb[0].mxu0
      %3211 = vmatprep.mubr.bf16.mxu0 %v3097
      %3212 = vmatmul.mubr.bf16.gmra.mrb[0].mxu0 %v2964
      %v3213 = vpop.f32.mrb[0].mxu0
      %v3214 = vadd.f32 0.0, %v3213
      %v3215 = vpop.f32.mrb[0].mxu0
      %v3216 = vpop.f32.mrb[0].mxu0
      %v3217 = vadd.f32 0.0, %v3216
      %v3218 = vpop.f32.mrb[0].mxu0
      %3219 = vmatprep.mubr.bf16.mxu0 %v3100
      %3220 = vmatmul.mubr.bf16.gmra.mrb[0].mxu0 %v2966
      %v3221 = vpop.f32.mrb[0].mxu0
      %v3222 = vadd.f32 0.0, %v3221
      %v3223 = vpop.f32.mrb[0].mxu0
      %v3224 = vpop.f32.mrb[0].mxu0
      %v3225 = vadd.f32 0.0, %v3224
      %v3226 = vpop.f32.mrb[0].mxu0
      %3227 = vmatprep.mubr.bf16.mxu0 %v3103
      %3228 = vmatmul.mubr.bf16.gmra.mrb[0].mxu0 %v2968
      %v3229 = vpop.f32.mrb[0].mxu0
      %v3230 = vadd.f32 0.0, %v3229
      %v3231 = vpop.f32.mrb[0].mxu0
      %v3232 = vpop.f32.mrb[0].mxu0
      %v3233 = vadd.f32 0.0, %v3232
      %v3234 = vpop.f32.mrb[0].mxu0
      %3235 = vmatprep.mubr.bf16.mxu0 %v3106
      %3236 = vmatmul.mubr.bf16.gmra.mrb[0].mxu0 %v2970
      %v3237 = vpop.f32.mrb[0].mxu0
      %v3238 = vadd.f32 0.0, %v3237
      %v3239 = vpop.f32.mrb[0].mxu0
      %v3240 = vpop.f32.mrb[0].mxu0
      %v3241 = vadd.f32 0.0, %v3240
      %v3242 = vpop.f32.mrb[0].mxu0
      %3243 = vmatprep.mubr.bf16.mxu0 %v3109
      %3244 = vmatmul.mubr.bf16.gmra.mrb[0].mxu0 %v2972
      %v3245 = vpop.f32.mrb[0].mxu0
      %v3246 = vadd.f32 0.0, %v3245
      %v3247 = vpop.f32.mrb[0].mxu0
      %v3248 = vpop.f32.mrb[0].mxu0
      %v3249 = vadd.f32 0.0, %v3248
      %v3250 = vpop.f32.mrb[0].mxu0
      %3251 = vmatprep.mubr.bf16.mxu0 %v3112
      %3252 = vmatmul.mubr.bf16.gmra.mrb[0].mxu0 %v2974
      %v3253 = vpop.f32.mrb[0].mxu0
      %v3254 = vadd.f32 0.0, %v3253
      %v3255 = vpop.f32.mrb[0].mxu0
      %v3256 = vpop.f32.mrb[0].mxu0
      %v3257 = vadd.f32 0.0, %v3256
      %v3258 = vpop.f32.mrb[0].mxu0
      %3259 = vmatprep.mubr.bf16.mxu0 %v3115
      %3260 = vmatmul.mubr.bf16.gmra.mrb[0].mxu0 %v2976
      %v3261 = vpop.f32.mrb[0].mxu0
      %v3262 = vadd.f32 0.0, %v3261
      %v3263 = vpop.f32.mrb[0].mxu0
      %v3264 = vpop.f32.mrb[0].mxu0
      %v3265 = vadd.f32 0.0, %v3264
      %v3266 = vpop.f32.mrb[0].mxu0
      %3267 = vmatprep.mubr.bf16.mxu0 %v3118
      %3268 = vmatmul.mubr.bf16.gmra.mrb[0].mxu0 %v2978
      %v3269 = vpop.f32.mrb[0].mxu0
      %v3270 = vadd.f32 0.0, %v3269
      %v3271 = vpop.f32.mrb[0].mxu0
      %v3272 = vpop.f32.mrb[0].mxu0
      %v3273 = vadd.f32 0.0, %v3272
      %v3274 = vpop.f32.mrb[0].mxu0
      %3275 = vmatprep.mubr.bf16.mxu0 %v3121
      %3276 = vmatmul.mubr.bf16.gmra.mrb[0].mxu0 %v2980
      %v3277 = vpop.f32.mrb[0].mxu0
      %v3278 = vadd.f32 0.0, %v3277
      %v3279 = vpop.f32.mrb[0].mxu0
      %v3280 = vpop.f32.mrb[0].mxu0
      %v3281 = vadd.f32 0.0, %v3280
      %v3282 = vpop.f32.mrb[0].mxu0
      %3283 = vdwg.mxu0
      %v3284 = vadd.f32 %v2950, %v3158
      %v3285 = vadd.f32 %v2950, %v3161
      %v3286 = vadd.f32 %v2950, %v3166
      %v3287 = vadd.f32 %v2950, %v3169
      %v3288 = vadd.f32 %v2950, %v3174
      %v3289 = vadd.f32 %v2950, %v3177
      %v3290 = vadd.f32 %v2950, %v3182
      %v3291 = vadd.f32 %v2950, %v3185
      %v3292 = vadd.f32 %v2950, %v3190
      %v3293 = vadd.f32 %v2950, %v3193
      %v3294 = vadd.f32 %v2950, %v3198
      %v3295 = vadd.f32 %v2950, %v3201
      %v3296 = vadd.f32 %v2950, %v3206
      %v3297 = vadd.f32 %v2950, %v3209
      %v3298 = vadd.f32 %v2950, %v3214
      %v3299 = vadd.f32 %v2950, %v3217
      %v3300 = vadd.f32 %v2950, %v3222
      %v3301 = vadd.f32 %v2950, %v3225
      %v3302 = vadd.f32 %v2950, %v3230
      %v3303 = vadd.f32 %v2950, %v3233
      %v3304 = vadd.f32 %v2950, %v3238
      %v3305 = vadd.f32 %v2950, %v3241
      %v3306 = vadd.f32 %v2950, %v3246
      %v3307 = vadd.f32 %v2950, %v3249
      %v3308 = vadd.f32 %v2950, %v3254
      %v3309 = vadd.f32 %v2950, %v3257
      %v3310 = vadd.f32 %v2950, %v3262
      %v3311 = vadd.f32 %v2950, %v3265
      %v3312 = vadd.f32 %v2950, %v3270
      %v3313 = vadd.f32 %v2950, %v3273
      %v3314 = vadd.f32 %v2950, %v3278
      %v3315 = vadd.f32 %v2950, %v3281
      %v3316 = vpack.c.bf16 %v2944, %v2943
      %v3317 = vpack.c.bf16 %v2784, %v2783
      %s3318 = scalar_lea.vmem %s5, 96
      %v3319 = vld [vmem:[%s3318] sm:$0xf]
      %v3320 = vld [vmem:[%s3318 + $0x4] sm:$0xf]
      %v3321 = vld [vmem:[%s3318 + $0x8] sm:$0xf]
      %v3322 = vld [vmem:[%s3318 + $0xc] sm:$0xf]
      %v3323 = vld [vmem:[%s3318 + $0x10] sm:$0xf]
      %v3324 = vld [vmem:[%s3318 + $0x14] sm:$0xf]
      %v3325 = vld [vmem:[%s3318 + $0x18] sm:$0xf]
      %v3326 = vld [vmem:[%s3318 + $0x1c] sm:$0xf]
      %v3327 = vld [vmem:[%s3318 + $0x20] sm:$0xf]
      %v3328 = vld [vmem:[%s3318 + $0x24] sm:$0xf]
      %v3329 = vld [vmem:[%s3318 + $0x28] sm:$0xf]
      %v3330 = vld [vmem:[%s3318 + $0x2c] sm:$0xf]
      %v3331 = vld [vmem:[%s3318 + $0x30] sm:$0xf]
      %v3332 = vld [vmem:[%s3318 + $0x34] sm:$0xf]
      %v3333 = vld [vmem:[%s3318 + $0x38] sm:$0xf]
      %v3334 = vld [vmem:[%s3318 + $0x3c] sm:$0xf]
      %v3335 = vld [vmem:[%s3318 + $0x40] sm:$0xf]
      %v3336 = vld [vmem:[%s3318 + $0x44] sm:$0xf]
      %v3337 = vld [vmem:[%s3318 + $0x48] sm:$0xf]
      %v3338 = vld [vmem:[%s3318 + $0x4c] sm:$0xf]
      %v3339 = vld [vmem:[%s3318 + $0x50] sm:$0xf]
      %v3340 = vld [vmem:[%s3318 + $0x54] sm:$0xf]
      %v3341 = vld [vmem:[%s3318 + $0x58] sm:$0xf]
      %v3342 = vld [vmem:[%s3318 + $0x5c] sm:$0xf]
      %v3367 = vunpack.c.l.b16 %v3319
      %v3368 = vunpack.c.l.b16 %v3320
      %v3369 = vunpack.c.l.b16 %v3321
      %v3370 = vunpack.c.l.b16 %v3322
      %v3371 = vunpack.c.l.b16 %v3323
      %v3372 = vunpack.c.l.b16 %v3324
      %v3373 = vunpack.c.l.b16 %v3325
      %v3374 = vunpack.c.l.b16 %v3326
      %v3375 = vunpack.c.l.b16 %v3327
      %v3376 = vunpack.c.l.b16 %v3328
      %v3377 = vunpack.c.l.b16 %v3329
      %v3378 = vunpack.c.l.b16 %v3330
      %v3379 = vunpack.c.l.b16 %v3331
      %v3380 = vunpack.c.l.b16 %v3332
      %v3381 = vunpack.c.l.b16 %v3333
      %v3382 = vunpack.c.l.b16 %v3334
      %v3383 = vunpack.c.l.b16 %v3335
      %v3384 = vunpack.c.l.b16 %v3336
      %v3385 = vunpack.c.l.b16 %v3337
      %v3386 = vunpack.c.l.b16 %v3338
      %v3387 = vunpack.c.l.b16 %v3339
      %v3388 = vunpack.c.l.b16 %v3340
      %v3389 = vunpack.c.l.b16 %v3341
      %v3390 = vunpack.c.l.b16 %v3342
      %v3391 = vpack.c.b16 %v3368, %v3367
      %v3392 = vpack.c.b16 %v3370, %v3369
      %v3393 = vpack.c.b16 %v3372, %v3371
      %v3394 = vpack.c.b16 %v3374, %v3373
      %v3395 = vpack.c.b16 %v3376, %v3375
      %v3396 = vpack.c.b16 %v3378, %v3377
      %v3397 = vpack.c.b16 %v3380, %v3379
      %v3398 = vpack.c.b16 %v3382, %v3381
      %v3399 = vpack.c.b16 %v3384, %v3383
      %v3400 = vpack.c.b16 %v3386, %v3385
      %v3401 = vpack.c.b16 %v3388, %v3387
      %v3402 = vpack.c.b16 %v3390, %v3389
      %v3416 = vsel %vm1568, %v3317, 0
      %3418 = vmatprep.subr.bf16.mxu0 0
      %3419 = vmatpush1.bf16.msra.mxu0 %v3391
      %3420 = vmatprep.subr.bf16.mxu0 0
      %3421 = vmatpush1.bf16.msra.mxu0 %v3392
      %3422 = vmatprep.subr.bf16.mxu0 0
      %3423 = vmatpush1.bf16.msra.mxu0 %v3393
      %3424 = vmatprep.subr.bf16.mxu0 0
      %3425 = vmatpush1.bf16.msra.mxu0 %v3394
      %3426 = vmatprep.subr.bf16.mxu0 0
      %3427 = vmatpush1.bf16.msra.mxu0 %v3395
      %3428 = vmatprep.subr.bf16.mxu0 0
      %3429 = vmatpush1.bf16.msra.mxu0 %v3396
      %3430 = vmatprep.subr.bf16.mxu0 0
      %3431 = vmatpush1.bf16.msra.mxu0 %v3397
      %3432 = vmatprep.subr.bf16.mxu0 0
      %3433 = vmatpush1.bf16.msra.mxu0 %v3398
      %3434 = vmatprep.subr.bf16.mxu0 0
      %3435 = vmatpush1.bf16.msra.mxu0 %v3399
      %3436 = vmatprep.subr.bf16.mxu0 0
      %3437 = vmatpush1.bf16.msra.mxu0 %v3400
      %3438 = vmatprep.subr.bf16.mxu0 0
      %3439 = vmatpush1.bf16.msra.mxu0 %v3401
      %3440 = vmatprep.subr.bf16.mxu0 0
      %3441 = vmatpush1.bf16.msra.mxu0 %v3402
      %3442 = vmatprep.subr.bf16.mxu0 0
      %3443 = vmatpush1.bf16.msra.mxu0 0
      %3444 = vmatprep.subr.bf16.mxu0 0
      %3445 = vmatpush1.bf16.msra.mxu0 0
      %3446 = vmatprep.subr.bf16.mxu0 0
      %3447 = vmatpush1.bf16.msra.mxu0 0
      %3448 = vmatprep.subr.bf16.mxu0 0
      %3449 = vmatpush1.bf16.msra.mxu0 0
      %3450 = vmatprep.mubr.bf16.mxu0 %v3079
      %3451 = vmatmul.mubr.bf16.gmra.mrb[0].mxu0 %v2952
      %v3452 = vpop.f32.mrb[0].mxu0
      %v3453 = vadd.f32 0.0, %v3452
      %v3454 = vpop.f32.mrb[0].mxu0
      %v3455 = vpop.f32.mrb[0].mxu0
      %v3456 = vadd.f32 0.0, %v3455
      %v3457 = vpop.f32.mrb[0].mxu0
      %3458 = vmatprep.mubr.bf16.mxu0 %v3082
      %3459 = vmatmul.mubr.bf16.gmra.mrb[0].mxu0 %v2954
      %v3460 = vpop.f32.mrb[0].mxu0
      %v3461 = vadd.f32 0.0, %v3460
      %v3462 = vpop.f32.mrb[0].mxu0
      %v3463 = vpop.f32.mrb[0].mxu0
      %v3464 = vadd.f32 0.0, %v3463
      %v3465 = vpop.f32.mrb[0].mxu0
      %3466 = vmatprep.mubr.bf16.mxu0 %v3085
      %3467 = vmatmul.mubr.bf16.gmra.mrb[0].mxu0 %v2956
      %v3468 = vpop.f32.mrb[0].mxu0
      %v3469 = vadd.f32 0.0, %v3468
      %v3470 = vpop.f32.mrb[0].mxu0
      %v3471 = vpop.f32.mrb[0].mxu0
      %v3472 = vadd.f32 0.0, %v3471
      %v3473 = vpop.f32.mrb[0].mxu0
      %3474 = vmatprep.mubr.bf16.mxu0 %v3088
      %3475 = vmatmul.mubr.bf16.gmra.mrb[0].mxu0 %v2958
      %v3476 = vpop.f32.mrb[0].mxu0
      %v3477 = vadd.f32 0.0, %v3476
      %v3478 = vpop.f32.mrb[0].mxu0
      %v3479 = vpop.f32.mrb[0].mxu0
      %v3480 = vadd.f32 0.0, %v3479
      %v3481 = vpop.f32.mrb[0].mxu0
      %3482 = vmatprep.mubr.bf16.mxu0 %v3091
      %3483 = vmatmul.mubr.bf16.gmra.mrb[0].mxu0 %v2960
      %v3484 = vpop.f32.mrb[0].mxu0
      %v3485 = vadd.f32 0.0, %v3484
      %v3486 = vpop.f32.mrb[0].mxu0
      %v3487 = vpop.f32.mrb[0].mxu0
      %v3488 = vadd.f32 0.0, %v3487
      %v3489 = vpop.f32.mrb[0].mxu0
      %3490 = vmatprep.mubr.bf16.mxu0 %v3094
      %3491 = vmatmul.mubr.bf16.gmra.mrb[0].mxu0 %v2962
      %v3492 = vpop.f32.mrb[0].mxu0
      %v3493 = vadd.f32 0.0, %v3492
      %v3494 = vpop.f32.mrb[0].mxu0
      %v3495 = vpop.f32.mrb[0].mxu0
      %v3496 = vadd.f32 0.0, %v3495
      %v3497 = vpop.f32.mrb[0].mxu0
      %3498 = vmatprep.mubr.bf16.mxu0 %v3097
      %3499 = vmatmul.mubr.bf16.gmra.mrb[0].mxu0 %v2964
      %v3500 = vpop.f32.mrb[0].mxu0
      %v3501 = vadd.f32 0.0, %v3500
      %v3502 = vpop.f32.mrb[0].mxu0
      %v3503 = vpop.f32.mrb[0].mxu0
      %v3504 = vadd.f32 0.0, %v3503
      %v3505 = vpop.f32.mrb[0].mxu0
      %3506 = vmatprep.mubr.bf16.mxu0 %v3100
      %3507 = vmatmul.mubr.bf16.gmra.mrb[0].mxu0 %v2966
      %v3508 = vpop.f32.mrb[0].mxu0
      %v3509 = vadd.f32 0.0, %v3508
      %v3510 = vpop.f32.mrb[0].mxu0
      %v3511 = vpop.f32.mrb[0].mxu0
      %v3512 = vadd.f32 0.0, %v3511
      %v3513 = vpop.f32.mrb[0].mxu0
      %3514 = vmatprep.mubr.bf16.mxu0 %v3103
      %3515 = vmatmul.mubr.bf16.gmra.mrb[0].mxu0 %v2968
      %v3516 = vpop.f32.mrb[0].mxu0
      %v3517 = vadd.f32 0.0, %v3516
      %v3518 = vpop.f32.mrb[0].mxu0
      %v3519 = vpop.f32.mrb[0].mxu0
      %v3520 = vadd.f32 0.0, %v3519
      %v3521 = vpop.f32.mrb[0].mxu0
      %3522 = vmatprep.mubr.bf16.mxu0 %v3106
      %3523 = vmatmul.mubr.bf16.gmra.mrb[0].mxu0 %v2970
      %v3524 = vpop.f32.mrb[0].mxu0
      %v3525 = vadd.f32 0.0, %v3524
      %v3526 = vpop.f32.mrb[0].mxu0
      %v3527 = vpop.f32.mrb[0].mxu0
      %v3528 = vadd.f32 0.0, %v3527
      %v3529 = vpop.f32.mrb[0].mxu0
      %3530 = vmatprep.mubr.bf16.mxu0 %v3109
      %3531 = vmatmul.mubr.bf16.gmra.mrb[0].mxu0 %v2972
      %v3532 = vpop.f32.mrb[0].mxu0
      %v3533 = vadd.f32 0.0, %v3532
      %v3534 = vpop.f32.mrb[0].mxu0
      %v3535 = vpop.f32.mrb[0].mxu0
      %v3536 = vadd.f32 0.0, %v3535
      %v3537 = vpop.f32.mrb[0].mxu0
      %3538 = vmatprep.mubr.bf16.mxu0 %v3112
      %3539 = vmatmul.mubr.bf16.gmra.mrb[0].mxu0 %v2974
      %v3540 = vpop.f32.mrb[0].mxu0
      %v3541 = vadd.f32 0.0, %v3540
      %v3542 = vpop.f32.mrb[0].mxu0
      %v3543 = vpop.f32.mrb[0].mxu0
      %v3544 = vadd.f32 0.0, %v3543
      %v3545 = vpop.f32.mrb[0].mxu0
      %3546 = vmatprep.mubr.bf16.mxu0 %v3115
      %3547 = vmatmul.mubr.bf16.gmra.mrb[0].mxu0 %v2976
      %v3548 = vpop.f32.mrb[0].mxu0
      %v3549 = vadd.f32 0.0, %v3548
      %v3550 = vpop.f32.mrb[0].mxu0
      %v3551 = vpop.f32.mrb[0].mxu0
      %v3552 = vadd.f32 0.0, %v3551
      %v3553 = vpop.f32.mrb[0].mxu0
      %3554 = vmatprep.mubr.bf16.mxu0 %v3118
      %3555 = vmatmul.mubr.bf16.gmra.mrb[0].mxu0 %v2978
      %v3556 = vpop.f32.mrb[0].mxu0
      %v3557 = vadd.f32 0.0, %v3556
      %v3558 = vpop.f32.mrb[0].mxu0
      %v3559 = vpop.f32.mrb[0].mxu0
      %v3560 = vadd.f32 0.0, %v3559
      %v3561 = vpop.f32.mrb[0].mxu0
      %3562 = vmatprep.mubr.bf16.mxu0 %v3121
      %3563 = vmatmul.mubr.bf16.gmra.mrb[0].mxu0 %v2980
      %v3564 = vpop.f32.mrb[0].mxu0
      %v3565 = vadd.f32 0.0, %v3564
      %v3566 = vpop.f32.mrb[0].mxu0
      %v3567 = vpop.f32.mrb[0].mxu0
      %v3568 = vadd.f32 0.0, %v3567
      %v3569 = vpop.f32.mrb[0].mxu0
      %3570 = vmatprep.mubr.bf16.mxu0 %v3416
      %3571 = vmatmul.mubr.bf16.gmra.mrb[0].mxu0 %v3316
      %v3572 = vpop.f32.mrb[0].mxu0
      %v3573 = vadd.f32 0.0, %v3572
      %v3574 = vpop.f32.mrb[0].mxu0
      %v3575 = vpop.f32.mrb[0].mxu0
      %v3576 = vadd.f32 0.0, %v3575
      %v3577 = vpop.f32.mrb[0].mxu0
      %3578 = vdwg.mxu0
      %v3579 = vadd.f32 %v3284, %v3453
      %v3580 = vadd.f32 %v3285, %v3456
      %v3581 = vadd.f32 %v3286, %v3461
      %v3582 = vadd.f32 %v3287, %v3464
      %v3583 = vadd.f32 %v3288, %v3469
      %v3584 = vadd.f32 %v3289, %v3472
      %v3585 = vadd.f32 %v3290, %v3477
      %v3586 = vadd.f32 %v3291, %v3480
      %v3587 = vadd.f32 %v3292, %v3485
      %v3588 = vadd.f32 %v3293, %v3488
      %v3589 = vadd.f32 %v3294, %v3493
      %v3590 = vadd.f32 %v3295, %v3496
      %v3591 = vadd.f32 %v3296, %v3501
      %v3592 = vadd.f32 %v3297, %v3504
      %v3593 = vadd.f32 %v3298, %v3509
      %v3594 = vadd.f32 %v3299, %v3512
      %v3595 = vadd.f32 %v3300, %v3517
      %v3596 = vadd.f32 %v3301, %v3520
      %v3597 = vadd.f32 %v3302, %v3525
      %v3598 = vadd.f32 %v3303, %v3528
      %v3599 = vadd.f32 %v3304, %v3533
      %v3600 = vadd.f32 %v3305, %v3536
      %v3601 = vadd.f32 %v3306, %v3541
      %v3602 = vadd.f32 %v3307, %v3544
      %v3603 = vadd.f32 %v3308, %v3549
      %v3604 = vadd.f32 %v3309, %v3552
      %v3605 = vadd.f32 %v3310, %v3557
      %v3606 = vadd.f32 %v3311, %v3560
      %v3607 = vadd.f32 %v3312, %v3565
      %v3608 = vadd.f32 %v3313, %v3568
      %v3609 = vadd.f32 %v3314, %v3573
      %v3610 = vadd.f32 %v3315, %v3576
      %s3611 = scalar_lea.vmem %s5, 192
      %v3612 = vld [vmem:[%s3611] sm:$0xf]
      %v3613 = vld [vmem:[%s3611 + $0x4] sm:$0xf]
      %v3614 = vld [vmem:[%s3611 + $0x8] sm:$0xf]
      %v3615 = vld [vmem:[%s3611 + $0xc] sm:$0xf]
      %v3616 = vld [vmem:[%s3611 + $0x10] sm:$0xf]
      %v3617 = vld [vmem:[%s3611 + $0x14] sm:$0xf]
      %v3618 = vld [vmem:[%s3611 + $0x18] sm:$0xf]
      %v3619 = vld [vmem:[%s3611 + $0x1c] sm:$0xf]
      %v3620 = vld [vmem:[%s3611 + $0x20] sm:$0xf]
      %v3621 = vld [vmem:[%s3611 + $0x24] sm:$0xf]
      %v3622 = vld [vmem:[%s3611 + $0x28] sm:$0xf]
      %v3623 = vld [vmem:[%s3611 + $0x2c] sm:$0xf]
      %v3624 = vld [vmem:[%s3611 + $0x30] sm:$0xf]
      %v3625 = vld [vmem:[%s3611 + $0x34] sm:$0xf]
      %v3626 = vld [vmem:[%s3611 + $0x38] sm:$0xf]
      %v3627 = vld [vmem:[%s3611 + $0x3c] sm:$0xf]
      %v3628 = vld [vmem:[%s3611 + $0x40] sm:$0xf]
      %v3629 = vld [vmem:[%s3611 + $0x44] sm:$0xf]
      %v3630 = vld [vmem:[%s3611 + $0x48] sm:$0xf]
      %v3631 = vld [vmem:[%s3611 + $0x4c] sm:$0xf]
      %v3632 = vld [vmem:[%s3611 + $0x50] sm:$0xf]
      %v3633 = vld [vmem:[%s3611 + $0x54] sm:$0xf]
      %v3634 = vld [vmem:[%s3611 + $0x58] sm:$0xf]
      %v3635 = vld [vmem:[%s3611 + $0x5c] sm:$0xf]
      %v3660 = vunpack.c.l.b16 %v3612
      %v3661 = vunpack.c.l.b16 %v3613
      %v3662 = vunpack.c.l.b16 %v3614
      %v3663 = vunpack.c.l.b16 %v3615
      %v3664 = vunpack.c.l.b16 %v3616
      %v3665 = vunpack.c.l.b16 %v3617
      %v3666 = vunpack.c.l.b16 %v3618
      %v3667 = vunpack.c.l.b16 %v3619
      %v3668 = vunpack.c.l.b16 %v3620
      %v3669 = vunpack.c.l.b16 %v3621
      %v3670 = vunpack.c.l.b16 %v3622
      %v3671 = vunpack.c.l.b16 %v3623
      %v3672 = vunpack.c.l.b16 %v3624
      %v3673 = vunpack.c.l.b16 %v3625
      %v3674 = vunpack.c.l.b16 %v3626
      %v3675 = vunpack.c.l.b16 %v3627
      %v3676 = vunpack.c.l.b16 %v3628
      %v3677 = vunpack.c.l.b16 %v3629
      %v3678 = vunpack.c.l.b16 %v3630
      %v3679 = vunpack.c.l.b16 %v3631
      %v3680 = vunpack.c.l.b16 %v3632
      %v3681 = vunpack.c.l.b16 %v3633
      %v3682 = vunpack.c.l.b16 %v3634
      %v3683 = vunpack.c.l.b16 %v3635
      %v3684 = vpack.c.b16 %v3661, %v3660
      %v3685 = vpack.c.b16 %v3663, %v3662
      %v3686 = vpack.c.b16 %v3665, %v3664
      %v3687 = vpack.c.b16 %v3667, %v3666
      %v3688 = vpack.c.b16 %v3669, %v3668
      %v3689 = vpack.c.b16 %v3671, %v3670
      %v3690 = vpack.c.b16 %v3673, %v3672
      %v3691 = vpack.c.b16 %v3675, %v3674
      %v3692 = vpack.c.b16 %v3677, %v3676
      %v3693 = vpack.c.b16 %v3679, %v3678
      %v3694 = vpack.c.b16 %v3681, %v3680
      %v3695 = vpack.c.b16 %v3683, %v3682
      %3708 = vmatprep.subr.bf16.mxu0 0
      %3709 = vmatpush1.bf16.msra.mxu0 %v3684
      %3710 = vmatprep.subr.bf16.mxu0 0
      %3711 = vmatpush1.bf16.msra.mxu0 %v3685
      %3712 = vmatprep.subr.bf16.mxu0 0
      %3713 = vmatpush1.bf16.msra.mxu0 %v3686
      %3714 = vmatprep.subr.bf16.mxu0 0
      %3715 = vmatpush1.bf16.msra.mxu0 %v3687
      %3716 = vmatprep.subr.bf16.mxu0 0
      %3717 = vmatpush1.bf16.msra.mxu0 %v3688
      %3718 = vmatprep.subr.bf16.mxu0 0
      %3719 = vmatpush1.bf16.msra.mxu0 %v3689
      %3720 = vmatprep.subr.bf16.mxu0 0
      %3721 = vmatpush1.bf16.msra.mxu0 %v3690
      %3722 = vmatprep.subr.bf16.mxu0 0
      %3723 = vmatpush1.bf16.msra.mxu0 %v3691
      %3724 = vmatprep.subr.bf16.mxu0 0
      %3725 = vmatpush1.bf16.msra.mxu0 %v3692
      %3726 = vmatprep.subr.bf16.mxu0 0
      %3727 = vmatpush1.bf16.msra.mxu0 %v3693
      %3728 = vmatprep.subr.bf16.mxu0 0
      %3729 = vmatpush1.bf16.msra.mxu0 %v3694
      %3730 = vmatprep.subr.bf16.mxu0 0
      %3731 = vmatpush1.bf16.msra.mxu0 %v3695
      %3732 = vmatprep.subr.bf16.mxu0 0
      %3733 = vmatpush1.bf16.msra.mxu0 0
      %3734 = vmatprep.subr.bf16.mxu0 0
      %3735 = vmatpush1.bf16.msra.mxu0 0
      %3736 = vmatprep.subr.bf16.mxu0 0
      %3737 = vmatpush1.bf16.msra.mxu0 0
      %3738 = vmatprep.subr.bf16.mxu0 0
      %3739 = vmatpush1.bf16.msra.mxu0 0
      %3740 = vmatprep.mubr.bf16.mxu0 %v3082
      %3741 = vmatmul.mubr.bf16.gmra.mrb[0].mxu0 %v2954
      %v3742 = vpop.f32.mrb[0].mxu0
      %v3743 = vadd.f32 0.0, %v3742
      %v3744 = vpop.f32.mrb[0].mxu0
      %v3745 = vpop.f32.mrb[0].mxu0
      %v3746 = vadd.f32 0.0, %v3745
      %v3747 = vpop.f32.mrb[0].mxu0
      %3748 = vmatprep.mubr.bf16.mxu0 %v3085
      %3749 = vmatmul.mubr.bf16.gmra.mrb[0].mxu0 %v2956
      %v3750 = vpop.f32.mrb[0].mxu0
      %v3751 = vadd.f32 0.0, %v3750
      %v3752 = vpop.f32.mrb[0].mxu0
      %v3753 = vpop.f32.mrb[0].mxu0
      %v3754 = vadd.f32 0.0, %v3753
      %v3755 = vpop.f32.mrb[0].mxu0
      %3756 = vmatprep.mubr.bf16.mxu0 %v3088
      %3757 = vmatmul.mubr.bf16.gmra.mrb[0].mxu0 %v2958
      %v3758 = vpop.f32.mrb[0].mxu0
      %v3759 = vadd.f32 0.0, %v3758
      %v3760 = vpop.f32.mrb[0].mxu0
      %v3761 = vpop.f32.mrb[0].mxu0
      %v3762 = vadd.f32 0.0, %v3761
      %v3763 = vpop.f32.mrb[0].mxu0
      %3764 = vmatprep.mubr.bf16.mxu0 %v3091
      %3765 = vmatmul.mubr.bf16.gmra.mrb[0].mxu0 %v2960
      %v3766 = vpop.f32.mrb[0].mxu0
      %v3767 = vadd.f32 0.0, %v3766
      %v3768 = vpop.f32.mrb[0].mxu0
      %v3769 = vpop.f32.mrb[0].mxu0
      %v3770 = vadd.f32 0.0, %v3769
      %v3771 = vpop.f32.mrb[0].mxu0
      %3772 = vmatprep.mubr.bf16.mxu0 %v3094
      %3773 = vmatmul.mubr.bf16.gmra.mrb[0].mxu0 %v2962
      %v3774 = vpop.f32.mrb[0].mxu0
      %v3775 = vadd.f32 0.0, %v3774
      %v3776 = vpop.f32.mrb[0].mxu0
      %v3777 = vpop.f32.mrb[0].mxu0
      %v3778 = vadd.f32 0.0, %v3777
      %v3779 = vpop.f32.mrb[0].mxu0
      %3780 = vmatprep.mubr.bf16.mxu0 %v3097
      %3781 = vmatmul.mubr.bf16.gmra.mrb[0].mxu0 %v2964
      %v3782 = vpop.f32.mrb[0].mxu0
      %v3783 = vadd.f32 0.0, %v3782
      %v3784 = vpop.f32.mrb[0].mxu0
      %v3785 = vpop.f32.mrb[0].mxu0
      %v3786 = vadd.f32 0.0, %v3785
      %v3787 = vpop.f32.mrb[0].mxu0
      %3788 = vmatprep.mubr.bf16.mxu0 %v3100
      %3789 = vmatmul.mubr.bf16.gmra.mrb[0].mxu0 %v2966
      %v3790 = vpop.f32.mrb[0].mxu0
      %v3791 = vadd.f32 0.0, %v3790
      %v3792 = vpop.f32.mrb[0].mxu0
      %v3793 = vpop.f32.mrb[0].mxu0
      %v3794 = vadd.f32 0.0, %v3793
      %v3795 = vpop.f32.mrb[0].mxu0
      %3796 = vmatprep.mubr.bf16.mxu0 %v3103
      %3797 = vmatmul.mubr.bf16.gmra.mrb[0].mxu0 %v2968
      %v3798 = vpop.f32.mrb[0].mxu0
      %v3799 = vadd.f32 0.0, %v3798
      %v3800 = vpop.f32.mrb[0].mxu0
      %v3801 = vpop.f32.mrb[0].mxu0
      %v3802 = vadd.f32 0.0, %v3801
      %v3803 = vpop.f32.mrb[0].mxu0
      %3804 = vmatprep.mubr.bf16.mxu0 %v3106
      %3805 = vmatmul.mubr.bf16.gmra.mrb[0].mxu0 %v2970
      %v3806 = vpop.f32.mrb[0].mxu0
      %v3807 = vadd.f32 0.0, %v3806
      %v3808 = vpop.f32.mrb[0].mxu0
      %v3809 = vpop.f32.mrb[0].mxu0
      %v3810 = vadd.f32 0.0, %v3809
      %v3811 = vpop.f32.mrb[0].mxu0
      %3812 = vmatprep.mubr.bf16.mxu0 %v3109
      %3813 = vmatmul.mubr.bf16.gmra.mrb[0].mxu0 %v2972
      %v3814 = vpop.f32.mrb[0].mxu0
      %v3815 = vadd.f32 0.0, %v3814
      %v3816 = vpop.f32.mrb[0].mxu0
      %v3817 = vpop.f32.mrb[0].mxu0
      %v3818 = vadd.f32 0.0, %v3817
      %v3819 = vpop.f32.mrb[0].mxu0
      %3820 = vmatprep.mubr.bf16.mxu0 %v3112
      %3821 = vmatmul.mubr.bf16.gmra.mrb[0].mxu0 %v2974
      %v3822 = vpop.f32.mrb[0].mxu0
      %v3823 = vadd.f32 0.0, %v3822
      %v3824 = vpop.f32.mrb[0].mxu0
      %v3825 = vpop.f32.mrb[0].mxu0
      %v3826 = vadd.f32 0.0, %v3825
      %v3827 = vpop.f32.mrb[0].mxu0
      %3828 = vmatprep.mubr.bf16.mxu0 %v3115
      %3829 = vmatmul.mubr.bf16.gmra.mrb[0].mxu0 %v2976
      %v3830 = vpop.f32.mrb[0].mxu0
      %v3831 = vadd.f32 0.0, %v3830
      %v3832 = vpop.f32.mrb[0].mxu0
      %v3833 = vpop.f32.mrb[0].mxu0
      %v3834 = vadd.f32 0.0, %v3833
      %v3835 = vpop.f32.mrb[0].mxu0
      %3836 = vmatprep.mubr.bf16.mxu0 %v3118
      %3837 = vmatmul.mubr.bf16.gmra.mrb[0].mxu0 %v2978
      %v3838 = vpop.f32.mrb[0].mxu0
      %v3839 = vadd.f32 0.0, %v3838
      %v3840 = vpop.f32.mrb[0].mxu0
      %v3841 = vpop.f32.mrb[0].mxu0
      %v3842 = vadd.f32 0.0, %v3841
      %v3843 = vpop.f32.mrb[0].mxu0
      %3844 = vmatprep.mubr.bf16.mxu0 %v3121
      %3845 = vmatmul.mubr.bf16.gmra.mrb[0].mxu0 %v2980
      %v3846 = vpop.f32.mrb[0].mxu0
      %v3847 = vadd.f32 0.0, %v3846
      %v3848 = vpop.f32.mrb[0].mxu0
      %v3849 = vpop.f32.mrb[0].mxu0
      %v3850 = vadd.f32 0.0, %v3849
      %v3851 = vpop.f32.mrb[0].mxu0
      %3852 = vmatprep.mubr.bf16.mxu0 %v3416
      %3853 = vmatmul.mubr.bf16.gmra.mrb[0].mxu0 %v3316
      %v3854 = vpop.f32.mrb[0].mxu0
      %v3855 = vadd.f32 0.0, %v3854
      %v3856 = vpop.f32.mrb[0].mxu0
      %v3857 = vpop.f32.mrb[0].mxu0
      %v3858 = vadd.f32 0.0, %v3857
      %v3859 = vpop.f32.mrb[0].mxu0
      %3860 = vmatprep.mubr.bf16.mxu0 %v1736
      %3861 = vmatmul.mubr.bf16.gmra.mrb[0].mxu0 %v1608
      %v3862 = vpop.f32.mrb[0].mxu0
      %v3863 = vadd.f32 0.0, %v3862
      %v3864 = vpop.f32.mrb[0].mxu0
      %v3865 = vpop.f32.mrb[0].mxu0
      %v3866 = vadd.f32 0.0, %v3865
      %v3867 = vpop.f32.mrb[0].mxu0
      %3868 = vdwg.mxu0
      %v3869 = vadd.f32 %v3579, %v3743
      %v3870 = vadd.f32 %v3580, %v3746
      %v3871 = vadd.f32 %v3581, %v3751
      %v3872 = vadd.f32 %v3582, %v3754
      %v3873 = vadd.f32 %v3583, %v3759
      %v3874 = vadd.f32 %v3584, %v3762
      %v3875 = vadd.f32 %v3585, %v3767
      %v3876 = vadd.f32 %v3586, %v3770
      %v3877 = vadd.f32 %v3587, %v3775
      %v3878 = vadd.f32 %v3588, %v3778
      %v3879 = vadd.f32 %v3589, %v3783
      %v3880 = vadd.f32 %v3590, %v3786
      %v3881 = vadd.f32 %v3591, %v3791
      %v3882 = vadd.f32 %v3592, %v3794
      %v3883 = vadd.f32 %v3593, %v3799
      %v3884 = vadd.f32 %v3594, %v3802
      %v3885 = vadd.f32 %v3595, %v3807
      %v3886 = vadd.f32 %v3596, %v3810
      %v3887 = vadd.f32 %v3597, %v3815
      %v3888 = vadd.f32 %v3598, %v3818
      %v3889 = vadd.f32 %v3599, %v3823
      %v3890 = vadd.f32 %v3600, %v3826
      %v3891 = vadd.f32 %v3601, %v3831
      %v3892 = vadd.f32 %v3602, %v3834
      %v3893 = vadd.f32 %v3603, %v3839
      %v3894 = vadd.f32 %v3604, %v3842
      %v3895 = vadd.f32 %v3605, %v3847
      %v3896 = vadd.f32 %v3606, %v3850
      %v3897 = vadd.f32 %v3607, %v3855
      %v3898 = vadd.f32 %v3608, %v3858
      %v3899 = vadd.f32 %v3609, %v3863
      %v3900 = vadd.f32 %v3610, %v3866
      %v3901 = vadd.f32 %v3869, %v733
      %v3902 = vadd.f32 %v3870, %v734
      %v3903 = vadd.f32 %v3871, %v735
      %v3904 = vadd.f32 %v3872, %v736
      %v3905 = vadd.f32 %v3873, %v737
      %v3906 = vadd.f32 %v3874, %v738
      %v3907 = vadd.f32 %v3875, %v739
      %v3908 = vadd.f32 %v3876, %v740
      %v3909 = vadd.f32 %v3877, %v741
      %v3910 = vadd.f32 %v3878, %v742
      %v3911 = vadd.f32 %v3879, %v743
      %v3912 = vadd.f32 %v3880, %v744
      %v3913 = vadd.f32 %v3881, %v745
      %v3914 = vadd.f32 %v3882, %v746
      %v3915 = vadd.f32 %v3883, %v747
      %v3916 = vadd.f32 %v3884, %v748
      %v3917 = vadd.f32 %v3885, %v749
      %v3918 = vadd.f32 %v3886, %v750
      %v3919 = vadd.f32 %v3887, %v751
      %v3920 = vadd.f32 %v3888, %v752
      %v3921 = vadd.f32 %v3889, %v753
      %v3922 = vadd.f32 %v3890, %v754
      %v3923 = vadd.f32 %v3891, %v755
      %v3924 = vadd.f32 %v3892, %v756
      %v3925 = vadd.f32 %v3893, %v757
      %v3926 = vadd.f32 %v3894, %v758
      %v3927 = vadd.f32 %v3895, %v759
      %v3928 = vadd.f32 %v3896, %v760
      %v3929 = vadd.f32 %v3897, %v761
      %v3930 = vadd.f32 %v3898, %v762
      %v3931 = vadd.f32 %v3899, %v763
      %v3932 = vadd.f32 %v3900, %v764
      %v3933 = vmax.f32 %v3901, 0.0
      %v3934 = vmax.f32 %v3902, 0.0
      %v3935 = vmax.f32 %v3903, 0.0
      %v3936 = vmax.f32 %v3904, 0.0
      %v3937 = vmax.f32 %v3905, 0.0
      %v3938 = vmax.f32 %v3906, 0.0
      %v3939 = vmax.f32 %v3907, 0.0
      %v3940 = vmax.f32 %v3908, 0.0
      %v3941 = vmax.f32 %v3909, 0.0
      %v3942 = vmax.f32 %v3910, 0.0
      %v3943 = vmax.f32 %v3911, 0.0
      %v3944 = vmax.f32 %v3912, 0.0
      %v3945 = vmax.f32 %v3913, 0.0
      %v3946 = vmax.f32 %v3914, 0.0
      %v3947 = vmax.f32 %v3915, 0.0
      %v3948 = vmax.f32 %v3916, 0.0
      %v3949 = vmax.f32 %v3917, 0.0
      %v3950 = vmax.f32 %v3918, 0.0
      %v3951 = vmax.f32 %v3919, 0.0
      %v3952 = vmax.f32 %v3920, 0.0
      %v3953 = vmax.f32 %v3921, 0.0
      %v3954 = vmax.f32 %v3922, 0.0
      %v3955 = vmax.f32 %v3923, 0.0
      %v3956 = vmax.f32 %v3924, 0.0
      %v3957 = vmax.f32 %v3925, 0.0
      %v3958 = vmax.f32 %v3926, 0.0
      %v3959 = vmax.f32 %v3927, 0.0
      %v3960 = vmax.f32 %v3928, 0.0
      %v3961 = vmax.f32 %v3929, 0.0
      %v3962 = vmax.f32 %v3930, 0.0
      %v3963 = vmax.f32 %v3931, 0.0
      %v3964 = vmax.f32 %v3932, 0.0
      %v3965 = vrot.slane %v3933, 7
      %v3966 = vrot.slane %v3934, 7
      %v3967 = vrot.slane %v3935, 7
      %v3968 = vrot.slane %v3936, 7
      %v3969 = vrot.slane %v3937, 7
      %v3970 = vrot.slane %v3938, 7
      %v3971 = vrot.slane %v3939, 7
      %v3972 = vrot.slane %v3940, 7
      %v3973 = vrot.slane %v3941, 7
      %v3974 = vrot.slane %v3942, 7
      %v3975 = vrot.slane %v3943, 7
      %v3976 = vrot.slane %v3944, 7
      %v3977 = vrot.slane %v3945, 7
      %v3978 = vrot.slane %v3946, 7
      %v3979 = vrot.slane %v3947, 7
      %v3980 = vrot.slane %v3948, 7
      %v3981 = vrot.slane %v3949, 7
      %v3982 = vrot.slane %v3950, 7
      %v3983 = vrot.slane %v3951, 7
      %v3984 = vrot.slane %v3952, 7
      %v3985 = vrot.slane %v3953, 7
      %v3986 = vrot.slane %v3954, 7
      %v3987 = vrot.slane %v3955, 7
      %v3988 = vrot.slane %v3956, 7
      %v3989 = vrot.slane %v3957, 7
      %v3990 = vrot.slane %v3958, 7
      %v3991 = vrot.slane %v3959, 7
      %v3992 = vrot.slane %v3960, 7
      %v3993 = vrot.slane %v3961, 7
      %v3994 = vrot.slane %v3962, 7
      %v3995 = vrot.slane %v3963, 7
      %v3996 = vrot.slane %v3964, 7
      %v3997 = vsel %vm1246, %v3995, %v3996
      %v3998 = vsel %vm1246, %v3994, %v3995
      %v3999 = vsel %vm1246, %v3993, %v3994
      %v4000 = vsel %vm1246, %v3992, %v3993
      %v4001 = vsel %vm1246, %v3991, %v3992
      %v4002 = vsel %vm1246, %v3990, %v3991
      %v4003 = vsel %vm1246, %v3989, %v3990
      %v4004 = vsel %vm1246, %v3988, %v3989
      %v4005 = vsel %vm1246, %v3987, %v3988
      %v4006 = vsel %vm1246, %v3986, %v3987
      %v4007 = vsel %vm1246, %v3985, %v3986
      %v4008 = vsel %vm1246, %v3984, %v3985
      %v4009 = vsel %vm1246, %v3983, %v3984
      %v4010 = vsel %vm1246, %v3982, %v3983
      %v4011 = vsel %vm1246, %v3981, %v3982
      %v4012 = vsel %vm1246, %v3980, %v3981
      %v4013 = vsel %vm1246, %v3979, %v3980
      %v4014 = vsel %vm1246, %v3978, %v3979
      %v4015 = vsel %vm1246, %v3977, %v3978
      %v4016 = vsel %vm1246, %v3976, %v3977
      %v4017 = vsel %vm1246, %v3975, %v3976
      %v4018 = vsel %vm1246, %v3974, %v3975
      %v4019 = vsel %vm1246, %v3973, %v3974
      %v4020 = vsel %vm1246, %v3972, %v3973
      %v4021 = vsel %vm1246, %v3971, %v3972
      %v4022 = vsel %vm1246, %v3970, %v3971
      %v4023 = vsel %vm1246, %v3969, %v3970
      %v4024 = vsel %vm1246, %v3968, %v3969
      %v4025 = vsel %vm1246, %v3967, %v3968
      %v4026 = vsel %vm1246, %v3966, %v3967
      %v4027 = vsel %vm1246, %v3965, %v3966
      %v4028 = vsel %vm1246, %v3996, %v3965
      %v4029 = vsel %vm1182, %v4028, 0.0
      %v4030 = vsel %vm1183, %v4027, 0.0
      %v4031 = vsel %vm1184, %v4026, 0.0
      %v4032 = vsel %vm1185, %v4025, 0.0
      %v4033 = vsel %vm1186, %v4024, 0.0
      %v4034 = vsel %vm1187, %v4023, 0.0
      %v4035 = vsel %vm1188, %v4022, 0.0
      %v4036 = vsel %vm1189, %v4021, 0.0
      %v4037 = vsel %vm1190, %v4020, 0.0
      %v4038 = vsel %vm1191, %v4019, 0.0
      %v4039 = vsel %vm1192, %v4018, 0.0
      %v4040 = vsel %vm1193, %v4017, 0.0
      %v4041 = vsel %vm1194, %v4016, 0.0
      %v4042 = vsel %vm1195, %v4015, 0.0
      %v4043 = vsel %vm1196, %v4014, 0.0
      %v4044 = vsel %vm1197, %v4013, 0.0
      %v4045 = vsel %vm1198, %v4012, 0.0
      %v4046 = vsel %vm1199, %v4011, 0.0
      %v4047 = vsel %vm1200, %v4010, 0.0
      %v4048 = vsel %vm1201, %v4009, 0.0
      %v4049 = vsel %vm1202, %v4008, 0.0
      %v4050 = vsel %vm1203, %v4007, 0.0
      %v4051 = vsel %vm1204, %v4006, 0.0
      %v4052 = vsel %vm1205, %v4005, 0.0
      %v4053 = vsel %vm1206, %v4004, 0.0
      %v4054 = vsel %vm1207, %v4003, 0.0
      %v4055 = vsel %vm1208, %v4002, 0.0
      %v4056 = vsel %vm1209, %v4001, 0.0
      %v4057 = vsel %vm1210, %v4000, 0.0
      %v4058 = vsel %vm1211, %v3999, 0.0
      %v4059 = vsel %vm1212, %v3998, 0.0
      %v4060 = vsel %vm1213, %v3997, 0.0
      %v4061 = vrot.slane %v3933, 1
      %v4062 = vrot.slane %v3934, 1
      %v4063 = vrot.slane %v3935, 1
      %v4064 = vrot.slane %v3936, 1
      %v4065 = vrot.slane %v3937, 1
      %v4066 = vrot.slane %v3938, 1
      %v4067 = vrot.slane %v3939, 1
      %v4068 = vrot.slane %v3940, 1
      %v4069 = vrot.slane %v3941, 1
      %v4070 = vrot.slane %v3942, 1
      %v4071 = vrot.slane %v3943, 1
      %v4072 = vrot.slane %v3944, 1
      %v4073 = vrot.slane %v3945, 1
      %v4074 = vrot.slane %v3946, 1
      %v4075 = vrot.slane %v3947, 1
      %v4076 = vrot.slane %v3948, 1
      %v4077 = vrot.slane %v3949, 1
      %v4078 = vrot.slane %v3950, 1
      %v4079 = vrot.slane %v3951, 1
      %v4080 = vrot.slane %v3952, 1
      %v4081 = vrot.slane %v3953, 1
      %v4082 = vrot.slane %v3954, 1
      %v4083 = vrot.slane %v3955, 1
      %v4084 = vrot.slane %v3956, 1
      %v4085 = vrot.slane %v3957, 1
      %v4086 = vrot.slane %v3958, 1
      %v4087 = vrot.slane %v3959, 1
      %v4088 = vrot.slane %v3960, 1
      %v4089 = vrot.slane %v3961, 1
      %v4090 = vrot.slane %v3962, 1
      %v4091 = vrot.slane %v3963, 1
      %v4092 = vrot.slane %v3964, 1
      %v4093 = vsel %vm1375, %v4091, %v4092
      %v4094 = vsel %vm1375, %v4090, %v4091
      %v4095 = vsel %vm1375, %v4089, %v4090
      %v4096 = vsel %vm1375, %v4088, %v4089
      %v4097 = vsel %vm1375, %v4087, %v4088
      %v4098 = vsel %vm1375, %v4086, %v4087
      %v4099 = vsel %vm1375, %v4085, %v4086
      %v4100 = vsel %vm1375, %v4084, %v4085
      %v4101 = vsel %vm1375, %v4083, %v4084
      %v4102 = vsel %vm1375, %v4082, %v4083
      %v4103 = vsel %vm1375, %v4081, %v4082
      %v4104 = vsel %vm1375, %v4080, %v4081
      %v4105 = vsel %vm1375, %v4079, %v4080
      %v4106 = vsel %vm1375, %v4078, %v4079
      %v4107 = vsel %vm1375, %v4077, %v4078
      %v4108 = vsel %vm1375, %v4076, %v4077
      %v4109 = vsel %vm1375, %v4075, %v4076
      %v4110 = vsel %vm1375, %v4074, %v4075
      %v4111 = vsel %vm1375, %v4073, %v4074
      %v4112 = vsel %vm1375, %v4072, %v4073
      %v4113 = vsel %vm1375, %v4071, %v4072
      %v4114 = vsel %vm1375, %v4070, %v4071
      %v4115 = vsel %vm1375, %v4069, %v4070
      %v4116 = vsel %vm1375, %v4068, %v4069
      %v4117 = vsel %vm1375, %v4067, %v4068
      %v4118 = vsel %vm1375, %v4066, %v4067
      %v4119 = vsel %vm1375, %v4065, %v4066
      %v4120 = vsel %vm1375, %v4064, %v4065
      %v4121 = vsel %vm1375, %v4063, %v4064
      %v4122 = vsel %vm1375, %v4062, %v4063
      %v4123 = vsel %vm1375, %v4061, %v4062
      %v4124 = vsel %vm1375, %v4092, %v4061
      %v4125 = vsel %vm1311, %v4123, 0.0
      %v4126 = vsel %vm1312, %v4122, 0.0
      %v4127 = vsel %vm1313, %v4121, 0.0
      %v4128 = vsel %vm1314, %v4120, 0.0
      %v4129 = vsel %vm1315, %v4119, 0.0
      %v4130 = vsel %vm1316, %v4118, 0.0
      %v4131 = vsel %vm1317, %v4117, 0.0
      %v4132 = vsel %vm1318, %v4116, 0.0
      %v4133 = vsel %vm1319, %v4115, 0.0
      %v4134 = vsel %vm1320, %v4114, 0.0
      %v4135 = vsel %vm1321, %v4113, 0.0
      %v4136 = vsel %vm1322, %v4112, 0.0
      %v4137 = vsel %vm1323, %v4111, 0.0
      %v4138 = vsel %vm1324, %v4110, 0.0
      %v4139 = vsel %vm1325, %v4109, 0.0
      %v4140 = vsel %vm1326, %v4108, 0.0
      %v4141 = vsel %vm1327, %v4107, 0.0
      %v4142 = vsel %vm1328, %v4106, 0.0
      %v4143 = vsel %vm1329, %v4105, 0.0
      %v4144 = vsel %vm1330, %v4104, 0.0
      %v4145 = vsel %vm1331, %v4103, 0.0
      %v4146 = vsel %vm1332, %v4102, 0.0
      %v4147 = vsel %vm1333, %v4101, 0.0
      %v4148 = vsel %vm1334, %v4100, 0.0
      %v4149 = vsel %vm1335, %v4099, 0.0
      %v4150 = vsel %vm1336, %v4098, 0.0
      %v4151 = vsel %vm1337, %v4097, 0.0
      %v4152 = vsel %vm1338, %v4096, 0.0
      %v4153 = vsel %vm1339, %v4095, 0.0
      %v4154 = vsel %vm1340, %v4094, 0.0
      %v4155 = vsel %vm1341, %v4093, 0.0
      %v4156 = vsel %vm1342, %v4124, 0.0
      %4189 = vrot.lane.b32.xlu0 %v3933, 64
      %v4190 = vpop.permute.xlu0 %4189
      %4191 = vrot.lane.b32.xlu0 %v3934, 64
      %v4192 = vpop.permute.xlu0 %4191
      %4193 = vrot.lane.b32.xlu0 %v3935, 64
      %v4194 = vpop.permute.xlu0 %4193
      %4195 = vrot.lane.b32.xlu0 %v3936, 64
      %v4196 = vpop.permute.xlu0 %4195
      %4197 = vrot.lane.b32.xlu0 %v3937, 64
      %v4198 = vpop.permute.xlu0 %4197
      %4199 = vrot.lane.b32.xlu0 %v3938, 64
      %v4200 = vpop.permute.xlu0 %4199
      %4201 = vrot.lane.b32.xlu0 %v3939, 64
      %v4202 = vpop.permute.xlu0 %4201
      %4203 = vrot.lane.b32.xlu0 %v3940, 64
      %v4204 = vpop.permute.xlu0 %4203
      %4205 = vrot.lane.b32.xlu0 %v3941, 64
      %v4206 = vpop.permute.xlu0 %4205
      %4207 = vrot.lane.b32.xlu0 %v3942, 64
      %v4208 = vpop.permute.xlu0 %4207
      %4209 = vrot.lane.b32.xlu0 %v3943, 64
      %v4210 = vpop.permute.xlu0 %4209
      %4211 = vrot.lane.b32.xlu0 %v3944, 64
      %v4212 = vpop.permute.xlu0 %4211
      %4213 = vrot.lane.b32.xlu0 %v3945, 64
      %v4214 = vpop.permute.xlu0 %4213
      %4215 = vrot.lane.b32.xlu0 %v3946, 64
      %v4216 = vpop.permute.xlu0 %4215
      %4217 = vrot.lane.b32.xlu0 %v3947, 64
      %v4218 = vpop.permute.xlu0 %4217
      %4219 = vrot.lane.b32.xlu0 %v3948, 64
      %v4220 = vpop.permute.xlu0 %4219
      %4221 = vrot.lane.b32.xlu0 %v3949, 64
      %v4222 = vpop.permute.xlu0 %4221
      %4223 = vrot.lane.b32.xlu0 %v3950, 64
      %v4224 = vpop.permute.xlu0 %4223
      %4225 = vrot.lane.b32.xlu0 %v3951, 64
      %v4226 = vpop.permute.xlu0 %4225
      %4227 = vrot.lane.b32.xlu0 %v3952, 64
      %v4228 = vpop.permute.xlu0 %4227
      %4229 = vrot.lane.b32.xlu0 %v3953, 64
      %v4230 = vpop.permute.xlu0 %4229
      %4231 = vrot.lane.b32.xlu0 %v3954, 64
      %v4232 = vpop.permute.xlu0 %4231
      %4233 = vrot.lane.b32.xlu0 %v3955, 64
      %v4234 = vpop.permute.xlu0 %4233
      %4235 = vrot.lane.b32.xlu0 %v3956, 64
      %v4236 = vpop.permute.xlu0 %4235
      %4237 = vrot.lane.b32.xlu0 %v3957, 64
      %v4238 = vpop.permute.xlu0 %4237
      %4239 = vrot.lane.b32.xlu0 %v3958, 64
      %v4240 = vpop.permute.xlu0 %4239
      %4241 = vrot.lane.b32.xlu0 %v3959, 64
      %v4242 = vpop.permute.xlu0 %4241
      %4243 = vrot.lane.b32.xlu0 %v3960, 64
      %v4244 = vpop.permute.xlu0 %4243
      %4245 = vrot.lane.b32.xlu0 %v3961, 64
      %v4246 = vpop.permute.xlu0 %4245
      %4247 = vrot.lane.b32.xlu0 %v3962, 64
      %v4248 = vpop.permute.xlu0 %4247
      %4249 = vrot.lane.b32.xlu0 %v3963, 64
      %v4250 = vpop.permute.xlu0 %4249
      %4251 = vrot.lane.b32.xlu0 %v3964, 64
      %v4252 = vpop.permute.xlu0 %4251
      %v4285 = vsel %vm1568, %v4029, %v4190
      %v4286 = vsel %vm1568, %v4030, %v4192
      %v4287 = vsel %vm1568, %v4031, %v4194
      %v4288 = vsel %vm1568, %v4032, %v4196
      %v4289 = vsel %vm1568, %v4033, %v4198
      %v4290 = vsel %vm1568, %v4034, %v4200
      %v4291 = vsel %vm1568, %v4035, %v4202
      %v4292 = vsel %vm1568, %v4036, %v4204
      %v4293 = vsel %vm1568, %v4037, %v4206
      %v4294 = vsel %vm1568, %v4038, %v4208
      %v4295 = vsel %vm1568, %v4039, %v4210
      %v4296 = vsel %vm1568, %v4040, %v4212
      %v4297 = vsel %vm1568, %v4041, %v4214
      %v4298 = vsel %vm1568, %v4042, %v4216
      %v4299 = vsel %vm1568, %v4043, %v4218
      %v4300 = vsel %vm1568, %v4044, %v4220
      %v4301 = vsel %vm1568, %v4045, %v4222
      %v4302 = vsel %vm1568, %v4046, %v4224
      %v4303 = vsel %vm1568, %v4047, %v4226
      %v4304 = vsel %vm1568, %v4048, %v4228
      %v4305 = vsel %vm1568, %v4049, %v4230
      %v4306 = vsel %vm1568, %v4050, %v4232
      %v4307 = vsel %vm1568, %v4051, %v4234
      %v4308 = vsel %vm1568, %v4052, %v4236
      %v4309 = vsel %vm1568, %v4053, %v4238
      %v4310 = vsel %vm1568, %v4054, %v4240
      %v4311 = vsel %vm1568, %v4055, %v4242
      %v4312 = vsel %vm1568, %v4056, %v4244
      %v4313 = vsel %vm1568, %v4057, %v4246
      %v4314 = vsel %vm1568, %v4058, %v4248
      %v4315 = vsel %vm1568, %v4059, %v4250
      %v4316 = vsel %vm1568, %v4060, %v4252
      %v4317 = vld [vmem:[%s8] sm:$0x1]
      %v4319 = vlaneseq
      %v4320 = vshrl.u32 %v4319, 7
      %v4321 = vsub.s32 0, %v4320
      %v4322 = vrot.slane %v4317, %v4321
      %v4324 = vpack.c.bf16 %v4286, %v4285
      %v4325 = vpack.c.bf16 %v4126, %v4125
      %v4326 = vpack.c.bf16 %v4288, %v4287
      %v4327 = vpack.c.bf16 %v4128, %v4127
      %v4328 = vpack.c.bf16 %v4290, %v4289
      %v4329 = vpack.c.bf16 %v4130, %v4129
      %v4330 = vpack.c.bf16 %v4292, %v4291
      %v4331 = vpack.c.bf16 %v4132, %v4131
      %v4332 = vpack.c.bf16 %v4294, %v4293
      %v4333 = vpack.c.bf16 %v4134, %v4133
      %v4334 = vpack.c.bf16 %v4296, %v4295
      %v4335 = vpack.c.bf16 %v4136, %v4135
      %v4336 = vpack.c.bf16 %v4298, %v4297
      %v4337 = vpack.c.bf16 %v4138, %v4137
      %v4338 = vpack.c.bf16 %v4300, %v4299
      %v4339 = vpack.c.bf16 %v4140, %v4139
      %v4340 = vpack.c.bf16 %v4302, %v4301
      %v4341 = vpack.c.bf16 %v4142, %v4141
      %v4342 = vpack.c.bf16 %v4304, %v4303
      %v4343 = vpack.c.bf16 %v4144, %v4143
      %v4344 = vpack.c.bf16 %v4306, %v4305
      %v4345 = vpack.c.bf16 %v4146, %v4145
      %v4346 = vpack.c.bf16 %v4308, %v4307
      %v4347 = vpack.c.bf16 %v4148, %v4147
      %v4348 = vpack.c.bf16 %v4310, %v4309
      %v4349 = vpack.c.bf16 %v4150, %v4149
      %v4350 = vpack.c.bf16 %v4312, %v4311
      %v4351 = vpack.c.bf16 %v4152, %v4151
      %v4352 = vpack.c.bf16 %v4314, %v4313
      %v4353 = vpack.c.bf16 %v4154, %v4153
      %v4354 = vld [vmem:[%s7] sm:$0xf]
      %v4355 = vld [vmem:[%s7 + $0x4] sm:$0xf]
      %v4356 = vld [vmem:[%s7 + $0x8] sm:$0xf]
      %v4357 = vld [vmem:[%s7 + $0xc] sm:$0xf]
      %v4358 = vld [vmem:[%s7 + $0x10] sm:$0xf]
      %v4359 = vld [vmem:[%s7 + $0x14] sm:$0xf]
      %v4360 = vld [vmem:[%s7 + $0x18] sm:$0xf]
      %v4361 = vld [vmem:[%s7 + $0x1c] sm:$0xf]
      %v4362 = vld [vmem:[%s7 + $0x20] sm:$0xf]
      %v4363 = vld [vmem:[%s7 + $0x24] sm:$0xf]
      %v4364 = vld [vmem:[%s7 + $0x28] sm:$0xf]
      %v4365 = vld [vmem:[%s7 + $0x2c] sm:$0xf]
      %v4366 = vld [vmem:[%s7 + $0x30] sm:$0xf]
      %v4367 = vld [vmem:[%s7 + $0x34] sm:$0xf]
      %v4368 = vld [vmem:[%s7 + $0x38] sm:$0xf]
      %v4369 = vld [vmem:[%s7 + $0x3c] sm:$0xf]
      %v4370 = vld [vmem:[%s7 + $0x40] sm:$0xf]
      %v4371 = vld [vmem:[%s7 + $0x44] sm:$0xf]
      %v4372 = vld [vmem:[%s7 + $0x48] sm:$0xf]
      %v4373 = vld [vmem:[%s7 + $0x4c] sm:$0xf]
      %v4374 = vld [vmem:[%s7 + $0x50] sm:$0xf]
      %v4375 = vld [vmem:[%s7 + $0x54] sm:$0xf]
      %v4376 = vld [vmem:[%s7 + $0x58] sm:$0xf]
      %v4377 = vld [vmem:[%s7 + $0x5c] sm:$0xf]
      %v4402 = vunpack.c.l.b16 %v4354
      %v4403 = vunpack.c.l.b16 %v4355
      %v4404 = vunpack.c.l.b16 %v4356
      %v4405 = vunpack.c.l.b16 %v4357
      %v4406 = vunpack.c.l.b16 %v4358
      %v4407 = vunpack.c.l.b16 %v4359
      %v4408 = vunpack.c.l.b16 %v4360
      %v4409 = vunpack.c.l.b16 %v4361
      %v4410 = vunpack.c.l.b16 %v4362
      %v4411 = vunpack.c.l.b16 %v4363
      %v4412 = vunpack.c.l.b16 %v4364
      %v4413 = vunpack.c.l.b16 %v4365
      %v4414 = vunpack.c.l.b16 %v4366
      %v4415 = vunpack.c.l.b16 %v4367
      %v4416 = vunpack.c.l.b16 %v4368
      %v4417 = vunpack.c.l.b16 %v4369
      %v4418 = vunpack.c.l.b16 %v4370
      %v4419 = vunpack.c.l.b16 %v4371
      %v4420 = vunpack.c.l.b16 %v4372
      %v4421 = vunpack.c.l.b16 %v4373
      %v4422 = vunpack.c.l.b16 %v4374
      %v4423 = vunpack.c.l.b16 %v4375
      %v4424 = vunpack.c.l.b16 %v4376
      %v4425 = vunpack.c.l.b16 %v4377
      %v4426 = vpack.c.b16 %v4403, %v4402
      %v4427 = vpack.c.b16 %v4405, %v4404
      %v4428 = vpack.c.b16 %v4407, %v4406
      %v4429 = vpack.c.b16 %v4409, %v4408
      %v4430 = vpack.c.b16 %v4411, %v4410
      %v4431 = vpack.c.b16 %v4413, %v4412
      %v4432 = vpack.c.b16 %v4415, %v4414
      %v4433 = vpack.c.b16 %v4417, %v4416
      %v4434 = vpack.c.b16 %v4419, %v4418
      %v4435 = vpack.c.b16 %v4421, %v4420
      %v4436 = vpack.c.b16 %v4423, %v4422
      %v4437 = vpack.c.b16 %v4425, %v4424
      %v4451 = vsel %vm1568, %v4325, 0
      %v4454 = vsel %vm1568, %v4327, 0
      %v4457 = vsel %vm1568, %v4329, 0
      %v4460 = vsel %vm1568, %v4331, 0
      %v4463 = vsel %vm1568, %v4333, 0
      %v4466 = vsel %vm1568, %v4335, 0
      %v4469 = vsel %vm1568, %v4337, 0
      %v4472 = vsel %vm1568, %v4339, 0
      %v4475 = vsel %vm1568, %v4341, 0
      %v4478 = vsel %vm1568, %v4343, 0
      %v4481 = vsel %vm1568, %v4345, 0
      %v4484 = vsel %vm1568, %v4347, 0
      %v4487 = vsel %vm1568, %v4349, 0
      %v4490 = vsel %vm1568, %v4351, 0
      %v4493 = vsel %vm1568, %v4353, 0
      %4495 = vmatprep.subr.bf16.mxu0 0
      %4496 = vmatpush1.bf16.msra.mxu0 %v4426
      %4497 = vmatprep.subr.bf16.mxu0 0
      %4498 = vmatpush1.bf16.msra.mxu0 %v4427
      %4499 = vmatprep.subr.bf16.mxu0 0
      %4500 = vmatpush1.bf16.msra.mxu0 %v4428
      %4501 = vmatprep.subr.bf16.mxu0 0
      %4502 = vmatpush1.bf16.msra.mxu0 %v4429
      %4503 = vmatprep.subr.bf16.mxu0 0
      %4504 = vmatpush1.bf16.msra.mxu0 %v4430
      %4505 = vmatprep.subr.bf16.mxu0 0
      %4506 = vmatpush1.bf16.msra.mxu0 %v4431
      %4507 = vmatprep.subr.bf16.mxu0 0
      %4508 = vmatpush1.bf16.msra.mxu0 %v4432
      %4509 = vmatprep.subr.bf16.mxu0 0
      %4510 = vmatpush1.bf16.msra.mxu0 %v4433
      %4511 = vmatprep.subr.bf16.mxu0 0
      %4512 = vmatpush1.bf16.msra.mxu0 %v4434
      %4513 = vmatprep.subr.bf16.mxu0 0
      %4514 = vmatpush1.bf16.msra.mxu0 %v4435
      %4515 = vmatprep.subr.bf16.mxu0 0
      %4516 = vmatpush1.bf16.msra.mxu0 %v4436
      %4517 = vmatprep.subr.bf16.mxu0 0
      %4518 = vmatpush1.bf16.msra.mxu0 %v4437
      %4519 = vmatprep.subr.bf16.mxu0 0
      %4520 = vmatpush1.bf16.msra.mxu0 0
      %4521 = vmatprep.subr.bf16.mxu0 0
      %4522 = vmatpush1.bf16.msra.mxu0 0
      %4523 = vmatprep.subr.bf16.mxu0 0
      %4524 = vmatpush1.bf16.msra.mxu0 0
      %4525 = vmatprep.subr.bf16.mxu0 0
      %4526 = vmatpush1.bf16.msra.mxu0 0
      %4527 = vmatprep.mubr.bf16.mxu0 %v1736
      %4528 = vmatmul.mubr.bf16.gmra.mrb[0].mxu0 %v1608
      %v4529 = vpop.f32.mrb[0].mxu0
      %v4530 = vadd.f32 0.0, %v4529
      %v4531 = vpop.f32.mrb[0].mxu0
      %v4532 = vpop.f32.mrb[0].mxu0
      %v4533 = vadd.f32 0.0, %v4532
      %v4534 = vpop.f32.mrb[0].mxu0
      %4535 = vmatprep.mubr.bf16.mxu0 %v4451
      %4536 = vmatmul.mubr.bf16.gmra.mrb[0].mxu0 %v4324
      %v4537 = vpop.f32.mrb[0].mxu0
      %v4538 = vadd.f32 0.0, %v4537
      %v4539 = vpop.f32.mrb[0].mxu0
      %v4540 = vpop.f32.mrb[0].mxu0
      %v4541 = vadd.f32 0.0, %v4540
      %v4542 = vpop.f32.mrb[0].mxu0
      %4543 = vmatprep.mubr.bf16.mxu0 %v4454
      %4544 = vmatmul.mubr.bf16.gmra.mrb[0].mxu0 %v4326
      %v4545 = vpop.f32.mrb[0].mxu0
      %v4546 = vadd.f32 0.0, %v4545
      %v4547 = vpop.f32.mrb[0].mxu0
      %v4548 = vpop.f32.mrb[0].mxu0
      %v4549 = vadd.f32 0.0, %v4548
      %v4550 = vpop.f32.mrb[0].mxu0
      %4551 = vmatprep.mubr.bf16.mxu0 %v4457
      %4552 = vmatmul.mubr.bf16.gmra.mrb[0].mxu0 %v4328
      %v4553 = vpop.f32.mrb[0].mxu0
      %v4554 = vadd.f32 0.0, %v4553
      %v4555 = vpop.f32.mrb[0].mxu0
      %v4556 = vpop.f32.mrb[0].mxu0
      %v4557 = vadd.f32 0.0, %v4556
      %v4558 = vpop.f32.mrb[0].mxu0
      %4559 = vmatprep.mubr.bf16.mxu0 %v4460
      %4560 = vmatmul.mubr.bf16.gmra.mrb[0].mxu0 %v4330
      %v4561 = vpop.f32.mrb[0].mxu0
      %v4562 = vadd.f32 0.0, %v4561
      %v4563 = vpop.f32.mrb[0].mxu0
      %v4564 = vpop.f32.mrb[0].mxu0
      %v4565 = vadd.f32 0.0, %v4564
      %v4566 = vpop.f32.mrb[0].mxu0
      %4567 = vmatprep.mubr.bf16.mxu0 %v4463
      %4568 = vmatmul.mubr.bf16.gmra.mrb[0].mxu0 %v4332
      %v4569 = vpop.f32.mrb[0].mxu0
      %v4570 = vadd.f32 0.0, %v4569
      %v4571 = vpop.f32.mrb[0].mxu0
      %v4572 = vpop.f32.mrb[0].mxu0
      %v4573 = vadd.f32 0.0, %v4572
      %v4574 = vpop.f32.mrb[0].mxu0
      %4575 = vmatprep.mubr.bf16.mxu0 %v4466
      %4576 = vmatmul.mubr.bf16.gmra.mrb[0].mxu0 %v4334
      %v4577 = vpop.f32.mrb[0].mxu0
      %v4578 = vadd.f32 0.0, %v4577
      %v4579 = vpop.f32.mrb[0].mxu0
      %v4580 = vpop.f32.mrb[0].mxu0
      %v4581 = vadd.f32 0.0, %v4580
      %v4582 = vpop.f32.mrb[0].mxu0
      %4583 = vmatprep.mubr.bf16.mxu0 %v4469
      %4584 = vmatmul.mubr.bf16.gmra.mrb[0].mxu0 %v4336
      %v4585 = vpop.f32.mrb[0].mxu0
      %v4586 = vadd.f32 0.0, %v4585
      %v4587 = vpop.f32.mrb[0].mxu0
      %v4588 = vpop.f32.mrb[0].mxu0
      %v4589 = vadd.f32 0.0, %v4588
      %v4590 = vpop.f32.mrb[0].mxu0
      %4591 = vmatprep.mubr.bf16.mxu0 %v4472
      %4592 = vmatmul.mubr.bf16.gmra.mrb[0].mxu0 %v4338
      %v4593 = vpop.f32.mrb[0].mxu0
      %v4594 = vadd.f32 0.0, %v4593
      %v4595 = vpop.f32.mrb[0].mxu0
      %v4596 = vpop.f32.mrb[0].mxu0
      %v4597 = vadd.f32 0.0, %v4596
      %v4598 = vpop.f32.mrb[0].mxu0
      %4599 = vmatprep.mubr.bf16.mxu0 %v4475
      %4600 = vmatmul.mubr.bf16.gmra.mrb[0].mxu0 %v4340
      %v4601 = vpop.f32.mrb[0].mxu0
      %v4602 = vadd.f32 0.0, %v4601
      %v4603 = vpop.f32.mrb[0].mxu0
      %v4604 = vpop.f32.mrb[0].mxu0
      %v4605 = vadd.f32 0.0, %v4604
      %v4606 = vpop.f32.mrb[0].mxu0
      %4607 = vmatprep.mubr.bf16.mxu0 %v4478
      %4608 = vmatmul.mubr.bf16.gmra.mrb[0].mxu0 %v4342
      %v4609 = vpop.f32.mrb[0].mxu0
      %v4610 = vadd.f32 0.0, %v4609
      %v4611 = vpop.f32.mrb[0].mxu0
      %v4612 = vpop.f32.mrb[0].mxu0
      %v4613 = vadd.f32 0.0, %v4612
      %v4614 = vpop.f32.mrb[0].mxu0
      %4615 = vmatprep.mubr.bf16.mxu0 %v4481
      %4616 = vmatmul.mubr.bf16.gmra.mrb[0].mxu0 %v4344
      %v4617 = vpop.f32.mrb[0].mxu0
      %v4618 = vadd.f32 0.0, %v4617
      %v4619 = vpop.f32.mrb[0].mxu0
      %v4620 = vpop.f32.mrb[0].mxu0
      %v4621 = vadd.f32 0.0, %v4620
      %v4622 = vpop.f32.mrb[0].mxu0
      %4623 = vmatprep.mubr.bf16.mxu0 %v4484
      %4624 = vmatmul.mubr.bf16.gmra.mrb[0].mxu0 %v4346
      %v4625 = vpop.f32.mrb[0].mxu0
      %v4626 = vadd.f32 0.0, %v4625
      %v4627 = vpop.f32.mrb[0].mxu0
      %v4628 = vpop.f32.mrb[0].mxu0
      %v4629 = vadd.f32 0.0, %v4628
      %v4630 = vpop.f32.mrb[0].mxu0
      %4631 = vmatprep.mubr.bf16.mxu0 %v4487
      %4632 = vmatmul.mubr.bf16.gmra.mrb[0].mxu0 %v4348
      %v4633 = vpop.f32.mrb[0].mxu0
      %v4634 = vadd.f32 0.0, %v4633
      %v4635 = vpop.f32.mrb[0].mxu0
      %v4636 = vpop.f32.mrb[0].mxu0
      %v4637 = vadd.f32 0.0, %v4636
      %v4638 = vpop.f32.mrb[0].mxu0
      %4639 = vmatprep.mubr.bf16.mxu0 %v4490
      %4640 = vmatmul.mubr.bf16.gmra.mrb[0].mxu0 %v4350
      %v4641 = vpop.f32.mrb[0].mxu0
      %v4642 = vadd.f32 0.0, %v4641
      %v4643 = vpop.f32.mrb[0].mxu0
      %v4644 = vpop.f32.mrb[0].mxu0
      %v4645 = vadd.f32 0.0, %v4644
      %v4646 = vpop.f32.mrb[0].mxu0
      %4647 = vmatprep.mubr.bf16.mxu0 %v4493
      %4648 = vmatmul.mubr.bf16.gmra.mrb[0].mxu0 %v4352
      %v4649 = vpop.f32.mrb[0].mxu0
      %v4650 = vadd.f32 0.0, %v4649
      %v4651 = vpop.f32.mrb[0].mxu0
      %v4652 = vpop.f32.mrb[0].mxu0
      %v4653 = vadd.f32 0.0, %v4652
      %v4654 = vpop.f32.mrb[0].mxu0
      %4655 = vdwg.mxu0
      %v4656 = vadd.f32 %v4322, %v4530
      %v4657 = vadd.f32 %v4322, %v4533
      %v4658 = vadd.f32 %v4322, %v4538
      %v4659 = vadd.f32 %v4322, %v4541
      %v4660 = vadd.f32 %v4322, %v4546
      %v4661 = vadd.f32 %v4322, %v4549
      %v4662 = vadd.f32 %v4322, %v4554
      %v4663 = vadd.f32 %v4322, %v4557
      %v4664 = vadd.f32 %v4322, %v4562
      %v4665 = vadd.f32 %v4322, %v4565
      %v4666 = vadd.f32 %v4322, %v4570
      %v4667 = vadd.f32 %v4322, %v4573
      %v4668 = vadd.f32 %v4322, %v4578
      %v4669 = vadd.f32 %v4322, %v4581
      %v4670 = vadd.f32 %v4322, %v4586
      %v4671 = vadd.f32 %v4322, %v4589
      %v4672 = vadd.f32 %v4322, %v4594
      %v4673 = vadd.f32 %v4322, %v4597
      %v4674 = vadd.f32 %v4322, %v4602
      %v4675 = vadd.f32 %v4322, %v4605
      %v4676 = vadd.f32 %v4322, %v4610
      %v4677 = vadd.f32 %v4322, %v4613
      %v4678 = vadd.f32 %v4322, %v4618
      %v4679 = vadd.f32 %v4322, %v4621
      %v4680 = vadd.f32 %v4322, %v4626
      %v4681 = vadd.f32 %v4322, %v4629
      %v4682 = vadd.f32 %v4322, %v4634
      %v4683 = vadd.f32 %v4322, %v4637
      %v4684 = vadd.f32 %v4322, %v4642
      %v4685 = vadd.f32 %v4322, %v4645
      %v4686 = vadd.f32 %v4322, %v4650
      %v4687 = vadd.f32 %v4322, %v4653
      %v4688 = vpack.c.bf16 %v4316, %v4315
      %v4689 = vpack.c.bf16 %v4156, %v4155
      %s4690 = scalar_lea.vmem %s7, 96
      %v4691 = vld [vmem:[%s4690] sm:$0xf]
      %v4692 = vld [vmem:[%s4690 + $0x4] sm:$0xf]
      %v4693 = vld [vmem:[%s4690 + $0x8] sm:$0xf]
      %v4694 = vld [vmem:[%s4690 + $0xc] sm:$0xf]
      %v4695 = vld [vmem:[%s4690 + $0x10] sm:$0xf]
      %v4696 = vld [vmem:[%s4690 + $0x14] sm:$0xf]
      %v4697 = vld [vmem:[%s4690 + $0x18] sm:$0xf]
      %v4698 = vld [vmem:[%s4690 + $0x1c] sm:$0xf]
      %v4699 = vld [vmem:[%s4690 + $0x20] sm:$0xf]
      %v4700 = vld [vmem:[%s4690 + $0x24] sm:$0xf]
      %v4701 = vld [vmem:[%s4690 + $0x28] sm:$0xf]
      %v4702 = vld [vmem:[%s4690 + $0x2c] sm:$0xf]
      %v4703 = vld [vmem:[%s4690 + $0x30] sm:$0xf]
      %v4704 = vld [vmem:[%s4690 + $0x34] sm:$0xf]
      %v4705 = vld [vmem:[%s4690 + $0x38] sm:$0xf]
      %v4706 = vld [vmem:[%s4690 + $0x3c] sm:$0xf]
      %v4707 = vld [vmem:[%s4690 + $0x40] sm:$0xf]
      %v4708 = vld [vmem:[%s4690 + $0x44] sm:$0xf]
      %v4709 = vld [vmem:[%s4690 + $0x48] sm:$0xf]
      %v4710 = vld [vmem:[%s4690 + $0x4c] sm:$0xf]
      %v4711 = vld [vmem:[%s4690 + $0x50] sm:$0xf]
      %v4712 = vld [vmem:[%s4690 + $0x54] sm:$0xf]
      %v4713 = vld [vmem:[%s4690 + $0x58] sm:$0xf]
      %v4714 = vld [vmem:[%s4690 + $0x5c] sm:$0xf]
      %v4739 = vunpack.c.l.b16 %v4691
      %v4740 = vunpack.c.l.b16 %v4692
      %v4741 = vunpack.c.l.b16 %v4693
      %v4742 = vunpack.c.l.b16 %v4694
      %v4743 = vunpack.c.l.b16 %v4695
      %v4744 = vunpack.c.l.b16 %v4696
      %v4745 = vunpack.c.l.b16 %v4697
      %v4746 = vunpack.c.l.b16 %v4698
      %v4747 = vunpack.c.l.b16 %v4699
      %v4748 = vunpack.c.l.b16 %v4700
      %v4749 = vunpack.c.l.b16 %v4701
      %v4750 = vunpack.c.l.b16 %v4702
      %v4751 = vunpack.c.l.b16 %v4703
      %v4752 = vunpack.c.l.b16 %v4704
      %v4753 = vunpack.c.l.b16 %v4705
      %v4754 = vunpack.c.l.b16 %v4706
      %v4755 = vunpack.c.l.b16 %v4707
      %v4756 = vunpack.c.l.b16 %v4708
      %v4757 = vunpack.c.l.b16 %v4709
      %v4758 = vunpack.c.l.b16 %v4710
      %v4759 = vunpack.c.l.b16 %v4711
      %v4760 = vunpack.c.l.b16 %v4712
      %v4761 = vunpack.c.l.b16 %v4713
      %v4762 = vunpack.c.l.b16 %v4714
      %v4763 = vpack.c.b16 %v4740, %v4739
      %v4764 = vpack.c.b16 %v4742, %v4741
      %v4765 = vpack.c.b16 %v4744, %v4743
      %v4766 = vpack.c.b16 %v4746, %v4745
      %v4767 = vpack.c.b16 %v4748, %v4747
      %v4768 = vpack.c.b16 %v4750, %v4749
      %v4769 = vpack.c.b16 %v4752, %v4751
      %v4770 = vpack.c.b16 %v4754, %v4753
      %v4771 = vpack.c.b16 %v4756, %v4755
      %v4772 = vpack.c.b16 %v4758, %v4757
      %v4773 = vpack.c.b16 %v4760, %v4759
      %v4774 = vpack.c.b16 %v4762, %v4761
      %v4788 = vsel %vm1568, %v4689, 0
      %4790 = vmatprep.subr.bf16.mxu0 0
      %4791 = vmatpush1.bf16.msra.mxu0 %v4763
      %4792 = vmatprep.subr.bf16.mxu0 0
      %4793 = vmatpush1.bf16.msra.mxu0 %v4764
      %4794 = vmatprep.subr.bf16.mxu0 0
      %4795 = vmatpush1.bf16.msra.mxu0 %v4765
      %4796 = vmatprep.subr.bf16.mxu0 0
      %4797 = vmatpush1.bf16.msra.mxu0 %v4766
      %4798 = vmatprep.subr.bf16.mxu0 0
      %4799 = vmatpush1.bf16.msra.mxu0 %v4767
      %4800 = vmatprep.subr.bf16.mxu0 0
      %4801 = vmatpush1.bf16.msra.mxu0 %v4768
      %4802 = vmatprep.subr.bf16.mxu0 0
      %4803 = vmatpush1.bf16.msra.mxu0 %v4769
      %4804 = vmatprep.subr.bf16.mxu0 0
      %4805 = vmatpush1.bf16.msra.mxu0 %v4770
      %4806 = vmatprep.subr.bf16.mxu0 0
      %4807 = vmatpush1.bf16.msra.mxu0 %v4771
      %4808 = vmatprep.subr.bf16.mxu0 0
      %4809 = vmatpush1.bf16.msra.mxu0 %v4772
      %4810 = vmatprep.subr.bf16.mxu0 0
      %4811 = vmatpush1.bf16.msra.mxu0 %v4773
      %4812 = vmatprep.subr.bf16.mxu0 0
      %4813 = vmatpush1.bf16.msra.mxu0 %v4774
      %4814 = vmatprep.subr.bf16.mxu0 0
      %4815 = vmatpush1.bf16.msra.mxu0 0
      %4816 = vmatprep.subr.bf16.mxu0 0
      %4817 = vmatpush1.bf16.msra.mxu0 0
      %4818 = vmatprep.subr.bf16.mxu0 0
      %4819 = vmatpush1.bf16.msra.mxu0 0
      %4820 = vmatprep.subr.bf16.mxu0 0
      %4821 = vmatpush1.bf16.msra.mxu0 0
      %4822 = vmatprep.mubr.bf16.mxu0 %v4451
      %4823 = vmatmul.mubr.bf16.gmra.mrb[0].mxu0 %v4324
      %v4824 = vpop.f32.mrb[0].mxu0
      %v4825 = vadd.f32 0.0, %v4824
      %v4826 = vpop.f32.mrb[0].mxu0
      %v4827 = vpop.f32.mrb[0].mxu0
      %v4828 = vadd.f32 0.0, %v4827
      %v4829 = vpop.f32.mrb[0].mxu0
      %4830 = vmatprep.mubr.bf16.mxu0 %v4454
      %4831 = vmatmul.mubr.bf16.gmra.mrb[0].mxu0 %v4326
      %v4832 = vpop.f32.mrb[0].mxu0
      %v4833 = vadd.f32 0.0, %v4832
      %v4834 = vpop.f32.mrb[0].mxu0
      %v4835 = vpop.f32.mrb[0].mxu0
      %v4836 = vadd.f32 0.0, %v4835
      %v4837 = vpop.f32.mrb[0].mxu0
      %4838 = vmatprep.mubr.bf16.mxu0 %v4457
      %4839 = vmatmul.mubr.bf16.gmra.mrb[0].mxu0 %v4328
      %v4840 = vpop.f32.mrb[0].mxu0
      %v4841 = vadd.f32 0.0, %v4840
      %v4842 = vpop.f32.mrb[0].mxu0
      %v4843 = vpop.f32.mrb[0].mxu0
      %v4844 = vadd.f32 0.0, %v4843
      %v4845 = vpop.f32.mrb[0].mxu0
      %4846 = vmatprep.mubr.bf16.mxu0 %v4460
      %4847 = vmatmul.mubr.bf16.gmra.mrb[0].mxu0 %v4330
      %v4848 = vpop.f32.mrb[0].mxu0
      %v4849 = vadd.f32 0.0, %v4848
      %v4850 = vpop.f32.mrb[0].mxu0
      %v4851 = vpop.f32.mrb[0].mxu0
      %v4852 = vadd.f32 0.0, %v4851
      %v4853 = vpop.f32.mrb[0].mxu0
      %4854 = vmatprep.mubr.bf16.mxu0 %v4463
      %4855 = vmatmul.mubr.bf16.gmra.mrb[0].mxu0 %v4332
      %v4856 = vpop.f32.mrb[0].mxu0
      %v4857 = vadd.f32 0.0, %v4856
      %v4858 = vpop.f32.mrb[0].mxu0
      %v4859 = vpop.f32.mrb[0].mxu0
      %v4860 = vadd.f32 0.0, %v4859
      %v4861 = vpop.f32.mrb[0].mxu0
      %4862 = vmatprep.mubr.bf16.mxu0 %v4466
      %4863 = vmatmul.mubr.bf16.gmra.mrb[0].mxu0 %v4334
      %v4864 = vpop.f32.mrb[0].mxu0
      %v4865 = vadd.f32 0.0, %v4864
      %v4866 = vpop.f32.mrb[0].mxu0
      %v4867 = vpop.f32.mrb[0].mxu0
      %v4868 = vadd.f32 0.0, %v4867
      %v4869 = vpop.f32.mrb[0].mxu0
      %4870 = vmatprep.mubr.bf16.mxu0 %v4469
      %4871 = vmatmul.mubr.bf16.gmra.mrb[0].mxu0 %v4336
      %v4872 = vpop.f32.mrb[0].mxu0
      %v4873 = vadd.f32 0.0, %v4872
      %v4874 = vpop.f32.mrb[0].mxu0
      %v4875 = vpop.f32.mrb[0].mxu0
      %v4876 = vadd.f32 0.0, %v4875
      %v4877 = vpop.f32.mrb[0].mxu0
      %4878 = vmatprep.mubr.bf16.mxu0 %v4472
      %4879 = vmatmul.mubr.bf16.gmra.mrb[0].mxu0 %v4338
      %v4880 = vpop.f32.mrb[0].mxu0
      %v4881 = vadd.f32 0.0, %v4880
      %v4882 = vpop.f32.mrb[0].mxu0
      %v4883 = vpop.f32.mrb[0].mxu0
      %v4884 = vadd.f32 0.0, %v4883
      %v4885 = vpop.f32.mrb[0].mxu0
      %4886 = vmatprep.mubr.bf16.mxu0 %v4475
      %4887 = vmatmul.mubr.bf16.gmra.mrb[0].mxu0 %v4340
      %v4888 = vpop.f32.mrb[0].mxu0
      %v4889 = vadd.f32 0.0, %v4888
      %v4890 = vpop.f32.mrb[0].mxu0
      %v4891 = vpop.f32.mrb[0].mxu0
      %v4892 = vadd.f32 0.0, %v4891
      %v4893 = vpop.f32.mrb[0].mxu0
      %4894 = vmatprep.mubr.bf16.mxu0 %v4478
      %4895 = vmatmul.mubr.bf16.gmra.mrb[0].mxu0 %v4342
      %v4896 = vpop.f32.mrb[0].mxu0
      %v4897 = vadd.f32 0.0, %v4896
      %v4898 = vpop.f32.mrb[0].mxu0
      %v4899 = vpop.f32.mrb[0].mxu0
      %v4900 = vadd.f32 0.0, %v4899
      %v4901 = vpop.f32.mrb[0].mxu0
      %4902 = vmatprep.mubr.bf16.mxu0 %v4481
      %4903 = vmatmul.mubr.bf16.gmra.mrb[0].mxu0 %v4344
      %v4904 = vpop.f32.mrb[0].mxu0
      %v4905 = vadd.f32 0.0, %v4904
      %v4906 = vpop.f32.mrb[0].mxu0
      %v4907 = vpop.f32.mrb[0].mxu0
      %v4908 = vadd.f32 0.0, %v4907
      %v4909 = vpop.f32.mrb[0].mxu0
      %4910 = vmatprep.mubr.bf16.mxu0 %v4484
      %4911 = vmatmul.mubr.bf16.gmra.mrb[0].mxu0 %v4346
      %v4912 = vpop.f32.mrb[0].mxu0
      %v4913 = vadd.f32 0.0, %v4912
      %v4914 = vpop.f32.mrb[0].mxu0
      %v4915 = vpop.f32.mrb[0].mxu0
      %v4916 = vadd.f32 0.0, %v4915
      %v4917 = vpop.f32.mrb[0].mxu0
      %4918 = vmatprep.mubr.bf16.mxu0 %v4487
      %4919 = vmatmul.mubr.bf16.gmra.mrb[0].mxu0 %v4348
      %v4920 = vpop.f32.mrb[0].mxu0
      %v4921 = vadd.f32 0.0, %v4920
      %v4922 = vpop.f32.mrb[0].mxu0
      %v4923 = vpop.f32.mrb[0].mxu0
      %v4924 = vadd.f32 0.0, %v4923
      %v4925 = vpop.f32.mrb[0].mxu0
      %4926 = vmatprep.mubr.bf16.mxu0 %v4490
      %4927 = vmatmul.mubr.bf16.gmra.mrb[0].mxu0 %v4350
      %v4928 = vpop.f32.mrb[0].mxu0
      %v4929 = vadd.f32 0.0, %v4928
      %v4930 = vpop.f32.mrb[0].mxu0
      %v4931 = vpop.f32.mrb[0].mxu0
      %v4932 = vadd.f32 0.0, %v4931
      %v4933 = vpop.f32.mrb[0].mxu0
      %4934 = vmatprep.mubr.bf16.mxu0 %v4493
      %4935 = vmatmul.mubr.bf16.gmra.mrb[0].mxu0 %v4352
      %v4936 = vpop.f32.mrb[0].mxu0
      %v4937 = vadd.f32 0.0, %v4936
      %v4938 = vpop.f32.mrb[0].mxu0
      %v4939 = vpop.f32.mrb[0].mxu0
      %v4940 = vadd.f32 0.0, %v4939
      %v4941 = vpop.f32.mrb[0].mxu0
      %4942 = vmatprep.mubr.bf16.mxu0 %v4788
      %4943 = vmatmul.mubr.bf16.gmra.mrb[0].mxu0 %v4688
      %v4944 = vpop.f32.mrb[0].mxu0
      %v4945 = vadd.f32 0.0, %v4944
      %v4946 = vpop.f32.mrb[0].mxu0
      %v4947 = vpop.f32.mrb[0].mxu0
      %v4948 = vadd.f32 0.0, %v4947
      %v4949 = vpop.f32.mrb[0].mxu0
      %4950 = vdwg.mxu0
      %v4951 = vadd.f32 %v4656, %v4825
      %v4952 = vadd.f32 %v4657, %v4828
      %v4953 = vadd.f32 %v4658, %v4833
      %v4954 = vadd.f32 %v4659, %v4836
      %v4955 = vadd.f32 %v4660, %v4841
      %v4956 = vadd.f32 %v4661, %v4844
      %v4957 = vadd.f32 %v4662, %v4849
      %v4958 = vadd.f32 %v4663, %v4852
      %v4959 = vadd.f32 %v4664, %v4857
      %v4960 = vadd.f32 %v4665, %v4860
      %v4961 = vadd.f32 %v4666, %v4865
      %v4962 = vadd.f32 %v4667, %v4868
      %v4963 = vadd.f32 %v4668, %v4873
      %v4964 = vadd.f32 %v4669, %v4876
      %v4965 = vadd.f32 %v4670, %v4881
      %v4966 = vadd.f32 %v4671, %v4884
      %v4967 = vadd.f32 %v4672, %v4889
      %v4968 = vadd.f32 %v4673, %v4892
      %v4969 = vadd.f32 %v4674, %v4897
      %v4970 = vadd.f32 %v4675, %v4900
      %v4971 = vadd.f32 %v4676, %v4905
      %v4972 = vadd.f32 %v4677, %v4908
      %v4973 = vadd.f32 %v4678, %v4913
      %v4974 = vadd.f32 %v4679, %v4916
      %v4975 = vadd.f32 %v4680, %v4921
      %v4976 = vadd.f32 %v4681, %v4924
      %v4977 = vadd.f32 %v4682, %v4929
      %v4978 = vadd.f32 %v4683, %v4932
      %v4979 = vadd.f32 %v4684, %v4937
      %v4980 = vadd.f32 %v4685, %v4940
      %v4981 = vadd.f32 %v4686, %v4945
      %v4982 = vadd.f32 %v4687, %v4948
      %s4983 = scalar_lea.vmem %s7, 192
      %v4984 = vld [vmem:[%s4983] sm:$0xf]
      %v4985 = vld [vmem:[%s4983 + $0x4] sm:$0xf]
      %v4986 = vld [vmem:[%s4983 + $0x8] sm:$0xf]
      %v4987 = vld [vmem:[%s4983 + $0xc] sm:$0xf]
      %v4988 = vld [vmem:[%s4983 + $0x10] sm:$0xf]
      %v4989 = vld [vmem:[%s4983 + $0x14] sm:$0xf]
      %v4990 = vld [vmem:[%s4983 + $0x18] sm:$0xf]
      %v4991 = vld [vmem:[%s4983 + $0x1c] sm:$0xf]
      %v4992 = vld [vmem:[%s4983 + $0x20] sm:$0xf]
      %v4993 = vld [vmem:[%s4983 + $0x24] sm:$0xf]
      %v4994 = vld [vmem:[%s4983 + $0x28] sm:$0xf]
      %v4995 = vld [vmem:[%s4983 + $0x2c] sm:$0xf]
      %v4996 = vld [vmem:[%s4983 + $0x30] sm:$0xf]
      %v4997 = vld [vmem:[%s4983 + $0x34] sm:$0xf]
      %v4998 = vld [vmem:[%s4983 + $0x38] sm:$0xf]
      %v4999 = vld [vmem:[%s4983 + $0x3c] sm:$0xf]
      %v5000 = vld [vmem:[%s4983 + $0x40] sm:$0xf]
      %v5001 = vld [vmem:[%s4983 + $0x44] sm:$0xf]
      %v5002 = vld [vmem:[%s4983 + $0x48] sm:$0xf]
      %v5003 = vld [vmem:[%s4983 + $0x4c] sm:$0xf]
      %v5004 = vld [vmem:[%s4983 + $0x50] sm:$0xf]
      %v5005 = vld [vmem:[%s4983 + $0x54] sm:$0xf]
      %v5006 = vld [vmem:[%s4983 + $0x58] sm:$0xf]
      %v5007 = vld [vmem:[%s4983 + $0x5c] sm:$0xf]
      %v5032 = vunpack.c.l.b16 %v4984
      %v5033 = vunpack.c.l.b16 %v4985
      %v5034 = vunpack.c.l.b16 %v4986
      %v5035 = vunpack.c.l.b16 %v4987
      %v5036 = vunpack.c.l.b16 %v4988
      %v5037 = vunpack.c.l.b16 %v4989
      %v5038 = vunpack.c.l.b16 %v4990
      %v5039 = vunpack.c.l.b16 %v4991
      %v5040 = vunpack.c.l.b16 %v4992
      %v5041 = vunpack.c.l.b16 %v4993
      %v5042 = vunpack.c.l.b16 %v4994
      %v5043 = vunpack.c.l.b16 %v4995
      %v5044 = vunpack.c.l.b16 %v4996
      %v5045 = vunpack.c.l.b16 %v4997
      %v5046 = vunpack.c.l.b16 %v4998
      %v5047 = vunpack.c.l.b16 %v4999
      %v5048 = vunpack.c.l.b16 %v5000
      %v5049 = vunpack.c.l.b16 %v5001
      %v5050 = vunpack.c.l.b16 %v5002
      %v5051 = vunpack.c.l.b16 %v5003
      %v5052 = vunpack.c.l.b16 %v5004
      %v5053 = vunpack.c.l.b16 %v5005
      %v5054 = vunpack.c.l.b16 %v5006
      %v5055 = vunpack.c.l.b16 %v5007
      %v5056 = vpack.c.b16 %v5033, %v5032
      %v5057 = vpack.c.b16 %v5035, %v5034
      %v5058 = vpack.c.b16 %v5037, %v5036
      %v5059 = vpack.c.b16 %v5039, %v5038
      %v5060 = vpack.c.b16 %v5041, %v5040
      %v5061 = vpack.c.b16 %v5043, %v5042
      %v5062 = vpack.c.b16 %v5045, %v5044
      %v5063 = vpack.c.b16 %v5047, %v5046
      %v5064 = vpack.c.b16 %v5049, %v5048
      %v5065 = vpack.c.b16 %v5051, %v5050
      %v5066 = vpack.c.b16 %v5053, %v5052
      %v5067 = vpack.c.b16 %v5055, %v5054
      %5080 = vmatprep.subr.bf16.mxu0 0
      %5081 = vmatpush1.bf16.msra.mxu0 %v5056
      %5082 = vmatprep.subr.bf16.mxu0 0
      %5083 = vmatpush1.bf16.msra.mxu0 %v5057
      %5084 = vmatprep.subr.bf16.mxu0 0
      %5085 = vmatpush1.bf16.msra.mxu0 %v5058
      %5086 = vmatprep.subr.bf16.mxu0 0
      %5087 = vmatpush1.bf16.msra.mxu0 %v5059
      %5088 = vmatprep.subr.bf16.mxu0 0
      %5089 = vmatpush1.bf16.msra.mxu0 %v5060
      %5090 = vmatprep.subr.bf16.mxu0 0
      %5091 = vmatpush1.bf16.msra.mxu0 %v5061
      %5092 = vmatprep.subr.bf16.mxu0 0
      %5093 = vmatpush1.bf16.msra.mxu0 %v5062
      %5094 = vmatprep.subr.bf16.mxu0 0
      %5095 = vmatpush1.bf16.msra.mxu0 %v5063
      %5096 = vmatprep.subr.bf16.mxu0 0
      %5097 = vmatpush1.bf16.msra.mxu0 %v5064
      %5098 = vmatprep.subr.bf16.mxu0 0
      %5099 = vmatpush1.bf16.msra.mxu0 %v5065
      %5100 = vmatprep.subr.bf16.mxu0 0
      %5101 = vmatpush1.bf16.msra.mxu0 %v5066
      %5102 = vmatprep.subr.bf16.mxu0 0
      %5103 = vmatpush1.bf16.msra.mxu0 %v5067
      %5104 = vmatprep.subr.bf16.mxu0 0
      %5105 = vmatpush1.bf16.msra.mxu0 0
      %5106 = vmatprep.subr.bf16.mxu0 0
      %5107 = vmatpush1.bf16.msra.mxu0 0
      %5108 = vmatprep.subr.bf16.mxu0 0
      %5109 = vmatpush1.bf16.msra.mxu0 0
      %5110 = vmatprep.subr.bf16.mxu0 0
      %5111 = vmatpush1.bf16.msra.mxu0 0
      %5112 = vmatprep.mubr.bf16.mxu0 %v4454
      %5113 = vmatmul.mubr.bf16.gmra.mrb[0].mxu0 %v4326
      %v5114 = vpop.f32.mrb[0].mxu0
      %v5115 = vadd.f32 0.0, %v5114
      %v5116 = vpop.f32.mrb[0].mxu0
      %v5117 = vpop.f32.mrb[0].mxu0
      %v5118 = vadd.f32 0.0, %v5117
      %v5119 = vpop.f32.mrb[0].mxu0
      %5120 = vmatprep.mubr.bf16.mxu0 %v4457
      %5121 = vmatmul.mubr.bf16.gmra.mrb[0].mxu0 %v4328
      %v5122 = vpop.f32.mrb[0].mxu0
      %v5123 = vadd.f32 0.0, %v5122
      %v5124 = vpop.f32.mrb[0].mxu0
      %v5125 = vpop.f32.mrb[0].mxu0
      %v5126 = vadd.f32 0.0, %v5125
      %v5127 = vpop.f32.mrb[0].mxu0
      %5128 = vmatprep.mubr.bf16.mxu0 %v4460
      %5129 = vmatmul.mubr.bf16.gmra.mrb[0].mxu0 %v4330
      %v5130 = vpop.f32.mrb[0].mxu0
      %v5131 = vadd.f32 0.0, %v5130
      %v5132 = vpop.f32.mrb[0].mxu0
      %v5133 = vpop.f32.mrb[0].mxu0
      %v5134 = vadd.f32 0.0, %v5133
      %v5135 = vpop.f32.mrb[0].mxu0
      %5136 = vmatprep.mubr.bf16.mxu0 %v4463
      %5137 = vmatmul.mubr.bf16.gmra.mrb[0].mxu0 %v4332
      %v5138 = vpop.f32.mrb[0].mxu0
      %v5139 = vadd.f32 0.0, %v5138
      %v5140 = vpop.f32.mrb[0].mxu0
      %v5141 = vpop.f32.mrb[0].mxu0
      %v5142 = vadd.f32 0.0, %v5141
      %v5143 = vpop.f32.mrb[0].mxu0
      %5144 = vmatprep.mubr.bf16.mxu0 %v4466
      %5145 = vmatmul.mubr.bf16.gmra.mrb[0].mxu0 %v4334
      %v5146 = vpop.f32.mrb[0].mxu0
      %v5147 = vadd.f32 0.0, %v5146
      %v5148 = vpop.f32.mrb[0].mxu0
      %v5149 = vpop.f32.mrb[0].mxu0
      %v5150 = vadd.f32 0.0, %v5149
      %v5151 = vpop.f32.mrb[0].mxu0
      %5152 = vmatprep.mubr.bf16.mxu0 %v4469
      %5153 = vmatmul.mubr.bf16.gmra.mrb[0].mxu0 %v4336
      %v5154 = vpop.f32.mrb[0].mxu0
      %v5155 = vadd.f32 0.0, %v5154
      %v5156 = vpop.f32.mrb[0].mxu0
      %v5157 = vpop.f32.mrb[0].mxu0
      %v5158 = vadd.f32 0.0, %v5157
      %v5159 = vpop.f32.mrb[0].mxu0
      %5160 = vmatprep.mubr.bf16.mxu0 %v4472
      %5161 = vmatmul.mubr.bf16.gmra.mrb[0].mxu0 %v4338
      %v5162 = vpop.f32.mrb[0].mxu0
      %v5163 = vadd.f32 0.0, %v5162
      %v5164 = vpop.f32.mrb[0].mxu0
      %v5165 = vpop.f32.mrb[0].mxu0
      %v5166 = vadd.f32 0.0, %v5165
      %v5167 = vpop.f32.mrb[0].mxu0
      %5168 = vmatprep.mubr.bf16.mxu0 %v4475
      %5169 = vmatmul.mubr.bf16.gmra.mrb[0].mxu0 %v4340
      %v5170 = vpop.f32.mrb[0].mxu0
      %v5171 = vadd.f32 0.0, %v5170
      %v5172 = vpop.f32.mrb[0].mxu0
      %v5173 = vpop.f32.mrb[0].mxu0
      %v5174 = vadd.f32 0.0, %v5173
      %v5175 = vpop.f32.mrb[0].mxu0
      %5176 = vmatprep.mubr.bf16.mxu0 %v4478
      %5177 = vmatmul.mubr.bf16.gmra.mrb[0].mxu0 %v4342
      %v5178 = vpop.f32.mrb[0].mxu0
      %v5179 = vadd.f32 0.0, %v5178
      %v5180 = vpop.f32.mrb[0].mxu0
      %v5181 = vpop.f32.mrb[0].mxu0
      %v5182 = vadd.f32 0.0, %v5181
      %v5183 = vpop.f32.mrb[0].mxu0
      %5184 = vmatprep.mubr.bf16.mxu0 %v4481
      %5185 = vmatmul.mubr.bf16.gmra.mrb[0].mxu0 %v4344
      %v5186 = vpop.f32.mrb[0].mxu0
      %v5187 = vadd.f32 0.0, %v5186
      %v5188 = vpop.f32.mrb[0].mxu0
      %v5189 = vpop.f32.mrb[0].mxu0
      %v5190 = vadd.f32 0.0, %v5189
      %v5191 = vpop.f32.mrb[0].mxu0
      %5192 = vmatprep.mubr.bf16.mxu0 %v4484
      %5193 = vmatmul.mubr.bf16.gmra.mrb[0].mxu0 %v4346
      %v5194 = vpop.f32.mrb[0].mxu0
      %v5195 = vadd.f32 0.0, %v5194
      %v5196 = vpop.f32.mrb[0].mxu0
      %v5197 = vpop.f32.mrb[0].mxu0
      %v5198 = vadd.f32 0.0, %v5197
      %v5199 = vpop.f32.mrb[0].mxu0
      %5200 = vmatprep.mubr.bf16.mxu0 %v4487
      %5201 = vmatmul.mubr.bf16.gmra.mrb[0].mxu0 %v4348
      %v5202 = vpop.f32.mrb[0].mxu0
      %v5203 = vadd.f32 0.0, %v5202
      %v5204 = vpop.f32.mrb[0].mxu0
      %v5205 = vpop.f32.mrb[0].mxu0
      %v5206 = vadd.f32 0.0, %v5205
      %v5207 = vpop.f32.mrb[0].mxu0
      %5208 = vmatprep.mubr.bf16.mxu0 %v4490
      %5209 = vmatmul.mubr.bf16.gmra.mrb[0].mxu0 %v4350
      %v5210 = vpop.f32.mrb[0].mxu0
      %v5211 = vadd.f32 0.0, %v5210
      %v5212 = vpop.f32.mrb[0].mxu0
      %v5213 = vpop.f32.mrb[0].mxu0
      %v5214 = vadd.f32 0.0, %v5213
      %v5215 = vpop.f32.mrb[0].mxu0
      %5216 = vmatprep.mubr.bf16.mxu0 %v4493
      %5217 = vmatmul.mubr.bf16.gmra.mrb[0].mxu0 %v4352
      %v5218 = vpop.f32.mrb[0].mxu0
      %v5219 = vadd.f32 0.0, %v5218
      %v5220 = vpop.f32.mrb[0].mxu0
      %v5221 = vpop.f32.mrb[0].mxu0
      %v5222 = vadd.f32 0.0, %v5221
      %v5223 = vpop.f32.mrb[0].mxu0
      %5224 = vmatprep.mubr.bf16.mxu0 %v4788
      %5225 = vmatmul.mubr.bf16.gmra.mrb[0].mxu0 %v4688
      %v5226 = vpop.f32.mrb[0].mxu0
      %v5227 = vadd.f32 0.0, %v5226
      %v5228 = vpop.f32.mrb[0].mxu0
      %v5229 = vpop.f32.mrb[0].mxu0
      %v5230 = vadd.f32 0.0, %v5229
      %v5231 = vpop.f32.mrb[0].mxu0
      %5232 = vmatprep.mubr.bf16.mxu0 %v1736
      %5233 = vmatmul.mubr.bf16.gmra.mrb[0].mxu0 %v1608
      %v5234 = vpop.f32.mrb[0].mxu0
      %v5235 = vadd.f32 0.0, %v5234
      %v5236 = vpop.f32.mrb[0].mxu0
      %v5237 = vpop.f32.mrb[0].mxu0
      %v5238 = vadd.f32 0.0, %v5237
      %v5239 = vpop.f32.mrb[0].mxu0
      %5240 = vdwg.mxu0
      %v5241 = vadd.f32 %v4951, %v5115
      %v5242 = vadd.f32 %v4952, %v5118
      %v5243 = vadd.f32 %v4953, %v5123
      %v5244 = vadd.f32 %v4954, %v5126
      %v5245 = vadd.f32 %v4955, %v5131
      %v5246 = vadd.f32 %v4956, %v5134
      %v5247 = vadd.f32 %v4957, %v5139
      %v5248 = vadd.f32 %v4958, %v5142
      %v5249 = vadd.f32 %v4959, %v5147
      %v5250 = vadd.f32 %v4960, %v5150
      %v5251 = vadd.f32 %v4961, %v5155
      %v5252 = vadd.f32 %v4962, %v5158
      %v5253 = vadd.f32 %v4963, %v5163
      %v5254 = vadd.f32 %v4964, %v5166
      %v5255 = vadd.f32 %v4965, %v5171
      %v5256 = vadd.f32 %v4966, %v5174
      %v5257 = vadd.f32 %v4967, %v5179
      %v5258 = vadd.f32 %v4968, %v5182
      %v5259 = vadd.f32 %v4969, %v5187
      %v5260 = vadd.f32 %v4970, %v5190
      %v5261 = vadd.f32 %v4971, %v5195
      %v5262 = vadd.f32 %v4972, %v5198
      %v5263 = vadd.f32 %v4973, %v5203
      %v5264 = vadd.f32 %v4974, %v5206
      %v5265 = vadd.f32 %v4975, %v5211
      %v5266 = vadd.f32 %v4976, %v5214
      %v5267 = vadd.f32 %v4977, %v5219
      %v5268 = vadd.f32 %v4978, %v5222
      %v5269 = vadd.f32 %v4979, %v5227
      %v5270 = vadd.f32 %v4980, %v5230
      %v5271 = vadd.f32 %v4981, %v5235
      %v5272 = vadd.f32 %v4982, %v5238
      %v5273 = vmax.f32 %v5241, 0.0
      %v5274 = vmax.f32 %v5242, 0.0
      %v5275 = vmax.f32 %v5243, 0.0
      %v5276 = vmax.f32 %v5244, 0.0
      %v5277 = vmax.f32 %v5245, 0.0
      %v5278 = vmax.f32 %v5246, 0.0
      %v5279 = vmax.f32 %v5247, 0.0
      %v5280 = vmax.f32 %v5248, 0.0
      %v5281 = vmax.f32 %v5249, 0.0
      %v5282 = vmax.f32 %v5250, 0.0
      %v5283 = vmax.f32 %v5251, 0.0
      %v5284 = vmax.f32 %v5252, 0.0
      %v5285 = vmax.f32 %v5253, 0.0
      %v5286 = vmax.f32 %v5254, 0.0
      %v5287 = vmax.f32 %v5255, 0.0
      %v5288 = vmax.f32 %v5256, 0.0
      %v5289 = vmax.f32 %v5257, 0.0
      %v5290 = vmax.f32 %v5258, 0.0
      %v5291 = vmax.f32 %v5259, 0.0
      %v5292 = vmax.f32 %v5260, 0.0
      %v5293 = vmax.f32 %v5261, 0.0
      %v5294 = vmax.f32 %v5262, 0.0
      %v5295 = vmax.f32 %v5263, 0.0
      %v5296 = vmax.f32 %v5264, 0.0
      %v5297 = vmax.f32 %v5265, 0.0
      %v5298 = vmax.f32 %v5266, 0.0
      %v5299 = vmax.f32 %v5267, 0.0
      %v5300 = vmax.f32 %v5268, 0.0
      %v5301 = vmax.f32 %v5269, 0.0
      %v5302 = vmax.f32 %v5270, 0.0
      %v5303 = vmax.f32 %v5271, 0.0
      %v5304 = vmax.f32 %v5272, 0.0
      %v5305 = vrot.slane %v5273, 7
      %v5306 = vrot.slane %v5274, 7
      %v5307 = vrot.slane %v5275, 7
      %v5308 = vrot.slane %v5276, 7
      %v5309 = vrot.slane %v5277, 7
      %v5310 = vrot.slane %v5278, 7
      %v5311 = vrot.slane %v5279, 7
      %v5312 = vrot.slane %v5280, 7
      %v5313 = vrot.slane %v5281, 7
      %v5314 = vrot.slane %v5282, 7
      %v5315 = vrot.slane %v5283, 7
      %v5316 = vrot.slane %v5284, 7
      %v5317 = vrot.slane %v5285, 7
      %v5318 = vrot.slane %v5286, 7
      %v5319 = vrot.slane %v5287, 7
      %v5320 = vrot.slane %v5288, 7
      %v5321 = vrot.slane %v5289, 7
      %v5322 = vrot.slane %v5290, 7
      %v5323 = vrot.slane %v5291, 7
      %v5324 = vrot.slane %v5292, 7
      %v5325 = vrot.slane %v5293, 7
      %v5326 = vrot.slane %v5294, 7
      %v5327 = vrot.slane %v5295, 7
      %v5328 = vrot.slane %v5296, 7
      %v5329 = vrot.slane %v5297, 7
      %v5330 = vrot.slane %v5298, 7
      %v5331 = vrot.slane %v5299, 7
      %v5332 = vrot.slane %v5300, 7
      %v5333 = vrot.slane %v5301, 7
      %v5334 = vrot.slane %v5302, 7
      %v5335 = vrot.slane %v5303, 7
      %v5336 = vrot.slane %v5304, 7
      %v5337 = vsel %vm1246, %v5335, %v5336
      %v5338 = vsel %vm1246, %v5334, %v5335
      %v5339 = vsel %vm1246, %v5333, %v5334
      %v5340 = vsel %vm1246, %v5332, %v5333
      %v5341 = vsel %vm1246, %v5331, %v5332
      %v5342 = vsel %vm1246, %v5330, %v5331
      %v5343 = vsel %vm1246, %v5329, %v5330
      %v5344 = vsel %vm1246, %v5328, %v5329
      %v5345 = vsel %vm1246, %v5327, %v5328
      %v5346 = vsel %vm1246, %v5326, %v5327
      %v5347 = vsel %vm1246, %v5325, %v5326
      %v5348 = vsel %vm1246, %v5324, %v5325
      %v5349 = vsel %vm1246, %v5323, %v5324
      %v5350 = vsel %vm1246, %v5322, %v5323
      %v5351 = vsel %vm1246, %v5321, %v5322
      %v5352 = vsel %vm1246, %v5320, %v5321
      %v5353 = vsel %vm1246, %v5319, %v5320
      %v5354 = vsel %vm1246, %v5318, %v5319
      %v5355 = vsel %vm1246, %v5317, %v5318
      %v5356 = vsel %vm1246, %v5316, %v5317
      %v5357 = vsel %vm1246, %v5315, %v5316
      %v5358 = vsel %vm1246, %v5314, %v5315
      %v5359 = vsel %vm1246, %v5313, %v5314
      %v5360 = vsel %vm1246, %v5312, %v5313
      %v5361 = vsel %vm1246, %v5311, %v5312
      %v5362 = vsel %vm1246, %v5310, %v5311
      %v5363 = vsel %vm1246, %v5309, %v5310
      %v5364 = vsel %vm1246, %v5308, %v5309
      %v5365 = vsel %vm1246, %v5307, %v5308
      %v5366 = vsel %vm1246, %v5306, %v5307
      %v5367 = vsel %vm1246, %v5305, %v5306
      %v5368 = vsel %vm1246, %v5336, %v5305
      %v5369 = vsel %vm1182, %v5368, 0.0
      %v5370 = vsel %vm1183, %v5367, 0.0
      %v5371 = vsel %vm1184, %v5366, 0.0
      %v5372 = vsel %vm1185, %v5365, 0.0
      %v5373 = vsel %vm1186, %v5364, 0.0
      %v5374 = vsel %vm1187, %v5363, 0.0
      %v5375 = vsel %vm1188, %v5362, 0.0
      %v5376 = vsel %vm1189, %v5361, 0.0
      %v5377 = vsel %vm1190, %v5360, 0.0
      %v5378 = vsel %vm1191, %v5359, 0.0
      %v5379 = vsel %vm1192, %v5358, 0.0
      %v5380 = vsel %vm1193, %v5357, 0.0
      %v5381 = vsel %vm1194, %v5356, 0.0
      %v5382 = vsel %vm1195, %v5355, 0.0
      %v5383 = vsel %vm1196, %v5354, 0.0
      %v5384 = vsel %vm1197, %v5353, 0.0
      %v5385 = vsel %vm1198, %v5352, 0.0
      %v5386 = vsel %vm1199, %v5351, 0.0
      %v5387 = vsel %vm1200, %v5350, 0.0
      %v5388 = vsel %vm1201, %v5349, 0.0
      %v5389 = vsel %vm1202, %v5348, 0.0
      %v5390 = vsel %vm1203, %v5347, 0.0
      %v5391 = vsel %vm1204, %v5346, 0.0
      %v5392 = vsel %vm1205, %v5345, 0.0
      %v5393 = vsel %vm1206, %v5344, 0.0
      %v5394 = vsel %vm1207, %v5343, 0.0
      %v5395 = vsel %vm1208, %v5342, 0.0
      %v5396 = vsel %vm1209, %v5341, 0.0
      %v5397 = vsel %vm1210, %v5340, 0.0
      %v5398 = vsel %vm1211, %v5339, 0.0
      %v5399 = vsel %vm1212, %v5338, 0.0
      %v5400 = vsel %vm1213, %v5337, 0.0
      %v5401 = vrot.slane %v5273, 1
      %v5402 = vrot.slane %v5274, 1
      %v5403 = vrot.slane %v5275, 1
      %v5404 = vrot.slane %v5276, 1
      %v5405 = vrot.slane %v5277, 1
      %v5406 = vrot.slane %v5278, 1
      %v5407 = vrot.slane %v5279, 1
      %v5408 = vrot.slane %v5280, 1
      %v5409 = vrot.slane %v5281, 1
      %v5410 = vrot.slane %v5282, 1
      %v5411 = vrot.slane %v5283, 1
      %v5412 = vrot.slane %v5284, 1
      %v5413 = vrot.slane %v5285, 1
      %v5414 = vrot.slane %v5286, 1
      %v5415 = vrot.slane %v5287, 1
      %v5416 = vrot.slane %v5288, 1
      %v5417 = vrot.slane %v5289, 1
      %v5418 = vrot.slane %v5290, 1
      %v5419 = vrot.slane %v5291, 1
      %v5420 = vrot.slane %v5292, 1
      %v5421 = vrot.slane %v5293, 1
      %v5422 = vrot.slane %v5294, 1
      %v5423 = vrot.slane %v5295, 1
      %v5424 = vrot.slane %v5296, 1
      %v5425 = vrot.slane %v5297, 1
      %v5426 = vrot.slane %v5298, 1
      %v5427 = vrot.slane %v5299, 1
      %v5428 = vrot.slane %v5300, 1
      %v5429 = vrot.slane %v5301, 1
      %v5430 = vrot.slane %v5302, 1
      %v5431 = vrot.slane %v5303, 1
      %v5432 = vrot.slane %v5304, 1
      %v5433 = vsel %vm1375, %v5431, %v5432
      %v5434 = vsel %vm1375, %v5430, %v5431
      %v5435 = vsel %vm1375, %v5429, %v5430
      %v5436 = vsel %vm1375, %v5428, %v5429
      %v5437 = vsel %vm1375, %v5427, %v5428
      %v5438 = vsel %vm1375, %v5426, %v5427
      %v5439 = vsel %vm1375, %v5425, %v5426
      %v5440 = vsel %vm1375, %v5424, %v5425
      %v5441 = vsel %vm1375, %v5423, %v5424
      %v5442 = vsel %vm1375, %v5422, %v5423
      %v5443 = vsel %vm1375, %v5421, %v5422
      %v5444 = vsel %vm1375, %v5420, %v5421
      %v5445 = vsel %vm1375, %v5419, %v5420
      %v5446 = vsel %vm1375, %v5418, %v5419
      %v5447 = vsel %vm1375, %v5417, %v5418
      %v5448 = vsel %vm1375, %v5416, %v5417
      %v5449 = vsel %vm1375, %v5415, %v5416
      %v5450 = vsel %vm1375, %v5414, %v5415
      %v5451 = vsel %vm1375, %v5413, %v5414
      %v5452 = vsel %vm1375, %v5412, %v5413
      %v5453 = vsel %vm1375, %v5411, %v5412
      %v5454 = vsel %vm1375, %v5410, %v5411
      %v5455 = vsel %vm1375, %v5409, %v5410
      %v5456 = vsel %vm1375, %v5408, %v5409
      %v5457 = vsel %vm1375, %v5407, %v5408
      %v5458 = vsel %vm1375, %v5406, %v5407
      %v5459 = vsel %vm1375, %v5405, %v5406
      %v5460 = vsel %vm1375, %v5404, %v5405
      %v5461 = vsel %vm1375, %v5403, %v5404
      %v5462 = vsel %vm1375, %v5402, %v5403
      %v5463 = vsel %vm1375, %v5401, %v5402
      %v5464 = vsel %vm1375, %v5432, %v5401
      %v5465 = vsel %vm1311, %v5463, 0.0
      %v5466 = vsel %vm1312, %v5462, 0.0
      %v5467 = vsel %vm1313, %v5461, 0.0
      %v5468 = vsel %vm1314, %v5460, 0.0
      %v5469 = vsel %vm1315, %v5459, 0.0
      %v5470 = vsel %vm1316, %v5458, 0.0
      %v5471 = vsel %vm1317, %v5457, 0.0
      %v5472 = vsel %vm1318, %v5456, 0.0
      %v5473 = vsel %vm1319, %v5455, 0.0
      %v5474 = vsel %vm1320, %v5454, 0.0
      %v5475 = vsel %vm1321, %v5453, 0.0
      %v5476 = vsel %vm1322, %v5452, 0.0
      %v5477 = vsel %vm1323, %v5451, 0.0
      %v5478 = vsel %vm1324, %v5450, 0.0
      %v5479 = vsel %vm1325, %v5449, 0.0
      %v5480 = vsel %vm1326, %v5448, 0.0
      %v5481 = vsel %vm1327, %v5447, 0.0
      %v5482 = vsel %vm1328, %v5446, 0.0
      %v5483 = vsel %vm1329, %v5445, 0.0
      %v5484 = vsel %vm1330, %v5444, 0.0
      %v5485 = vsel %vm1331, %v5443, 0.0
      %v5486 = vsel %vm1332, %v5442, 0.0
      %v5487 = vsel %vm1333, %v5441, 0.0
      %v5488 = vsel %vm1334, %v5440, 0.0
      %v5489 = vsel %vm1335, %v5439, 0.0
      %v5490 = vsel %vm1336, %v5438, 0.0
      %v5491 = vsel %vm1337, %v5437, 0.0
      %v5492 = vsel %vm1338, %v5436, 0.0
      %v5493 = vsel %vm1339, %v5435, 0.0
      %v5494 = vsel %vm1340, %v5434, 0.0
      %v5495 = vsel %vm1341, %v5433, 0.0
      %v5496 = vsel %vm1342, %v5464, 0.0
      %5529 = vrot.lane.b32.xlu0 %v5273, 64
      %v5530 = vpop.permute.xlu0 %5529
      %5531 = vrot.lane.b32.xlu0 %v5274, 64
      %v5532 = vpop.permute.xlu0 %5531
      %5533 = vrot.lane.b32.xlu0 %v5275, 64
      %v5534 = vpop.permute.xlu0 %5533
      %5535 = vrot.lane.b32.xlu0 %v5276, 64
      %v5536 = vpop.permute.xlu0 %5535
      %5537 = vrot.lane.b32.xlu0 %v5277, 64
      %v5538 = vpop.permute.xlu0 %5537
      %5539 = vrot.lane.b32.xlu0 %v5278, 64
      %v5540 = vpop.permute.xlu0 %5539
      %5541 = vrot.lane.b32.xlu0 %v5279, 64
      %v5542 = vpop.permute.xlu0 %5541
      %5543 = vrot.lane.b32.xlu0 %v5280, 64
      %v5544 = vpop.permute.xlu0 %5543
      %5545 = vrot.lane.b32.xlu0 %v5281, 64
      %v5546 = vpop.permute.xlu0 %5545
      %5547 = vrot.lane.b32.xlu0 %v5282, 64
      %v5548 = vpop.permute.xlu0 %5547
      %5549 = vrot.lane.b32.xlu0 %v5283, 64
      %v5550 = vpop.permute.xlu0 %5549
      %5551 = vrot.lane.b32.xlu0 %v5284, 64
      %v5552 = vpop.permute.xlu0 %5551
      %5553 = vrot.lane.b32.xlu0 %v5285, 64
      %v5554 = vpop.permute.xlu0 %5553
      %5555 = vrot.lane.b32.xlu0 %v5286, 64
      %v5556 = vpop.permute.xlu0 %5555
      %5557 = vrot.lane.b32.xlu0 %v5287, 64
      %v5558 = vpop.permute.xlu0 %5557
      %5559 = vrot.lane.b32.xlu0 %v5288, 64
      %v5560 = vpop.permute.xlu0 %5559
      %5561 = vrot.lane.b32.xlu0 %v5289, 64
      %v5562 = vpop.permute.xlu0 %5561
      %5563 = vrot.lane.b32.xlu0 %v5290, 64
      %v5564 = vpop.permute.xlu0 %5563
      %5565 = vrot.lane.b32.xlu0 %v5291, 64
      %v5566 = vpop.permute.xlu0 %5565
      %5567 = vrot.lane.b32.xlu0 %v5292, 64
      %v5568 = vpop.permute.xlu0 %5567
      %5569 = vrot.lane.b32.xlu0 %v5293, 64
      %v5570 = vpop.permute.xlu0 %5569
      %5571 = vrot.lane.b32.xlu0 %v5294, 64
      %v5572 = vpop.permute.xlu0 %5571
      %5573 = vrot.lane.b32.xlu0 %v5295, 64
      %v5574 = vpop.permute.xlu0 %5573
      %5575 = vrot.lane.b32.xlu0 %v5296, 64
      %v5576 = vpop.permute.xlu0 %5575
      %5577 = vrot.lane.b32.xlu0 %v5297, 64
      %v5578 = vpop.permute.xlu0 %5577
      %5579 = vrot.lane.b32.xlu0 %v5298, 64
      %v5580 = vpop.permute.xlu0 %5579
      %5581 = vrot.lane.b32.xlu0 %v5299, 64
      %v5582 = vpop.permute.xlu0 %5581
      %5583 = vrot.lane.b32.xlu0 %v5300, 64
      %v5584 = vpop.permute.xlu0 %5583
      %5585 = vrot.lane.b32.xlu0 %v5301, 64
      %v5586 = vpop.permute.xlu0 %5585
      %5587 = vrot.lane.b32.xlu0 %v5302, 64
      %v5588 = vpop.permute.xlu0 %5587
      %5589 = vrot.lane.b32.xlu0 %v5303, 64
      %v5590 = vpop.permute.xlu0 %5589
      %5591 = vrot.lane.b32.xlu0 %v5304, 64
      %v5592 = vpop.permute.xlu0 %5591
      %v5625 = vsel %vm1568, %v5369, %v5530
      %v5626 = vsel %vm1568, %v5370, %v5532
      %v5627 = vsel %vm1568, %v5371, %v5534
      %v5628 = vsel %vm1568, %v5372, %v5536
      %v5629 = vsel %vm1568, %v5373, %v5538
      %v5630 = vsel %vm1568, %v5374, %v5540
      %v5631 = vsel %vm1568, %v5375, %v5542
      %v5632 = vsel %vm1568, %v5376, %v5544
      %v5633 = vsel %vm1568, %v5377, %v5546
      %v5634 = vsel %vm1568, %v5378, %v5548
      %v5635 = vsel %vm1568, %v5379, %v5550
      %v5636 = vsel %vm1568, %v5380, %v5552
      %v5637 = vsel %vm1568, %v5381, %v5554
      %v5638 = vsel %vm1568, %v5382, %v5556
      %v5639 = vsel %vm1568, %v5383, %v5558
      %v5640 = vsel %vm1568, %v5384, %v5560
      %v5641 = vsel %vm1568, %v5385, %v5562
      %v5642 = vsel %vm1568, %v5386, %v5564
      %v5643 = vsel %vm1568, %v5387, %v5566
      %v5644 = vsel %vm1568, %v5388, %v5568
      %v5645 = vsel %vm1568, %v5389, %v5570
      %v5646 = vsel %vm1568, %v5390, %v5572
      %v5647 = vsel %vm1568, %v5391, %v5574
      %v5648 = vsel %vm1568, %v5392, %v5576
      %v5649 = vsel %vm1568, %v5393, %v5578
      %v5650 = vsel %vm1568, %v5394, %v5580
      %v5651 = vsel %vm1568, %v5395, %v5582
      %v5652 = vsel %vm1568, %v5396, %v5584
      %v5653 = vsel %vm1568, %v5397, %v5586
      %v5654 = vsel %vm1568, %v5398, %v5588
      %v5655 = vsel %vm1568, %v5399, %v5590
      %v5656 = vsel %vm1568, %v5400, %v5592
      %v5657 = vld [vmem:[%s10] sm:$0x1]
      %v5659 = vlaneseq
      %v5660 = vshrl.u32 %v5659, 7
      %v5661 = vsub.s32 0, %v5660
      %v5662 = vrot.slane %v5657, %v5661
      %v5664 = vpack.c.bf16 %v5626, %v5625
      %v5665 = vpack.c.bf16 %v5466, %v5465
      %v5666 = vpack.c.bf16 %v5628, %v5627
      %v5667 = vpack.c.bf16 %v5468, %v5467
      %v5668 = vpack.c.bf16 %v5630, %v5629
      %v5669 = vpack.c.bf16 %v5470, %v5469
      %v5670 = vpack.c.bf16 %v5632, %v5631
      %v5671 = vpack.c.bf16 %v5472, %v5471
      %v5672 = vpack.c.bf16 %v5634, %v5633
      %v5673 = vpack.c.bf16 %v5474, %v5473
      %v5674 = vpack.c.bf16 %v5636, %v5635
      %v5675 = vpack.c.bf16 %v5476, %v5475
      %v5676 = vpack.c.bf16 %v5638, %v5637
      %v5677 = vpack.c.bf16 %v5478, %v5477
      %v5678 = vpack.c.bf16 %v5640, %v5639
      %v5679 = vpack.c.bf16 %v5480, %v5479
      %v5680 = vpack.c.bf16 %v5642, %v5641
      %v5681 = vpack.c.bf16 %v5482, %v5481
      %v5682 = vpack.c.bf16 %v5644, %v5643
      %v5683 = vpack.c.bf16 %v5484, %v5483
      %v5684 = vpack.c.bf16 %v5646, %v5645
      %v5685 = vpack.c.bf16 %v5486, %v5485
      %v5686 = vpack.c.bf16 %v5648, %v5647
      %v5687 = vpack.c.bf16 %v5488, %v5487
      %v5688 = vpack.c.bf16 %v5650, %v5649
      %v5689 = vpack.c.bf16 %v5490, %v5489
      %v5690 = vpack.c.bf16 %v5652, %v5651
      %v5691 = vpack.c.bf16 %v5492, %v5491
      %v5692 = vpack.c.bf16 %v5654, %v5653
      %v5693 = vpack.c.bf16 %v5494, %v5493
      %v5694 = vld [vmem:[%s9] sm:$0xf]
      %v5695 = vld [vmem:[%s9 + $0x4] sm:$0xf]
      %v5696 = vld [vmem:[%s9 + $0x8] sm:$0xf]
      %v5697 = vld [vmem:[%s9 + $0xc] sm:$0xf]
      %v5698 = vld [vmem:[%s9 + $0x10] sm:$0xf]
      %v5699 = vld [vmem:[%s9 + $0x14] sm:$0xf]
      %v5700 = vld [vmem:[%s9 + $0x18] sm:$0xf]
      %v5701 = vld [vmem:[%s9 + $0x1c] sm:$0xf]
      %v5702 = vld [vmem:[%s9 + $0x20] sm:$0xf]
      %v5703 = vld [vmem:[%s9 + $0x24] sm:$0xf]
      %v5704 = vld [vmem:[%s9 + $0x28] sm:$0xf]
      %v5705 = vld [vmem:[%s9 + $0x2c] sm:$0xf]
      %v5706 = vld [vmem:[%s9 + $0x30] sm:$0xf]
      %v5707 = vld [vmem:[%s9 + $0x34] sm:$0xf]
      %v5708 = vld [vmem:[%s9 + $0x38] sm:$0xf]
      %v5709 = vld [vmem:[%s9 + $0x3c] sm:$0xf]
      %v5710 = vld [vmem:[%s9 + $0x40] sm:$0xf]
      %v5711 = vld [vmem:[%s9 + $0x44] sm:$0xf]
      %v5712 = vld [vmem:[%s9 + $0x48] sm:$0xf]
      %v5713 = vld [vmem:[%s9 + $0x4c] sm:$0xf]
      %v5714 = vld [vmem:[%s9 + $0x50] sm:$0xf]
      %v5715 = vld [vmem:[%s9 + $0x54] sm:$0xf]
      %v5716 = vld [vmem:[%s9 + $0x58] sm:$0xf]
      %v5717 = vld [vmem:[%s9 + $0x5c] sm:$0xf]
      %v5742 = vunpack.c.l.b16 %v5694
      %v5743 = vunpack.c.l.b16 %v5695
      %v5744 = vunpack.c.l.b16 %v5696
      %v5745 = vunpack.c.l.b16 %v5697
      %v5746 = vunpack.c.l.b16 %v5698
      %v5747 = vunpack.c.l.b16 %v5699
      %v5748 = vunpack.c.l.b16 %v5700
      %v5749 = vunpack.c.l.b16 %v5701
      %v5750 = vunpack.c.l.b16 %v5702
      %v5751 = vunpack.c.l.b16 %v5703
      %v5752 = vunpack.c.l.b16 %v5704
      %v5753 = vunpack.c.l.b16 %v5705
      %v5754 = vunpack.c.l.b16 %v5706
      %v5755 = vunpack.c.l.b16 %v5707
      %v5756 = vunpack.c.l.b16 %v5708
      %v5757 = vunpack.c.l.b16 %v5709
      %v5758 = vunpack.c.l.b16 %v5710
      %v5759 = vunpack.c.l.b16 %v5711
      %v5760 = vunpack.c.l.b16 %v5712
      %v5761 = vunpack.c.l.b16 %v5713
      %v5762 = vunpack.c.l.b16 %v5714
      %v5763 = vunpack.c.l.b16 %v5715
      %v5764 = vunpack.c.l.b16 %v5716
      %v5765 = vunpack.c.l.b16 %v5717
      %v5766 = vpack.c.b16 %v5743, %v5742
      %v5767 = vpack.c.b16 %v5745, %v5744
      %v5768 = vpack.c.b16 %v5747, %v5746
      %v5769 = vpack.c.b16 %v5749, %v5748
      %v5770 = vpack.c.b16 %v5751, %v5750
      %v5771 = vpack.c.b16 %v5753, %v5752
      %v5772 = vpack.c.b16 %v5755, %v5754
      %v5773 = vpack.c.b16 %v5757, %v5756
      %v5774 = vpack.c.b16 %v5759, %v5758
      %v5775 = vpack.c.b16 %v5761, %v5760
      %v5776 = vpack.c.b16 %v5763, %v5762
      %v5777 = vpack.c.b16 %v5765, %v5764
      %v5791 = vsel %vm1568, %v5665, 0
      %v5794 = vsel %vm1568, %v5667, 0
      %v5797 = vsel %vm1568, %v5669, 0
      %v5800 = vsel %vm1568, %v5671, 0
      %v5803 = vsel %vm1568, %v5673, 0
      %v5806 = vsel %vm1568, %v5675, 0
      %v5809 = vsel %vm1568, %v5677, 0
      %v5812 = vsel %vm1568, %v5679, 0
      %v5815 = vsel %vm1568, %v5681, 0
      %v5818 = vsel %vm1568, %v5683, 0
      %v5821 = vsel %vm1568, %v5685, 0
      %v5824 = vsel %vm1568, %v5687, 0
      %v5827 = vsel %vm1568, %v5689, 0
      %v5830 = vsel %vm1568, %v5691, 0
      %v5833 = vsel %vm1568, %v5693, 0
      %5835 = vmatprep.subr.bf16.mxu0 0
      %5836 = vmatpush1.bf16.msra.mxu0 %v5766
      %5837 = vmatprep.subr.bf16.mxu0 0
      %5838 = vmatpush1.bf16.msra.mxu0 %v5767
      %5839 = vmatprep.subr.bf16.mxu0 0
      %5840 = vmatpush1.bf16.msra.mxu0 %v5768
      %5841 = vmatprep.subr.bf16.mxu0 0
      %5842 = vmatpush1.bf16.msra.mxu0 %v5769
      %5843 = vmatprep.subr.bf16.mxu0 0
      %5844 = vmatpush1.bf16.msra.mxu0 %v5770
      %5845 = vmatprep.subr.bf16.mxu0 0
      %5846 = vmatpush1.bf16.msra.mxu0 %v5771
      %5847 = vmatprep.subr.bf16.mxu0 0
      %5848 = vmatpush1.bf16.msra.mxu0 %v5772
      %5849 = vmatprep.subr.bf16.mxu0 0
      %5850 = vmatpush1.bf16.msra.mxu0 %v5773
      %5851 = vmatprep.subr.bf16.mxu0 0
      %5852 = vmatpush1.bf16.msra.mxu0 %v5774
      %5853 = vmatprep.subr.bf16.mxu0 0
      %5854 = vmatpush1.bf16.msra.mxu0 %v5775
      %5855 = vmatprep.subr.bf16.mxu0 0
      %5856 = vmatpush1.bf16.msra.mxu0 %v5776
      %5857 = vmatprep.subr.bf16.mxu0 0
      %5858 = vmatpush1.bf16.msra.mxu0 %v5777
      %5859 = vmatprep.subr.bf16.mxu0 0
      %5860 = vmatpush1.bf16.msra.mxu0 0
      %5861 = vmatprep.subr.bf16.mxu0 0
      %5862 = vmatpush1.bf16.msra.mxu0 0
      %5863 = vmatprep.subr.bf16.mxu0 0
      %5864 = vmatpush1.bf16.msra.mxu0 0
      %5865 = vmatprep.subr.bf16.mxu0 0
      %5866 = vmatpush1.bf16.msra.mxu0 0
      %5867 = vmatprep.mubr.bf16.mxu0 %v1736
      %5868 = vmatmul.mubr.bf16.gmra.mrb[0].mxu0 %v1608
      %v5869 = vpop.f32.mrb[0].mxu0
      %v5870 = vadd.f32 0.0, %v5869
      %v5871 = vpop.f32.mrb[0].mxu0
      %v5872 = vpop.f32.mrb[0].mxu0
      %v5873 = vadd.f32 0.0, %v5872
      %v5874 = vpop.f32.mrb[0].mxu0
      %5875 = vmatprep.mubr.bf16.mxu0 %v5791
      %5876 = vmatmul.mubr.bf16.gmra.mrb[0].mxu0 %v5664
      %v5877 = vpop.f32.mrb[0].mxu0
      %v5878 = vadd.f32 0.0, %v5877
      %v5879 = vpop.f32.mrb[0].mxu0
      %v5880 = vpop.f32.mrb[0].mxu0
      %v5881 = vadd.f32 0.0, %v5880
      %v5882 = vpop.f32.mrb[0].mxu0
      %5883 = vmatprep.mubr.bf16.mxu0 %v5794
      %5884 = vmatmul.mubr.bf16.gmra.mrb[0].mxu0 %v5666
      %v5885 = vpop.f32.mrb[0].mxu0
      %v5886 = vadd.f32 0.0, %v5885
      %v5887 = vpop.f32.mrb[0].mxu0
      %v5888 = vpop.f32.mrb[0].mxu0
      %v5889 = vadd.f32 0.0, %v5888
      %v5890 = vpop.f32.mrb[0].mxu0
      %5891 = vmatprep.mubr.bf16.mxu0 %v5797
      %5892 = vmatmul.mubr.bf16.gmra.mrb[0].mxu0 %v5668
      %v5893 = vpop.f32.mrb[0].mxu0
      %v5894 = vadd.f32 0.0, %v5893
      %v5895 = vpop.f32.mrb[0].mxu0
      %v5896 = vpop.f32.mrb[0].mxu0
      %v5897 = vadd.f32 0.0, %v5896
      %v5898 = vpop.f32.mrb[0].mxu0
      %5899 = vmatprep.mubr.bf16.mxu0 %v5800
      %5900 = vmatmul.mubr.bf16.gmra.mrb[0].mxu0 %v5670
      %v5901 = vpop.f32.mrb[0].mxu0
      %v5902 = vadd.f32 0.0, %v5901
      %v5903 = vpop.f32.mrb[0].mxu0
      %v5904 = vpop.f32.mrb[0].mxu0
      %v5905 = vadd.f32 0.0, %v5904
      %v5906 = vpop.f32.mrb[0].mxu0
      %5907 = vmatprep.mubr.bf16.mxu0 %v5803
      %5908 = vmatmul.mubr.bf16.gmra.mrb[0].mxu0 %v5672
      %v5909 = vpop.f32.mrb[0].mxu0
      %v5910 = vadd.f32 0.0, %v5909
      %v5911 = vpop.f32.mrb[0].mxu0
      %v5912 = vpop.f32.mrb[0].mxu0
      %v5913 = vadd.f32 0.0, %v5912
      %v5914 = vpop.f32.mrb[0].mxu0
      %5915 = vmatprep.mubr.bf16.mxu0 %v5806
      %5916 = vmatmul.mubr.bf16.gmra.mrb[0].mxu0 %v5674
      %v5917 = vpop.f32.mrb[0].mxu0
      %v5918 = vadd.f32 0.0, %v5917
      %v5919 = vpop.f32.mrb[0].mxu0
      %v5920 = vpop.f32.mrb[0].mxu0
      %v5921 = vadd.f32 0.0, %v5920
      %v5922 = vpop.f32.mrb[0].mxu0
      %5923 = vmatprep.mubr.bf16.mxu0 %v5809
      %5924 = vmatmul.mubr.bf16.gmra.mrb[0].mxu0 %v5676
      %v5925 = vpop.f32.mrb[0].mxu0
      %v5926 = vadd.f32 0.0, %v5925
      %v5927 = vpop.f32.mrb[0].mxu0
      %v5928 = vpop.f32.mrb[0].mxu0
      %v5929 = vadd.f32 0.0, %v5928
      %v5930 = vpop.f32.mrb[0].mxu0
      %5931 = vmatprep.mubr.bf16.mxu0 %v5812
      %5932 = vmatmul.mubr.bf16.gmra.mrb[0].mxu0 %v5678
      %v5933 = vpop.f32.mrb[0].mxu0
      %v5934 = vadd.f32 0.0, %v5933
      %v5935 = vpop.f32.mrb[0].mxu0
      %v5936 = vpop.f32.mrb[0].mxu0
      %v5937 = vadd.f32 0.0, %v5936
      %v5938 = vpop.f32.mrb[0].mxu0
      %5939 = vmatprep.mubr.bf16.mxu0 %v5815
      %5940 = vmatmul.mubr.bf16.gmra.mrb[0].mxu0 %v5680
      %v5941 = vpop.f32.mrb[0].mxu0
      %v5942 = vadd.f32 0.0, %v5941
      %v5943 = vpop.f32.mrb[0].mxu0
      %v5944 = vpop.f32.mrb[0].mxu0
      %v5945 = vadd.f32 0.0, %v5944
      %v5946 = vpop.f32.mrb[0].mxu0
      %5947 = vmatprep.mubr.bf16.mxu0 %v5818
      %5948 = vmatmul.mubr.bf16.gmra.mrb[0].mxu0 %v5682
      %v5949 = vpop.f32.mrb[0].mxu0
      %v5950 = vadd.f32 0.0, %v5949
      %v5951 = vpop.f32.mrb[0].mxu0
      %v5952 = vpop.f32.mrb[0].mxu0
      %v5953 = vadd.f32 0.0, %v5952
      %v5954 = vpop.f32.mrb[0].mxu0
      %5955 = vmatprep.mubr.bf16.mxu0 %v5821
      %5956 = vmatmul.mubr.bf16.gmra.mrb[0].mxu0 %v5684
      %v5957 = vpop.f32.mrb[0].mxu0
      %v5958 = vadd.f32 0.0, %v5957
      %v5959 = vpop.f32.mrb[0].mxu0
      %v5960 = vpop.f32.mrb[0].mxu0
      %v5961 = vadd.f32 0.0, %v5960
      %v5962 = vpop.f32.mrb[0].mxu0
      %5963 = vmatprep.mubr.bf16.mxu0 %v5824
      %5964 = vmatmul.mubr.bf16.gmra.mrb[0].mxu0 %v5686
      %v5965 = vpop.f32.mrb[0].mxu0
      %v5966 = vadd.f32 0.0, %v5965
      %v5967 = vpop.f32.mrb[0].mxu0
      %v5968 = vpop.f32.mrb[0].mxu0
      %v5969 = vadd.f32 0.0, %v5968
      %v5970 = vpop.f32.mrb[0].mxu0
      %5971 = vmatprep.mubr.bf16.mxu0 %v5827
      %5972 = vmatmul.mubr.bf16.gmra.mrb[0].mxu0 %v5688
      %v5973 = vpop.f32.mrb[0].mxu0
      %v5974 = vadd.f32 0.0, %v5973
      %v5975 = vpop.f32.mrb[0].mxu0
      %v5976 = vpop.f32.mrb[0].mxu0
      %v5977 = vadd.f32 0.0, %v5976
      %v5978 = vpop.f32.mrb[0].mxu0
      %5979 = vmatprep.mubr.bf16.mxu0 %v5830
      %5980 = vmatmul.mubr.bf16.gmra.mrb[0].mxu0 %v5690
      %v5981 = vpop.f32.mrb[0].mxu0
      %v5982 = vadd.f32 0.0, %v5981
      %v5983 = vpop.f32.mrb[0].mxu0
      %v5984 = vpop.f32.mrb[0].mxu0
      %v5985 = vadd.f32 0.0, %v5984
      %v5986 = vpop.f32.mrb[0].mxu0
      %5987 = vmatprep.mubr.bf16.mxu0 %v5833
      %5988 = vmatmul.mubr.bf16.gmra.mrb[0].mxu0 %v5692
      %v5989 = vpop.f32.mrb[0].mxu0
      %v5990 = vadd.f32 0.0, %v5989
      %v5991 = vpop.f32.mrb[0].mxu0
      %v5992 = vpop.f32.mrb[0].mxu0
      %v5993 = vadd.f32 0.0, %v5992
      %v5994 = vpop.f32.mrb[0].mxu0
      %5995 = vdwg.mxu0
      %v5996 = vadd.f32 %v5662, %v5870
      %v5997 = vadd.f32 %v5662, %v5873
      %v5998 = vadd.f32 %v5662, %v5878
      %v5999 = vadd.f32 %v5662, %v5881
      %v6000 = vadd.f32 %v5662, %v5886
      %v6001 = vadd.f32 %v5662, %v5889
      %v6002 = vadd.f32 %v5662, %v5894
      %v6003 = vadd.f32 %v5662, %v5897
      %v6004 = vadd.f32 %v5662, %v5902
      %v6005 = vadd.f32 %v5662, %v5905
      %v6006 = vadd.f32 %v5662, %v5910
      %v6007 = vadd.f32 %v5662, %v5913
      %v6008 = vadd.f32 %v5662, %v5918
      %v6009 = vadd.f32 %v5662, %v5921
      %v6010 = vadd.f32 %v5662, %v5926
      %v6011 = vadd.f32 %v5662, %v5929
      %v6012 = vadd.f32 %v5662, %v5934
      %v6013 = vadd.f32 %v5662, %v5937
      %v6014 = vadd.f32 %v5662, %v5942
      %v6015 = vadd.f32 %v5662, %v5945
      %v6016 = vadd.f32 %v5662, %v5950
      %v6017 = vadd.f32 %v5662, %v5953
      %v6018 = vadd.f32 %v5662, %v5958
      %v6019 = vadd.f32 %v5662, %v5961
      %v6020 = vadd.f32 %v5662, %v5966
      %v6021 = vadd.f32 %v5662, %v5969
      %v6022 = vadd.f32 %v5662, %v5974
      %v6023 = vadd.f32 %v5662, %v5977
      %v6024 = vadd.f32 %v5662, %v5982
      %v6025 = vadd.f32 %v5662, %v5985
      %v6026 = vadd.f32 %v5662, %v5990
      %v6027 = vadd.f32 %v5662, %v5993
      %v6028 = vpack.c.bf16 %v5656, %v5655
      %v6029 = vpack.c.bf16 %v5496, %v5495
      %s6030 = scalar_lea.vmem %s9, 96
      %v6031 = vld [vmem:[%s6030] sm:$0xf]
      %v6032 = vld [vmem:[%s6030 + $0x4] sm:$0xf]
      %v6033 = vld [vmem:[%s6030 + $0x8] sm:$0xf]
      %v6034 = vld [vmem:[%s6030 + $0xc] sm:$0xf]
      %v6035 = vld [vmem:[%s6030 + $0x10] sm:$0xf]
      %v6036 = vld [vmem:[%s6030 + $0x14] sm:$0xf]
      %v6037 = vld [vmem:[%s6030 + $0x18] sm:$0xf]
      %v6038 = vld [vmem:[%s6030 + $0x1c] sm:$0xf]
      %v6039 = vld [vmem:[%s6030 + $0x20] sm:$0xf]
      %v6040 = vld [vmem:[%s6030 + $0x24] sm:$0xf]
      %v6041 = vld [vmem:[%s6030 + $0x28] sm:$0xf]
      %v6042 = vld [vmem:[%s6030 + $0x2c] sm:$0xf]
      %v6043 = vld [vmem:[%s6030 + $0x30] sm:$0xf]
      %v6044 = vld [vmem:[%s6030 + $0x34] sm:$0xf]
      %v6045 = vld [vmem:[%s6030 + $0x38] sm:$0xf]
      %v6046 = vld [vmem:[%s6030 + $0x3c] sm:$0xf]
      %v6047 = vld [vmem:[%s6030 + $0x40] sm:$0xf]
      %v6048 = vld [vmem:[%s6030 + $0x44] sm:$0xf]
      %v6049 = vld [vmem:[%s6030 + $0x48] sm:$0xf]
      %v6050 = vld [vmem:[%s6030 + $0x4c] sm:$0xf]
      %v6051 = vld [vmem:[%s6030 + $0x50] sm:$0xf]
      %v6052 = vld [vmem:[%s6030 + $0x54] sm:$0xf]
      %v6053 = vld [vmem:[%s6030 + $0x58] sm:$0xf]
      %v6054 = vld [vmem:[%s6030 + $0x5c] sm:$0xf]
      %v6079 = vunpack.c.l.b16 %v6031
      %v6080 = vunpack.c.l.b16 %v6032
      %v6081 = vunpack.c.l.b16 %v6033
      %v6082 = vunpack.c.l.b16 %v6034
      %v6083 = vunpack.c.l.b16 %v6035
      %v6084 = vunpack.c.l.b16 %v6036
      %v6085 = vunpack.c.l.b16 %v6037
      %v6086 = vunpack.c.l.b16 %v6038
      %v6087 = vunpack.c.l.b16 %v6039
      %v6088 = vunpack.c.l.b16 %v6040
      %v6089 = vunpack.c.l.b16 %v6041
      %v6090 = vunpack.c.l.b16 %v6042
      %v6091 = vunpack.c.l.b16 %v6043
      %v6092 = vunpack.c.l.b16 %v6044
      %v6093 = vunpack.c.l.b16 %v6045
      %v6094 = vunpack.c.l.b16 %v6046
      %v6095 = vunpack.c.l.b16 %v6047
      %v6096 = vunpack.c.l.b16 %v6048
      %v6097 = vunpack.c.l.b16 %v6049
      %v6098 = vunpack.c.l.b16 %v6050
      %v6099 = vunpack.c.l.b16 %v6051
      %v6100 = vunpack.c.l.b16 %v6052
      %v6101 = vunpack.c.l.b16 %v6053
      %v6102 = vunpack.c.l.b16 %v6054
      %v6103 = vpack.c.b16 %v6080, %v6079
      %v6104 = vpack.c.b16 %v6082, %v6081
      %v6105 = vpack.c.b16 %v6084, %v6083
      %v6106 = vpack.c.b16 %v6086, %v6085
      %v6107 = vpack.c.b16 %v6088, %v6087
      %v6108 = vpack.c.b16 %v6090, %v6089
      %v6109 = vpack.c.b16 %v6092, %v6091
      %v6110 = vpack.c.b16 %v6094, %v6093
      %v6111 = vpack.c.b16 %v6096, %v6095
      %v6112 = vpack.c.b16 %v6098, %v6097
      %v6113 = vpack.c.b16 %v6100, %v6099
      %v6114 = vpack.c.b16 %v6102, %v6101
      %v6128 = vsel %vm1568, %v6029, 0
      %6130 = vmatprep.subr.bf16.mxu0 0
      %6131 = vmatpush1.bf16.msra.mxu0 %v6103
      %6132 = vmatprep.subr.bf16.mxu0 0
      %6133 = vmatpush1.bf16.msra.mxu0 %v6104
      %6134 = vmatprep.subr.bf16.mxu0 0
      %6135 = vmatpush1.bf16.msra.mxu0 %v6105
      %6136 = vmatprep.subr.bf16.mxu0 0
      %6137 = vmatpush1.bf16.msra.mxu0 %v6106
      %6138 = vmatprep.subr.bf16.mxu0 0
      %6139 = vmatpush1.bf16.msra.mxu0 %v6107
      %6140 = vmatprep.subr.bf16.mxu0 0
      %6141 = vmatpush1.bf16.msra.mxu0 %v6108
      %6142 = vmatprep.subr.bf16.mxu0 0
      %6143 = vmatpush1.bf16.msra.mxu0 %v6109
      %6144 = vmatprep.subr.bf16.mxu0 0
      %6145 = vmatpush1.bf16.msra.mxu0 %v6110
      %6146 = vmatprep.subr.bf16.mxu0 0
      %6147 = vmatpush1.bf16.msra.mxu0 %v6111
      %6148 = vmatprep.subr.bf16.mxu0 0
      %6149 = vmatpush1.bf16.msra.mxu0 %v6112
      %6150 = vmatprep.subr.bf16.mxu0 0
      %6151 = vmatpush1.bf16.msra.mxu0 %v6113
      %6152 = vmatprep.subr.bf16.mxu0 0
      %6153 = vmatpush1.bf16.msra.mxu0 %v6114
      %6154 = vmatprep.subr.bf16.mxu0 0
      %6155 = vmatpush1.bf16.msra.mxu0 0
      %6156 = vmatprep.subr.bf16.mxu0 0
      %6157 = vmatpush1.bf16.msra.mxu0 0
      %6158 = vmatprep.subr.bf16.mxu0 0
      %6159 = vmatpush1.bf16.msra.mxu0 0
      %6160 = vmatprep.subr.bf16.mxu0 0
      %6161 = vmatpush1.bf16.msra.mxu0 0
      %6162 = vmatprep.mubr.bf16.mxu0 %v5791
      %6163 = vmatmul.mubr.bf16.gmra.mrb[0].mxu0 %v5664
      %v6164 = vpop.f32.mrb[0].mxu0
      %v6165 = vadd.f32 0.0, %v6164
      %v6166 = vpop.f32.mrb[0].mxu0
      %v6167 = vpop.f32.mrb[0].mxu0
      %v6168 = vadd.f32 0.0, %v6167
      %v6169 = vpop.f32.mrb[0].mxu0
      %6170 = vmatprep.mubr.bf16.mxu0 %v5794
      %6171 = vmatmul.mubr.bf16.gmra.mrb[0].mxu0 %v5666
      %v6172 = vpop.f32.mrb[0].mxu0
      %v6173 = vadd.f32 0.0, %v6172
      %v6174 = vpop.f32.mrb[0].mxu0
      %v6175 = vpop.f32.mrb[0].mxu0
      %v6176 = vadd.f32 0.0, %v6175
      %v6177 = vpop.f32.mrb[0].mxu0
      %6178 = vmatprep.mubr.bf16.mxu0 %v5797
      %6179 = vmatmul.mubr.bf16.gmra.mrb[0].mxu0 %v5668
      %v6180 = vpop.f32.mrb[0].mxu0
      %v6181 = vadd.f32 0.0, %v6180
      %v6182 = vpop.f32.mrb[0].mxu0
      %v6183 = vpop.f32.mrb[0].mxu0
      %v6184 = vadd.f32 0.0, %v6183
      %v6185 = vpop.f32.mrb[0].mxu0
      %6186 = vmatprep.mubr.bf16.mxu0 %v5800
      %6187 = vmatmul.mubr.bf16.gmra.mrb[0].mxu0 %v5670
      %v6188 = vpop.f32.mrb[0].mxu0
      %v6189 = vadd.f32 0.0, %v6188
      %v6190 = vpop.f32.mrb[0].mxu0
      %v6191 = vpop.f32.mrb[0].mxu0
      %v6192 = vadd.f32 0.0, %v6191
      %v6193 = vpop.f32.mrb[0].mxu0
      %6194 = vmatprep.mubr.bf16.mxu0 %v5803
      %6195 = vmatmul.mubr.bf16.gmra.mrb[0].mxu0 %v5672
      %v6196 = vpop.f32.mrb[0].mxu0
      %v6197 = vadd.f32 0.0, %v6196
      %v6198 = vpop.f32.mrb[0].mxu0
      %v6199 = vpop.f32.mrb[0].mxu0
      %v6200 = vadd.f32 0.0, %v6199
      %v6201 = vpop.f32.mrb[0].mxu0
      %6202 = vmatprep.mubr.bf16.mxu0 %v5806
      %6203 = vmatmul.mubr.bf16.gmra.mrb[0].mxu0 %v5674
      %v6204 = vpop.f32.mrb[0].mxu0
      %v6205 = vadd.f32 0.0, %v6204
      %v6206 = vpop.f32.mrb[0].mxu0
      %v6207 = vpop.f32.mrb[0].mxu0
      %v6208 = vadd.f32 0.0, %v6207
      %v6209 = vpop.f32.mrb[0].mxu0
      %6210 = vmatprep.mubr.bf16.mxu0 %v5809
      %6211 = vmatmul.mubr.bf16.gmra.mrb[0].mxu0 %v5676
      %v6212 = vpop.f32.mrb[0].mxu0
      %v6213 = vadd.f32 0.0, %v6212
      %v6214 = vpop.f32.mrb[0].mxu0
      %v6215 = vpop.f32.mrb[0].mxu0
      %v6216 = vadd.f32 0.0, %v6215
      %v6217 = vpop.f32.mrb[0].mxu0
      %6218 = vmatprep.mubr.bf16.mxu0 %v5812
      %6219 = vmatmul.mubr.bf16.gmra.mrb[0].mxu0 %v5678
      %v6220 = vpop.f32.mrb[0].mxu0
      %v6221 = vadd.f32 0.0, %v6220
      %v6222 = vpop.f32.mrb[0].mxu0
      %v6223 = vpop.f32.mrb[0].mxu0
      %v6224 = vadd.f32 0.0, %v6223
      %v6225 = vpop.f32.mrb[0].mxu0
      %6226 = vmatprep.mubr.bf16.mxu0 %v5815
      %6227 = vmatmul.mubr.bf16.gmra.mrb[0].mxu0 %v5680
      %v6228 = vpop.f32.mrb[0].mxu0
      %v6229 = vadd.f32 0.0, %v6228
      %v6230 = vpop.f32.mrb[0].mxu0
      %v6231 = vpop.f32.mrb[0].mxu0
      %v6232 = vadd.f32 0.0, %v6231
      %v6233 = vpop.f32.mrb[0].mxu0
      %6234 = vmatprep.mubr.bf16.mxu0 %v5818
      %6235 = vmatmul.mubr.bf16.gmra.mrb[0].mxu0 %v5682
      %v6236 = vpop.f32.mrb[0].mxu0
      %v6237 = vadd.f32 0.0, %v6236
      %v6238 = vpop.f32.mrb[0].mxu0
      %v6239 = vpop.f32.mrb[0].mxu0
      %v6240 = vadd.f32 0.0, %v6239
      %v6241 = vpop.f32.mrb[0].mxu0
      %6242 = vmatprep.mubr.bf16.mxu0 %v5821
      %6243 = vmatmul.mubr.bf16.gmra.mrb[0].mxu0 %v5684
      %v6244 = vpop.f32.mrb[0].mxu0
      %v6245 = vadd.f32 0.0, %v6244
      %v6246 = vpop.f32.mrb[0].mxu0
      %v6247 = vpop.f32.mrb[0].mxu0
      %v6248 = vadd.f32 0.0, %v6247
      %v6249 = vpop.f32.mrb[0].mxu0
      %6250 = vmatprep.mubr.bf16.mxu0 %v5824
      %6251 = vmatmul.mubr.bf16.gmra.mrb[0].mxu0 %v5686
      %v6252 = vpop.f32.mrb[0].mxu0
      %v6253 = vadd.f32 0.0, %v6252
      %v6254 = vpop.f32.mrb[0].mxu0
      %v6255 = vpop.f32.mrb[0].mxu0
      %v6256 = vadd.f32 0.0, %v6255
      %v6257 = vpop.f32.mrb[0].mxu0
      %6258 = vmatprep.mubr.bf16.mxu0 %v5827
      %6259 = vmatmul.mubr.bf16.gmra.mrb[0].mxu0 %v5688
      %v6260 = vpop.f32.mrb[0].mxu0
      %v6261 = vadd.f32 0.0, %v6260
      %v6262 = vpop.f32.mrb[0].mxu0
      %v6263 = vpop.f32.mrb[0].mxu0
      %v6264 = vadd.f32 0.0, %v6263
      %v6265 = vpop.f32.mrb[0].mxu0
      %6266 = vmatprep.mubr.bf16.mxu0 %v5830
      %6267 = vmatmul.mubr.bf16.gmra.mrb[0].mxu0 %v5690
      %v6268 = vpop.f32.mrb[0].mxu0
      %v6269 = vadd.f32 0.0, %v6268
      %v6270 = vpop.f32.mrb[0].mxu0
      %v6271 = vpop.f32.mrb[0].mxu0
      %v6272 = vadd.f32 0.0, %v6271
      %v6273 = vpop.f32.mrb[0].mxu0
      %6274 = vmatprep.mubr.bf16.mxu0 %v5833
      %6275 = vmatmul.mubr.bf16.gmra.mrb[0].mxu0 %v5692
      %v6276 = vpop.f32.mrb[0].mxu0
      %v6277 = vadd.f32 0.0, %v6276
      %v6278 = vpop.f32.mrb[0].mxu0
      %v6279 = vpop.f32.mrb[0].mxu0
      %v6280 = vadd.f32 0.0, %v6279
      %v6281 = vpop.f32.mrb[0].mxu0
      %6282 = vmatprep.mubr.bf16.mxu0 %v6128
      %6283 = vmatmul.mubr.bf16.gmra.mrb[0].mxu0 %v6028
      %v6284 = vpop.f32.mrb[0].mxu0
      %v6285 = vadd.f32 0.0, %v6284
      %v6286 = vpop.f32.mrb[0].mxu0
      %v6287 = vpop.f32.mrb[0].mxu0
      %v6288 = vadd.f32 0.0, %v6287
      %v6289 = vpop.f32.mrb[0].mxu0
      %6290 = vdwg.mxu0
      %v6291 = vadd.f32 %v5996, %v6165
      %v6292 = vadd.f32 %v5997, %v6168
      %v6293 = vadd.f32 %v5998, %v6173
      %v6294 = vadd.f32 %v5999, %v6176
      %v6295 = vadd.f32 %v6000, %v6181
      %v6296 = vadd.f32 %v6001, %v6184
      %v6297 = vadd.f32 %v6002, %v6189
      %v6298 = vadd.f32 %v6003, %v6192
      %v6299 = vadd.f32 %v6004, %v6197
      %v6300 = vadd.f32 %v6005, %v6200
      %v6301 = vadd.f32 %v6006, %v6205
      %v6302 = vadd.f32 %v6007, %v6208
      %v6303 = vadd.f32 %v6008, %v6213
      %v6304 = vadd.f32 %v6009, %v6216
      %v6305 = vadd.f32 %v6010, %v6221
      %v6306 = vadd.f32 %v6011, %v6224
      %v6307 = vadd.f32 %v6012, %v6229
      %v6308 = vadd.f32 %v6013, %v6232
      %v6309 = vadd.f32 %v6014, %v6237
      %v6310 = vadd.f32 %v6015, %v6240
      %v6311 = vadd.f32 %v6016, %v6245
      %v6312 = vadd.f32 %v6017, %v6248
      %v6313 = vadd.f32 %v6018, %v6253
      %v6314 = vadd.f32 %v6019, %v6256
      %v6315 = vadd.f32 %v6020, %v6261
      %v6316 = vadd.f32 %v6021, %v6264
      %v6317 = vadd.f32 %v6022, %v6269
      %v6318 = vadd.f32 %v6023, %v6272
      %v6319 = vadd.f32 %v6024, %v6277
      %v6320 = vadd.f32 %v6025, %v6280
      %v6321 = vadd.f32 %v6026, %v6285
      %v6322 = vadd.f32 %v6027, %v6288
      %s6323 = scalar_lea.vmem %s9, 192
      %v6324 = vld [vmem:[%s6323] sm:$0xf]
      %v6325 = vld [vmem:[%s6323 + $0x4] sm:$0xf]
      %v6326 = vld [vmem:[%s6323 + $0x8] sm:$0xf]
      %v6327 = vld [vmem:[%s6323 + $0xc] sm:$0xf]
      %v6328 = vld [vmem:[%s6323 + $0x10] sm:$0xf]
      %v6329 = vld [vmem:[%s6323 + $0x14] sm:$0xf]
      %v6330 = vld [vmem:[%s6323 + $0x18] sm:$0xf]
      %v6331 = vld [vmem:[%s6323 + $0x1c] sm:$0xf]
      %v6332 = vld [vmem:[%s6323 + $0x20] sm:$0xf]
      %v6333 = vld [vmem:[%s6323 + $0x24] sm:$0xf]
      %v6334 = vld [vmem:[%s6323 + $0x28] sm:$0xf]
      %v6335 = vld [vmem:[%s6323 + $0x2c] sm:$0xf]
      %v6336 = vld [vmem:[%s6323 + $0x30] sm:$0xf]
      %v6337 = vld [vmem:[%s6323 + $0x34] sm:$0xf]
      %v6338 = vld [vmem:[%s6323 + $0x38] sm:$0xf]
      %v6339 = vld [vmem:[%s6323 + $0x3c] sm:$0xf]
      %v6340 = vld [vmem:[%s6323 + $0x40] sm:$0xf]
      %v6341 = vld [vmem:[%s6323 + $0x44] sm:$0xf]
      %v6342 = vld [vmem:[%s6323 + $0x48] sm:$0xf]
      %v6343 = vld [vmem:[%s6323 + $0x4c] sm:$0xf]
      %v6344 = vld [vmem:[%s6323 + $0x50] sm:$0xf]
      %v6345 = vld [vmem:[%s6323 + $0x54] sm:$0xf]
      %v6346 = vld [vmem:[%s6323 + $0x58] sm:$0xf]
      %v6347 = vld [vmem:[%s6323 + $0x5c] sm:$0xf]
      %v6372 = vunpack.c.l.b16 %v6324
      %v6373 = vunpack.c.l.b16 %v6325
      %v6374 = vunpack.c.l.b16 %v6326
      %v6375 = vunpack.c.l.b16 %v6327
      %v6376 = vunpack.c.l.b16 %v6328
      %v6377 = vunpack.c.l.b16 %v6329
      %v6378 = vunpack.c.l.b16 %v6330
      %v6379 = vunpack.c.l.b16 %v6331
      %v6380 = vunpack.c.l.b16 %v6332
      %v6381 = vunpack.c.l.b16 %v6333
      %v6382 = vunpack.c.l.b16 %v6334
      %v6383 = vunpack.c.l.b16 %v6335
      %v6384 = vunpack.c.l.b16 %v6336
      %v6385 = vunpack.c.l.b16 %v6337
      %v6386 = vunpack.c.l.b16 %v6338
      %v6387 = vunpack.c.l.b16 %v6339
      %v6388 = vunpack.c.l.b16 %v6340
      %v6389 = vunpack.c.l.b16 %v6341
      %v6390 = vunpack.c.l.b16 %v6342
      %v6391 = vunpack.c.l.b16 %v6343
      %v6392 = vunpack.c.l.b16 %v6344
      %v6393 = vunpack.c.l.b16 %v6345
      %v6394 = vunpack.c.l.b16 %v6346
      %v6395 = vunpack.c.l.b16 %v6347
      %v6396 = vpack.c.b16 %v6373, %v6372
      %v6397 = vpack.c.b16 %v6375, %v6374
      %v6398 = vpack.c.b16 %v6377, %v6376
      %v6399 = vpack.c.b16 %v6379, %v6378
      %v6400 = vpack.c.b16 %v6381, %v6380
      %v6401 = vpack.c.b16 %v6383, %v6382
      %v6402 = vpack.c.b16 %v6385, %v6384
      %v6403 = vpack.c.b16 %v6387, %v6386
      %v6404 = vpack.c.b16 %v6389, %v6388
      %v6405 = vpack.c.b16 %v6391, %v6390
      %v6406 = vpack.c.b16 %v6393, %v6392
      %v6407 = vpack.c.b16 %v6395, %v6394
      %6420 = vmatprep.subr.bf16.mxu0 0
      %6421 = vmatpush1.bf16.msra.mxu0 %v6396
      %6422 = vmatprep.subr.bf16.mxu0 0
      %6423 = vmatpush1.bf16.msra.mxu0 %v6397
      %6424 = vmatprep.subr.bf16.mxu0 0
      %6425 = vmatpush1.bf16.msra.mxu0 %v6398
      %6426 = vmatprep.subr.bf16.mxu0 0
      %6427 = vmatpush1.bf16.msra.mxu0 %v6399
      %6428 = vmatprep.subr.bf16.mxu0 0
      %6429 = vmatpush1.bf16.msra.mxu0 %v6400
      %6430 = vmatprep.subr.bf16.mxu0 0
      %6431 = vmatpush1.bf16.msra.mxu0 %v6401
      %6432 = vmatprep.subr.bf16.mxu0 0
      %6433 = vmatpush1.bf16.msra.mxu0 %v6402
      %6434 = vmatprep.subr.bf16.mxu0 0
      %6435 = vmatpush1.bf16.msra.mxu0 %v6403
      %6436 = vmatprep.subr.bf16.mxu0 0
      %6437 = vmatpush1.bf16.msra.mxu0 %v6404
      %6438 = vmatprep.subr.bf16.mxu0 0
      %6439 = vmatpush1.bf16.msra.mxu0 %v6405
      %6440 = vmatprep.subr.bf16.mxu0 0
      %6441 = vmatpush1.bf16.msra.mxu0 %v6406
      %6442 = vmatprep.subr.bf16.mxu0 0
      %6443 = vmatpush1.bf16.msra.mxu0 %v6407
      %6444 = vmatprep.subr.bf16.mxu0 0
      %6445 = vmatpush1.bf16.msra.mxu0 0
      %6446 = vmatprep.subr.bf16.mxu0 0
      %6447 = vmatpush1.bf16.msra.mxu0 0
      %6448 = vmatprep.subr.bf16.mxu0 0
      %6449 = vmatpush1.bf16.msra.mxu0 0
      %6450 = vmatprep.subr.bf16.mxu0 0
      %6451 = vmatpush1.bf16.msra.mxu0 0
      %6452 = vmatprep.mubr.bf16.mxu0 %v5794
      %6453 = vmatmul.mubr.bf16.gmra.mrb[0].mxu0 %v5666
      %v6454 = vpop.f32.mrb[0].mxu0
      %v6455 = vadd.f32 0.0, %v6454
      %v6456 = vpop.f32.mrb[0].mxu0
      %v6457 = vpop.f32.mrb[0].mxu0
      %v6458 = vadd.f32 0.0, %v6457
      %v6459 = vpop.f32.mrb[0].mxu0
      %6460 = vmatprep.mubr.bf16.mxu0 %v5797
      %6461 = vmatmul.mubr.bf16.gmra.mrb[0].mxu0 %v5668
      %v6462 = vpop.f32.mrb[0].mxu0
      %v6463 = vadd.f32 0.0, %v6462
      %v6464 = vpop.f32.mrb[0].mxu0
      %v6465 = vpop.f32.mrb[0].mxu0
      %v6466 = vadd.f32 0.0, %v6465
      %v6467 = vpop.f32.mrb[0].mxu0
      %6468 = vmatprep.mubr.bf16.mxu0 %v5800
      %6469 = vmatmul.mubr.bf16.gmra.mrb[0].mxu0 %v5670
      %v6470 = vpop.f32.mrb[0].mxu0
      %v6471 = vadd.f32 0.0, %v6470
      %v6472 = vpop.f32.mrb[0].mxu0
      %v6473 = vpop.f32.mrb[0].mxu0
      %v6474 = vadd.f32 0.0, %v6473
      %v6475 = vpop.f32.mrb[0].mxu0
      %6476 = vmatprep.mubr.bf16.mxu0 %v5803
      %6477 = vmatmul.mubr.bf16.gmra.mrb[0].mxu0 %v5672
      %v6478 = vpop.f32.mrb[0].mxu0
      %v6479 = vadd.f32 0.0, %v6478
      %v6480 = vpop.f32.mrb[0].mxu0
      %v6481 = vpop.f32.mrb[0].mxu0
      %v6482 = vadd.f32 0.0, %v6481
      %v6483 = vpop.f32.mrb[0].mxu0
      %6484 = vmatprep.mubr.bf16.mxu0 %v5806
      %6485 = vmatmul.mubr.bf16.gmra.mrb[0].mxu0 %v5674
      %v6486 = vpop.f32.mrb[0].mxu0
      %v6487 = vadd.f32 0.0, %v6486
      %v6488 = vpop.f32.mrb[0].mxu0
      %v6489 = vpop.f32.mrb[0].mxu0
      %v6490 = vadd.f32 0.0, %v6489
      %v6491 = vpop.f32.mrb[0].mxu0
      %6492 = vmatprep.mubr.bf16.mxu0 %v5809
      %6493 = vmatmul.mubr.bf16.gmra.mrb[0].mxu0 %v5676
      %v6494 = vpop.f32.mrb[0].mxu0
      %v6495 = vadd.f32 0.0, %v6494
      %v6496 = vpop.f32.mrb[0].mxu0
      %v6497 = vpop.f32.mrb[0].mxu0
      %v6498 = vadd.f32 0.0, %v6497
      %v6499 = vpop.f32.mrb[0].mxu0
      %6500 = vmatprep.mubr.bf16.mxu0 %v5812
      %6501 = vmatmul.mubr.bf16.gmra.mrb[0].mxu0 %v5678
      %v6502 = vpop.f32.mrb[0].mxu0
      %v6503 = vadd.f32 0.0, %v6502
      %v6504 = vpop.f32.mrb[0].mxu0
      %v6505 = vpop.f32.mrb[0].mxu0
      %v6506 = vadd.f32 0.0, %v6505
      %v6507 = vpop.f32.mrb[0].mxu0
      %6508 = vmatprep.mubr.bf16.mxu0 %v5815
      %6509 = vmatmul.mubr.bf16.gmra.mrb[0].mxu0 %v5680
      %v6510 = vpop.f32.mrb[0].mxu0
      %v6511 = vadd.f32 0.0, %v6510
      %v6512 = vpop.f32.mrb[0].mxu0
      %v6513 = vpop.f32.mrb[0].mxu0
      %v6514 = vadd.f32 0.0, %v6513
      %v6515 = vpop.f32.mrb[0].mxu0
      %6516 = vmatprep.mubr.bf16.mxu0 %v5818
      %6517 = vmatmul.mubr.bf16.gmra.mrb[0].mxu0 %v5682
      %v6518 = vpop.f32.mrb[0].mxu0
      %v6519 = vadd.f32 0.0, %v6518
      %v6520 = vpop.f32.mrb[0].mxu0
      %v6521 = vpop.f32.mrb[0].mxu0
      %v6522 = vadd.f32 0.0, %v6521
      %v6523 = vpop.f32.mrb[0].mxu0
      %6524 = vmatprep.mubr.bf16.mxu0 %v5821
      %6525 = vmatmul.mubr.bf16.gmra.mrb[0].mxu0 %v5684
      %v6526 = vpop.f32.mrb[0].mxu0
      %v6527 = vadd.f32 0.0, %v6526
      %v6528 = vpop.f32.mrb[0].mxu0
      %v6529 = vpop.f32.mrb[0].mxu0
      %v6530 = vadd.f32 0.0, %v6529
      %v6531 = vpop.f32.mrb[0].mxu0
      %6532 = vmatprep.mubr.bf16.mxu0 %v5824
      %6533 = vmatmul.mubr.bf16.gmra.mrb[0].mxu0 %v5686
      %v6534 = vpop.f32.mrb[0].mxu0
      %v6535 = vadd.f32 0.0, %v6534
      %v6536 = vpop.f32.mrb[0].mxu0
      %v6537 = vpop.f32.mrb[0].mxu0
      %v6538 = vadd.f32 0.0, %v6537
      %v6539 = vpop.f32.mrb[0].mxu0
      %6540 = vmatprep.mubr.bf16.mxu0 %v5827
      %6541 = vmatmul.mubr.bf16.gmra.mrb[0].mxu0 %v5688
      %v6542 = vpop.f32.mrb[0].mxu0
      %v6543 = vadd.f32 0.0, %v6542
      %v6544 = vpop.f32.mrb[0].mxu0
      %v6545 = vpop.f32.mrb[0].mxu0
      %v6546 = vadd.f32 0.0, %v6545
      %v6547 = vpop.f32.mrb[0].mxu0
      %6548 = vmatprep.mubr.bf16.mxu0 %v5830
      %6549 = vmatmul.mubr.bf16.gmra.mrb[0].mxu0 %v5690
      %v6550 = vpop.f32.mrb[0].mxu0
      %v6551 = vadd.f32 0.0, %v6550
      %v6552 = vpop.f32.mrb[0].mxu0
      %v6553 = vpop.f32.mrb[0].mxu0
      %v6554 = vadd.f32 0.0, %v6553
      %v6555 = vpop.f32.mrb[0].mxu0
      %6556 = vmatprep.mubr.bf16.mxu0 %v5833
      %6557 = vmatmul.mubr.bf16.gmra.mrb[0].mxu0 %v5692
      %v6558 = vpop.f32.mrb[0].mxu0
      %v6559 = vadd.f32 0.0, %v6558
      %v6560 = vpop.f32.mrb[0].mxu0
      %v6561 = vpop.f32.mrb[0].mxu0
      %v6562 = vadd.f32 0.0, %v6561
      %v6563 = vpop.f32.mrb[0].mxu0
      %6564 = vmatprep.mubr.bf16.mxu0 %v6128
      %6565 = vmatmul.mubr.bf16.gmra.mrb[0].mxu0 %v6028
      %v6566 = vpop.f32.mrb[0].mxu0
      %v6567 = vadd.f32 0.0, %v6566
      %v6568 = vpop.f32.mrb[0].mxu0
      %v6569 = vpop.f32.mrb[0].mxu0
      %v6570 = vadd.f32 0.0, %v6569
      %v6571 = vpop.f32.mrb[0].mxu0
      %6572 = vmatprep.mubr.bf16.mxu0 %v1736
      %6573 = vmatmul.mubr.bf16.gmra.mrb[0].mxu0 %v1608
      %v6574 = vpop.f32.mrb[0].mxu0
      %v6575 = vadd.f32 0.0, %v6574
      %v6576 = vpop.f32.mrb[0].mxu0
      %v6577 = vpop.f32.mrb[0].mxu0
      %v6578 = vadd.f32 0.0, %v6577
      %v6579 = vpop.f32.mrb[0].mxu0
      %6580 = vdwg.mxu0
      %v6581 = vadd.f32 %v6291, %v6455
      %v6582 = vadd.f32 %v6292, %v6458
      %v6583 = vadd.f32 %v6293, %v6463
      %v6584 = vadd.f32 %v6294, %v6466
      %v6585 = vadd.f32 %v6295, %v6471
      %v6586 = vadd.f32 %v6296, %v6474
      %v6587 = vadd.f32 %v6297, %v6479
      %v6588 = vadd.f32 %v6298, %v6482
      %v6589 = vadd.f32 %v6299, %v6487
      %v6590 = vadd.f32 %v6300, %v6490
      %v6591 = vadd.f32 %v6301, %v6495
      %v6592 = vadd.f32 %v6302, %v6498
      %v6593 = vadd.f32 %v6303, %v6503
      %v6594 = vadd.f32 %v6304, %v6506
      %v6595 = vadd.f32 %v6305, %v6511
      %v6596 = vadd.f32 %v6306, %v6514
      %v6597 = vadd.f32 %v6307, %v6519
      %v6598 = vadd.f32 %v6308, %v6522
      %v6599 = vadd.f32 %v6309, %v6527
      %v6600 = vadd.f32 %v6310, %v6530
      %v6601 = vadd.f32 %v6311, %v6535
      %v6602 = vadd.f32 %v6312, %v6538
      %v6603 = vadd.f32 %v6313, %v6543
      %v6604 = vadd.f32 %v6314, %v6546
      %v6605 = vadd.f32 %v6315, %v6551
      %v6606 = vadd.f32 %v6316, %v6554
      %v6607 = vadd.f32 %v6317, %v6559
      %v6608 = vadd.f32 %v6318, %v6562
      %v6609 = vadd.f32 %v6319, %v6567
      %v6610 = vadd.f32 %v6320, %v6570
      %v6611 = vadd.f32 %v6321, %v6575
      %v6612 = vadd.f32 %v6322, %v6578
      %v6613 = vadd.f32 %v6581, %v3933
      %v6614 = vadd.f32 %v6582, %v3934
      %v6615 = vadd.f32 %v6583, %v3935
      %v6616 = vadd.f32 %v6584, %v3936
      %v6617 = vadd.f32 %v6585, %v3937
      %v6618 = vadd.f32 %v6586, %v3938
      %v6619 = vadd.f32 %v6587, %v3939
      %v6620 = vadd.f32 %v6588, %v3940
      %v6621 = vadd.f32 %v6589, %v3941
      %v6622 = vadd.f32 %v6590, %v3942
      %v6623 = vadd.f32 %v6591, %v3943
      %v6624 = vadd.f32 %v6592, %v3944
      %v6625 = vadd.f32 %v6593, %v3945
      %v6626 = vadd.f32 %v6594, %v3946
      %v6627 = vadd.f32 %v6595, %v3947
      %v6628 = vadd.f32 %v6596, %v3948
      %v6629 = vadd.f32 %v6597, %v3949
      %v6630 = vadd.f32 %v6598, %v3950
      %v6631 = vadd.f32 %v6599, %v3951
      %v6632 = vadd.f32 %v6600, %v3952
      %v6633 = vadd.f32 %v6601, %v3953
      %v6634 = vadd.f32 %v6602, %v3954
      %v6635 = vadd.f32 %v6603, %v3955
      %v6636 = vadd.f32 %v6604, %v3956
      %v6637 = vadd.f32 %v6605, %v3957
      %v6638 = vadd.f32 %v6606, %v3958
      %v6639 = vadd.f32 %v6607, %v3959
      %v6640 = vadd.f32 %v6608, %v3960
      %v6641 = vadd.f32 %v6609, %v3961
      %v6642 = vadd.f32 %v6610, %v3962
      %v6643 = vadd.f32 %v6611, %v3963
      %v6644 = vadd.f32 %v6612, %v3964
      %v6645 = vmax.f32 %v6613, 0.0
      %v6646 = vmax.f32 %v6614, 0.0
      %v6647 = vmax.f32 %v6615, 0.0
      %v6648 = vmax.f32 %v6616, 0.0
      %v6649 = vmax.f32 %v6617, 0.0
      %v6650 = vmax.f32 %v6618, 0.0
      %v6651 = vmax.f32 %v6619, 0.0
      %v6652 = vmax.f32 %v6620, 0.0
      %v6653 = vmax.f32 %v6621, 0.0
      %v6654 = vmax.f32 %v6622, 0.0
      %v6655 = vmax.f32 %v6623, 0.0
      %v6656 = vmax.f32 %v6624, 0.0
      %v6657 = vmax.f32 %v6625, 0.0
      %v6658 = vmax.f32 %v6626, 0.0
      %v6659 = vmax.f32 %v6627, 0.0
      %v6660 = vmax.f32 %v6628, 0.0
      %v6661 = vmax.f32 %v6629, 0.0
      %v6662 = vmax.f32 %v6630, 0.0
      %v6663 = vmax.f32 %v6631, 0.0
      %v6664 = vmax.f32 %v6632, 0.0
      %v6665 = vmax.f32 %v6633, 0.0
      %v6666 = vmax.f32 %v6634, 0.0
      %v6667 = vmax.f32 %v6635, 0.0
      %v6668 = vmax.f32 %v6636, 0.0
      %v6669 = vmax.f32 %v6637, 0.0
      %v6670 = vmax.f32 %v6638, 0.0
      %v6671 = vmax.f32 %v6639, 0.0
      %v6672 = vmax.f32 %v6640, 0.0
      %v6673 = vmax.f32 %v6641, 0.0
      %v6674 = vmax.f32 %v6642, 0.0
      %v6675 = vmax.f32 %v6643, 0.0
      %v6676 = vmax.f32 %v6644, 0.0
      %v6677 = vpack.c.bf16 %v6646, %v6645
      %v6678 = vpack.c.bf16 %v6648, %v6647
      %v6679 = vpack.c.bf16 %v6650, %v6649
      %v6680 = vpack.c.bf16 %v6652, %v6651
      %v6681 = vpack.c.bf16 %v6654, %v6653
      %v6682 = vpack.c.bf16 %v6656, %v6655
      %v6683 = vpack.c.bf16 %v6658, %v6657
      %v6684 = vpack.c.bf16 %v6660, %v6659
      %v6685 = vpack.c.bf16 %v6662, %v6661
      %v6686 = vpack.c.bf16 %v6664, %v6663
      %v6687 = vpack.c.bf16 %v6666, %v6665
      %v6688 = vpack.c.bf16 %v6668, %v6667
      %v6689 = vpack.c.bf16 %v6670, %v6669
      %v6690 = vpack.c.bf16 %v6672, %v6671
      %v6691 = vpack.c.bf16 %v6674, %v6673
      %v6692 = vpack.c.bf16 %v6676, %v6675
      %v6709 = vunpack.c.l.b16 %v6677
      %v6710 = vunpack.c.h.b16 %v6677
      %v6711 = vunpack.c.l.b16 %v6678
      %v6712 = vunpack.c.h.b16 %v6678
      %v6713 = vunpack.c.l.b16 %v6679
      %v6714 = vunpack.c.h.b16 %v6679
      %v6715 = vunpack.c.l.b16 %v6680
      %v6716 = vunpack.c.h.b16 %v6680
      %v6717 = vunpack.c.l.b16 %v6681
      %v6718 = vunpack.c.h.b16 %v6681
      %v6719 = vunpack.c.l.b16 %v6682
      %v6720 = vunpack.c.h.b16 %v6682
      %v6721 = vunpack.c.l.b16 %v6683
      %v6722 = vunpack.c.h.b16 %v6683
      %v6723 = vunpack.c.l.b16 %v6684
      %v6724 = vunpack.c.h.b16 %v6684
      %v6725 = vunpack.c.l.b16 %v6685
      %v6726 = vunpack.c.h.b16 %v6685
      %v6727 = vunpack.c.l.b16 %v6686
      %v6728 = vunpack.c.h.b16 %v6686
      %v6729 = vunpack.c.l.b16 %v6687
      %v6730 = vunpack.c.h.b16 %v6687
      %v6731 = vunpack.c.l.b16 %v6688
      %v6732 = vunpack.c.h.b16 %v6688
      %v6733 = vunpack.c.l.b16 %v6689
      %v6734 = vunpack.c.h.b16 %v6689
      %v6735 = vunpack.c.l.b16 %v6690
      %v6736 = vunpack.c.h.b16 %v6690
      %v6737 = vunpack.c.l.b16 %v6691
      %v6738 = vunpack.c.h.b16 %v6691
      %v6739 = vunpack.c.l.b16 %v6692
      %v6740 = vunpack.c.h.b16 %v6692
      %v6741 = vpack.c.b16 %v6709, %v6709
      %v6742 = vpack.c.b16 %v6710, %v6710
      %v6743 = vpack.c.b16 %v6711, %v6711
      %v6744 = vpack.c.b16 %v6712, %v6712
      %v6745 = vpack.c.b16 %v6713, %v6713
      %v6746 = vpack.c.b16 %v6714, %v6714
      %v6747 = vpack.c.b16 %v6715, %v6715
      %v6748 = vpack.c.b16 %v6716, %v6716
      %v6749 = vpack.c.b16 %v6717, %v6717
      %v6750 = vpack.c.b16 %v6718, %v6718
      %v6751 = vpack.c.b16 %v6719, %v6719
      %v6752 = vpack.c.b16 %v6720, %v6720
      %v6753 = vpack.c.b16 %v6721, %v6721
      %v6754 = vpack.c.b16 %v6722, %v6722
      %v6755 = vpack.c.b16 %v6723, %v6723
      %v6756 = vpack.c.b16 %v6724, %v6724
      %v6757 = vpack.c.b16 %v6725, %v6725
      %v6758 = vpack.c.b16 %v6726, %v6726
      %v6759 = vpack.c.b16 %v6727, %v6727
      %v6760 = vpack.c.b16 %v6728, %v6728
      %v6761 = vpack.c.b16 %v6729, %v6729
      %v6762 = vpack.c.b16 %v6730, %v6730
      %v6763 = vpack.c.b16 %v6731, %v6731
      %v6764 = vpack.c.b16 %v6732, %v6732
      %v6765 = vpack.c.b16 %v6733, %v6733
      %v6766 = vpack.c.b16 %v6734, %v6734
      %v6767 = vpack.c.b16 %v6735, %v6735
      %v6768 = vpack.c.b16 %v6736, %v6736
      %v6769 = vpack.c.b16 %v6737, %v6737
      %v6770 = vpack.c.b16 %v6738, %v6738
      %v6771 = vpack.c.b16 %v6739, %v6739
      %v6772 = vpack.c.b16 %v6740, %v6740
      %vm6805 = vcmask 519168
      %6806 = vst.msk [vmem:[%s386] sm:$0xf] %vm6805, %v6741
      %6807 = vst.msk [vmem:[%s386 + $0x4] sm:$0xf] %vm6805, %v6742
      %6808 = vst.msk [vmem:[%s386 + $0x8] sm:$0xf] %vm6805, %v6743
      %6809 = vst.msk [vmem:[%s386 + $0xc] sm:$0xf] %vm6805, %v6744
      %6810 = vst.msk [vmem:[%s386 + $0x10] sm:$0xf] %vm6805, %v6745
      %6811 = vst.msk [vmem:[%s386 + $0x14] sm:$0xf] %vm6805, %v6746
      %6812 = vst.msk [vmem:[%s386 + $0x18] sm:$0xf] %vm6805, %v6747
      %6813 = vst.msk [vmem:[%s386 + $0x1c] sm:$0xf] %vm6805, %v6748
      %6814 = vst.msk [vmem:[%s386 + $0x20] sm:$0xf] %vm6805, %v6749
      %6815 = vst.msk [vmem:[%s386 + $0x24] sm:$0xf] %vm6805, %v6750
      %6816 = vst.msk [vmem:[%s386 + $0x28] sm:$0xf] %vm6805, %v6751
      %6817 = vst.msk [vmem:[%s386 + $0x2c] sm:$0xf] %vm6805, %v6752
      %6818 = vst.msk [vmem:[%s386 + $0x30] sm:$0xf] %vm6805, %v6753
      %6819 = vst.msk [vmem:[%s386 + $0x34] sm:$0xf] %vm6805, %v6754
      %6820 = vst.msk [vmem:[%s386 + $0x38] sm:$0xf] %vm6805, %v6755
      %6821 = vst.msk [vmem:[%s386 + $0x3c] sm:$0xf] %vm6805, %v6756
      %6822 = vst.msk [vmem:[%s386 + $0x40] sm:$0xf] %vm6805, %v6757
      %6823 = vst.msk [vmem:[%s386 + $0x44] sm:$0xf] %vm6805, %v6758
      %6824 = vst.msk [vmem:[%s386 + $0x48] sm:$0xf] %vm6805, %v6759
      %6825 = vst.msk [vmem:[%s386 + $0x4c] sm:$0xf] %vm6805, %v6760
      %6826 = vst.msk [vmem:[%s386 + $0x50] sm:$0xf] %vm6805, %v6761
      %6827 = vst.msk [vmem:[%s386 + $0x54] sm:$0xf] %vm6805, %v6762
      %6828 = vst.msk [vmem:[%s386 + $0x58] sm:$0xf] %vm6805, %v6763
      %6829 = vst.msk [vmem:[%s386 + $0x5c] sm:$0xf] %vm6805, %v6764
      %6830 = vst.msk [vmem:[%s386 + $0x60] sm:$0xf] %vm6805, %v6765
      %6831 = vst.msk [vmem:[%s386 + $0x64] sm:$0xf] %vm6805, %v6766
      %6832 = vst.msk [vmem:[%s386 + $0x68] sm:$0xf] %vm6805, %v6767
      %6833 = vst.msk [vmem:[%s386 + $0x6c] sm:$0xf] %vm6805, %v6768
      %6834 = vst.msk [vmem:[%s386 + $0x70] sm:$0xf] %vm6805, %v6769
      %6835 = vst.msk [vmem:[%s386 + $0x74] sm:$0xf] %vm6805, %v6770
      %6836 = vst.msk [vmem:[%s386 + $0x78] sm:$0xf] %vm6805, %v6771
      %6837 = vst.msk [vmem:[%s386 + $0x7c] sm:$0xf] %vm6805, %v6772
      %p6838 = scmp.lt.s32.totalorder %s22, 1
      %s6839 = scalar_select %p6838, %s22, 1
      %s6840 = smul.addr %s6839, 32
      %s6841 = smul.addr %s6840, 4
      %s6842 = scalar_lea.vmem %s11, %s6841
      // Predicated region
      $region65: #{simple_resnet_forward.2} parent=63 // pred_check
        %p6843 = pneg %p276
      $region66: #{simple_resnet_forward.2} parent=63 // pred_check_branch
        %6845 = sbr.rel (%p6843) target = $region68
      $region67: #{simple_resnet_forward.2} parent=63 // pred_region
        _
      $region68: #{simple_resnet_forward.2} parent=63 // pred_fallthru
        _
    $region64: #{simple_resnet_forward.2} parent=5 // pred_fallthru
      _
    %p6846 = scmp.le.s32.totalorder 2, %s17
    // Predicated region
    $region69: #{simple_resnet_forward.2} parent=5 // pred_check
      %p6847 = pneg %p6846
    $region70: #{simple_resnet_forward.2} parent=5 // pred_check_branch
      %6849 = sbr.rel (%p6847) target = $region72
    $region71: #{simple_resnet_forward.2} parent=5 // pred_region
      %s6850 = ssub.s32 %s17, 2
      // Predicated region
      $region73: #{simple_resnet_forward.2} parent=71 // pred_check
        %p6851 = pneg %p282
      $region74: #{simple_resnet_forward.2} parent=71 // pred_check_branch
        %6853 = sbr.rel (%p6851) target = $region76
      $region75: #{simple_resnet_forward.2} parent=71 // pred_region
        %p6854 = scmp.lt.s32.totalorder %s23, 1
        %s6855 = scalar_select %p6854, %s23, 1
        %s6856 = smul.addr %s6855, 32
        %s6857 = smul.addr %s6856, 4
        %s6858 = scalar_lea.vmem %s11, %s6857
      $region76: #{simple_resnet_forward.2} parent=71 // pred_fallthru
        _
    $region72: #{simple_resnet_forward.2} parent=5 // pred_fallthru
      _
  $region6: #{simple_resnet_forward.2} parent=0 // loop_footer
    %s21 = sadd.s32 1, %s17
  $region7: #{simple_resnet_forward.2} parent=0 // loop_footer_branch
    %16 = sbr.rel target = $region3
  $region8: #{simple_resnet_forward.2} parent=0 // loop_exit
    _

// kernel: simple_resnet_forward.3
$region0: #{simple_resnet_forward.3}
  #allocation0 [shape = 'u32[]', space=smem, size = 0x4, offset = 0x4, fixed_abs, tag = 'smem constant byte address 0x4 - core index']
  #allocation1 [shape = 'u32[144,128]{1,0:T(1,128)}', space=vmem, size = 0x12000, scoped, tag = 'internal scratch']
  %s0 = inlined_call_operand.vmem [shape: bf16[2,64,576], index: 0, kind: input, shape index: {}]
  %s1 = inlined_call_operand.vmem [shape: bf16[2,64,64], index: 1, kind: input, shape index: {}]
  %s2 = inlined_call_operand.vmem [shape: bf16[576,128], index: 2, kind: input, shape index: {}]
  %s3 = inlined_call_operand.vmem [shape: f32[1,128], index: 3, kind: input, shape index: {}]
  %s4 = inlined_call_operand.vmem [shape: bf16[3,384,128], index: 4, kind: input, shape index: {}]
  %s5 = inlined_call_operand.vmem [shape: f32[1,128], index: 5, kind: input, shape index: {}]
  %s6 = inlined_call_operand.vmem [shape: bf16[64,128], index: 6, kind: input, shape index: {}]
  %s7 = inlined_call_operand.vmem [shape: f32[1,128], index: 7, kind: input, shape index: {}]
  %s8 = inlined_call_operand.vmem [shape: bf16[3,384,128], index: 8, kind: input, shape index: {}]
  %s9 = inlined_call_operand.vmem [shape: f32[1,128], index: 9, kind: input, shape index: {}]
  %s10 = inlined_call_operand.vmem [shape: bf16[3,384,128], index: 10, kind: input, shape index: {}]
  %s11 = inlined_call_operand.vmem [shape: f32[1,128], index: 11, kind: input, shape index: {}]
  %s12 = inlined_call_operand.vmem [shape: bf16[128,128], index: 12, kind: input, shape index: {}]
  %s13 = inlined_call_operand.vmem [shape: f32[1,128], index: 13, kind: input, shape index: {}]
  %s14 = inlined_call_operand.hbm [shape: f32[2,1,128], index: 14, kind: output, shape index: {}]
  %s15 = sld [smem:[#allocation0]]
  $region89: #{simple_resnet_forward.3} parent=0
    _
  %s17 = ssub.s32 1, %s15
  %s18 = scalar_select 0, %s17, %s15
  $region1: #{simple_resnet_forward.3} parent=0
    #allocation2 [shape = 'u8[1024]{0}', space=vmem, size = 0x400, scoped, tag = 'output window, operand 0']
    #allocation3 [shape = 's32[2]{0}', space=sflag, size = 0x8, scoped, tag = 'scoped memory for simple_resnet_forward.3']
    %19 = vsyncpa [#allocation3], 0
    %s20 = scalar_lea.sflag [#allocation3], 1
    %21 = vsyncpa %s20, 0
    loop: start=0, step=1, limit=4
    $region2: #{simple_resnet_forward.3} parent=1 // loop_pre_header
      _
    $region3: #{simple_resnet_forward.3} parent=1 // loop_header
      %s23 = sphi 0, %s27
      %p24 = scmp.ge.s32.totalorder %s23, 4
      %s33 = sphi 0, %s35
      %s36 = sphi 0, %s33
      %s37 = sphi 0, %s36
      %s53 = sphi 0, %s37
      %s59 = sphi 0, %s61
      %s62 = sphi 0, %s59
      %s63 = sphi 0, %s62
      %s79 = sphi 0, %s63
      %s83 = sphi 0, %s83
      %s85 = sphi 0, %s83
      %s86 = sphi 0, %s85
      %s100 = sphi 0, %s86
      %s104 = sphi 0, %s104
      %s106 = sphi 0, %s104
      %s107 = sphi 0, %s106
      %s121 = sphi 0, %s107
      %s125 = sphi 0, %s125
      %s127 = sphi 0, %s125
      %s128 = sphi 0, %s127
      %s142 = sphi 0, %s128
      %s146 = sphi 0, %s146
      %s148 = sphi 0, %s146
      %s149 = sphi 0, %s148
      %s163 = sphi 0, %s149
      %s167 = sphi 0, %s167
      %s169 = sphi 0, %s167
      %s170 = sphi 0, %s169
      %s184 = sphi 0, %s170
      %s188 = sphi 0, %s188
      %s190 = sphi 0, %s188
      %s191 = sphi 0, %s190
      %s205 = sphi 0, %s191
      %s209 = sphi 0, %s209
      %s211 = sphi 0, %s209
      %s212 = sphi 0, %s211
      %s226 = sphi 0, %s212
      %s230 = sphi 0, %s230
      %s232 = sphi 0, %s230
      %s233 = sphi 0, %s232
      %s247 = sphi 0, %s233
      %s251 = sphi 0, %s251
      %s253 = sphi 0, %s251
      %s254 = sphi 0, %s253
      %s268 = sphi 0, %s254
      %s272 = sphi 0, %s272
      %s274 = sphi 0, %s272
      %s275 = sphi 0, %s274
      %s289 = sphi 0, %s275
      %s293 = sphi 0, %s293
      %s295 = sphi 0, %s293
      %s296 = sphi 0, %s295
      %s310 = sphi 0, %s296
      %s314 = sphi 0, %s314
      %s316 = sphi 0, %s314
      %s317 = sphi 0, %s316
      %s331 = sphi 0, %s317
      %s337 = sphi 0, %s339
      %s340 = sphi 0, %s337
      %s341 = sphi 0, %s340
      %s357 = sphi 0, %s341
    $region4: #{simple_resnet_forward.3} parent=1 // loop_header_branch
      %26 = sbr.rel (%p24) target = $region8
    $region5: #{simple_resnet_forward.3} parent=1 // loop_body
      %s28 = ssub.s32 %s23, 1
      %s29 = ssub.s32 %s23, 2
      %s30 = sadd.s32 %s23, 1
      %s31 = ssub.s32 %s23, %s30
      %p32 = scmp.eq.s32.totalorder %s31, 0
      %s34 = sadd.s32 %s33, 1
      %s35 = scalar_select %p32, %s33, %s34
      %p38 = pneg %p32
      %p39 = scmp.eq.s32.totalorder %s23, 1
      %p40 = por %p38, %p39
      %p41 = scmp.ne.s32.totalorder %s33, %s36
      %p42 = scmp.eq.s32.totalorder %s23, 0
      %p43 = por %p41, %p42
      %p44 = scmp.ne.s32.totalorder %s33, %s36
      %p45 = scmp.eq.s32.totalorder %s28, 1
      %p46 = por %p44, %p45
      %p47 = scmp.ne.s32.totalorder %s36, %s37
      %p48 = scmp.eq.s32.totalorder %s28, 0
      %p49 = por %p47, %p48
      %p50 = scmp.ne.s32.totalorder %s36, %s37
      %p51 = scmp.eq.s32.totalorder %s29, 1
      %p52 = por %p50, %p51
      %p54 = scmp.ne.s32.totalorder %s37, %s53
      %p55 = scmp.eq.s32.totalorder %s29, 0
      %p56 = por %p54, %p55
      %s57 = ssub.s32 %s23, %s30
      %p58 = scmp.eq.s32.totalorder %s57, 0
      %s60 = sadd.s32 %s59, 1
      %s61 = scalar_select %p58, %s59, %s60
      %p64 = pneg %p58
      %p65 = scmp.eq.s32.totalorder %s23, 1
      %p66 = por %p64, %p65
      %p67 = scmp.ne.s32.totalorder %s59, %s62
      %p68 = scmp.eq.s32.totalorder %s23, 0
      %p69 = por %p67, %p68
      %p70 = scmp.ne.s32.totalorder %s59, %s62
      %p71 = scmp.eq.s32.totalorder %s28, 1
      %p72 = por %p70, %p71
      %p73 = scmp.ne.s32.totalorder %s62, %s63
      %p74 = scmp.eq.s32.totalorder %s28, 0
      %p75 = por %p73, %p74
      %p76 = scmp.ne.s32.totalorder %s62, %s63
      %p77 = scmp.eq.s32.totalorder %s29, 1
      %p78 = por %p76, %p77
      %p80 = scmp.ne.s32.totalorder %s63, %s79
      %p81 = scmp.eq.s32.totalorder %s29, 0
      %p82 = por %p80, %p81
      %s84 = sadd.s32 %s83, 1
      %p87 = scmp.eq.s32.totalorder %s23, 1
      %p88 = scmp.ne.s32.totalorder %s83, %s85
      %p89 = scmp.eq.s32.totalorder %s23, 0
      %p90 = por %p88, %p89
      %p91 = scmp.ne.s32.totalorder %s83, %s85
      %p92 = scmp.eq.s32.totalorder %s28, 1
      %p93 = por %p91, %p92
      %p94 = scmp.ne.s32.totalorder %s85, %s86
      %p95 = scmp.eq.s32.totalorder %s28, 0
      %p96 = por %p94, %p95
      %p97 = scmp.ne.s32.totalorder %s85, %s86
      %p98 = scmp.eq.s32.totalorder %s29, 1
      %p99 = por %p97, %p98
      %p101 = scmp.ne.s32.totalorder %s86, %s100
      %p102 = scmp.eq.s32.totalorder %s29, 0
      %p103 = por %p101, %p102
      %s105 = sadd.s32 %s104, 1
      %p108 = scmp.eq.s32.totalorder %s23, 1
      %p109 = scmp.ne.s32.totalorder %s104, %s106
      %p110 = scmp.eq.s32.totalorder %s23, 0
      %p111 = por %p109, %p110
      %p112 = scmp.ne.s32.totalorder %s104, %s106
      %p113 = scmp.eq.s32.totalorder %s28, 1
      %p114 = por %p112, %p113
      %p115 = scmp.ne.s32.totalorder %s106, %s107
      %p116 = scmp.eq.s32.totalorder %s28, 0
      %p117 = por %p115, %p116
      %p118 = scmp.ne.s32.totalorder %s106, %s107
      %p119 = scmp.eq.s32.totalorder %s29, 1
      %p120 = por %p118, %p119
      %p122 = scmp.ne.s32.totalorder %s107, %s121
      %p123 = scmp.eq.s32.totalorder %s29, 0
      %p124 = por %p122, %p123
      %s126 = sadd.s32 %s125, 1
      %p129 = scmp.eq.s32.totalorder %s23, 1
      %p130 = scmp.ne.s32.totalorder %s125, %s127
      %p131 = scmp.eq.s32.totalorder %s23, 0
      %p132 = por %p130, %p131
      %p133 = scmp.ne.s32.totalorder %s125, %s127
      %p134 = scmp.eq.s32.totalorder %s28, 1
      %p135 = por %p133, %p134
      %p136 = scmp.ne.s32.totalorder %s127, %s128
      %p137 = scmp.eq.s32.totalorder %s28, 0
      %p138 = por %p136, %p137
      %p139 = scmp.ne.s32.totalorder %s127, %s128
      %p140 = scmp.eq.s32.totalorder %s29, 1
      %p141 = por %p139, %p140
      %p143 = scmp.ne.s32.totalorder %s128, %s142
      %p144 = scmp.eq.s32.totalorder %s29, 0
      %p145 = por %p143, %p144
      %s147 = sadd.s32 %s146, 1
      %p150 = scmp.eq.s32.totalorder %s23, 1
      %p151 = scmp.ne.s32.totalorder %s146, %s148
      %p152 = scmp.eq.s32.totalorder %s23, 0
      %p153 = por %p151, %p152
      %p154 = scmp.ne.s32.totalorder %s146, %s148
      %p155 = scmp.eq.s32.totalorder %s28, 1
      %p156 = por %p154, %p155
      %p157 = scmp.ne.s32.totalorder %s148, %s149
      %p158 = scmp.eq.s32.totalorder %s28, 0
      %p159 = por %p157, %p158
      %p160 = scmp.ne.s32.totalorder %s148, %s149
      %p161 = scmp.eq.s32.totalorder %s29, 1
      %p162 = por %p160, %p161
      %p164 = scmp.ne.s32.totalorder %s149, %s163
      %p165 = scmp.eq.s32.totalorder %s29, 0
      %p166 = por %p164, %p165
      %s168 = sadd.s32 %s167, 1
      %p171 = scmp.eq.s32.totalorder %s23, 1
      %p172 = scmp.ne.s32.totalorder %s167, %s169
      %p173 = scmp.eq.s32.totalorder %s23, 0
      %p174 = por %p172, %p173
      %p175 = scmp.ne.s32.totalorder %s167, %s169
      %p176 = scmp.eq.s32.totalorder %s28, 1
      %p177 = por %p175, %p176
      %p178 = scmp.ne.s32.totalorder %s169, %s170
      %p179 = scmp.eq.s32.totalorder %s28, 0
      %p180 = por %p178, %p179
      %p181 = scmp.ne.s32.totalorder %s169, %s170
      %p182 = scmp.eq.s32.totalorder %s29, 1
      %p183 = por %p181, %p182
      %p185 = scmp.ne.s32.totalorder %s170, %s184
      %p186 = scmp.eq.s32.totalorder %s29, 0
      %p187 = por %p185, %p186
      %s189 = sadd.s32 %s188, 1
      %p192 = scmp.eq.s32.totalorder %s23, 1
      %p193 = scmp.ne.s32.totalorder %s188, %s190
      %p194 = scmp.eq.s32.totalorder %s23, 0
      %p195 = por %p193, %p194
      %p196 = scmp.ne.s32.totalorder %s188, %s190
      %p197 = scmp.eq.s32.totalorder %s28, 1
      %p198 = por %p196, %p197
      %p199 = scmp.ne.s32.totalorder %s190, %s191
      %p200 = scmp.eq.s32.totalorder %s28, 0
      %p201 = por %p199, %p200
      %p202 = scmp.ne.s32.totalorder %s190, %s191
      %p203 = scmp.eq.s32.totalorder %s29, 1
      %p204 = por %p202, %p203
      %p206 = scmp.ne.s32.totalorder %s191, %s205
      %p207 = scmp.eq.s32.totalorder %s29, 0
      %p208 = por %p206, %p207
      %s210 = sadd.s32 %s209, 1
      %p213 = scmp.eq.s32.totalorder %s23, 1
      %p214 = scmp.ne.s32.totalorder %s209, %s211
      %p215 = scmp.eq.s32.totalorder %s23, 0
      %p216 = por %p214, %p215
      %p217 = scmp.ne.s32.totalorder %s209, %s211
      %p218 = scmp.eq.s32.totalorder %s28, 1
      %p219 = por %p217, %p218
      %p220 = scmp.ne.s32.totalorder %s211, %s212
      %p221 = scmp.eq.s32.totalorder %s28, 0
      %p222 = por %p220, %p221
      %p223 = scmp.ne.s32.totalorder %s211, %s212
      %p224 = scmp.eq.s32.totalorder %s29, 1
      %p225 = por %p223, %p224
      %p227 = scmp.ne.s32.totalorder %s212, %s226
      %p228 = scmp.eq.s32.totalorder %s29, 0
      %p229 = por %p227, %p228
      %s231 = sadd.s32 %s230, 1
      %p234 = scmp.eq.s32.totalorder %s23, 1
      %p235 = scmp.ne.s32.totalorder %s230, %s232
      %p236 = scmp.eq.s32.totalorder %s23, 0
      %p237 = por %p235, %p236
      %p238 = scmp.ne.s32.totalorder %s230, %s232
      %p239 = scmp.eq.s32.totalorder %s28, 1
      %p240 = por %p238, %p239
      %p241 = scmp.ne.s32.totalorder %s232, %s233
      %p242 = scmp.eq.s32.totalorder %s28, 0
      %p243 = por %p241, %p242
      %p244 = scmp.ne.s32.totalorder %s232, %s233
      %p245 = scmp.eq.s32.totalorder %s29, 1
      %p246 = por %p244, %p245
      %p248 = scmp.ne.s32.totalorder %s233, %s247
      %p249 = scmp.eq.s32.totalorder %s29, 0
      %p250 = por %p248, %p249
      %s252 = sadd.s32 %s251, 1
      %p255 = scmp.eq.s32.totalorder %s23, 1
      %p256 = scmp.ne.s32.totalorder %s251, %s253
      %p257 = scmp.eq.s32.totalorder %s23, 0
      %p258 = por %p256, %p257
      %p259 = scmp.ne.s32.totalorder %s251, %s253
      %p260 = scmp.eq.s32.totalorder %s28, 1
      %p261 = por %p259, %p260
      %p262 = scmp.ne.s32.totalorder %s253, %s254
      %p263 = scmp.eq.s32.totalorder %s28, 0
      %p264 = por %p262, %p263
      %p265 = scmp.ne.s32.totalorder %s253, %s254
      %p266 = scmp.eq.s32.totalorder %s29, 1
      %p267 = por %p265, %p266
      %p269 = scmp.ne.s32.totalorder %s254, %s268
      %p270 = scmp.eq.s32.totalorder %s29, 0
      %p271 = por %p269, %p270
      %s273 = sadd.s32 %s272, 1
      %p276 = scmp.eq.s32.totalorder %s23, 1
      %p277 = scmp.ne.s32.totalorder %s272, %s274
      %p278 = scmp.eq.s32.totalorder %s23, 0
      %p279 = por %p277, %p278
      %p280 = scmp.ne.s32.totalorder %s272, %s274
      %p281 = scmp.eq.s32.totalorder %s28, 1
      %p282 = por %p280, %p281
      %p283 = scmp.ne.s32.totalorder %s274, %s275
      %p284 = scmp.eq.s32.totalorder %s28, 0
      %p285 = por %p283, %p284
      %p286 = scmp.ne.s32.totalorder %s274, %s275
      %p287 = scmp.eq.s32.totalorder %s29, 1
      %p288 = por %p286, %p287
      %p290 = scmp.ne.s32.totalorder %s275, %s289
      %p291 = scmp.eq.s32.totalorder %s29, 0
      %p292 = por %p290, %p291
      %s294 = sadd.s32 %s293, 1
      %p297 = scmp.eq.s32.totalorder %s23, 1
      %p298 = scmp.ne.s32.totalorder %s293, %s295
      %p299 = scmp.eq.s32.totalorder %s23, 0
      %p300 = por %p298, %p299
      %p301 = scmp.ne.s32.totalorder %s293, %s295
      %p302 = scmp.eq.s32.totalorder %s28, 1
      %p303 = por %p301, %p302
      %p304 = scmp.ne.s32.totalorder %s295, %s296
      %p305 = scmp.eq.s32.totalorder %s28, 0
      %p306 = por %p304, %p305
      %p307 = scmp.ne.s32.totalorder %s295, %s296
      %p308 = scmp.eq.s32.totalorder %s29, 1
      %p309 = por %p307, %p308
      %p311 = scmp.ne.s32.totalorder %s296, %s310
      %p312 = scmp.eq.s32.totalorder %s29, 0
      %p313 = por %p311, %p312
      %s315 = sadd.s32 %s314, 1
      %p318 = scmp.eq.s32.totalorder %s23, 1
      %p319 = scmp.ne.s32.totalorder %s314, %s316
      %p320 = scmp.eq.s32.totalorder %s23, 0
      %p321 = por %p319, %p320
      %p322 = scmp.ne.s32.totalorder %s314, %s316
      %p323 = scmp.eq.s32.totalorder %s28, 1
      %p324 = por %p322, %p323
      %p325 = scmp.ne.s32.totalorder %s316, %s317
      %p326 = scmp.eq.s32.totalorder %s28, 0
      %p327 = por %p325, %p326
      %p328 = scmp.ne.s32.totalorder %s316, %s317
      %p329 = scmp.eq.s32.totalorder %s29, 1
      %p330 = por %p328, %p329
      %p332 = scmp.ne.s32.totalorder %s317, %s331
      %p333 = scmp.eq.s32.totalorder %s29, 0
      %p334 = por %p332, %p333
      %s335 = ssub.s32 %s23, %s30
      %p336 = scmp.eq.s32.totalorder %s335, 0
      %s338 = sadd.s32 %s337, 1
      %s339 = scalar_select %p336, %s337, %s338
      %p342 = pneg %p336
      %p343 = scmp.eq.s32.totalorder %s23, 1
      %p344 = por %p342, %p343
      %p345 = scmp.ne.s32.totalorder %s337, %s340
      %p346 = scmp.eq.s32.totalorder %s23, 0
      %p347 = por %p345, %p346
      %p348 = scmp.ne.s32.totalorder %s337, %s340
      %p349 = scmp.eq.s32.totalorder %s28, 1
      %p350 = por %p348, %p349
      %p351 = scmp.ne.s32.totalorder %s340, %s341
      %p352 = scmp.eq.s32.totalorder %s28, 0
      %p353 = por %p351, %p352
      %p354 = scmp.ne.s32.totalorder %s340, %s341
      %p355 = scmp.eq.s32.totalorder %s29, 1
      %p356 = por %p354, %p355
      %p358 = scmp.ne.s32.totalorder %s341, %s357
      %p359 = scmp.eq.s32.totalorder %s29, 0
      %p360 = por %p358, %p359
      %p361 = scmp.le.s32.totalorder 1, %s23
      %p362 = scmp.lt.s32.totalorder %s23, 3
      %p363 = pnand %p361, %p362
      %p364 = pneg %p363
      // Predicated region
      $region9: #{simple_resnet_forward.3} parent=5 // pred_check
        _
      $region10: #{simple_resnet_forward.3} parent=5 // pred_check_branch
        %366 = sbr.rel (%p363) target = $region12
      $region11: #{simple_resnet_forward.3} parent=5 // pred_region
        %s367 = ssub.s32 %s23, 1
        // Predicated region
        $region13: #{simple_resnet_forward.3} parent=11 // pred_check
          %p368 = pneg %p96
        $region14: #{simple_resnet_forward.3} parent=11 // pred_check_branch
          %370 = sbr.rel (%p368) target = $region16
        $region15: #{simple_resnet_forward.3} parent=11 // pred_region
          _
        $region16: #{simple_resnet_forward.3} parent=11 // pred_fallthru
          _
        // Predicated region
        $region17: #{simple_resnet_forward.3} parent=11 // pred_check
          %p371 = pneg %p117
        $region18: #{simple_resnet_forward.3} parent=11 // pred_check_branch
          %373 = sbr.rel (%p371) target = $region20
        $region19: #{simple_resnet_forward.3} parent=11 // pred_region
          _
        $region20: #{simple_resnet_forward.3} parent=11 // pred_fallthru
          _
        // Predicated region
        $region21: #{simple_resnet_forward.3} parent=11 // pred_check
          %p374 = pneg %p138
        $region22: #{simple_resnet_forward.3} parent=11 // pred_check_branch
          %376 = sbr.rel (%p374) target = $region24
        $region23: #{simple_resnet_forward.3} parent=11 // pred_region
          _
        $region24: #{simple_resnet_forward.3} parent=11 // pred_fallthru
          _
        // Predicated region
        $region25: #{simple_resnet_forward.3} parent=11 // pred_check
          %p377 = pneg %p159
        $region26: #{simple_resnet_forward.3} parent=11 // pred_check_branch
          %379 = sbr.rel (%p377) target = $region28
        $region27: #{simple_resnet_forward.3} parent=11 // pred_region
          _
        $region28: #{simple_resnet_forward.3} parent=11 // pred_fallthru
          _
        // Predicated region
        $region29: #{simple_resnet_forward.3} parent=11 // pred_check
          %p380 = pneg %p180
        $region30: #{simple_resnet_forward.3} parent=11 // pred_check_branch
          %382 = sbr.rel (%p380) target = $region32
        $region31: #{simple_resnet_forward.3} parent=11 // pred_region
          _
        $region32: #{simple_resnet_forward.3} parent=11 // pred_fallthru
          _
        // Predicated region
        $region33: #{simple_resnet_forward.3} parent=11 // pred_check
          %p383 = pneg %p201
        $region34: #{simple_resnet_forward.3} parent=11 // pred_check_branch
          %385 = sbr.rel (%p383) target = $region36
        $region35: #{simple_resnet_forward.3} parent=11 // pred_region
          _
        $region36: #{simple_resnet_forward.3} parent=11 // pred_fallthru
          _
        // Predicated region
        $region37: #{simple_resnet_forward.3} parent=11 // pred_check
          %p386 = pneg %p222
        $region38: #{simple_resnet_forward.3} parent=11 // pred_check_branch
          %388 = sbr.rel (%p386) target = $region40
        $region39: #{simple_resnet_forward.3} parent=11 // pred_region
          _
        $region40: #{simple_resnet_forward.3} parent=11 // pred_fallthru
          _
        // Predicated region
        $region41: #{simple_resnet_forward.3} parent=11 // pred_check
          %p389 = pneg %p243
        $region42: #{simple_resnet_forward.3} parent=11 // pred_check_branch
          %391 = sbr.rel (%p389) target = $region44
        $region43: #{simple_resnet_forward.3} parent=11 // pred_region
          _
        $region44: #{simple_resnet_forward.3} parent=11 // pred_fallthru
          _
        // Predicated region
        $region45: #{simple_resnet_forward.3} parent=11 // pred_check
          %p392 = pneg %p264
        $region46: #{simple_resnet_forward.3} parent=11 // pred_check_branch
          %394 = sbr.rel (%p392) target = $region48
        $region47: #{simple_resnet_forward.3} parent=11 // pred_region
          _
        $region48: #{simple_resnet_forward.3} parent=11 // pred_fallthru
          _
        // Predicated region
        $region49: #{simple_resnet_forward.3} parent=11 // pred_check
          %p395 = pneg %p285
        $region50: #{simple_resnet_forward.3} parent=11 // pred_check_branch
          %397 = sbr.rel (%p395) target = $region52
        $region51: #{simple_resnet_forward.3} parent=11 // pred_region
          _
        $region52: #{simple_resnet_forward.3} parent=11 // pred_fallthru
          _
        // Predicated region
        $region53: #{simple_resnet_forward.3} parent=11 // pred_check
          %p398 = pneg %p306
        $region54: #{simple_resnet_forward.3} parent=11 // pred_check_branch
          %400 = sbr.rel (%p398) target = $region56
        $region55: #{simple_resnet_forward.3} parent=11 // pred_region
          _
        $region56: #{simple_resnet_forward.3} parent=11 // pred_fallthru
          _
        // Predicated region
        $region57: #{simple_resnet_forward.3} parent=11 // pred_check
          %p401 = pneg %p327
        $region58: #{simple_resnet_forward.3} parent=11 // pred_check_branch
          %403 = sbr.rel (%p401) target = $region60
        $region59: #{simple_resnet_forward.3} parent=11 // pred_region
          _
        $region60: #{simple_resnet_forward.3} parent=11 // pred_fallthru
          _
      $region12: #{simple_resnet_forward.3} parent=5 // pred_fallthru
        _
      %p404 = scmp.lt.s32.totalorder %s23, 2
      // Predicated region
      $region61: #{simple_resnet_forward.3} parent=5 // pred_check
        %p405 = pneg %p404
      $region62: #{simple_resnet_forward.3} parent=5 // pred_check_branch
        %407 = sbr.rel (%p405) target = $region64
      $region63: #{simple_resnet_forward.3} parent=5 // pred_region
        // Predicated region
        $region65: #{simple_resnet_forward.3} parent=63 // pred_check
          %p408 = pneg %p43
        $region66: #{simple_resnet_forward.3} parent=63 // pred_check_branch
          %410 = sbr.rel (%p408) target = $region68
        $region67: #{simple_resnet_forward.3} parent=63 // pred_region
          %p411 = scmp.lt.s32.totalorder %s23, 1
          %s412 = scalar_select %p411, %s23, 1
          %s413 = smul.addr %s412, 40
          %s414 = smul.addr %s413, 4
          %s415 = scalar_lea.vmem %s0, %s414
        $region68: #{simple_resnet_forward.3} parent=63 // pred_fallthru
          _
        // Predicated region
        $region69: #{simple_resnet_forward.3} parent=63 // pred_check
          %p416 = pneg %p69
        $region70: #{simple_resnet_forward.3} parent=63 // pred_check_branch
          %418 = sbr.rel (%p416) target = $region72
        $region71: #{simple_resnet_forward.3} parent=63 // pred_region
          %p419 = scmp.lt.s32.totalorder %s23, 1
          %s420 = scalar_select %p419, %s23, 1
          %s421 = smul.addr %s420, 8
          %s422 = smul.addr %s421, 4
          %s423 = scalar_lea.vmem %s1, %s422
        $region72: #{simple_resnet_forward.3} parent=63 // pred_fallthru
          _
      $region64: #{simple_resnet_forward.3} parent=5 // pred_fallthru
        _
      %p424 = scmp.le.s32.totalorder 1, %s23
      %p425 = scmp.lt.s32.totalorder %s23, 3
      %p426 = pnand %p424, %p425
      %p427 = pneg %p426
      // Predicated region
      $region73: #{simple_resnet_forward.3} parent=5 // pred_check
        _
      $region74: #{simple_resnet_forward.3} parent=5 // pred_check_branch
        %429 = sbr.rel (%p426) target = $region76
      $region75: #{simple_resnet_forward.3} parent=5 // pred_region
        %s430 = ssub.s32 %s23, 1
        %p431 = scmp.lt.s32.totalorder %s28, 1
        %s432 = scalar_select %p431, %s28, 1
        %s433 = smul.addr %s432, 40
        %s434 = smul.addr %s433, 4
        %s435 = scalar_lea.vmem %s0, %s434
        %p436 = pneg %p49
        %p437 = pneg %p46
        %p438 = scmp.lt.s32.totalorder %s28, 1
        %s439 = scalar_select %p438, %s28, 1
        %s440 = smul.addr %s439, 8
        %s441 = smul.addr %s440, 4
        %s442 = scalar_lea.vmem %s1, %s441
        %p443 = pneg %p75
        %p444 = pneg %p72
        %p445 = pneg %p96
        %p446 = pneg %p93
        %p447 = pneg %p117
        %p448 = pneg %p114
        %p449 = pneg %p138
        %p450 = pneg %p135
        %p451 = pneg %p159
        %p452 = pneg %p156
        %p453 = pneg %p180
        %p454 = pneg %p177
        %p455 = pneg %p201
        %p456 = pneg %p198
        %p457 = pneg %p222
        %p458 = pneg %p219
        %p459 = pneg %p243
        %p460 = pneg %p240
        %p461 = pneg %p264
        %p462 = pneg %p261
        %p463 = pneg %p285
        %p464 = pneg %p282
        %p465 = pneg %p306
        %p466 = pneg %p303
        %p467 = pneg %p327
        %p468 = pneg %p324
        %p469 = pneg %p353
        %p470 = pneg %p350
        %s471 = sand.u32 %s340, 1
        %s472 = scalar_lea.sflag [#allocation3], %s471
        %s473 = sand.u32 %s340, 1
        %s474 = scalar_lea.vmem [#allocation2], %s473
        %p475 = scmp.lt.s32.totalorder %s28, 1
        %s476 = scalar_select %p475, %s28, 1
        %s477 = smul.addr %s476, 40
        %s478 = smul.addr %s477, 4
        %s479 = scalar_lea.vmem %s0, %s478
        %p480 = scmp.lt.s32.totalorder %s28, 1
        %s481 = scalar_select %p480, %s28, 1
        %s482 = smul.addr %s481, 8
        %s483 = smul.addr %s482, 4
        %s484 = scalar_lea.vmem %s1, %s483
        %v486 = vld [vmem:[%s479] sm:$0xff]
        %v487 = vld [vmem:[%s479 + $0x8] sm:$0xff]
        %v488 = vld [vmem:[%s479 + $0x10] sm:$0xf]
        %v489 = vld [vmem:[%s479 + $0x14] sm:$0xff]
        %v490 = vld [vmem:[%s479 + $0x1c] sm:$0xff]
        %v491 = vld [vmem:[%s479 + $0x24] sm:$0xf]
        %v492 = vld [vmem:[%s479 + $0x28] sm:$0xff]
        %v493 = vld [vmem:[%s479 + $0x30] sm:$0xff]
        %v494 = vld [vmem:[%s479 + $0x38] sm:$0xf]
        %v495 = vld [vmem:[%s479 + $0x3c] sm:$0xff]
        %v496 = vld [vmem:[%s479 + $0x44] sm:$0xff]
        %v497 = vld [vmem:[%s479 + $0x4c] sm:$0xf]
        %v498 = vld [vmem:[%s479 + $0x50] sm:$0xff]
        %v499 = vld [vmem:[%s479 + $0x58] sm:$0xff]
        %v500 = vld [vmem:[%s479 + $0x60] sm:$0xf]
        %v501 = vld [vmem:[%s479 + $0x64] sm:$0xff]
        %v502 = vld [vmem:[%s479 + $0x6c] sm:$0xff]
        %v503 = vld [vmem:[%s479 + $0x74] sm:$0xf]
        %v504 = vld [vmem:[%s479 + $0x78] sm:$0xff]
        %v505 = vld [vmem:[%s479 + $0x80] sm:$0xff]
        %v506 = vld [vmem:[%s479 + $0x88] sm:$0xf]
        %v507 = vld [vmem:[%s479 + $0x8c] sm:$0xff]
        %v508 = vld [vmem:[%s479 + $0x94] sm:$0xff]
        %v509 = vld [vmem:[%s479 + $0x9c] sm:$0xf]
        %v510 = vld [vmem:[%s2] sm:$0xf]
        %v511 = vld [vmem:[%s2 + $0x4] sm:$0xf]
        %v512 = vld [vmem:[%s2 + $0x8] sm:$0xf]
        %v513 = vld [vmem:[%s2 + $0xc] sm:$0xf]
        %v514 = vld [vmem:[%s2 + $0x10] sm:$0xf]
        %v515 = vld [vmem:[%s2 + $0x14] sm:$0xf]
        %v516 = vld [vmem:[%s2 + $0x18] sm:$0xf]
        %v517 = vld [vmem:[%s2 + $0x1c] sm:$0xf]
        %v518 = vld [vmem:[%s2 + $0x20] sm:$0xf]
        %v519 = vld [vmem:[%s2 + $0x24] sm:$0xf]
        %v520 = vld [vmem:[%s2 + $0x28] sm:$0xf]
        %v521 = vld [vmem:[%s2 + $0x2c] sm:$0xf]
        %v522 = vld [vmem:[%s2 + $0x30] sm:$0xf]
        %v523 = vld [vmem:[%s2 + $0x34] sm:$0xf]
        %v524 = vld [vmem:[%s2 + $0x38] sm:$0xf]
        %v525 = vld [vmem:[%s2 + $0x3c] sm:$0xf]
        %v526 = vld [vmem:[%s2 + $0x40] sm:$0xf]
        %v527 = vld [vmem:[%s2 + $0x44] sm:$0xf]
        %v528 = vld [vmem:[%s2 + $0x48] sm:$0xf]
        %v529 = vld [vmem:[%s2 + $0x4c] sm:$0xf]
        %v530 = vld [vmem:[%s2 + $0x50] sm:$0xf]
        %v531 = vld [vmem:[%s2 + $0x54] sm:$0xf]
        %v532 = vld [vmem:[%s2 + $0x58] sm:$0xf]
        %v533 = vld [vmem:[%s2 + $0x5c] sm:$0xf]
        %v534 = vld [vmem:[%s2 + $0x60] sm:$0xf]
        %v535 = vld [vmem:[%s2 + $0x64] sm:$0xf]
        %v536 = vld [vmem:[%s2 + $0x68] sm:$0xf]
        %v537 = vld [vmem:[%s2 + $0x6c] sm:$0xf]
        %v538 = vld [vmem:[%s2 + $0x70] sm:$0xf]
        %v539 = vld [vmem:[%s2 + $0x74] sm:$0xf]
        %v540 = vld [vmem:[%s2 + $0x78] sm:$0xf]
        %v541 = vld [vmem:[%s2 + $0x7c] sm:$0xf]
        %v542 = vld [vmem:[%s2 + $0x80] sm:$0xf]
        %v543 = vld [vmem:[%s2 + $0x84] sm:$0xf]
        %v544 = vld [vmem:[%s2 + $0x88] sm:$0xf]
        %v545 = vld [vmem:[%s2 + $0x8c] sm:$0xf]
        %v546 = vld [vmem:[%s2 + $0x90] sm:$0xf]
        %v547 = vld [vmem:[%s2 + $0x94] sm:$0xf]
        %v548 = vld [vmem:[%s2 + $0x98] sm:$0xf]
        %v549 = vld [vmem:[%s2 + $0x9c] sm:$0xf]
        %v550 = vld [vmem:[%s2 + $0xa0] sm:$0xf]
        %v551 = vld [vmem:[%s2 + $0xa4] sm:$0xf]
        %v552 = vld [vmem:[%s2 + $0xa8] sm:$0xf]
        %v553 = vld [vmem:[%s2 + $0xac] sm:$0xf]
        %v554 = vld [vmem:[%s2 + $0xb0] sm:$0xf]
        %v555 = vld [vmem:[%s2 + $0xb4] sm:$0xf]
        %v556 = vld [vmem:[%s2 + $0xb8] sm:$0xf]
        %v557 = vld [vmem:[%s2 + $0xbc] sm:$0xf]
        %v558 = vld [vmem:[%s2 + $0xc0] sm:$0xf]
        %v559 = vld [vmem:[%s2 + $0xc4] sm:$0xf]
        %v560 = vld [vmem:[%s2 + $0xc8] sm:$0xf]
        %v561 = vld [vmem:[%s2 + $0xcc] sm:$0xf]
        %v562 = vld [vmem:[%s2 + $0xd0] sm:$0xf]
        %v563 = vld [vmem:[%s2 + $0xd4] sm:$0xf]
        %v564 = vld [vmem:[%s2 + $0xd8] sm:$0xf]
        %v565 = vld [vmem:[%s2 + $0xdc] sm:$0xf]
        %v566 = vld [vmem:[%s2 + $0xe0] sm:$0xf]
        %v567 = vld [vmem:[%s2 + $0xe4] sm:$0xf]
        %v568 = vld [vmem:[%s2 + $0xe8] sm:$0xf]
        %v569 = vld [vmem:[%s2 + $0xec] sm:$0xf]
        %v570 = vld [vmem:[%s2 + $0xf0] sm:$0xf]
        %v571 = vld [vmem:[%s2 + $0xf4] sm:$0xf]
        %v572 = vld [vmem:[%s2 + $0xf8] sm:$0xf]
        %v573 = vld [vmem:[%s2 + $0xfc] sm:$0xf]
        %v574 = vld [vmem:[%s2 + $0x100] sm:$0xf]
        %v575 = vld [vmem:[%s2 + $0x104] sm:$0xf]
        %v576 = vld [vmem:[%s2 + $0x108] sm:$0xf]
        %v577 = vld [vmem:[%s2 + $0x10c] sm:$0xf]
        %v578 = vld [vmem:[%s2 + $0x110] sm:$0xf]
        %v579 = vld [vmem:[%s2 + $0x114] sm:$0xf]
        %v580 = vld [vmem:[%s2 + $0x118] sm:$0xf]
        %v581 = vld [vmem:[%s2 + $0x11c] sm:$0xf]
        %v582 = vld [vmem:[%s3] sm:$0x1]
        %v584 = vlaneseq
        %v585 = vshrl.u32 %v584, 7
        %v586 = vsub.s32 0, %v585
        %v587 = vrot.slane %v582, %v586
        %v613 = vunpack.c.l.b16 %v486
        %v614 = vunpack.c.h.b16 %v486
        %v615 = vunpack.c.l.b16 %v487
        %v616 = vunpack.c.h.b16 %v487
        %v617 = vunpack.c.l.b16 %v488
        %v618 = vunpack.c.l.b16 %v489
        %v619 = vunpack.c.h.b16 %v489
        %v620 = vunpack.c.l.b16 %v490
        %v621 = vunpack.c.h.b16 %v490
        %v622 = vunpack.c.l.b16 %v491
        %v623 = vunpack.c.l.b16 %v492
        %v624 = vunpack.c.h.b16 %v492
        %v625 = vunpack.c.l.b16 %v493
        %v626 = vunpack.c.h.b16 %v493
        %v627 = vunpack.c.l.b16 %v494
        %v628 = vunpack.c.l.b16 %v495
        %v629 = vunpack.c.h.b16 %v495
        %v630 = vunpack.c.l.b16 %v496
        %v631 = vunpack.c.h.b16 %v496
        %v632 = vunpack.c.l.b16 %v497
        %v633 = vunpack.c.l.b16 %v498
        %v634 = vunpack.c.h.b16 %v498
        %v635 = vunpack.c.l.b16 %v499
        %v636 = vunpack.c.h.b16 %v499
        %v637 = vunpack.c.l.b16 %v500
        %v638 = vunpack.c.l.b16 %v501
        %v639 = vunpack.c.h.b16 %v501
        %v640 = vunpack.c.l.b16 %v502
        %v641 = vunpack.c.h.b16 %v502
        %v642 = vunpack.c.l.b16 %v503
        %v643 = vunpack.c.l.b16 %v504
        %v644 = vunpack.c.h.b16 %v504
        %v645 = vunpack.c.l.b16 %v505
        %v646 = vunpack.c.h.b16 %v505
        %v647 = vunpack.c.l.b16 %v506
        %v648 = vunpack.c.l.b16 %v507
        %v649 = vunpack.c.h.b16 %v507
        %v650 = vunpack.c.l.b16 %v508
        %v651 = vunpack.c.h.b16 %v508
        %v652 = vunpack.c.l.b16 %v509
        %v653 = vpack.c.b16 %v618, %v613
        %v654 = vpack.c.b16 %v619, %v614
        %v655 = vpack.c.b16 %v620, %v615
        %v656 = vpack.c.b16 %v621, %v616
        %v657 = vpack.c.b16 %v622, %v617
        %v658 = vpack.c.b16 %v628, %v623
        %v659 = vpack.c.b16 %v629, %v624
        %v660 = vpack.c.b16 %v630, %v625
        %v661 = vpack.c.b16 %v631, %v626
        %v662 = vpack.c.b16 %v632, %v627
        %v663 = vpack.c.b16 %v638, %v633
        %v664 = vpack.c.b16 %v639, %v634
        %v665 = vpack.c.b16 %v640, %v635
        %v666 = vpack.c.b16 %v641, %v636
        %v667 = vpack.c.b16 %v642, %v637
        %v668 = vpack.c.b16 %v648, %v643
        %v669 = vpack.c.b16 %v649, %v644
        %v670 = vpack.c.b16 %v650, %v645
        %v671 = vpack.c.b16 %v651, %v646
        %v672 = vpack.c.b16 %v652, %v647
        %v761 = vunpack.c.l.b16 %v510
        %v762 = vunpack.c.l.b16 %v511
        %v763 = vunpack.c.l.b16 %v512
        %v764 = vunpack.c.l.b16 %v513
        %v765 = vunpack.c.l.b16 %v514
        %v766 = vunpack.c.l.b16 %v515
        %v767 = vunpack.c.l.b16 %v516
        %v768 = vunpack.c.l.b16 %v517
        %v769 = vunpack.c.l.b16 %v518
        %v770 = vunpack.c.l.b16 %v519
        %v771 = vunpack.c.l.b16 %v520
        %v772 = vunpack.c.l.b16 %v521
        %v773 = vunpack.c.l.b16 %v522
        %v774 = vunpack.c.l.b16 %v523
        %v775 = vunpack.c.l.b16 %v524
        %v776 = vunpack.c.l.b16 %v525
        %v777 = vunpack.c.l.b16 %v526
        %v778 = vunpack.c.l.b16 %v527
        %v779 = vunpack.c.l.b16 %v528
        %v780 = vunpack.c.l.b16 %v529
        %v781 = vunpack.c.l.b16 %v530
        %v782 = vunpack.c.l.b16 %v531
        %v783 = vunpack.c.l.b16 %v532
        %v784 = vunpack.c.l.b16 %v533
        %v785 = vunpack.c.l.b16 %v534
        %v786 = vunpack.c.l.b16 %v535
        %v787 = vunpack.c.l.b16 %v536
        %v788 = vunpack.c.l.b16 %v537
        %v789 = vunpack.c.l.b16 %v538
        %v790 = vunpack.c.l.b16 %v539
        %v791 = vunpack.c.l.b16 %v540
        %v792 = vunpack.c.l.b16 %v541
        %v793 = vunpack.c.l.b16 %v542
        %v794 = vunpack.c.l.b16 %v543
        %v795 = vunpack.c.l.b16 %v544
        %v796 = vunpack.c.l.b16 %v545
        %v797 = vunpack.c.l.b16 %v546
        %v798 = vunpack.c.l.b16 %v547
        %v799 = vunpack.c.l.b16 %v548
        %v800 = vunpack.c.l.b16 %v549
        %v801 = vunpack.c.l.b16 %v550
        %v802 = vunpack.c.l.b16 %v551
        %v803 = vunpack.c.l.b16 %v552
        %v804 = vunpack.c.l.b16 %v553
        %v805 = vunpack.c.l.b16 %v554
        %v806 = vunpack.c.l.b16 %v555
        %v807 = vunpack.c.l.b16 %v556
        %v808 = vunpack.c.l.b16 %v557
        %v809 = vunpack.c.l.b16 %v558
        %v810 = vunpack.c.l.b16 %v559
        %v811 = vunpack.c.l.b16 %v560
        %v812 = vunpack.c.l.b16 %v561
        %v813 = vunpack.c.l.b16 %v562
        %v814 = vunpack.c.l.b16 %v563
        %v815 = vunpack.c.l.b16 %v564
        %v816 = vunpack.c.l.b16 %v565
        %v817 = vunpack.c.l.b16 %v566
        %v818 = vunpack.c.l.b16 %v567
        %v819 = vunpack.c.l.b16 %v568
        %v820 = vunpack.c.l.b16 %v569
        %v821 = vunpack.c.l.b16 %v570
        %v822 = vunpack.c.l.b16 %v571
        %v823 = vunpack.c.l.b16 %v572
        %v824 = vunpack.c.l.b16 %v573
        %v825 = vunpack.c.l.b16 %v574
        %v826 = vunpack.c.l.b16 %v575
        %v827 = vunpack.c.l.b16 %v576
        %v828 = vunpack.c.l.b16 %v577
        %v829 = vunpack.c.l.b16 %v578
        %v830 = vunpack.c.l.b16 %v579
        %v831 = vunpack.c.l.b16 %v580
        %v832 = vunpack.c.l.b16 %v581
        %v833 = vpack.c.b16 %v762, %v761
        %v834 = vpack.c.b16 %v764, %v763
        %v835 = vpack.c.b16 %v766, %v765
        %v836 = vpack.c.b16 %v768, %v767
        %v837 = vpack.c.b16 %v770, %v769
        %v838 = vpack.c.b16 %v772, %v771
        %v839 = vpack.c.b16 %v774, %v773
        %v840 = vpack.c.b16 %v776, %v775
        %v841 = vpack.c.b16 %v778, %v777
        %v842 = vpack.c.b16 %v780, %v779
        %v843 = vpack.c.b16 %v782, %v781
        %v844 = vpack.c.b16 %v784, %v783
        %v845 = vpack.c.b16 %v786, %v785
        %v846 = vpack.c.b16 %v788, %v787
        %v847 = vpack.c.b16 %v790, %v789
        %v848 = vpack.c.b16 %v792, %v791
        %v849 = vpack.c.b16 %v794, %v793
        %v850 = vpack.c.b16 %v796, %v795
        %v851 = vpack.c.b16 %v798, %v797
        %v852 = vpack.c.b16 %v800, %v799
        %v853 = vpack.c.b16 %v802, %v801
        %v854 = vpack.c.b16 %v804, %v803
        %v855 = vpack.c.b16 %v806, %v805
        %v856 = vpack.c.b16 %v808, %v807
        %v857 = vpack.c.b16 %v810, %v809
        %v858 = vpack.c.b16 %v812, %v811
        %v859 = vpack.c.b16 %v814, %v813
        %v860 = vpack.c.b16 %v816, %v815
        %v861 = vpack.c.b16 %v818, %v817
        %v862 = vpack.c.b16 %v820, %v819
        %v863 = vpack.c.b16 %v822, %v821
        %v864 = vpack.c.b16 %v824, %v823
        %v865 = vpack.c.b16 %v826, %v825
        %v866 = vpack.c.b16 %v828, %v827
        %v867 = vpack.c.b16 %v830, %v829
        %v868 = vpack.c.b16 %v832, %v831
        %vm905 = vcmask 523264
        %v907 = vsel %vm905, %v657, 0
        %v910 = vsel %vm905, %v662, 0
        %v913 = vsel %vm905, %v667, 0
        %v916 = vsel %vm905, %v672, 0
        %918 = vmatprep.subr.bf16.mxu0 0
        %919 = vmatpush1.bf16.msra.mxu0 %v833
        %920 = vmatprep.subr.bf16.mxu0 0
        %921 = vmatpush1.bf16.msra.mxu0 %v834
        %922 = vmatprep.subr.bf16.mxu0 0
        %923 = vmatpush1.bf16.msra.mxu0 %v835
        %924 = vmatprep.subr.bf16.mxu0 0
        %925 = vmatpush1.bf16.msra.mxu0 %v836
        %926 = vmatprep.subr.bf16.mxu0 0
        %927 = vmatpush1.bf16.msra.mxu0 %v837
        %928 = vmatprep.subr.bf16.mxu0 0
        %929 = vmatpush1.bf16.msra.mxu0 %v838
        %930 = vmatprep.subr.bf16.mxu0 0
        %931 = vmatpush1.bf16.msra.mxu0 %v839
        %932 = vmatprep.subr.bf16.mxu0 0
        %933 = vmatpush1.bf16.msra.mxu0 %v840
        %934 = vmatprep.subr.bf16.mxu0 0
        %935 = vmatpush1.bf16.msra.mxu0 %v841
        %936 = vmatprep.subr.bf16.mxu0 0
        %937 = vmatpush1.bf16.msra.mxu0 %v842
        %938 = vmatprep.subr.bf16.mxu0 0
        %939 = vmatpush1.bf16.msra.mxu0 %v843
        %940 = vmatprep.subr.bf16.mxu0 0
        %941 = vmatpush1.bf16.msra.mxu0 %v844
        %942 = vmatprep.subr.bf16.mxu0 0
        %943 = vmatpush1.bf16.msra.mxu0 %v845
        %944 = vmatprep.subr.bf16.mxu0 0
        %945 = vmatpush1.bf16.msra.mxu0 %v846
        %946 = vmatprep.subr.bf16.mxu0 0
        %947 = vmatpush1.bf16.msra.mxu0 %v847
        %948 = vmatprep.subr.bf16.mxu0 0
        %949 = vmatpush1.bf16.msra.mxu0 %v848
        %950 = vmatprep.mubr.bf16.mxu0 %v654
        %951 = vmatmul.mubr.bf16.gmra.mrb[0].mxu0 %v653
        %v952 = vpop.f32.mrb[0].mxu0
        %v953 = vadd.f32 %v587, %v952
        %v954 = vpop.f32.mrb[0].mxu0
        %v955 = vpop.f32.mrb[0].mxu0
        %v956 = vadd.f32 %v587, %v955
        %v957 = vpop.f32.mrb[0].mxu0
        %958 = vmatprep.mubr.bf16.mxu0 %v659
        %959 = vmatmul.mubr.bf16.gmra.mrb[0].mxu0 %v658
        %v960 = vpop.f32.mrb[0].mxu0
        %v961 = vadd.f32 %v587, %v960
        %v962 = vpop.f32.mrb[0].mxu0
        %v963 = vpop.f32.mrb[0].mxu0
        %v964 = vadd.f32 %v587, %v963
        %v965 = vpop.f32.mrb[0].mxu0
        %966 = vmatprep.mubr.bf16.mxu0 %v664
        %967 = vmatmul.mubr.bf16.gmra.mrb[0].mxu0 %v663
        %v968 = vpop.f32.mrb[0].mxu0
        %v969 = vadd.f32 %v587, %v968
        %v970 = vpop.f32.mrb[0].mxu0
        %v971 = vpop.f32.mrb[0].mxu0
        %v972 = vadd.f32 %v587, %v971
        %v973 = vpop.f32.mrb[0].mxu0
        %974 = vmatprep.mubr.bf16.mxu0 %v669
        %975 = vmatmul.mubr.bf16.gmra.mrb[0].mxu0 %v668
        %v976 = vpop.f32.mrb[0].mxu0
        %v977 = vadd.f32 %v587, %v976
        %v978 = vpop.f32.mrb[0].mxu0
        %v979 = vpop.f32.mrb[0].mxu0
        %v980 = vadd.f32 %v587, %v979
        %v981 = vpop.f32.mrb[0].mxu0
        %982 = vdwg.mxu0
        %983 = vmatprep.subr.bf16.mxu0 0
        %984 = vmatpush1.bf16.msra.mxu0 %v849
        %985 = vmatprep.subr.bf16.mxu0 0
        %986 = vmatpush1.bf16.msra.mxu0 %v850
        %987 = vmatprep.subr.bf16.mxu0 0
        %988 = vmatpush1.bf16.msra.mxu0 %v851
        %989 = vmatprep.subr.bf16.mxu0 0
        %990 = vmatpush1.bf16.msra.mxu0 %v852
        %991 = vmatprep.subr.bf16.mxu0 0
        %992 = vmatpush1.bf16.msra.mxu0 %v853
        %993 = vmatprep.subr.bf16.mxu0 0
        %994 = vmatpush1.bf16.msra.mxu0 %v854
        %995 = vmatprep.subr.bf16.mxu0 0
        %996 = vmatpush1.bf16.msra.mxu0 %v855
        %997 = vmatprep.subr.bf16.mxu0 0
        %998 = vmatpush1.bf16.msra.mxu0 %v856
        %999 = vmatprep.subr.bf16.mxu0 0
        %1000 = vmatpush1.bf16.msra.mxu0 %v857
        %1001 = vmatprep.subr.bf16.mxu0 0
        %1002 = vmatpush1.bf16.msra.mxu0 %v858
        %1003 = vmatprep.subr.bf16.mxu0 0
        %1004 = vmatpush1.bf16.msra.mxu0 %v859
        %1005 = vmatprep.subr.bf16.mxu0 0
        %1006 = vmatpush1.bf16.msra.mxu0 %v860
        %1007 = vmatprep.subr.bf16.mxu0 0
        %1008 = vmatpush1.bf16.msra.mxu0 %v861
        %1009 = vmatprep.subr.bf16.mxu0 0
        %1010 = vmatpush1.bf16.msra.mxu0 %v862
        %1011 = vmatprep.subr.bf16.mxu0 0
        %1012 = vmatpush1.bf16.msra.mxu0 %v863
        %1013 = vmatprep.subr.bf16.mxu0 0
        %1014 = vmatpush1.bf16.msra.mxu0 %v864
        %1015 = vmatprep.mubr.bf16.mxu0 %v656
        %1016 = vmatmul.mubr.bf16.gmra.mrb[0].mxu0 %v655
        %v1017 = vpop.f32.mrb[0].mxu0
        %v1018 = vadd.f32 %v953, %v1017
        %v1019 = vpop.f32.mrb[0].mxu0
        %v1020 = vpop.f32.mrb[0].mxu0
        %v1021 = vadd.f32 %v956, %v1020
        %v1022 = vpop.f32.mrb[0].mxu0
        %1023 = vmatprep.mubr.bf16.mxu0 %v661
        %1024 = vmatmul.mubr.bf16.gmra.mrb[0].mxu0 %v660
        %v1025 = vpop.f32.mrb[0].mxu0
        %v1026 = vadd.f32 %v961, %v1025
        %v1027 = vpop.f32.mrb[0].mxu0
        %v1028 = vpop.f32.mrb[0].mxu0
        %v1029 = vadd.f32 %v964, %v1028
        %v1030 = vpop.f32.mrb[0].mxu0
        %1031 = vmatprep.mubr.bf16.mxu0 %v666
        %1032 = vmatmul.mubr.bf16.gmra.mrb[0].mxu0 %v665
        %v1033 = vpop.f32.mrb[0].mxu0
        %v1034 = vadd.f32 %v969, %v1033
        %v1035 = vpop.f32.mrb[0].mxu0
        %v1036 = vpop.f32.mrb[0].mxu0
        %v1037 = vadd.f32 %v972, %v1036
        %v1038 = vpop.f32.mrb[0].mxu0
        %1039 = vmatprep.mubr.bf16.mxu0 %v671
        %1040 = vmatmul.mubr.bf16.gmra.mrb[0].mxu0 %v670
        %v1041 = vpop.f32.mrb[0].mxu0
        %v1042 = vadd.f32 %v977, %v1041
        %v1043 = vpop.f32.mrb[0].mxu0
        %v1044 = vpop.f32.mrb[0].mxu0
        %v1045 = vadd.f32 %v980, %v1044
        %v1046 = vpop.f32.mrb[0].mxu0
        %1047 = vdwg.mxu0
        %1048 = vmatprep.subr.bf16.mxu0 0
        %1049 = vmatpush1.bf16.msra.mxu0 %v865
        %1050 = vmatprep.subr.bf16.mxu0 0
        %1051 = vmatpush1.bf16.msra.mxu0 %v866
        %1052 = vmatprep.subr.bf16.mxu0 0
        %1053 = vmatpush1.bf16.msra.mxu0 %v867
        %1054 = vmatprep.subr.bf16.mxu0 0
        %1055 = vmatpush1.bf16.msra.mxu0 %v868
        %1056 = vmatprep.subr.bf16.mxu0 0
        %1057 = vmatpush1.bf16.msra.mxu0 0
        %1058 = vmatprep.subr.bf16.mxu0 0
        %1059 = vmatpush1.bf16.msra.mxu0 0
        %1060 = vmatprep.subr.bf16.mxu0 0
        %1061 = vmatpush1.bf16.msra.mxu0 0
        %1062 = vmatprep.subr.bf16.mxu0 0
        %1063 = vmatpush1.bf16.msra.mxu0 0
        %1064 = vmatprep.subr.bf16.mxu0 0
        %1065 = vmatpush1.bf16.msra.mxu0 0
        %1066 = vmatprep.subr.bf16.mxu0 0
        %1067 = vmatpush1.bf16.msra.mxu0 0
        %1068 = vmatprep.subr.bf16.mxu0 0
        %1069 = vmatpush1.bf16.msra.mxu0 0
        %1070 = vmatprep.subr.bf16.mxu0 0
        %1071 = vmatpush1.bf16.msra.mxu0 0
        %1072 = vmatprep.subr.bf16.mxu0 0
        %1073 = vmatpush1.bf16.msra.mxu0 0
        %1074 = vmatprep.subr.bf16.mxu0 0
        %1075 = vmatpush1.bf16.msra.mxu0 0
        %1076 = vmatprep.subr.bf16.mxu0 0
        %1077 = vmatpush1.bf16.msra.mxu0 0
        %1078 = vmatprep.subr.bf16.mxu0 0
        %1079 = vmatpush1.bf16.msra.mxu0 0
        %1080 = vmatprep.mubr.bf16.mxu0 0
        %1081 = vmatmul.mubr.bf16.gmra.mrb[0].mxu0 %v907
        %v1082 = vpop.f32.mrb[0].mxu0
        %v1083 = vadd.f32 %v1018, %v1082
        %v1084 = vpop.f32.mrb[0].mxu0
        %v1085 = vpop.f32.mrb[0].mxu0
        %v1086 = vadd.f32 %v1021, %v1085
        %v1087 = vpop.f32.mrb[0].mxu0
        %1088 = vmatprep.mubr.bf16.mxu0 0
        %1089 = vmatmul.mubr.bf16.gmra.mrb[0].mxu0 %v910
        %v1090 = vpop.f32.mrb[0].mxu0
        %v1091 = vadd.f32 %v1026, %v1090
        %v1092 = vpop.f32.mrb[0].mxu0
        %v1093 = vpop.f32.mrb[0].mxu0
        %v1094 = vadd.f32 %v1029, %v1093
        %v1095 = vpop.f32.mrb[0].mxu0
        %1096 = vmatprep.mubr.bf16.mxu0 0
        %1097 = vmatmul.mubr.bf16.gmra.mrb[0].mxu0 %v913
        %v1098 = vpop.f32.mrb[0].mxu0
        %v1099 = vadd.f32 %v1034, %v1098
        %v1100 = vpop.f32.mrb[0].mxu0
        %v1101 = vpop.f32.mrb[0].mxu0
        %v1102 = vadd.f32 %v1037, %v1101
        %v1103 = vpop.f32.mrb[0].mxu0
        %1104 = vmatprep.mubr.bf16.mxu0 0
        %1105 = vmatmul.mubr.bf16.gmra.mrb[0].mxu0 %v916
        %v1106 = vpop.f32.mrb[0].mxu0
        %v1107 = vadd.f32 %v1042, %v1106
        %v1108 = vpop.f32.mrb[0].mxu0
        %v1109 = vpop.f32.mrb[0].mxu0
        %v1110 = vadd.f32 %v1045, %v1109
        %v1111 = vpop.f32.mrb[0].mxu0
        %1112 = vdwg.mxu0
        %v1113 = vmax.f32 %v1083, 0.0
        %v1114 = vmax.f32 %v1086, 0.0
        %v1115 = vmax.f32 %v1091, 0.0
        %v1116 = vmax.f32 %v1094, 0.0
        %v1117 = vmax.f32 %v1099, 0.0
        %v1118 = vmax.f32 %v1102, 0.0
        %v1119 = vmax.f32 %v1107, 0.0
        %v1120 = vmax.f32 %v1110, 0.0
        %v1121 = vlaneseq
        %v1122 = vshrl.u32 %v1121, 7
        %v1123 = vadd.s32 %v1122, 8
        %v1124 = vadd.s32 %v1122, 16
        %v1125 = vadd.s32 %v1122, 24
        %v1126 = vadd.s32 %v1122, 32
        %v1127 = vadd.s32 %v1122, 40
        %v1128 = vadd.s32 %v1122, 48
        %v1129 = vadd.s32 %v1122, 56
        %vm1130 = vcmp.lt.s32.totalorder %v1122, 0
        %v1131 = vsub.s32 0, %v1122
        %v1132 = vsel %vm1130, %v1131, %v1122
        %v1133 = vshrl.u32 %v1132, 3
        %v1134 = vand.u32 %v1132, 7
        %v1135 = vsub.s32 0, %v1134
        %v1136 = vsel %vm1130, %v1135, %v1134
        %vm1137 = vcmp.lt.s32.totalorder %v1123, 0
        %v1138 = vsub.s32 0, %v1123
        %v1139 = vsel %vm1137, %v1138, %v1123
        %v1140 = vshrl.u32 %v1139, 3
        %v1141 = vand.u32 %v1139, 7
        %v1142 = vsub.s32 0, %v1141
        %v1143 = vsel %vm1137, %v1142, %v1141
        %vm1144 = vcmp.lt.s32.totalorder %v1124, 0
        %v1145 = vsub.s32 0, %v1124
        %v1146 = vsel %vm1144, %v1145, %v1124
        %v1147 = vshrl.u32 %v1146, 3
        %v1148 = vand.u32 %v1146, 7
        %v1149 = vsub.s32 0, %v1148
        %v1150 = vsel %vm1144, %v1149, %v1148
        %vm1151 = vcmp.lt.s32.totalorder %v1125, 0
        %v1152 = vsub.s32 0, %v1125
        %v1153 = vsel %vm1151, %v1152, %v1125
        %v1154 = vshrl.u32 %v1153, 3
        %v1155 = vand.u32 %v1153, 7
        %v1156 = vsub.s32 0, %v1155
        %v1157 = vsel %vm1151, %v1156, %v1155
        %vm1158 = vcmp.lt.s32.totalorder %v1126, 0
        %v1159 = vsub.s32 0, %v1126
        %v1160 = vsel %vm1158, %v1159, %v1126
        %v1161 = vshrl.u32 %v1160, 3
        %v1162 = vand.u32 %v1160, 7
        %v1163 = vsub.s32 0, %v1162
        %v1164 = vsel %vm1158, %v1163, %v1162
        %vm1165 = vcmp.lt.s32.totalorder %v1127, 0
        %v1166 = vsub.s32 0, %v1127
        %v1167 = vsel %vm1165, %v1166, %v1127
        %v1168 = vshrl.u32 %v1167, 3
        %v1169 = vand.u32 %v1167, 7
        %v1170 = vsub.s32 0, %v1169
        %v1171 = vsel %vm1165, %v1170, %v1169
        %vm1172 = vcmp.lt.s32.totalorder %v1128, 0
        %v1173 = vsub.s32 0, %v1128
        %v1174 = vsel %vm1172, %v1173, %v1128
        %v1175 = vshrl.u32 %v1174, 3
        %v1176 = vand.u32 %v1174, 7
        %v1177 = vsub.s32 0, %v1176
        %v1178 = vsel %vm1172, %v1177, %v1176
        %vm1179 = vcmp.lt.s32.totalorder %v1129, 0
        %v1180 = vsub.s32 0, %v1129
        %v1181 = vsel %vm1179, %v1180, %v1129
        %v1182 = vshrl.u32 %v1181, 3
        %v1183 = vand.u32 %v1181, 7
        %v1184 = vsub.s32 0, %v1183
        %v1185 = vsel %vm1179, %v1184, %v1183
        %vm1186 = vcmp.ne.s32.totalorder %v1136, 0
        %vm1187 = vcmp.ne.s32.totalorder %v1143, 0
        %vm1188 = vcmp.ne.s32.totalorder %v1150, 0
        %vm1189 = vcmp.ne.s32.totalorder %v1157, 0
        %vm1190 = vcmp.ne.s32.totalorder %v1164, 0
        %vm1191 = vcmp.ne.s32.totalorder %v1171, 0
        %vm1192 = vcmp.ne.s32.totalorder %v1178, 0
        %vm1193 = vcmp.ne.s32.totalorder %v1185, 0
        %vm1194 = vcmp.lt.s32.totalorder %v1136, 0
        %vm1195 = vcmp.lt.s32.totalorder %v1143, 0
        %vm1196 = vcmp.lt.s32.totalorder %v1150, 0
        %vm1197 = vcmp.lt.s32.totalorder %v1157, 0
        %vm1198 = vcmp.lt.s32.totalorder %v1164, 0
        %vm1199 = vcmp.lt.s32.totalorder %v1171, 0
        %vm1200 = vcmp.lt.s32.totalorder %v1178, 0
        %vm1201 = vcmp.lt.s32.totalorder %v1185, 0
        %vm1202 = vmand %vm1194, %vm1186
        %vm1203 = vmand %vm1195, %vm1187
        %vm1204 = vmand %vm1196, %vm1188
        %vm1205 = vmand %vm1197, %vm1189
        %vm1206 = vmand %vm1198, %vm1190
        %vm1207 = vmand %vm1199, %vm1191
        %vm1208 = vmand %vm1200, %vm1192
        %vm1209 = vmand %vm1201, %vm1193
        %v1210 = vadd.s32 %v1136, 8
        %v1211 = vadd.s32 %v1143, 8
        %v1212 = vadd.s32 %v1150, 8
        %v1213 = vadd.s32 %v1157, 8
        %v1214 = vadd.s32 %v1164, 8
        %v1215 = vadd.s32 %v1171, 8
        %v1216 = vadd.s32 %v1178, 8
        %v1217 = vadd.s32 %v1185, 8
        %v1218 = vsel %vm1202, %v1210, %v1136
        %v1219 = vsel %vm1203, %v1211, %v1143
        %v1220 = vsel %vm1204, %v1212, %v1150
        %v1221 = vsel %vm1205, %v1213, %v1157
        %v1222 = vsel %vm1206, %v1214, %v1164
        %v1223 = vsel %vm1207, %v1215, %v1171
        %v1224 = vsel %vm1208, %v1216, %v1178
        %v1225 = vsel %vm1209, %v1217, %v1185
        %vm1226 = vcmp.ne.s32.totalorder %v1218, 0
        %vm1227 = vcmp.ne.s32.totalorder %v1219, 0
        %vm1228 = vcmp.ne.s32.totalorder %v1220, 0
        %vm1229 = vcmp.ne.s32.totalorder %v1221, 0
        %vm1230 = vcmp.ne.s32.totalorder %v1222, 0
        %vm1231 = vcmp.ne.s32.totalorder %v1223, 0
        %vm1232 = vcmp.ne.s32.totalorder %v1224, 0
        %vm1233 = vcmp.ne.s32.totalorder %v1225, 0
        %v1234 = vrot.slane %v1113, 7
        %v1235 = vrot.slane %v1114, 7
        %v1236 = vrot.slane %v1115, 7
        %v1237 = vrot.slane %v1116, 7
        %v1238 = vrot.slane %v1117, 7
        %v1239 = vrot.slane %v1118, 7
        %v1240 = vrot.slane %v1119, 7
        %v1241 = vrot.slane %v1120, 7
        %vm1242 = vcmp.lt.s32.totalorder %v1122, 1
        %v1243 = vsel %vm1242, %v1240, %v1241
        %v1244 = vsel %vm1242, %v1239, %v1240
        %v1245 = vsel %vm1242, %v1238, %v1239
        %v1246 = vsel %vm1242, %v1237, %v1238
        %v1247 = vsel %vm1242, %v1236, %v1237
        %v1248 = vsel %vm1242, %v1235, %v1236
        %v1249 = vsel %vm1242, %v1234, %v1235
        %v1250 = vsel %vm1242, %v1241, %v1234
        %v1251 = vsel %vm1226, %v1250, 0.0
        %v1252 = vsel %vm1227, %v1249, 0.0
        %v1253 = vsel %vm1228, %v1248, 0.0
        %v1254 = vsel %vm1229, %v1247, 0.0
        %v1255 = vsel %vm1230, %v1246, 0.0
        %v1256 = vsel %vm1231, %v1245, 0.0
        %v1257 = vsel %vm1232, %v1244, 0.0
        %v1258 = vsel %vm1233, %v1243, 0.0
        %vm1259 = vcmp.ne.s32.totalorder %v1218, 7
        %vm1260 = vcmp.ne.s32.totalorder %v1219, 7
        %vm1261 = vcmp.ne.s32.totalorder %v1220, 7
        %vm1262 = vcmp.ne.s32.totalorder %v1221, 7
        %vm1263 = vcmp.ne.s32.totalorder %v1222, 7
        %vm1264 = vcmp.ne.s32.totalorder %v1223, 7
        %vm1265 = vcmp.ne.s32.totalorder %v1224, 7
        %vm1266 = vcmp.ne.s32.totalorder %v1225, 7
        %v1267 = vrot.slane %v1113, 1
        %v1268 = vrot.slane %v1114, 1
        %v1269 = vrot.slane %v1115, 1
        %v1270 = vrot.slane %v1116, 1
        %v1271 = vrot.slane %v1117, 1
        %v1272 = vrot.slane %v1118, 1
        %v1273 = vrot.slane %v1119, 1
        %v1274 = vrot.slane %v1120, 1
        %vm1275 = vcmp.lt.s32.totalorder %v1122, 7
        %v1276 = vsel %vm1275, %v1273, %v1274
        %v1277 = vsel %vm1275, %v1272, %v1273
        %v1278 = vsel %vm1275, %v1271, %v1272
        %v1279 = vsel %vm1275, %v1270, %v1271
        %v1280 = vsel %vm1275, %v1269, %v1270
        %v1281 = vsel %vm1275, %v1268, %v1269
        %v1282 = vsel %vm1275, %v1267, %v1268
        %v1283 = vsel %vm1275, %v1274, %v1267
        %v1284 = vsel %vm1259, %v1282, 0.0
        %v1285 = vsel %vm1260, %v1281, 0.0
        %v1286 = vsel %vm1261, %v1280, 0.0
        %v1287 = vsel %vm1262, %v1279, 0.0
        %v1288 = vsel %vm1263, %v1278, 0.0
        %v1289 = vsel %vm1264, %v1277, 0.0
        %v1290 = vsel %vm1265, %v1276, 0.0
        %v1291 = vsel %vm1266, %v1283, 0.0
        %v1292 = vld [vmem:[%s5] sm:$0x1]
        %v1294 = vlaneseq
        %v1295 = vshrl.u32 %v1294, 7
        %v1296 = vsub.s32 0, %v1295
        %v1297 = vrot.slane %v1292, %v1296
        %v1299 = vpack.c.bf16 %v1251, 0.0
        %v1300 = vpack.c.bf16 %v1113, 0.0
        %v1301 = vpack.c.bf16 %v1284, 0.0
        %v1302 = vpack.c.bf16 %v1253, %v1252
        %v1303 = vpack.c.bf16 %v1115, %v1114
        %v1304 = vpack.c.bf16 %v1286, %v1285
        %v1305 = vpack.c.bf16 %v1255, %v1254
        %v1306 = vpack.c.bf16 %v1117, %v1116
        %v1307 = vpack.c.bf16 %v1288, %v1287
        %v1308 = vpack.c.bf16 %v1257, %v1256
        %v1309 = vpack.c.bf16 %v1119, %v1118
        %v1310 = vpack.c.bf16 %v1290, %v1289
        %v1311 = vld [vmem:[%s4] sm:$0xf]
        %v1312 = vld [vmem:[%s4 + $0x4] sm:$0xf]
        %v1313 = vld [vmem:[%s4 + $0x8] sm:$0xf]
        %v1314 = vld [vmem:[%s4 + $0xc] sm:$0xf]
        %v1315 = vld [vmem:[%s4 + $0x10] sm:$0xf]
        %v1316 = vld [vmem:[%s4 + $0x14] sm:$0xf]
        %v1317 = vld [vmem:[%s4 + $0x18] sm:$0xf]
        %v1318 = vld [vmem:[%s4 + $0x1c] sm:$0xf]
        %v1319 = vld [vmem:[%s4 + $0x20] sm:$0xf]
        %v1320 = vld [vmem:[%s4 + $0x24] sm:$0xf]
        %v1321 = vld [vmem:[%s4 + $0x28] sm:$0xf]
        %v1322 = vld [vmem:[%s4 + $0x2c] sm:$0xf]
        %v1323 = vld [vmem:[%s4 + $0x30] sm:$0xf]
        %v1324 = vld [vmem:[%s4 + $0x34] sm:$0xf]
        %v1325 = vld [vmem:[%s4 + $0x38] sm:$0xf]
        %v1326 = vld [vmem:[%s4 + $0x3c] sm:$0xf]
        %v1327 = vld [vmem:[%s4 + $0x40] sm:$0xf]
        %v1328 = vld [vmem:[%s4 + $0x44] sm:$0xf]
        %v1329 = vld [vmem:[%s4 + $0x48] sm:$0xf]
        %v1330 = vld [vmem:[%s4 + $0x4c] sm:$0xf]
        %v1331 = vld [vmem:[%s4 + $0x50] sm:$0xf]
        %v1332 = vld [vmem:[%s4 + $0x54] sm:$0xf]
        %v1333 = vld [vmem:[%s4 + $0x58] sm:$0xf]
        %v1334 = vld [vmem:[%s4 + $0x5c] sm:$0xf]
        %v1335 = vld [vmem:[%s4 + $0x60] sm:$0xf]
        %v1336 = vld [vmem:[%s4 + $0x64] sm:$0xf]
        %v1337 = vld [vmem:[%s4 + $0x68] sm:$0xf]
        %v1338 = vld [vmem:[%s4 + $0x6c] sm:$0xf]
        %v1339 = vld [vmem:[%s4 + $0x70] sm:$0xf]
        %v1340 = vld [vmem:[%s4 + $0x74] sm:$0xf]
        %v1341 = vld [vmem:[%s4 + $0x78] sm:$0xf]
        %v1342 = vld [vmem:[%s4 + $0x7c] sm:$0xf]
        %v1343 = vld [vmem:[%s4 + $0x80] sm:$0xf]
        %v1344 = vld [vmem:[%s4 + $0x84] sm:$0xf]
        %v1345 = vld [vmem:[%s4 + $0x88] sm:$0xf]
        %v1346 = vld [vmem:[%s4 + $0x8c] sm:$0xf]
        %v1347 = vld [vmem:[%s4 + $0x90] sm:$0xf]
        %v1348 = vld [vmem:[%s4 + $0x94] sm:$0xf]
        %v1349 = vld [vmem:[%s4 + $0x98] sm:$0xf]
        %v1350 = vld [vmem:[%s4 + $0x9c] sm:$0xf]
        %v1351 = vld [vmem:[%s4 + $0xa0] sm:$0xf]
        %v1352 = vld [vmem:[%s4 + $0xa4] sm:$0xf]
        %v1353 = vld [vmem:[%s4 + $0xa8] sm:$0xf]
        %v1354 = vld [vmem:[%s4 + $0xac] sm:$0xf]
        %v1355 = vld [vmem:[%s4 + $0xb0] sm:$0xf]
        %v1356 = vld [vmem:[%s4 + $0xb4] sm:$0xf]
        %v1357 = vld [vmem:[%s4 + $0xb8] sm:$0xf]
        %v1358 = vld [vmem:[%s4 + $0xbc] sm:$0xf]
        %v1407 = vunpack.c.l.b16 %v1311
        %v1408 = vunpack.c.l.b16 %v1312
        %v1409 = vunpack.c.l.b16 %v1313
        %v1410 = vunpack.c.l.b16 %v1314
        %v1411 = vunpack.c.l.b16 %v1315
        %v1412 = vunpack.c.l.b16 %v1316
        %v1413 = vunpack.c.l.b16 %v1317
        %v1414 = vunpack.c.l.b16 %v1318
        %v1415 = vunpack.c.l.b16 %v1319
        %v1416 = vunpack.c.l.b16 %v1320
        %v1417 = vunpack.c.l.b16 %v1321
        %v1418 = vunpack.c.l.b16 %v1322
        %v1419 = vunpack.c.l.b16 %v1323
        %v1420 = vunpack.c.l.b16 %v1324
        %v1421 = vunpack.c.l.b16 %v1325
        %v1422 = vunpack.c.l.b16 %v1326
        %v1423 = vunpack.c.l.b16 %v1327
        %v1424 = vunpack.c.l.b16 %v1328
        %v1425 = vunpack.c.l.b16 %v1329
        %v1426 = vunpack.c.l.b16 %v1330
        %v1427 = vunpack.c.l.b16 %v1331
        %v1428 = vunpack.c.l.b16 %v1332
        %v1429 = vunpack.c.l.b16 %v1333
        %v1430 = vunpack.c.l.b16 %v1334
        %v1431 = vunpack.c.l.b16 %v1335
        %v1432 = vunpack.c.l.b16 %v1336
        %v1433 = vunpack.c.l.b16 %v1337
        %v1434 = vunpack.c.l.b16 %v1338
        %v1435 = vunpack.c.l.b16 %v1339
        %v1436 = vunpack.c.l.b16 %v1340
        %v1437 = vunpack.c.l.b16 %v1341
        %v1438 = vunpack.c.l.b16 %v1342
        %v1439 = vunpack.c.l.b16 %v1343
        %v1440 = vunpack.c.l.b16 %v1344
        %v1441 = vunpack.c.l.b16 %v1345
        %v1442 = vunpack.c.l.b16 %v1346
        %v1443 = vunpack.c.l.b16 %v1347
        %v1444 = vunpack.c.l.b16 %v1348
        %v1445 = vunpack.c.l.b16 %v1349
        %v1446 = vunpack.c.l.b16 %v1350
        %v1447 = vunpack.c.l.b16 %v1351
        %v1448 = vunpack.c.l.b16 %v1352
        %v1449 = vunpack.c.l.b16 %v1353
        %v1450 = vunpack.c.l.b16 %v1354
        %v1451 = vunpack.c.l.b16 %v1355
        %v1452 = vunpack.c.l.b16 %v1356
        %v1453 = vunpack.c.l.b16 %v1357
        %v1454 = vunpack.c.l.b16 %v1358
        %v1455 = vpack.c.b16 %v1408, %v1407
        %v1456 = vpack.c.b16 %v1410, %v1409
        %v1457 = vpack.c.b16 %v1412, %v1411
        %v1458 = vpack.c.b16 %v1414, %v1413
        %v1459 = vpack.c.b16 %v1416, %v1415
        %v1460 = vpack.c.b16 %v1418, %v1417
        %v1461 = vpack.c.b16 %v1420, %v1419
        %v1462 = vpack.c.b16 %v1422, %v1421
        %v1463 = vpack.c.b16 %v1424, %v1423
        %v1464 = vpack.c.b16 %v1426, %v1425
        %v1465 = vpack.c.b16 %v1428, %v1427
        %v1466 = vpack.c.b16 %v1430, %v1429
        %v1467 = vpack.c.b16 %v1432, %v1431
        %v1468 = vpack.c.b16 %v1434, %v1433
        %v1469 = vpack.c.b16 %v1436, %v1435
        %v1470 = vpack.c.b16 %v1438, %v1437
        %v1471 = vpack.c.b16 %v1440, %v1439
        %v1472 = vpack.c.b16 %v1442, %v1441
        %v1473 = vpack.c.b16 %v1444, %v1443
        %v1474 = vpack.c.b16 %v1446, %v1445
        %v1475 = vpack.c.b16 %v1448, %v1447
        %v1476 = vpack.c.b16 %v1450, %v1449
        %v1477 = vpack.c.b16 %v1452, %v1451
        %v1478 = vpack.c.b16 %v1454, %v1453
        %1503 = vmatprep.subr.bf16.mxu0 0
        %1504 = vmatpush1.bf16.msra.mxu0 %v1455
        %1505 = vmatprep.subr.bf16.mxu0 0
        %1506 = vmatpush1.bf16.msra.mxu0 %v1456
        %1507 = vmatprep.subr.bf16.mxu0 0
        %1508 = vmatpush1.bf16.msra.mxu0 %v1457
        %1509 = vmatprep.subr.bf16.mxu0 0
        %1510 = vmatpush1.bf16.msra.mxu0 %v1458
        %1511 = vmatprep.subr.bf16.mxu0 0
        %1512 = vmatpush1.bf16.msra.mxu0 %v1459
        %1513 = vmatprep.subr.bf16.mxu0 0
        %1514 = vmatpush1.bf16.msra.mxu0 %v1460
        %1515 = vmatprep.subr.bf16.mxu0 0
        %1516 = vmatpush1.bf16.msra.mxu0 %v1461
        %1517 = vmatprep.subr.bf16.mxu0 0
        %1518 = vmatpush1.bf16.msra.mxu0 %v1462
        %1519 = vmatprep.subr.bf16.mxu0 0
        %1520 = vmatpush1.bf16.msra.mxu0 %v1463
        %1521 = vmatprep.subr.bf16.mxu0 0
        %1522 = vmatpush1.bf16.msra.mxu0 %v1464
        %1523 = vmatprep.subr.bf16.mxu0 0
        %1524 = vmatpush1.bf16.msra.mxu0 %v1465
        %1525 = vmatprep.subr.bf16.mxu0 0
        %1526 = vmatpush1.bf16.msra.mxu0 %v1466
        %1527 = vmatprep.subr.bf16.mxu0 0
        %1528 = vmatpush1.bf16.msra.mxu0 %v1467
        %1529 = vmatprep.subr.bf16.mxu0 0
        %1530 = vmatpush1.bf16.msra.mxu0 %v1468
        %1531 = vmatprep.subr.bf16.mxu0 0
        %1532 = vmatpush1.bf16.msra.mxu0 %v1469
        %1533 = vmatprep.subr.bf16.mxu0 0
        %1534 = vmatpush1.bf16.msra.mxu0 %v1470
        %1535 = vmatprep.mubr.bf16.mxu0 %v1300
        %1536 = vmatmul.mubr.bf16.gmra.mrb[0].mxu0 %v1299
        %v1537 = vpop.f32.mrb[0].mxu0
        %v1538 = vadd.f32 0.0, %v1537
        %v1539 = vpop.f32.mrb[0].mxu0
        %v1540 = vpop.f32.mrb[0].mxu0
        %v1541 = vadd.f32 0.0, %v1540
        %v1542 = vpop.f32.mrb[0].mxu0
        %1543 = vmatprep.mubr.bf16.mxu0 %v1303
        %1544 = vmatmul.mubr.bf16.gmra.mrb[0].mxu0 %v1302
        %v1545 = vpop.f32.mrb[0].mxu0
        %v1546 = vadd.f32 0.0, %v1545
        %v1547 = vpop.f32.mrb[0].mxu0
        %v1548 = vpop.f32.mrb[0].mxu0
        %v1549 = vadd.f32 0.0, %v1548
        %v1550 = vpop.f32.mrb[0].mxu0
        %1551 = vmatprep.mubr.bf16.mxu0 %v1306
        %1552 = vmatmul.mubr.bf16.gmra.mrb[0].mxu0 %v1305
        %v1553 = vpop.f32.mrb[0].mxu0
        %v1554 = vadd.f32 0.0, %v1553
        %v1555 = vpop.f32.mrb[0].mxu0
        %v1556 = vpop.f32.mrb[0].mxu0
        %v1557 = vadd.f32 0.0, %v1556
        %v1558 = vpop.f32.mrb[0].mxu0
        %1559 = vmatprep.mubr.bf16.mxu0 %v1309
        %1560 = vmatmul.mubr.bf16.gmra.mrb[0].mxu0 %v1308
        %v1561 = vpop.f32.mrb[0].mxu0
        %v1562 = vadd.f32 0.0, %v1561
        %v1563 = vpop.f32.mrb[0].mxu0
        %v1564 = vpop.f32.mrb[0].mxu0
        %v1565 = vadd.f32 0.0, %v1564
        %v1566 = vpop.f32.mrb[0].mxu0
        %1567 = vdwg.mxu0
        %1568 = vmatprep.subr.bf16.mxu0 0
        %1569 = vmatpush1.bf16.msra.mxu0 %v1471
        %1570 = vmatprep.subr.bf16.mxu0 0
        %1571 = vmatpush1.bf16.msra.mxu0 %v1472
        %1572 = vmatprep.subr.bf16.mxu0 0
        %1573 = vmatpush1.bf16.msra.mxu0 %v1473
        %1574 = vmatprep.subr.bf16.mxu0 0
        %1575 = vmatpush1.bf16.msra.mxu0 %v1474
        %1576 = vmatprep.subr.bf16.mxu0 0
        %1577 = vmatpush1.bf16.msra.mxu0 %v1475
        %1578 = vmatprep.subr.bf16.mxu0 0
        %1579 = vmatpush1.bf16.msra.mxu0 %v1476
        %1580 = vmatprep.subr.bf16.mxu0 0
        %1581 = vmatpush1.bf16.msra.mxu0 %v1477
        %1582 = vmatprep.subr.bf16.mxu0 0
        %1583 = vmatpush1.bf16.msra.mxu0 %v1478
        %1584 = vmatprep.subr.bf16.mxu0 0
        %1585 = vmatpush1.bf16.msra.mxu0 0
        %1586 = vmatprep.subr.bf16.mxu0 0
        %1587 = vmatpush1.bf16.msra.mxu0 0
        %1588 = vmatprep.subr.bf16.mxu0 0
        %1589 = vmatpush1.bf16.msra.mxu0 0
        %1590 = vmatprep.subr.bf16.mxu0 0
        %1591 = vmatpush1.bf16.msra.mxu0 0
        %1592 = vmatprep.subr.bf16.mxu0 0
        %1593 = vmatpush1.bf16.msra.mxu0 0
        %1594 = vmatprep.subr.bf16.mxu0 0
        %1595 = vmatpush1.bf16.msra.mxu0 0
        %1596 = vmatprep.subr.bf16.mxu0 0
        %1597 = vmatpush1.bf16.msra.mxu0 0
        %1598 = vmatprep.subr.bf16.mxu0 0
        %1599 = vmatpush1.bf16.msra.mxu0 0
        %1600 = vmatprep.mubr.bf16.mxu0 0
        %1601 = vmatmul.mubr.bf16.gmra.mrb[0].mxu0 %v1301
        %v1602 = vpop.f32.mrb[0].mxu0
        %v1603 = vadd.f32 %v1538, %v1602
        %v1604 = vpop.f32.mrb[0].mxu0
        %v1605 = vpop.f32.mrb[0].mxu0
        %v1606 = vadd.f32 %v1541, %v1605
        %v1607 = vpop.f32.mrb[0].mxu0
        %1608 = vmatprep.mubr.bf16.mxu0 0
        %1609 = vmatmul.mubr.bf16.gmra.mrb[0].mxu0 %v1304
        %v1610 = vpop.f32.mrb[0].mxu0
        %v1611 = vadd.f32 %v1546, %v1610
        %v1612 = vpop.f32.mrb[0].mxu0
        %v1613 = vpop.f32.mrb[0].mxu0
        %v1614 = vadd.f32 %v1549, %v1613
        %v1615 = vpop.f32.mrb[0].mxu0
        %1616 = vmatprep.mubr.bf16.mxu0 0
        %1617 = vmatmul.mubr.bf16.gmra.mrb[0].mxu0 %v1307
        %v1618 = vpop.f32.mrb[0].mxu0
        %v1619 = vadd.f32 %v1554, %v1618
        %v1620 = vpop.f32.mrb[0].mxu0
        %v1621 = vpop.f32.mrb[0].mxu0
        %v1622 = vadd.f32 %v1557, %v1621
        %v1623 = vpop.f32.mrb[0].mxu0
        %1624 = vmatprep.mubr.bf16.mxu0 0
        %1625 = vmatmul.mubr.bf16.gmra.mrb[0].mxu0 %v1310
        %v1626 = vpop.f32.mrb[0].mxu0
        %v1627 = vadd.f32 %v1562, %v1626
        %v1628 = vpop.f32.mrb[0].mxu0
        %v1629 = vpop.f32.mrb[0].mxu0
        %v1630 = vadd.f32 %v1565, %v1629
        %v1631 = vpop.f32.mrb[0].mxu0
        %1632 = vdwg.mxu0
        %v1633 = vadd.f32 %v1297, %v1603
        %v1634 = vadd.f32 %v1297, %v1606
        %v1635 = vadd.f32 %v1297, %v1611
        %v1636 = vadd.f32 %v1297, %v1614
        %v1637 = vadd.f32 %v1297, %v1619
        %v1638 = vadd.f32 %v1297, %v1622
        %v1639 = vadd.f32 %v1297, %v1627
        %v1640 = vadd.f32 %v1297, %v1630
        %v1641 = vpack.c.bf16 %v1252, %v1251
        %v1642 = vpack.c.bf16 %v1114, %v1113
        %v1643 = vpack.c.bf16 %v1285, %v1284
        %v1644 = vpack.c.bf16 %v1254, %v1253
        %v1645 = vpack.c.bf16 %v1116, %v1115
        %v1646 = vpack.c.bf16 %v1287, %v1286
        %v1647 = vpack.c.bf16 %v1256, %v1255
        %v1648 = vpack.c.bf16 %v1118, %v1117
        %v1649 = vpack.c.bf16 %v1289, %v1288
        %v1650 = vpack.c.bf16 %v1258, %v1257
        %v1651 = vpack.c.bf16 %v1120, %v1119
        %v1652 = vpack.c.bf16 %v1291, %v1290
        %s1653 = scalar_lea.vmem %s4, 192
        %v1654 = vld [vmem:[%s1653] sm:$0xf]
        %v1655 = vld [vmem:[%s1653 + $0x4] sm:$0xf]
        %v1656 = vld [vmem:[%s1653 + $0x8] sm:$0xf]
        %v1657 = vld [vmem:[%s1653 + $0xc] sm:$0xf]
        %v1658 = vld [vmem:[%s1653 + $0x10] sm:$0xf]
        %v1659 = vld [vmem:[%s1653 + $0x14] sm:$0xf]
        %v1660 = vld [vmem:[%s1653 + $0x18] sm:$0xf]
        %v1661 = vld [vmem:[%s1653 + $0x1c] sm:$0xf]
        %v1662 = vld [vmem:[%s1653 + $0x20] sm:$0xf]
        %v1663 = vld [vmem:[%s1653 + $0x24] sm:$0xf]
        %v1664 = vld [vmem:[%s1653 + $0x28] sm:$0xf]
        %v1665 = vld [vmem:[%s1653 + $0x2c] sm:$0xf]
        %v1666 = vld [vmem:[%s1653 + $0x30] sm:$0xf]
        %v1667 = vld [vmem:[%s1653 + $0x34] sm:$0xf]
        %v1668 = vld [vmem:[%s1653 + $0x38] sm:$0xf]
        %v1669 = vld [vmem:[%s1653 + $0x3c] sm:$0xf]
        %v1670 = vld [vmem:[%s1653 + $0x40] sm:$0xf]
        %v1671 = vld [vmem:[%s1653 + $0x44] sm:$0xf]
        %v1672 = vld [vmem:[%s1653 + $0x48] sm:$0xf]
        %v1673 = vld [vmem:[%s1653 + $0x4c] sm:$0xf]
        %v1674 = vld [vmem:[%s1653 + $0x50] sm:$0xf]
        %v1675 = vld [vmem:[%s1653 + $0x54] sm:$0xf]
        %v1676 = vld [vmem:[%s1653 + $0x58] sm:$0xf]
        %v1677 = vld [vmem:[%s1653 + $0x5c] sm:$0xf]
        %v1678 = vld [vmem:[%s1653 + $0x60] sm:$0xf]
        %v1679 = vld [vmem:[%s1653 + $0x64] sm:$0xf]
        %v1680 = vld [vmem:[%s1653 + $0x68] sm:$0xf]
        %v1681 = vld [vmem:[%s1653 + $0x6c] sm:$0xf]
        %v1682 = vld [vmem:[%s1653 + $0x70] sm:$0xf]
        %v1683 = vld [vmem:[%s1653 + $0x74] sm:$0xf]
        %v1684 = vld [vmem:[%s1653 + $0x78] sm:$0xf]
        %v1685 = vld [vmem:[%s1653 + $0x7c] sm:$0xf]
        %v1686 = vld [vmem:[%s1653 + $0x80] sm:$0xf]
        %v1687 = vld [vmem:[%s1653 + $0x84] sm:$0xf]
        %v1688 = vld [vmem:[%s1653 + $0x88] sm:$0xf]
        %v1689 = vld [vmem:[%s1653 + $0x8c] sm:$0xf]
        %v1690 = vld [vmem:[%s1653 + $0x90] sm:$0xf]
        %v1691 = vld [vmem:[%s1653 + $0x94] sm:$0xf]
        %v1692 = vld [vmem:[%s1653 + $0x98] sm:$0xf]
        %v1693 = vld [vmem:[%s1653 + $0x9c] sm:$0xf]
        %v1694 = vld [vmem:[%s1653 + $0xa0] sm:$0xf]
        %v1695 = vld [vmem:[%s1653 + $0xa4] sm:$0xf]
        %v1696 = vld [vmem:[%s1653 + $0xa8] sm:$0xf]
        %v1697 = vld [vmem:[%s1653 + $0xac] sm:$0xf]
        %v1698 = vld [vmem:[%s1653 + $0xb0] sm:$0xf]
        %v1699 = vld [vmem:[%s1653 + $0xb4] sm:$0xf]
        %v1700 = vld [vmem:[%s1653 + $0xb8] sm:$0xf]
        %v1701 = vld [vmem:[%s1653 + $0xbc] sm:$0xf]
        %v1750 = vunpack.c.l.b16 %v1654
        %v1751 = vunpack.c.l.b16 %v1655
        %v1752 = vunpack.c.l.b16 %v1656
        %v1753 = vunpack.c.l.b16 %v1657
        %v1754 = vunpack.c.l.b16 %v1658
        %v1755 = vunpack.c.l.b16 %v1659
        %v1756 = vunpack.c.l.b16 %v1660
        %v1757 = vunpack.c.l.b16 %v1661
        %v1758 = vunpack.c.l.b16 %v1662
        %v1759 = vunpack.c.l.b16 %v1663
        %v1760 = vunpack.c.l.b16 %v1664
        %v1761 = vunpack.c.l.b16 %v1665
        %v1762 = vunpack.c.l.b16 %v1666
        %v1763 = vunpack.c.l.b16 %v1667
        %v1764 = vunpack.c.l.b16 %v1668
        %v1765 = vunpack.c.l.b16 %v1669
        %v1766 = vunpack.c.l.b16 %v1670
        %v1767 = vunpack.c.l.b16 %v1671
        %v1768 = vunpack.c.l.b16 %v1672
        %v1769 = vunpack.c.l.b16 %v1673
        %v1770 = vunpack.c.l.b16 %v1674
        %v1771 = vunpack.c.l.b16 %v1675
        %v1772 = vunpack.c.l.b16 %v1676
        %v1773 = vunpack.c.l.b16 %v1677
        %v1774 = vunpack.c.l.b16 %v1678
        %v1775 = vunpack.c.l.b16 %v1679
        %v1776 = vunpack.c.l.b16 %v1680
        %v1777 = vunpack.c.l.b16 %v1681
        %v1778 = vunpack.c.l.b16 %v1682
        %v1779 = vunpack.c.l.b16 %v1683
        %v1780 = vunpack.c.l.b16 %v1684
        %v1781 = vunpack.c.l.b16 %v1685
        %v1782 = vunpack.c.l.b16 %v1686
        %v1783 = vunpack.c.l.b16 %v1687
        %v1784 = vunpack.c.l.b16 %v1688
        %v1785 = vunpack.c.l.b16 %v1689
        %v1786 = vunpack.c.l.b16 %v1690
        %v1787 = vunpack.c.l.b16 %v1691
        %v1788 = vunpack.c.l.b16 %v1692
        %v1789 = vunpack.c.l.b16 %v1693
        %v1790 = vunpack.c.l.b16 %v1694
        %v1791 = vunpack.c.l.b16 %v1695
        %v1792 = vunpack.c.l.b16 %v1696
        %v1793 = vunpack.c.l.b16 %v1697
        %v1794 = vunpack.c.l.b16 %v1698
        %v1795 = vunpack.c.l.b16 %v1699
        %v1796 = vunpack.c.l.b16 %v1700
        %v1797 = vunpack.c.l.b16 %v1701
        %v1798 = vpack.c.b16 %v1751, %v1750
        %v1799 = vpack.c.b16 %v1753, %v1752
        %v1800 = vpack.c.b16 %v1755, %v1754
        %v1801 = vpack.c.b16 %v1757, %v1756
        %v1802 = vpack.c.b16 %v1759, %v1758
        %v1803 = vpack.c.b16 %v1761, %v1760
        %v1804 = vpack.c.b16 %v1763, %v1762
        %v1805 = vpack.c.b16 %v1765, %v1764
        %v1806 = vpack.c.b16 %v1767, %v1766
        %v1807 = vpack.c.b16 %v1769, %v1768
        %v1808 = vpack.c.b16 %v1771, %v1770
        %v1809 = vpack.c.b16 %v1773, %v1772
        %v1810 = vpack.c.b16 %v1775, %v1774
        %v1811 = vpack.c.b16 %v1777, %v1776
        %v1812 = vpack.c.b16 %v1779, %v1778
        %v1813 = vpack.c.b16 %v1781, %v1780
        %v1814 = vpack.c.b16 %v1783, %v1782
        %v1815 = vpack.c.b16 %v1785, %v1784
        %v1816 = vpack.c.b16 %v1787, %v1786
        %v1817 = vpack.c.b16 %v1789, %v1788
        %v1818 = vpack.c.b16 %v1791, %v1790
        %v1819 = vpack.c.b16 %v1793, %v1792
        %v1820 = vpack.c.b16 %v1795, %v1794
        %v1821 = vpack.c.b16 %v1797, %v1796
        %1846 = vmatprep.subr.bf16.mxu0 0
        %1847 = vmatpush1.bf16.msra.mxu0 %v1798
        %1848 = vmatprep.subr.bf16.mxu0 0
        %1849 = vmatpush1.bf16.msra.mxu0 %v1799
        %1850 = vmatprep.subr.bf16.mxu0 0
        %1851 = vmatpush1.bf16.msra.mxu0 %v1800
        %1852 = vmatprep.subr.bf16.mxu0 0
        %1853 = vmatpush1.bf16.msra.mxu0 %v1801
        %1854 = vmatprep.subr.bf16.mxu0 0
        %1855 = vmatpush1.bf16.msra.mxu0 %v1802
        %1856 = vmatprep.subr.bf16.mxu0 0
        %1857 = vmatpush1.bf16.msra.mxu0 %v1803
        %1858 = vmatprep.subr.bf16.mxu0 0
        %1859 = vmatpush1.bf16.msra.mxu0 %v1804
        %1860 = vmatprep.subr.bf16.mxu0 0
        %1861 = vmatpush1.bf16.msra.mxu0 %v1805
        %1862 = vmatprep.subr.bf16.mxu0 0
        %1863 = vmatpush1.bf16.msra.mxu0 %v1806
        %1864 = vmatprep.subr.bf16.mxu0 0
        %1865 = vmatpush1.bf16.msra.mxu0 %v1807
        %1866 = vmatprep.subr.bf16.mxu0 0
        %1867 = vmatpush1.bf16.msra.mxu0 %v1808
        %1868 = vmatprep.subr.bf16.mxu0 0
        %1869 = vmatpush1.bf16.msra.mxu0 %v1809
        %1870 = vmatprep.subr.bf16.mxu0 0
        %1871 = vmatpush1.bf16.msra.mxu0 %v1810
        %1872 = vmatprep.subr.bf16.mxu0 0
        %1873 = vmatpush1.bf16.msra.mxu0 %v1811
        %1874 = vmatprep.subr.bf16.mxu0 0
        %1875 = vmatpush1.bf16.msra.mxu0 %v1812
        %1876 = vmatprep.subr.bf16.mxu0 0
        %1877 = vmatpush1.bf16.msra.mxu0 %v1813
        %1878 = vmatprep.mubr.bf16.mxu0 %v1642
        %1879 = vmatmul.mubr.bf16.gmra.mrb[0].mxu0 %v1641
        %v1880 = vpop.f32.mrb[0].mxu0
        %v1881 = vadd.f32 0.0, %v1880
        %v1882 = vpop.f32.mrb[0].mxu0
        %v1883 = vpop.f32.mrb[0].mxu0
        %v1884 = vadd.f32 0.0, %v1883
        %v1885 = vpop.f32.mrb[0].mxu0
        %1886 = vmatprep.mubr.bf16.mxu0 %v1645
        %1887 = vmatmul.mubr.bf16.gmra.mrb[0].mxu0 %v1644
        %v1888 = vpop.f32.mrb[0].mxu0
        %v1889 = vadd.f32 0.0, %v1888
        %v1890 = vpop.f32.mrb[0].mxu0
        %v1891 = vpop.f32.mrb[0].mxu0
        %v1892 = vadd.f32 0.0, %v1891
        %v1893 = vpop.f32.mrb[0].mxu0
        %1894 = vmatprep.mubr.bf16.mxu0 %v1648
        %1895 = vmatmul.mubr.bf16.gmra.mrb[0].mxu0 %v1647
        %v1896 = vpop.f32.mrb[0].mxu0
        %v1897 = vadd.f32 0.0, %v1896
        %v1898 = vpop.f32.mrb[0].mxu0
        %v1899 = vpop.f32.mrb[0].mxu0
        %v1900 = vadd.f32 0.0, %v1899
        %v1901 = vpop.f32.mrb[0].mxu0
        %1902 = vmatprep.mubr.bf16.mxu0 %v1651
        %1903 = vmatmul.mubr.bf16.gmra.mrb[0].mxu0 %v1650
        %v1904 = vpop.f32.mrb[0].mxu0
        %v1905 = vadd.f32 0.0, %v1904
        %v1906 = vpop.f32.mrb[0].mxu0
        %v1907 = vpop.f32.mrb[0].mxu0
        %v1908 = vadd.f32 0.0, %v1907
        %v1909 = vpop.f32.mrb[0].mxu0
        %1910 = vdwg.mxu0
        %1911 = vmatprep.subr.bf16.mxu0 0
        %1912 = vmatpush1.bf16.msra.mxu0 %v1814
        %1913 = vmatprep.subr.bf16.mxu0 0
        %1914 = vmatpush1.bf16.msra.mxu0 %v1815
        %1915 = vmatprep.subr.bf16.mxu0 0
        %1916 = vmatpush1.bf16.msra.mxu0 %v1816
        %1917 = vmatprep.subr.bf16.mxu0 0
        %1918 = vmatpush1.bf16.msra.mxu0 %v1817
        %1919 = vmatprep.subr.bf16.mxu0 0
        %1920 = vmatpush1.bf16.msra.mxu0 %v1818
        %1921 = vmatprep.subr.bf16.mxu0 0
        %1922 = vmatpush1.bf16.msra.mxu0 %v1819
        %1923 = vmatprep.subr.bf16.mxu0 0
        %1924 = vmatpush1.bf16.msra.mxu0 %v1820
        %1925 = vmatprep.subr.bf16.mxu0 0
        %1926 = vmatpush1.bf16.msra.mxu0 %v1821
        %1927 = vmatprep.subr.bf16.mxu0 0
        %1928 = vmatpush1.bf16.msra.mxu0 0
        %1929 = vmatprep.subr.bf16.mxu0 0
        %1930 = vmatpush1.bf16.msra.mxu0 0
        %1931 = vmatprep.subr.bf16.mxu0 0
        %1932 = vmatpush1.bf16.msra.mxu0 0
        %1933 = vmatprep.subr.bf16.mxu0 0
        %1934 = vmatpush1.bf16.msra.mxu0 0
        %1935 = vmatprep.subr.bf16.mxu0 0
        %1936 = vmatpush1.bf16.msra.mxu0 0
        %1937 = vmatprep.subr.bf16.mxu0 0
        %1938 = vmatpush1.bf16.msra.mxu0 0
        %1939 = vmatprep.subr.bf16.mxu0 0
        %1940 = vmatpush1.bf16.msra.mxu0 0
        %1941 = vmatprep.subr.bf16.mxu0 0
        %1942 = vmatpush1.bf16.msra.mxu0 0
        %1943 = vmatprep.mubr.bf16.mxu0 0
        %1944 = vmatmul.mubr.bf16.gmra.mrb[0].mxu0 %v1643
        %v1945 = vpop.f32.mrb[0].mxu0
        %v1946 = vadd.f32 %v1881, %v1945
        %v1947 = vpop.f32.mrb[0].mxu0
        %v1948 = vpop.f32.mrb[0].mxu0
        %v1949 = vadd.f32 %v1884, %v1948
        %v1950 = vpop.f32.mrb[0].mxu0
        %1951 = vmatprep.mubr.bf16.mxu0 0
        %1952 = vmatmul.mubr.bf16.gmra.mrb[0].mxu0 %v1646
        %v1953 = vpop.f32.mrb[0].mxu0
        %v1954 = vadd.f32 %v1889, %v1953
        %v1955 = vpop.f32.mrb[0].mxu0
        %v1956 = vpop.f32.mrb[0].mxu0
        %v1957 = vadd.f32 %v1892, %v1956
        %v1958 = vpop.f32.mrb[0].mxu0
        %1959 = vmatprep.mubr.bf16.mxu0 0
        %1960 = vmatmul.mubr.bf16.gmra.mrb[0].mxu0 %v1649
        %v1961 = vpop.f32.mrb[0].mxu0
        %v1962 = vadd.f32 %v1897, %v1961
        %v1963 = vpop.f32.mrb[0].mxu0
        %v1964 = vpop.f32.mrb[0].mxu0
        %v1965 = vadd.f32 %v1900, %v1964
        %v1966 = vpop.f32.mrb[0].mxu0
        %1967 = vmatprep.mubr.bf16.mxu0 0
        %1968 = vmatmul.mubr.bf16.gmra.mrb[0].mxu0 %v1652
        %v1969 = vpop.f32.mrb[0].mxu0
        %v1970 = vadd.f32 %v1905, %v1969
        %v1971 = vpop.f32.mrb[0].mxu0
        %v1972 = vpop.f32.mrb[0].mxu0
        %v1973 = vadd.f32 %v1908, %v1972
        %v1974 = vpop.f32.mrb[0].mxu0
        %1975 = vdwg.mxu0
        %v1976 = vadd.f32 %v1633, %v1946
        %v1977 = vadd.f32 %v1634, %v1949
        %v1978 = vadd.f32 %v1635, %v1954
        %v1979 = vadd.f32 %v1636, %v1957
        %v1980 = vadd.f32 %v1637, %v1962
        %v1981 = vadd.f32 %v1638, %v1965
        %v1982 = vadd.f32 %v1639, %v1970
        %v1983 = vadd.f32 %v1640, %v1973
        %v1984 = vpack.c.bf16 0.0, %v1258
        %v1985 = vpack.c.bf16 0.0, %v1120
        %v1986 = vpack.c.bf16 0.0, %v1291
        %s1987 = scalar_lea.vmem %s4, 384
        %v1988 = vld [vmem:[%s1987] sm:$0xf]
        %v1989 = vld [vmem:[%s1987 + $0x4] sm:$0xf]
        %v1990 = vld [vmem:[%s1987 + $0x8] sm:$0xf]
        %v1991 = vld [vmem:[%s1987 + $0xc] sm:$0xf]
        %v1992 = vld [vmem:[%s1987 + $0x10] sm:$0xf]
        %v1993 = vld [vmem:[%s1987 + $0x14] sm:$0xf]
        %v1994 = vld [vmem:[%s1987 + $0x18] sm:$0xf]
        %v1995 = vld [vmem:[%s1987 + $0x1c] sm:$0xf]
        %v1996 = vld [vmem:[%s1987 + $0x20] sm:$0xf]
        %v1997 = vld [vmem:[%s1987 + $0x24] sm:$0xf]
        %v1998 = vld [vmem:[%s1987 + $0x28] sm:$0xf]
        %v1999 = vld [vmem:[%s1987 + $0x2c] sm:$0xf]
        %v2000 = vld [vmem:[%s1987 + $0x30] sm:$0xf]
        %v2001 = vld [vmem:[%s1987 + $0x34] sm:$0xf]
        %v2002 = vld [vmem:[%s1987 + $0x38] sm:$0xf]
        %v2003 = vld [vmem:[%s1987 + $0x3c] sm:$0xf]
        %v2004 = vld [vmem:[%s1987 + $0x40] sm:$0xf]
        %v2005 = vld [vmem:[%s1987 + $0x44] sm:$0xf]
        %v2006 = vld [vmem:[%s1987 + $0x48] sm:$0xf]
        %v2007 = vld [vmem:[%s1987 + $0x4c] sm:$0xf]
        %v2008 = vld [vmem:[%s1987 + $0x50] sm:$0xf]
        %v2009 = vld [vmem:[%s1987 + $0x54] sm:$0xf]
        %v2010 = vld [vmem:[%s1987 + $0x58] sm:$0xf]
        %v2011 = vld [vmem:[%s1987 + $0x5c] sm:$0xf]
        %v2012 = vld [vmem:[%s1987 + $0x60] sm:$0xf]
        %v2013 = vld [vmem:[%s1987 + $0x64] sm:$0xf]
        %v2014 = vld [vmem:[%s1987 + $0x68] sm:$0xf]
        %v2015 = vld [vmem:[%s1987 + $0x6c] sm:$0xf]
        %v2016 = vld [vmem:[%s1987 + $0x70] sm:$0xf]
        %v2017 = vld [vmem:[%s1987 + $0x74] sm:$0xf]
        %v2018 = vld [vmem:[%s1987 + $0x78] sm:$0xf]
        %v2019 = vld [vmem:[%s1987 + $0x7c] sm:$0xf]
        %v2020 = vld [vmem:[%s1987 + $0x80] sm:$0xf]
        %v2021 = vld [vmem:[%s1987 + $0x84] sm:$0xf]
        %v2022 = vld [vmem:[%s1987 + $0x88] sm:$0xf]
        %v2023 = vld [vmem:[%s1987 + $0x8c] sm:$0xf]
        %v2024 = vld [vmem:[%s1987 + $0x90] sm:$0xf]
        %v2025 = vld [vmem:[%s1987 + $0x94] sm:$0xf]
        %v2026 = vld [vmem:[%s1987 + $0x98] sm:$0xf]
        %v2027 = vld [vmem:[%s1987 + $0x9c] sm:$0xf]
        %v2028 = vld [vmem:[%s1987 + $0xa0] sm:$0xf]
        %v2029 = vld [vmem:[%s1987 + $0xa4] sm:$0xf]
        %v2030 = vld [vmem:[%s1987 + $0xa8] sm:$0xf]
        %v2031 = vld [vmem:[%s1987 + $0xac] sm:$0xf]
        %v2032 = vld [vmem:[%s1987 + $0xb0] sm:$0xf]
        %v2033 = vld [vmem:[%s1987 + $0xb4] sm:$0xf]
        %v2034 = vld [vmem:[%s1987 + $0xb8] sm:$0xf]
        %v2035 = vld [vmem:[%s1987 + $0xbc] sm:$0xf]
        %v2084 = vunpack.c.l.b16 %v1988
        %v2085 = vunpack.c.l.b16 %v1989
        %v2086 = vunpack.c.l.b16 %v1990
        %v2087 = vunpack.c.l.b16 %v1991
        %v2088 = vunpack.c.l.b16 %v1992
        %v2089 = vunpack.c.l.b16 %v1993
        %v2090 = vunpack.c.l.b16 %v1994
        %v2091 = vunpack.c.l.b16 %v1995
        %v2092 = vunpack.c.l.b16 %v1996
        %v2093 = vunpack.c.l.b16 %v1997
        %v2094 = vunpack.c.l.b16 %v1998
        %v2095 = vunpack.c.l.b16 %v1999
        %v2096 = vunpack.c.l.b16 %v2000
        %v2097 = vunpack.c.l.b16 %v2001
        %v2098 = vunpack.c.l.b16 %v2002
        %v2099 = vunpack.c.l.b16 %v2003
        %v2100 = vunpack.c.l.b16 %v2004
        %v2101 = vunpack.c.l.b16 %v2005
        %v2102 = vunpack.c.l.b16 %v2006
        %v2103 = vunpack.c.l.b16 %v2007
        %v2104 = vunpack.c.l.b16 %v2008
        %v2105 = vunpack.c.l.b16 %v2009
        %v2106 = vunpack.c.l.b16 %v2010
        %v2107 = vunpack.c.l.b16 %v2011
        %v2108 = vunpack.c.l.b16 %v2012
        %v2109 = vunpack.c.l.b16 %v2013
        %v2110 = vunpack.c.l.b16 %v2014
        %v2111 = vunpack.c.l.b16 %v2015
        %v2112 = vunpack.c.l.b16 %v2016
        %v2113 = vunpack.c.l.b16 %v2017
        %v2114 = vunpack.c.l.b16 %v2018
        %v2115 = vunpack.c.l.b16 %v2019
        %v2116 = vunpack.c.l.b16 %v2020
        %v2117 = vunpack.c.l.b16 %v2021
        %v2118 = vunpack.c.l.b16 %v2022
        %v2119 = vunpack.c.l.b16 %v2023
        %v2120 = vunpack.c.l.b16 %v2024
        %v2121 = vunpack.c.l.b16 %v2025
        %v2122 = vunpack.c.l.b16 %v2026
        %v2123 = vunpack.c.l.b16 %v2027
        %v2124 = vunpack.c.l.b16 %v2028
        %v2125 = vunpack.c.l.b16 %v2029
        %v2126 = vunpack.c.l.b16 %v2030
        %v2127 = vunpack.c.l.b16 %v2031
        %v2128 = vunpack.c.l.b16 %v2032
        %v2129 = vunpack.c.l.b16 %v2033
        %v2130 = vunpack.c.l.b16 %v2034
        %v2131 = vunpack.c.l.b16 %v2035
        %v2132 = vpack.c.b16 %v2085, %v2084
        %v2133 = vpack.c.b16 %v2087, %v2086
        %v2134 = vpack.c.b16 %v2089, %v2088
        %v2135 = vpack.c.b16 %v2091, %v2090
        %v2136 = vpack.c.b16 %v2093, %v2092
        %v2137 = vpack.c.b16 %v2095, %v2094
        %v2138 = vpack.c.b16 %v2097, %v2096
        %v2139 = vpack.c.b16 %v2099, %v2098
        %v2140 = vpack.c.b16 %v2101, %v2100
        %v2141 = vpack.c.b16 %v2103, %v2102
        %v2142 = vpack.c.b16 %v2105, %v2104
        %v2143 = vpack.c.b16 %v2107, %v2106
        %v2144 = vpack.c.b16 %v2109, %v2108
        %v2145 = vpack.c.b16 %v2111, %v2110
        %v2146 = vpack.c.b16 %v2113, %v2112
        %v2147 = vpack.c.b16 %v2115, %v2114
        %v2148 = vpack.c.b16 %v2117, %v2116
        %v2149 = vpack.c.b16 %v2119, %v2118
        %v2150 = vpack.c.b16 %v2121, %v2120
        %v2151 = vpack.c.b16 %v2123, %v2122
        %v2152 = vpack.c.b16 %v2125, %v2124
        %v2153 = vpack.c.b16 %v2127, %v2126
        %v2154 = vpack.c.b16 %v2129, %v2128
        %v2155 = vpack.c.b16 %v2131, %v2130
        %2180 = vmatprep.subr.bf16.mxu0 0
        %2181 = vmatpush1.bf16.msra.mxu0 %v2132
        %2182 = vmatprep.subr.bf16.mxu0 0
        %2183 = vmatpush1.bf16.msra.mxu0 %v2133
        %2184 = vmatprep.subr.bf16.mxu0 0
        %2185 = vmatpush1.bf16.msra.mxu0 %v2134
        %2186 = vmatprep.subr.bf16.mxu0 0
        %2187 = vmatpush1.bf16.msra.mxu0 %v2135
        %2188 = vmatprep.subr.bf16.mxu0 0
        %2189 = vmatpush1.bf16.msra.mxu0 %v2136
        %2190 = vmatprep.subr.bf16.mxu0 0
        %2191 = vmatpush1.bf16.msra.mxu0 %v2137
        %2192 = vmatprep.subr.bf16.mxu0 0
        %2193 = vmatpush1.bf16.msra.mxu0 %v2138
        %2194 = vmatprep.subr.bf16.mxu0 0
        %2195 = vmatpush1.bf16.msra.mxu0 %v2139
        %2196 = vmatprep.subr.bf16.mxu0 0
        %2197 = vmatpush1.bf16.msra.mxu0 %v2140
        %2198 = vmatprep.subr.bf16.mxu0 0
        %2199 = vmatpush1.bf16.msra.mxu0 %v2141
        %2200 = vmatprep.subr.bf16.mxu0 0
        %2201 = vmatpush1.bf16.msra.mxu0 %v2142
        %2202 = vmatprep.subr.bf16.mxu0 0
        %2203 = vmatpush1.bf16.msra.mxu0 %v2143
        %2204 = vmatprep.subr.bf16.mxu0 0
        %2205 = vmatpush1.bf16.msra.mxu0 %v2144
        %2206 = vmatprep.subr.bf16.mxu0 0
        %2207 = vmatpush1.bf16.msra.mxu0 %v2145
        %2208 = vmatprep.subr.bf16.mxu0 0
        %2209 = vmatpush1.bf16.msra.mxu0 %v2146
        %2210 = vmatprep.subr.bf16.mxu0 0
        %2211 = vmatpush1.bf16.msra.mxu0 %v2147
        %2212 = vmatprep.mubr.bf16.mxu0 %v1303
        %2213 = vmatmul.mubr.bf16.gmra.mrb[0].mxu0 %v1302
        %v2214 = vpop.f32.mrb[0].mxu0
        %v2215 = vadd.f32 0.0, %v2214
        %v2216 = vpop.f32.mrb[0].mxu0
        %v2217 = vpop.f32.mrb[0].mxu0
        %v2218 = vadd.f32 0.0, %v2217
        %v2219 = vpop.f32.mrb[0].mxu0
        %2220 = vmatprep.mubr.bf16.mxu0 %v1306
        %2221 = vmatmul.mubr.bf16.gmra.mrb[0].mxu0 %v1305
        %v2222 = vpop.f32.mrb[0].mxu0
        %v2223 = vadd.f32 0.0, %v2222
        %v2224 = vpop.f32.mrb[0].mxu0
        %v2225 = vpop.f32.mrb[0].mxu0
        %v2226 = vadd.f32 0.0, %v2225
        %v2227 = vpop.f32.mrb[0].mxu0
        %2228 = vmatprep.mubr.bf16.mxu0 %v1309
        %2229 = vmatmul.mubr.bf16.gmra.mrb[0].mxu0 %v1308
        %v2230 = vpop.f32.mrb[0].mxu0
        %v2231 = vadd.f32 0.0, %v2230
        %v2232 = vpop.f32.mrb[0].mxu0
        %v2233 = vpop.f32.mrb[0].mxu0
        %v2234 = vadd.f32 0.0, %v2233
        %v2235 = vpop.f32.mrb[0].mxu0
        %2236 = vmatprep.mubr.bf16.mxu0 %v1985
        %2237 = vmatmul.mubr.bf16.gmra.mrb[0].mxu0 %v1984
        %v2238 = vpop.f32.mrb[0].mxu0
        %v2239 = vadd.f32 0.0, %v2238
        %v2240 = vpop.f32.mrb[0].mxu0
        %v2241 = vpop.f32.mrb[0].mxu0
        %v2242 = vadd.f32 0.0, %v2241
        %v2243 = vpop.f32.mrb[0].mxu0
        %2244 = vdwg.mxu0
        %2245 = vmatprep.subr.bf16.mxu0 0
        %2246 = vmatpush1.bf16.msra.mxu0 %v2148
        %2247 = vmatprep.subr.bf16.mxu0 0
        %2248 = vmatpush1.bf16.msra.mxu0 %v2149
        %2249 = vmatprep.subr.bf16.mxu0 0
        %2250 = vmatpush1.bf16.msra.mxu0 %v2150
        %2251 = vmatprep.subr.bf16.mxu0 0
        %2252 = vmatpush1.bf16.msra.mxu0 %v2151
        %2253 = vmatprep.subr.bf16.mxu0 0
        %2254 = vmatpush1.bf16.msra.mxu0 %v2152
        %2255 = vmatprep.subr.bf16.mxu0 0
        %2256 = vmatpush1.bf16.msra.mxu0 %v2153
        %2257 = vmatprep.subr.bf16.mxu0 0
        %2258 = vmatpush1.bf16.msra.mxu0 %v2154
        %2259 = vmatprep.subr.bf16.mxu0 0
        %2260 = vmatpush1.bf16.msra.mxu0 %v2155
        %2261 = vmatprep.subr.bf16.mxu0 0
        %2262 = vmatpush1.bf16.msra.mxu0 0
        %2263 = vmatprep.subr.bf16.mxu0 0
        %2264 = vmatpush1.bf16.msra.mxu0 0
        %2265 = vmatprep.subr.bf16.mxu0 0
        %2266 = vmatpush1.bf16.msra.mxu0 0
        %2267 = vmatprep.subr.bf16.mxu0 0
        %2268 = vmatpush1.bf16.msra.mxu0 0
        %2269 = vmatprep.subr.bf16.mxu0 0
        %2270 = vmatpush1.bf16.msra.mxu0 0
        %2271 = vmatprep.subr.bf16.mxu0 0
        %2272 = vmatpush1.bf16.msra.mxu0 0
        %2273 = vmatprep.subr.bf16.mxu0 0
        %2274 = vmatpush1.bf16.msra.mxu0 0
        %2275 = vmatprep.subr.bf16.mxu0 0
        %2276 = vmatpush1.bf16.msra.mxu0 0
        %2277 = vmatprep.mubr.bf16.mxu0 0
        %2278 = vmatmul.mubr.bf16.gmra.mrb[0].mxu0 %v1304
        %v2279 = vpop.f32.mrb[0].mxu0
        %v2280 = vadd.f32 %v2215, %v2279
        %v2281 = vpop.f32.mrb[0].mxu0
        %v2282 = vpop.f32.mrb[0].mxu0
        %v2283 = vadd.f32 %v2218, %v2282
        %v2284 = vpop.f32.mrb[0].mxu0
        %2285 = vmatprep.mubr.bf16.mxu0 0
        %2286 = vmatmul.mubr.bf16.gmra.mrb[0].mxu0 %v1307
        %v2287 = vpop.f32.mrb[0].mxu0
        %v2288 = vadd.f32 %v2223, %v2287
        %v2289 = vpop.f32.mrb[0].mxu0
        %v2290 = vpop.f32.mrb[0].mxu0
        %v2291 = vadd.f32 %v2226, %v2290
        %v2292 = vpop.f32.mrb[0].mxu0
        %2293 = vmatprep.mubr.bf16.mxu0 0
        %2294 = vmatmul.mubr.bf16.gmra.mrb[0].mxu0 %v1310
        %v2295 = vpop.f32.mrb[0].mxu0
        %v2296 = vadd.f32 %v2231, %v2295
        %v2297 = vpop.f32.mrb[0].mxu0
        %v2298 = vpop.f32.mrb[0].mxu0
        %v2299 = vadd.f32 %v2234, %v2298
        %v2300 = vpop.f32.mrb[0].mxu0
        %2301 = vmatprep.mubr.bf16.mxu0 0
        %2302 = vmatmul.mubr.bf16.gmra.mrb[0].mxu0 %v1986
        %v2303 = vpop.f32.mrb[0].mxu0
        %v2304 = vadd.f32 %v2239, %v2303
        %v2305 = vpop.f32.mrb[0].mxu0
        %v2306 = vpop.f32.mrb[0].mxu0
        %v2307 = vadd.f32 %v2242, %v2306
        %v2308 = vpop.f32.mrb[0].mxu0
        %2309 = vdwg.mxu0
        %v2310 = vadd.f32 %v1976, %v2280
        %v2311 = vadd.f32 %v1977, %v2283
        %v2312 = vadd.f32 %v1978, %v2288
        %v2313 = vadd.f32 %v1979, %v2291
        %v2314 = vadd.f32 %v1980, %v2296
        %v2315 = vadd.f32 %v1981, %v2299
        %v2316 = vadd.f32 %v1982, %v2304
        %v2317 = vadd.f32 %v1983, %v2307
        %v2318 = vld [vmem:[%s484] sm:$0xf]
        %v2319 = vld [vmem:[%s484 + $0x4] sm:$0xf]
        %v2320 = vld [vmem:[%s484 + $0x8] sm:$0xf]
        %v2321 = vld [vmem:[%s484 + $0xc] sm:$0xf]
        %v2322 = vld [vmem:[%s484 + $0x10] sm:$0xf]
        %v2323 = vld [vmem:[%s484 + $0x14] sm:$0xf]
        %v2324 = vld [vmem:[%s484 + $0x18] sm:$0xf]
        %v2325 = vld [vmem:[%s484 + $0x1c] sm:$0xf]
        %v2326 = vld [vmem:[%s6] sm:$0xf]
        %v2327 = vld [vmem:[%s6 + $0x4] sm:$0xf]
        %v2328 = vld [vmem:[%s6 + $0x8] sm:$0xf]
        %v2329 = vld [vmem:[%s6 + $0xc] sm:$0xf]
        %v2330 = vld [vmem:[%s6 + $0x10] sm:$0xf]
        %v2331 = vld [vmem:[%s6 + $0x14] sm:$0xf]
        %v2332 = vld [vmem:[%s6 + $0x18] sm:$0xf]
        %v2333 = vld [vmem:[%s6 + $0x1c] sm:$0xf]
        %v2334 = vld [vmem:[%s7] sm:$0x1]
        %v2336 = vlaneseq
        %v2337 = vshrl.u32 %v2336, 7
        %v2338 = vsub.s32 0, %v2337
        %v2339 = vrot.slane %v2334, %v2338
        %v2349 = vunpack.c.l.b16 %v2318
        %v2350 = vunpack.c.l.b16 %v2319
        %v2351 = vunpack.c.l.b16 %v2320
        %v2352 = vunpack.c.l.b16 %v2321
        %v2353 = vunpack.c.l.b16 %v2322
        %v2354 = vunpack.c.l.b16 %v2323
        %v2355 = vunpack.c.l.b16 %v2324
        %v2356 = vunpack.c.l.b16 %v2325
        %v2357 = vpack.c.b16 %v2350, %v2349
        %v2358 = vpack.c.b16 %v2352, %v2351
        %v2359 = vpack.c.b16 %v2354, %v2353
        %v2360 = vpack.c.b16 %v2356, %v2355
        %v2369 = vunpack.c.l.b16 %v2326
        %v2370 = vunpack.c.l.b16 %v2327
        %v2371 = vunpack.c.l.b16 %v2328
        %v2372 = vunpack.c.l.b16 %v2329
        %v2373 = vunpack.c.l.b16 %v2330
        %v2374 = vunpack.c.l.b16 %v2331
        %v2375 = vunpack.c.l.b16 %v2332
        %v2376 = vunpack.c.l.b16 %v2333
        %v2377 = vpack.c.b16 %v2370, %v2369
        %v2378 = vpack.c.b16 %v2372, %v2371
        %v2379 = vpack.c.b16 %v2374, %v2373
        %v2380 = vpack.c.b16 %v2376, %v2375
        %v2386 = vsel %vm905, %v2357, 0
        %v2389 = vsel %vm905, %v2358, 0
        %v2392 = vsel %vm905, %v2359, 0
        %v2395 = vsel %vm905, %v2360, 0
        %2397 = vmatprep.subr.bf16.mxu0 0
        %2398 = vmatpush1.bf16.msra.mxu0 %v2377
        %2399 = vmatprep.subr.bf16.mxu0 0
        %2400 = vmatpush1.bf16.msra.mxu0 %v2378
        %2401 = vmatprep.subr.bf16.mxu0 0
        %2402 = vmatpush1.bf16.msra.mxu0 %v2379
        %2403 = vmatprep.subr.bf16.mxu0 0
        %2404 = vmatpush1.bf16.msra.mxu0 %v2380
        %2405 = vmatprep.subr.bf16.mxu0 0
        %2406 = vmatpush1.bf16.msra.mxu0 0
        %2407 = vmatprep.subr.bf16.mxu0 0
        %2408 = vmatpush1.bf16.msra.mxu0 0
        %2409 = vmatprep.subr.bf16.mxu0 0
        %2410 = vmatpush1.bf16.msra.mxu0 0
        %2411 = vmatprep.subr.bf16.mxu0 0
        %2412 = vmatpush1.bf16.msra.mxu0 0
        %2413 = vmatprep.subr.bf16.mxu0 0
        %2414 = vmatpush1.bf16.msra.mxu0 0
        %2415 = vmatprep.subr.bf16.mxu0 0
        %2416 = vmatpush1.bf16.msra.mxu0 0
        %2417 = vmatprep.subr.bf16.mxu0 0
        %2418 = vmatpush1.bf16.msra.mxu0 0
        %2419 = vmatprep.subr.bf16.mxu0 0
        %2420 = vmatpush1.bf16.msra.mxu0 0
        %2421 = vmatprep.subr.bf16.mxu0 0
        %2422 = vmatpush1.bf16.msra.mxu0 0
        %2423 = vmatprep.subr.bf16.mxu0 0
        %2424 = vmatpush1.bf16.msra.mxu0 0
        %2425 = vmatprep.subr.bf16.mxu0 0
        %2426 = vmatpush1.bf16.msra.mxu0 0
        %2427 = vmatprep.subr.bf16.mxu0 0
        %2428 = vmatpush1.bf16.msra.mxu0 0
        %2429 = vmatprep.mubr.bf16.mxu0 0
        %2430 = vmatmul.mubr.bf16.gmra.mrb[0].mxu0 %v2386
        %v2431 = vpop.f32.mrb[0].mxu0
        %v2432 = vadd.f32 %v2339, %v2431
        %v2433 = vpop.f32.mrb[0].mxu0
        %v2434 = vpop.f32.mrb[0].mxu0
        %v2435 = vadd.f32 %v2339, %v2434
        %v2436 = vpop.f32.mrb[0].mxu0
        %2437 = vmatprep.mubr.bf16.mxu0 0
        %2438 = vmatmul.mubr.bf16.gmra.mrb[0].mxu0 %v2389
        %v2439 = vpop.f32.mrb[0].mxu0
        %v2440 = vadd.f32 %v2339, %v2439
        %v2441 = vpop.f32.mrb[0].mxu0
        %v2442 = vpop.f32.mrb[0].mxu0
        %v2443 = vadd.f32 %v2339, %v2442
        %v2444 = vpop.f32.mrb[0].mxu0
        %2445 = vmatprep.mubr.bf16.mxu0 0
        %2446 = vmatmul.mubr.bf16.gmra.mrb[0].mxu0 %v2392
        %v2447 = vpop.f32.mrb[0].mxu0
        %v2448 = vadd.f32 %v2339, %v2447
        %v2449 = vpop.f32.mrb[0].mxu0
        %v2450 = vpop.f32.mrb[0].mxu0
        %v2451 = vadd.f32 %v2339, %v2450
        %v2452 = vpop.f32.mrb[0].mxu0
        %2453 = vmatprep.mubr.bf16.mxu0 0
        %2454 = vmatmul.mubr.bf16.gmra.mrb[0].mxu0 %v2395
        %v2455 = vpop.f32.mrb[0].mxu0
        %v2456 = vadd.f32 %v2339, %v2455
        %v2457 = vpop.f32.mrb[0].mxu0
        %v2458 = vpop.f32.mrb[0].mxu0
        %v2459 = vadd.f32 %v2339, %v2458
        %v2460 = vpop.f32.mrb[0].mxu0
        %2461 = vdwg.mxu0
        %v2462 = vadd.f32 %v2310, %v2432
        %v2463 = vadd.f32 %v2311, %v2435
        %v2464 = vadd.f32 %v2312, %v2440
        %v2465 = vadd.f32 %v2313, %v2443
        %v2466 = vadd.f32 %v2314, %v2448
        %v2467 = vadd.f32 %v2315, %v2451
        %v2468 = vadd.f32 %v2316, %v2456
        %v2469 = vadd.f32 %v2317, %v2459
        %v2470 = vmax.f32 %v2462, 0.0
        %v2471 = vmax.f32 %v2463, 0.0
        %v2472 = vmax.f32 %v2464, 0.0
        %v2473 = vmax.f32 %v2465, 0.0
        %v2474 = vmax.f32 %v2466, 0.0
        %v2475 = vmax.f32 %v2467, 0.0
        %v2476 = vmax.f32 %v2468, 0.0
        %v2477 = vmax.f32 %v2469, 0.0
        %v2478 = vrot.slane %v2470, 7
        %v2479 = vrot.slane %v2471, 7
        %v2480 = vrot.slane %v2472, 7
        %v2481 = vrot.slane %v2473, 7
        %v2482 = vrot.slane %v2474, 7
        %v2483 = vrot.slane %v2475, 7
        %v2484 = vrot.slane %v2476, 7
        %v2485 = vrot.slane %v2477, 7
        %v2486 = vsel %vm1242, %v2484, %v2485
        %v2487 = vsel %vm1242, %v2483, %v2484
        %v2488 = vsel %vm1242, %v2482, %v2483
        %v2489 = vsel %vm1242, %v2481, %v2482
        %v2490 = vsel %vm1242, %v2480, %v2481
        %v2491 = vsel %vm1242, %v2479, %v2480
        %v2492 = vsel %vm1242, %v2478, %v2479
        %v2493 = vsel %vm1242, %v2485, %v2478
        %v2494 = vsel %vm1226, %v2493, 0.0
        %v2495 = vsel %vm1227, %v2492, 0.0
        %v2496 = vsel %vm1228, %v2491, 0.0
        %v2497 = vsel %vm1229, %v2490, 0.0
        %v2498 = vsel %vm1230, %v2489, 0.0
        %v2499 = vsel %vm1231, %v2488, 0.0
        %v2500 = vsel %vm1232, %v2487, 0.0
        %v2501 = vsel %vm1233, %v2486, 0.0
        %v2502 = vrot.slane %v2470, 1
        %v2503 = vrot.slane %v2471, 1
        %v2504 = vrot.slane %v2472, 1
        %v2505 = vrot.slane %v2473, 1
        %v2506 = vrot.slane %v2474, 1
        %v2507 = vrot.slane %v2475, 1
        %v2508 = vrot.slane %v2476, 1
        %v2509 = vrot.slane %v2477, 1
        %v2510 = vsel %vm1275, %v2508, %v2509
        %v2511 = vsel %vm1275, %v2507, %v2508
        %v2512 = vsel %vm1275, %v2506, %v2507
        %v2513 = vsel %vm1275, %v2505, %v2506
        %v2514 = vsel %vm1275, %v2504, %v2505
        %v2515 = vsel %vm1275, %v2503, %v2504
        %v2516 = vsel %vm1275, %v2502, %v2503
        %v2517 = vsel %vm1275, %v2509, %v2502
        %v2518 = vsel %vm1259, %v2516, 0.0
        %v2519 = vsel %vm1260, %v2515, 0.0
        %v2520 = vsel %vm1261, %v2514, 0.0
        %v2521 = vsel %vm1262, %v2513, 0.0
        %v2522 = vsel %vm1263, %v2512, 0.0
        %v2523 = vsel %vm1264, %v2511, 0.0
        %v2524 = vsel %vm1265, %v2510, 0.0
        %v2525 = vsel %vm1266, %v2517, 0.0
        %v2526 = vld [vmem:[%s9] sm:$0x1]
        %v2528 = vlaneseq
        %v2529 = vshrl.u32 %v2528, 7
        %v2530 = vsub.s32 0, %v2529
        %v2531 = vrot.slane %v2526, %v2530
        %v2533 = vpack.c.bf16 %v2494, 0.0
        %v2534 = vpack.c.bf16 %v2470, 0.0
        %v2535 = vpack.c.bf16 %v2518, 0.0
        %v2536 = vpack.c.bf16 %v2496, %v2495
        %v2537 = vpack.c.bf16 %v2472, %v2471
        %v2538 = vpack.c.bf16 %v2520, %v2519
        %v2539 = vpack.c.bf16 %v2498, %v2497
        %v2540 = vpack.c.bf16 %v2474, %v2473
        %v2541 = vpack.c.bf16 %v2522, %v2521
        %v2542 = vpack.c.bf16 %v2500, %v2499
        %v2543 = vpack.c.bf16 %v2476, %v2475
        %v2544 = vpack.c.bf16 %v2524, %v2523
        %v2545 = vld [vmem:[%s8] sm:$0xf]
        %v2546 = vld [vmem:[%s8 + $0x4] sm:$0xf]
        %v2547 = vld [vmem:[%s8 + $0x8] sm:$0xf]
        %v2548 = vld [vmem:[%s8 + $0xc] sm:$0xf]
        %v2549 = vld [vmem:[%s8 + $0x10] sm:$0xf]
        %v2550 = vld [vmem:[%s8 + $0x14] sm:$0xf]
        %v2551 = vld [vmem:[%s8 + $0x18] sm:$0xf]
        %v2552 = vld [vmem:[%s8 + $0x1c] sm:$0xf]
        %v2553 = vld [vmem:[%s8 + $0x20] sm:$0xf]
        %v2554 = vld [vmem:[%s8 + $0x24] sm:$0xf]
        %v2555 = vld [vmem:[%s8 + $0x28] sm:$0xf]
        %v2556 = vld [vmem:[%s8 + $0x2c] sm:$0xf]
        %v2557 = vld [vmem:[%s8 + $0x30] sm:$0xf]
        %v2558 = vld [vmem:[%s8 + $0x34] sm:$0xf]
        %v2559 = vld [vmem:[%s8 + $0x38] sm:$0xf]
        %v2560 = vld [vmem:[%s8 + $0x3c] sm:$0xf]
        %v2561 = vld [vmem:[%s8 + $0x40] sm:$0xf]
        %v2562 = vld [vmem:[%s8 + $0x44] sm:$0xf]
        %v2563 = vld [vmem:[%s8 + $0x48] sm:$0xf]
        %v2564 = vld [vmem:[%s8 + $0x4c] sm:$0xf]
        %v2565 = vld [vmem:[%s8 + $0x50] sm:$0xf]
        %v2566 = vld [vmem:[%s8 + $0x54] sm:$0xf]
        %v2567 = vld [vmem:[%s8 + $0x58] sm:$0xf]
        %v2568 = vld [vmem:[%s8 + $0x5c] sm:$0xf]
        %v2569 = vld [vmem:[%s8 + $0x60] sm:$0xf]
        %v2570 = vld [vmem:[%s8 + $0x64] sm:$0xf]
        %v2571 = vld [vmem:[%s8 + $0x68] sm:$0xf]
        %v2572 = vld [vmem:[%s8 + $0x6c] sm:$0xf]
        %v2573 = vld [vmem:[%s8 + $0x70] sm:$0xf]
        %v2574 = vld [vmem:[%s8 + $0x74] sm:$0xf]
        %v2575 = vld [vmem:[%s8 + $0x78] sm:$0xf]
        %v2576 = vld [vmem:[%s8 + $0x7c] sm:$0xf]
        %v2577 = vld [vmem:[%s8 + $0x80] sm:$0xf]
        %v2578 = vld [vmem:[%s8 + $0x84] sm:$0xf]
        %v2579 = vld [vmem:[%s8 + $0x88] sm:$0xf]
        %v2580 = vld [vmem:[%s8 + $0x8c] sm:$0xf]
        %v2581 = vld [vmem:[%s8 + $0x90] sm:$0xf]
        %v2582 = vld [vmem:[%s8 + $0x94] sm:$0xf]
        %v2583 = vld [vmem:[%s8 + $0x98] sm:$0xf]
        %v2584 = vld [vmem:[%s8 + $0x9c] sm:$0xf]
        %v2585 = vld [vmem:[%s8 + $0xa0] sm:$0xf]
        %v2586 = vld [vmem:[%s8 + $0xa4] sm:$0xf]
        %v2587 = vld [vmem:[%s8 + $0xa8] sm:$0xf]
        %v2588 = vld [vmem:[%s8 + $0xac] sm:$0xf]
        %v2589 = vld [vmem:[%s8 + $0xb0] sm:$0xf]
        %v2590 = vld [vmem:[%s8 + $0xb4] sm:$0xf]
        %v2591 = vld [vmem:[%s8 + $0xb8] sm:$0xf]
        %v2592 = vld [vmem:[%s8 + $0xbc] sm:$0xf]
        %v2641 = vunpack.c.l.b16 %v2545
        %v2642 = vunpack.c.l.b16 %v2546
        %v2643 = vunpack.c.l.b16 %v2547
        %v2644 = vunpack.c.l.b16 %v2548
        %v2645 = vunpack.c.l.b16 %v2549
        %v2646 = vunpack.c.l.b16 %v2550
        %v2647 = vunpack.c.l.b16 %v2551
        %v2648 = vunpack.c.l.b16 %v2552
        %v2649 = vunpack.c.l.b16 %v2553
        %v2650 = vunpack.c.l.b16 %v2554
        %v2651 = vunpack.c.l.b16 %v2555
        %v2652 = vunpack.c.l.b16 %v2556
        %v2653 = vunpack.c.l.b16 %v2557
        %v2654 = vunpack.c.l.b16 %v2558
        %v2655 = vunpack.c.l.b16 %v2559
        %v2656 = vunpack.c.l.b16 %v2560
        %v2657 = vunpack.c.l.b16 %v2561
        %v2658 = vunpack.c.l.b16 %v2562
        %v2659 = vunpack.c.l.b16 %v2563
        %v2660 = vunpack.c.l.b16 %v2564
        %v2661 = vunpack.c.l.b16 %v2565
        %v2662 = vunpack.c.l.b16 %v2566
        %v2663 = vunpack.c.l.b16 %v2567
        %v2664 = vunpack.c.l.b16 %v2568
        %v2665 = vunpack.c.l.b16 %v2569
        %v2666 = vunpack.c.l.b16 %v2570
        %v2667 = vunpack.c.l.b16 %v2571
        %v2668 = vunpack.c.l.b16 %v2572
        %v2669 = vunpack.c.l.b16 %v2573
        %v2670 = vunpack.c.l.b16 %v2574
        %v2671 = vunpack.c.l.b16 %v2575
        %v2672 = vunpack.c.l.b16 %v2576
        %v2673 = vunpack.c.l.b16 %v2577
        %v2674 = vunpack.c.l.b16 %v2578
        %v2675 = vunpack.c.l.b16 %v2579
        %v2676 = vunpack.c.l.b16 %v2580
        %v2677 = vunpack.c.l.b16 %v2581
        %v2678 = vunpack.c.l.b16 %v2582
        %v2679 = vunpack.c.l.b16 %v2583
        %v2680 = vunpack.c.l.b16 %v2584
        %v2681 = vunpack.c.l.b16 %v2585
        %v2682 = vunpack.c.l.b16 %v2586
        %v2683 = vunpack.c.l.b16 %v2587
        %v2684 = vunpack.c.l.b16 %v2588
        %v2685 = vunpack.c.l.b16 %v2589
        %v2686 = vunpack.c.l.b16 %v2590
        %v2687 = vunpack.c.l.b16 %v2591
        %v2688 = vunpack.c.l.b16 %v2592
        %v2689 = vpack.c.b16 %v2642, %v2641
        %v2690 = vpack.c.b16 %v2644, %v2643
        %v2691 = vpack.c.b16 %v2646, %v2645
        %v2692 = vpack.c.b16 %v2648, %v2647
        %v2693 = vpack.c.b16 %v2650, %v2649
        %v2694 = vpack.c.b16 %v2652, %v2651
        %v2695 = vpack.c.b16 %v2654, %v2653
        %v2696 = vpack.c.b16 %v2656, %v2655
        %v2697 = vpack.c.b16 %v2658, %v2657
        %v2698 = vpack.c.b16 %v2660, %v2659
        %v2699 = vpack.c.b16 %v2662, %v2661
        %v2700 = vpack.c.b16 %v2664, %v2663
        %v2701 = vpack.c.b16 %v2666, %v2665
        %v2702 = vpack.c.b16 %v2668, %v2667
        %v2703 = vpack.c.b16 %v2670, %v2669
        %v2704 = vpack.c.b16 %v2672, %v2671
        %v2705 = vpack.c.b16 %v2674, %v2673
        %v2706 = vpack.c.b16 %v2676, %v2675
        %v2707 = vpack.c.b16 %v2678, %v2677
        %v2708 = vpack.c.b16 %v2680, %v2679
        %v2709 = vpack.c.b16 %v2682, %v2681
        %v2710 = vpack.c.b16 %v2684, %v2683
        %v2711 = vpack.c.b16 %v2686, %v2685
        %v2712 = vpack.c.b16 %v2688, %v2687
        %2737 = vmatprep.subr.bf16.mxu0 0
        %2738 = vmatpush1.bf16.msra.mxu0 %v2689
        %2739 = vmatprep.subr.bf16.mxu0 0
        %2740 = vmatpush1.bf16.msra.mxu0 %v2690
        %2741 = vmatprep.subr.bf16.mxu0 0
        %2742 = vmatpush1.bf16.msra.mxu0 %v2691
        %2743 = vmatprep.subr.bf16.mxu0 0
        %2744 = vmatpush1.bf16.msra.mxu0 %v2692
        %2745 = vmatprep.subr.bf16.mxu0 0
        %2746 = vmatpush1.bf16.msra.mxu0 %v2693
        %2747 = vmatprep.subr.bf16.mxu0 0
        %2748 = vmatpush1.bf16.msra.mxu0 %v2694
        %2749 = vmatprep.subr.bf16.mxu0 0
        %2750 = vmatpush1.bf16.msra.mxu0 %v2695
        %2751 = vmatprep.subr.bf16.mxu0 0
        %2752 = vmatpush1.bf16.msra.mxu0 %v2696
        %2753 = vmatprep.subr.bf16.mxu0 0
        %2754 = vmatpush1.bf16.msra.mxu0 %v2697
        %2755 = vmatprep.subr.bf16.mxu0 0
        %2756 = vmatpush1.bf16.msra.mxu0 %v2698
        %2757 = vmatprep.subr.bf16.mxu0 0
        %2758 = vmatpush1.bf16.msra.mxu0 %v2699
        %2759 = vmatprep.subr.bf16.mxu0 0
        %2760 = vmatpush1.bf16.msra.mxu0 %v2700
        %2761 = vmatprep.subr.bf16.mxu0 0
        %2762 = vmatpush1.bf16.msra.mxu0 %v2701
        %2763 = vmatprep.subr.bf16.mxu0 0
        %2764 = vmatpush1.bf16.msra.mxu0 %v2702
        %2765 = vmatprep.subr.bf16.mxu0 0
        %2766 = vmatpush1.bf16.msra.mxu0 %v2703
        %2767 = vmatprep.subr.bf16.mxu0 0
        %2768 = vmatpush1.bf16.msra.mxu0 %v2704
        %2769 = vmatprep.mubr.bf16.mxu0 %v2534
        %2770 = vmatmul.mubr.bf16.gmra.mrb[0].mxu0 %v2533
        %v2771 = vpop.f32.mrb[0].mxu0
        %v2772 = vadd.f32 0.0, %v2771
        %v2773 = vpop.f32.mrb[0].mxu0
        %v2774 = vpop.f32.mrb[0].mxu0
        %v2775 = vadd.f32 0.0, %v2774
        %v2776 = vpop.f32.mrb[0].mxu0
        %2777 = vmatprep.mubr.bf16.mxu0 %v2537
        %2778 = vmatmul.mubr.bf16.gmra.mrb[0].mxu0 %v2536
        %v2779 = vpop.f32.mrb[0].mxu0
        %v2780 = vadd.f32 0.0, %v2779
        %v2781 = vpop.f32.mrb[0].mxu0
        %v2782 = vpop.f32.mrb[0].mxu0
        %v2783 = vadd.f32 0.0, %v2782
        %v2784 = vpop.f32.mrb[0].mxu0
        %2785 = vmatprep.mubr.bf16.mxu0 %v2540
        %2786 = vmatmul.mubr.bf16.gmra.mrb[0].mxu0 %v2539
        %v2787 = vpop.f32.mrb[0].mxu0
        %v2788 = vadd.f32 0.0, %v2787
        %v2789 = vpop.f32.mrb[0].mxu0
        %v2790 = vpop.f32.mrb[0].mxu0
        %v2791 = vadd.f32 0.0, %v2790
        %v2792 = vpop.f32.mrb[0].mxu0
        %2793 = vmatprep.mubr.bf16.mxu0 %v2543
        %2794 = vmatmul.mubr.bf16.gmra.mrb[0].mxu0 %v2542
        %v2795 = vpop.f32.mrb[0].mxu0
        %v2796 = vadd.f32 0.0, %v2795
        %v2797 = vpop.f32.mrb[0].mxu0
        %v2798 = vpop.f32.mrb[0].mxu0
        %v2799 = vadd.f32 0.0, %v2798
        %v2800 = vpop.f32.mrb[0].mxu0
        %2801 = vdwg.mxu0
        %2802 = vmatprep.subr.bf16.mxu0 0
        %2803 = vmatpush1.bf16.msra.mxu0 %v2705
        %2804 = vmatprep.subr.bf16.mxu0 0
        %2805 = vmatpush1.bf16.msra.mxu0 %v2706
        %2806 = vmatprep.subr.bf16.mxu0 0
        %2807 = vmatpush1.bf16.msra.mxu0 %v2707
        %2808 = vmatprep.subr.bf16.mxu0 0
        %2809 = vmatpush1.bf16.msra.mxu0 %v2708
        %2810 = vmatprep.subr.bf16.mxu0 0
        %2811 = vmatpush1.bf16.msra.mxu0 %v2709
        %2812 = vmatprep.subr.bf16.mxu0 0
        %2813 = vmatpush1.bf16.msra.mxu0 %v2710
        %2814 = vmatprep.subr.bf16.mxu0 0
        %2815 = vmatpush1.bf16.msra.mxu0 %v2711
        %2816 = vmatprep.subr.bf16.mxu0 0
        %2817 = vmatpush1.bf16.msra.mxu0 %v2712
        %2818 = vmatprep.subr.bf16.mxu0 0
        %2819 = vmatpush1.bf16.msra.mxu0 0
        %2820 = vmatprep.subr.bf16.mxu0 0
        %2821 = vmatpush1.bf16.msra.mxu0 0
        %2822 = vmatprep.subr.bf16.mxu0 0
        %2823 = vmatpush1.bf16.msra.mxu0 0
        %2824 = vmatprep.subr.bf16.mxu0 0
        %2825 = vmatpush1.bf16.msra.mxu0 0
        %2826 = vmatprep.subr.bf16.mxu0 0
        %2827 = vmatpush1.bf16.msra.mxu0 0
        %2828 = vmatprep.subr.bf16.mxu0 0
        %2829 = vmatpush1.bf16.msra.mxu0 0
        %2830 = vmatprep.subr.bf16.mxu0 0
        %2831 = vmatpush1.bf16.msra.mxu0 0
        %2832 = vmatprep.subr.bf16.mxu0 0
        %2833 = vmatpush1.bf16.msra.mxu0 0
        %2834 = vmatprep.mubr.bf16.mxu0 0
        %2835 = vmatmul.mubr.bf16.gmra.mrb[0].mxu0 %v2535
        %v2836 = vpop.f32.mrb[0].mxu0
        %v2837 = vadd.f32 %v2772, %v2836
        %v2838 = vpop.f32.mrb[0].mxu0
        %v2839 = vpop.f32.mrb[0].mxu0
        %v2840 = vadd.f32 %v2775, %v2839
        %v2841 = vpop.f32.mrb[0].mxu0
        %2842 = vmatprep.mubr.bf16.mxu0 0
        %2843 = vmatmul.mubr.bf16.gmra.mrb[0].mxu0 %v2538
        %v2844 = vpop.f32.mrb[0].mxu0
        %v2845 = vadd.f32 %v2780, %v2844
        %v2846 = vpop.f32.mrb[0].mxu0
        %v2847 = vpop.f32.mrb[0].mxu0
        %v2848 = vadd.f32 %v2783, %v2847
        %v2849 = vpop.f32.mrb[0].mxu0
        %2850 = vmatprep.mubr.bf16.mxu0 0
        %2851 = vmatmul.mubr.bf16.gmra.mrb[0].mxu0 %v2541
        %v2852 = vpop.f32.mrb[0].mxu0
        %v2853 = vadd.f32 %v2788, %v2852
        %v2854 = vpop.f32.mrb[0].mxu0
        %v2855 = vpop.f32.mrb[0].mxu0
        %v2856 = vadd.f32 %v2791, %v2855
        %v2857 = vpop.f32.mrb[0].mxu0
        %2858 = vmatprep.mubr.bf16.mxu0 0
        %2859 = vmatmul.mubr.bf16.gmra.mrb[0].mxu0 %v2544
        %v2860 = vpop.f32.mrb[0].mxu0
        %v2861 = vadd.f32 %v2796, %v2860
        %v2862 = vpop.f32.mrb[0].mxu0
        %v2863 = vpop.f32.mrb[0].mxu0
        %v2864 = vadd.f32 %v2799, %v2863
        %v2865 = vpop.f32.mrb[0].mxu0
        %2866 = vdwg.mxu0
        %v2867 = vadd.f32 %v2531, %v2837
        %v2868 = vadd.f32 %v2531, %v2840
        %v2869 = vadd.f32 %v2531, %v2845
        %v2870 = vadd.f32 %v2531, %v2848
        %v2871 = vadd.f32 %v2531, %v2853
        %v2872 = vadd.f32 %v2531, %v2856
        %v2873 = vadd.f32 %v2531, %v2861
        %v2874 = vadd.f32 %v2531, %v2864
        %v2875 = vpack.c.bf16 %v2495, %v2494
        %v2876 = vpack.c.bf16 %v2471, %v2470
        %v2877 = vpack.c.bf16 %v2519, %v2518
        %v2878 = vpack.c.bf16 %v2497, %v2496
        %v2879 = vpack.c.bf16 %v2473, %v2472
        %v2880 = vpack.c.bf16 %v2521, %v2520
        %v2881 = vpack.c.bf16 %v2499, %v2498
        %v2882 = vpack.c.bf16 %v2475, %v2474
        %v2883 = vpack.c.bf16 %v2523, %v2522
        %v2884 = vpack.c.bf16 %v2501, %v2500
        %v2885 = vpack.c.bf16 %v2477, %v2476
        %v2886 = vpack.c.bf16 %v2525, %v2524
        %s2887 = scalar_lea.vmem %s8, 192
        %v2888 = vld [vmem:[%s2887] sm:$0xf]
        %v2889 = vld [vmem:[%s2887 + $0x4] sm:$0xf]
        %v2890 = vld [vmem:[%s2887 + $0x8] sm:$0xf]
        %v2891 = vld [vmem:[%s2887 + $0xc] sm:$0xf]
        %v2892 = vld [vmem:[%s2887 + $0x10] sm:$0xf]
        %v2893 = vld [vmem:[%s2887 + $0x14] sm:$0xf]
        %v2894 = vld [vmem:[%s2887 + $0x18] sm:$0xf]
        %v2895 = vld [vmem:[%s2887 + $0x1c] sm:$0xf]
        %v2896 = vld [vmem:[%s2887 + $0x20] sm:$0xf]
        %v2897 = vld [vmem:[%s2887 + $0x24] sm:$0xf]
        %v2898 = vld [vmem:[%s2887 + $0x28] sm:$0xf]
        %v2899 = vld [vmem:[%s2887 + $0x2c] sm:$0xf]
        %v2900 = vld [vmem:[%s2887 + $0x30] sm:$0xf]
        %v2901 = vld [vmem:[%s2887 + $0x34] sm:$0xf]
        %v2902 = vld [vmem:[%s2887 + $0x38] sm:$0xf]
        %v2903 = vld [vmem:[%s2887 + $0x3c] sm:$0xf]
        %v2904 = vld [vmem:[%s2887 + $0x40] sm:$0xf]
        %v2905 = vld [vmem:[%s2887 + $0x44] sm:$0xf]
        %v2906 = vld [vmem:[%s2887 + $0x48] sm:$0xf]
        %v2907 = vld [vmem:[%s2887 + $0x4c] sm:$0xf]
        %v2908 = vld [vmem:[%s2887 + $0x50] sm:$0xf]
        %v2909 = vld [vmem:[%s2887 + $0x54] sm:$0xf]
        %v2910 = vld [vmem:[%s2887 + $0x58] sm:$0xf]
        %v2911 = vld [vmem:[%s2887 + $0x5c] sm:$0xf]
        %v2912 = vld [vmem:[%s2887 + $0x60] sm:$0xf]
        %v2913 = vld [vmem:[%s2887 + $0x64] sm:$0xf]
        %v2914 = vld [vmem:[%s2887 + $0x68] sm:$0xf]
        %v2915 = vld [vmem:[%s2887 + $0x6c] sm:$0xf]
        %v2916 = vld [vmem:[%s2887 + $0x70] sm:$0xf]
        %v2917 = vld [vmem:[%s2887 + $0x74] sm:$0xf]
        %v2918 = vld [vmem:[%s2887 + $0x78] sm:$0xf]
        %v2919 = vld [vmem:[%s2887 + $0x7c] sm:$0xf]
        %v2920 = vld [vmem:[%s2887 + $0x80] sm:$0xf]
        %v2921 = vld [vmem:[%s2887 + $0x84] sm:$0xf]
        %v2922 = vld [vmem:[%s2887 + $0x88] sm:$0xf]
        %v2923 = vld [vmem:[%s2887 + $0x8c] sm:$0xf]
        %v2924 = vld [vmem:[%s2887 + $0x90] sm:$0xf]
        %v2925 = vld [vmem:[%s2887 + $0x94] sm:$0xf]
        %v2926 = vld [vmem:[%s2887 + $0x98] sm:$0xf]
        %v2927 = vld [vmem:[%s2887 + $0x9c] sm:$0xf]
        %v2928 = vld [vmem:[%s2887 + $0xa0] sm:$0xf]
        %v2929 = vld [vmem:[%s2887 + $0xa4] sm:$0xf]
        %v2930 = vld [vmem:[%s2887 + $0xa8] sm:$0xf]
        %v2931 = vld [vmem:[%s2887 + $0xac] sm:$0xf]
        %v2932 = vld [vmem:[%s2887 + $0xb0] sm:$0xf]
        %v2933 = vld [vmem:[%s2887 + $0xb4] sm:$0xf]
        %v2934 = vld [vmem:[%s2887 + $0xb8] sm:$0xf]
        %v2935 = vld [vmem:[%s2887 + $0xbc] sm:$0xf]
        %v2984 = vunpack.c.l.b16 %v2888
        %v2985 = vunpack.c.l.b16 %v2889
        %v2986 = vunpack.c.l.b16 %v2890
        %v2987 = vunpack.c.l.b16 %v2891
        %v2988 = vunpack.c.l.b16 %v2892
        %v2989 = vunpack.c.l.b16 %v2893
        %v2990 = vunpack.c.l.b16 %v2894
        %v2991 = vunpack.c.l.b16 %v2895
        %v2992 = vunpack.c.l.b16 %v2896
        %v2993 = vunpack.c.l.b16 %v2897
        %v2994 = vunpack.c.l.b16 %v2898
        %v2995 = vunpack.c.l.b16 %v2899
        %v2996 = vunpack.c.l.b16 %v2900
        %v2997 = vunpack.c.l.b16 %v2901
        %v2998 = vunpack.c.l.b16 %v2902
        %v2999 = vunpack.c.l.b16 %v2903
        %v3000 = vunpack.c.l.b16 %v2904
        %v3001 = vunpack.c.l.b16 %v2905
        %v3002 = vunpack.c.l.b16 %v2906
        %v3003 = vunpack.c.l.b16 %v2907
        %v3004 = vunpack.c.l.b16 %v2908
        %v3005 = vunpack.c.l.b16 %v2909
        %v3006 = vunpack.c.l.b16 %v2910
        %v3007 = vunpack.c.l.b16 %v2911
        %v3008 = vunpack.c.l.b16 %v2912
        %v3009 = vunpack.c.l.b16 %v2913
        %v3010 = vunpack.c.l.b16 %v2914
        %v3011 = vunpack.c.l.b16 %v2915
        %v3012 = vunpack.c.l.b16 %v2916
        %v3013 = vunpack.c.l.b16 %v2917
        %v3014 = vunpack.c.l.b16 %v2918
        %v3015 = vunpack.c.l.b16 %v2919
        %v3016 = vunpack.c.l.b16 %v2920
        %v3017 = vunpack.c.l.b16 %v2921
        %v3018 = vunpack.c.l.b16 %v2922
        %v3019 = vunpack.c.l.b16 %v2923
        %v3020 = vunpack.c.l.b16 %v2924
        %v3021 = vunpack.c.l.b16 %v2925
        %v3022 = vunpack.c.l.b16 %v2926
        %v3023 = vunpack.c.l.b16 %v2927
        %v3024 = vunpack.c.l.b16 %v2928
        %v3025 = vunpack.c.l.b16 %v2929
        %v3026 = vunpack.c.l.b16 %v2930
        %v3027 = vunpack.c.l.b16 %v2931
        %v3028 = vunpack.c.l.b16 %v2932
        %v3029 = vunpack.c.l.b16 %v2933
        %v3030 = vunpack.c.l.b16 %v2934
        %v3031 = vunpack.c.l.b16 %v2935
        %v3032 = vpack.c.b16 %v2985, %v2984
        %v3033 = vpack.c.b16 %v2987, %v2986
        %v3034 = vpack.c.b16 %v2989, %v2988
        %v3035 = vpack.c.b16 %v2991, %v2990
        %v3036 = vpack.c.b16 %v2993, %v2992
        %v3037 = vpack.c.b16 %v2995, %v2994
        %v3038 = vpack.c.b16 %v2997, %v2996
        %v3039 = vpack.c.b16 %v2999, %v2998
        %v3040 = vpack.c.b16 %v3001, %v3000
        %v3041 = vpack.c.b16 %v3003, %v3002
        %v3042 = vpack.c.b16 %v3005, %v3004
        %v3043 = vpack.c.b16 %v3007, %v3006
        %v3044 = vpack.c.b16 %v3009, %v3008
        %v3045 = vpack.c.b16 %v3011, %v3010
        %v3046 = vpack.c.b16 %v3013, %v3012
        %v3047 = vpack.c.b16 %v3015, %v3014
        %v3048 = vpack.c.b16 %v3017, %v3016
        %v3049 = vpack.c.b16 %v3019, %v3018
        %v3050 = vpack.c.b16 %v3021, %v3020
        %v3051 = vpack.c.b16 %v3023, %v3022
        %v3052 = vpack.c.b16 %v3025, %v3024
        %v3053 = vpack.c.b16 %v3027, %v3026
        %v3054 = vpack.c.b16 %v3029, %v3028
        %v3055 = vpack.c.b16 %v3031, %v3030
        %3080 = vmatprep.subr.bf16.mxu0 0
        %3081 = vmatpush1.bf16.msra.mxu0 %v3032
        %3082 = vmatprep.subr.bf16.mxu0 0
        %3083 = vmatpush1.bf16.msra.mxu0 %v3033
        %3084 = vmatprep.subr.bf16.mxu0 0
        %3085 = vmatpush1.bf16.msra.mxu0 %v3034
        %3086 = vmatprep.subr.bf16.mxu0 0
        %3087 = vmatpush1.bf16.msra.mxu0 %v3035
        %3088 = vmatprep.subr.bf16.mxu0 0
        %3089 = vmatpush1.bf16.msra.mxu0 %v3036
        %3090 = vmatprep.subr.bf16.mxu0 0
        %3091 = vmatpush1.bf16.msra.mxu0 %v3037
        %3092 = vmatprep.subr.bf16.mxu0 0
        %3093 = vmatpush1.bf16.msra.mxu0 %v3038
        %3094 = vmatprep.subr.bf16.mxu0 0
        %3095 = vmatpush1.bf16.msra.mxu0 %v3039
        %3096 = vmatprep.subr.bf16.mxu0 0
        %3097 = vmatpush1.bf16.msra.mxu0 %v3040
        %3098 = vmatprep.subr.bf16.mxu0 0
        %3099 = vmatpush1.bf16.msra.mxu0 %v3041
        %3100 = vmatprep.subr.bf16.mxu0 0
        %3101 = vmatpush1.bf16.msra.mxu0 %v3042
        %3102 = vmatprep.subr.bf16.mxu0 0
        %3103 = vmatpush1.bf16.msra.mxu0 %v3043
        %3104 = vmatprep.subr.bf16.mxu0 0
        %3105 = vmatpush1.bf16.msra.mxu0 %v3044
        %3106 = vmatprep.subr.bf16.mxu0 0
        %3107 = vmatpush1.bf16.msra.mxu0 %v3045
        %3108 = vmatprep.subr.bf16.mxu0 0
        %3109 = vmatpush1.bf16.msra.mxu0 %v3046
        %3110 = vmatprep.subr.bf16.mxu0 0
        %3111 = vmatpush1.bf16.msra.mxu0 %v3047
        %3112 = vmatprep.mubr.bf16.mxu0 %v2876
        %3113 = vmatmul.mubr.bf16.gmra.mrb[0].mxu0 %v2875
        %v3114 = vpop.f32.mrb[0].mxu0
        %v3115 = vadd.f32 0.0, %v3114
        %v3116 = vpop.f32.mrb[0].mxu0
        %v3117 = vpop.f32.mrb[0].mxu0
        %v3118 = vadd.f32 0.0, %v3117
        %v3119 = vpop.f32.mrb[0].mxu0
        %3120 = vmatprep.mubr.bf16.mxu0 %v2879
        %3121 = vmatmul.mubr.bf16.gmra.mrb[0].mxu0 %v2878
        %v3122 = vpop.f32.mrb[0].mxu0
        %v3123 = vadd.f32 0.0, %v3122
        %v3124 = vpop.f32.mrb[0].mxu0
        %v3125 = vpop.f32.mrb[0].mxu0
        %v3126 = vadd.f32 0.0, %v3125
        %v3127 = vpop.f32.mrb[0].mxu0
        %3128 = vmatprep.mubr.bf16.mxu0 %v2882
        %3129 = vmatmul.mubr.bf16.gmra.mrb[0].mxu0 %v2881
        %v3130 = vpop.f32.mrb[0].mxu0
        %v3131 = vadd.f32 0.0, %v3130
        %v3132 = vpop.f32.mrb[0].mxu0
        %v3133 = vpop.f32.mrb[0].mxu0
        %v3134 = vadd.f32 0.0, %v3133
        %v3135 = vpop.f32.mrb[0].mxu0
        %3136 = vmatprep.mubr.bf16.mxu0 %v2885
        %3137 = vmatmul.mubr.bf16.gmra.mrb[0].mxu0 %v2884
        %v3138 = vpop.f32.mrb[0].mxu0
        %v3139 = vadd.f32 0.0, %v3138
        %v3140 = vpop.f32.mrb[0].mxu0
        %v3141 = vpop.f32.mrb[0].mxu0
        %v3142 = vadd.f32 0.0, %v3141
        %v3143 = vpop.f32.mrb[0].mxu0
        %3144 = vdwg.mxu0
        %3145 = vmatprep.subr.bf16.mxu0 0
        %3146 = vmatpush1.bf16.msra.mxu0 %v3048
        %3147 = vmatprep.subr.bf16.mxu0 0
        %3148 = vmatpush1.bf16.msra.mxu0 %v3049
        %3149 = vmatprep.subr.bf16.mxu0 0
        %3150 = vmatpush1.bf16.msra.mxu0 %v3050
        %3151 = vmatprep.subr.bf16.mxu0 0
        %3152 = vmatpush1.bf16.msra.mxu0 %v3051
        %3153 = vmatprep.subr.bf16.mxu0 0
        %3154 = vmatpush1.bf16.msra.mxu0 %v3052
        %3155 = vmatprep.subr.bf16.mxu0 0
        %3156 = vmatpush1.bf16.msra.mxu0 %v3053
        %3157 = vmatprep.subr.bf16.mxu0 0
        %3158 = vmatpush1.bf16.msra.mxu0 %v3054
        %3159 = vmatprep.subr.bf16.mxu0 0
        %3160 = vmatpush1.bf16.msra.mxu0 %v3055
        %3161 = vmatprep.subr.bf16.mxu0 0
        %3162 = vmatpush1.bf16.msra.mxu0 0
        %3163 = vmatprep.subr.bf16.mxu0 0
        %3164 = vmatpush1.bf16.msra.mxu0 0
        %3165 = vmatprep.subr.bf16.mxu0 0
        %3166 = vmatpush1.bf16.msra.mxu0 0
        %3167 = vmatprep.subr.bf16.mxu0 0
        %3168 = vmatpush1.bf16.msra.mxu0 0
        %3169 = vmatprep.subr.bf16.mxu0 0
        %3170 = vmatpush1.bf16.msra.mxu0 0
        %3171 = vmatprep.subr.bf16.mxu0 0
        %3172 = vmatpush1.bf16.msra.mxu0 0
        %3173 = vmatprep.subr.bf16.mxu0 0
        %3174 = vmatpush1.bf16.msra.mxu0 0
        %3175 = vmatprep.subr.bf16.mxu0 0
        %3176 = vmatpush1.bf16.msra.mxu0 0
        %3177 = vmatprep.mubr.bf16.mxu0 0
        %3178 = vmatmul.mubr.bf16.gmra.mrb[0].mxu0 %v2877
        %v3179 = vpop.f32.mrb[0].mxu0
        %v3180 = vadd.f32 %v3115, %v3179
        %v3181 = vpop.f32.mrb[0].mxu0
        %v3182 = vpop.f32.mrb[0].mxu0
        %v3183 = vadd.f32 %v3118, %v3182
        %v3184 = vpop.f32.mrb[0].mxu0
        %3185 = vmatprep.mubr.bf16.mxu0 0
        %3186 = vmatmul.mubr.bf16.gmra.mrb[0].mxu0 %v2880
        %v3187 = vpop.f32.mrb[0].mxu0
        %v3188 = vadd.f32 %v3123, %v3187
        %v3189 = vpop.f32.mrb[0].mxu0
        %v3190 = vpop.f32.mrb[0].mxu0
        %v3191 = vadd.f32 %v3126, %v3190
        %v3192 = vpop.f32.mrb[0].mxu0
        %3193 = vmatprep.mubr.bf16.mxu0 0
        %3194 = vmatmul.mubr.bf16.gmra.mrb[0].mxu0 %v2883
        %v3195 = vpop.f32.mrb[0].mxu0
        %v3196 = vadd.f32 %v3131, %v3195
        %v3197 = vpop.f32.mrb[0].mxu0
        %v3198 = vpop.f32.mrb[0].mxu0
        %v3199 = vadd.f32 %v3134, %v3198
        %v3200 = vpop.f32.mrb[0].mxu0
        %3201 = vmatprep.mubr.bf16.mxu0 0
        %3202 = vmatmul.mubr.bf16.gmra.mrb[0].mxu0 %v2886
        %v3203 = vpop.f32.mrb[0].mxu0
        %v3204 = vadd.f32 %v3139, %v3203
        %v3205 = vpop.f32.mrb[0].mxu0
        %v3206 = vpop.f32.mrb[0].mxu0
        %v3207 = vadd.f32 %v3142, %v3206
        %v3208 = vpop.f32.mrb[0].mxu0
        %3209 = vdwg.mxu0
        %v3210 = vadd.f32 %v2867, %v3180
        %v3211 = vadd.f32 %v2868, %v3183
        %v3212 = vadd.f32 %v2869, %v3188
        %v3213 = vadd.f32 %v2870, %v3191
        %v3214 = vadd.f32 %v2871, %v3196
        %v3215 = vadd.f32 %v2872, %v3199
        %v3216 = vadd.f32 %v2873, %v3204
        %v3217 = vadd.f32 %v2874, %v3207
        %v3218 = vpack.c.bf16 0.0, %v2501
        %v3219 = vpack.c.bf16 0.0, %v2477
        %v3220 = vpack.c.bf16 0.0, %v2525
        %s3221 = scalar_lea.vmem %s8, 384
        %v3222 = vld [vmem:[%s3221] sm:$0xf]
        %v3223 = vld [vmem:[%s3221 + $0x4] sm:$0xf]
        %v3224 = vld [vmem:[%s3221 + $0x8] sm:$0xf]
        %v3225 = vld [vmem:[%s3221 + $0xc] sm:$0xf]
        %v3226 = vld [vmem:[%s3221 + $0x10] sm:$0xf]
        %v3227 = vld [vmem:[%s3221 + $0x14] sm:$0xf]
        %v3228 = vld [vmem:[%s3221 + $0x18] sm:$0xf]
        %v3229 = vld [vmem:[%s3221 + $0x1c] sm:$0xf]
        %v3230 = vld [vmem:[%s3221 + $0x20] sm:$0xf]
        %v3231 = vld [vmem:[%s3221 + $0x24] sm:$0xf]
        %v3232 = vld [vmem:[%s3221 + $0x28] sm:$0xf]
        %v3233 = vld [vmem:[%s3221 + $0x2c] sm:$0xf]
        %v3234 = vld [vmem:[%s3221 + $0x30] sm:$0xf]
        %v3235 = vld [vmem:[%s3221 + $0x34] sm:$0xf]
        %v3236 = vld [vmem:[%s3221 + $0x38] sm:$0xf]
        %v3237 = vld [vmem:[%s3221 + $0x3c] sm:$0xf]
        %v3238 = vld [vmem:[%s3221 + $0x40] sm:$0xf]
        %v3239 = vld [vmem:[%s3221 + $0x44] sm:$0xf]
        %v3240 = vld [vmem:[%s3221 + $0x48] sm:$0xf]
        %v3241 = vld [vmem:[%s3221 + $0x4c] sm:$0xf]
        %v3242 = vld [vmem:[%s3221 + $0x50] sm:$0xf]
        %v3243 = vld [vmem:[%s3221 + $0x54] sm:$0xf]
        %v3244 = vld [vmem:[%s3221 + $0x58] sm:$0xf]
        %v3245 = vld [vmem:[%s3221 + $0x5c] sm:$0xf]
        %v3246 = vld [vmem:[%s3221 + $0x60] sm:$0xf]
        %v3247 = vld [vmem:[%s3221 + $0x64] sm:$0xf]
        %v3248 = vld [vmem:[%s3221 + $0x68] sm:$0xf]
        %v3249 = vld [vmem:[%s3221 + $0x6c] sm:$0xf]
        %v3250 = vld [vmem:[%s3221 + $0x70] sm:$0xf]
        %v3251 = vld [vmem:[%s3221 + $0x74] sm:$0xf]
        %v3252 = vld [vmem:[%s3221 + $0x78] sm:$0xf]
        %v3253 = vld [vmem:[%s3221 + $0x7c] sm:$0xf]
        %v3254 = vld [vmem:[%s3221 + $0x80] sm:$0xf]
        %v3255 = vld [vmem:[%s3221 + $0x84] sm:$0xf]
        %v3256 = vld [vmem:[%s3221 + $0x88] sm:$0xf]
        %v3257 = vld [vmem:[%s3221 + $0x8c] sm:$0xf]
        %v3258 = vld [vmem:[%s3221 + $0x90] sm:$0xf]
        %v3259 = vld [vmem:[%s3221 + $0x94] sm:$0xf]
        %v3260 = vld [vmem:[%s3221 + $0x98] sm:$0xf]
        %v3261 = vld [vmem:[%s3221 + $0x9c] sm:$0xf]
        %v3262 = vld [vmem:[%s3221 + $0xa0] sm:$0xf]
        %v3263 = vld [vmem:[%s3221 + $0xa4] sm:$0xf]
        %v3264 = vld [vmem:[%s3221 + $0xa8] sm:$0xf]
        %v3265 = vld [vmem:[%s3221 + $0xac] sm:$0xf]
        %v3266 = vld [vmem:[%s3221 + $0xb0] sm:$0xf]
        %v3267 = vld [vmem:[%s3221 + $0xb4] sm:$0xf]
        %v3268 = vld [vmem:[%s3221 + $0xb8] sm:$0xf]
        %v3269 = vld [vmem:[%s3221 + $0xbc] sm:$0xf]
        %v3318 = vunpack.c.l.b16 %v3222
        %v3319 = vunpack.c.l.b16 %v3223
        %v3320 = vunpack.c.l.b16 %v3224
        %v3321 = vunpack.c.l.b16 %v3225
        %v3322 = vunpack.c.l.b16 %v3226
        %v3323 = vunpack.c.l.b16 %v3227
        %v3324 = vunpack.c.l.b16 %v3228
        %v3325 = vunpack.c.l.b16 %v3229
        %v3326 = vunpack.c.l.b16 %v3230
        %v3327 = vunpack.c.l.b16 %v3231
        %v3328 = vunpack.c.l.b16 %v3232
        %v3329 = vunpack.c.l.b16 %v3233
        %v3330 = vunpack.c.l.b16 %v3234
        %v3331 = vunpack.c.l.b16 %v3235
        %v3332 = vunpack.c.l.b16 %v3236
        %v3333 = vunpack.c.l.b16 %v3237
        %v3334 = vunpack.c.l.b16 %v3238
        %v3335 = vunpack.c.l.b16 %v3239
        %v3336 = vunpack.c.l.b16 %v3240
        %v3337 = vunpack.c.l.b16 %v3241
        %v3338 = vunpack.c.l.b16 %v3242
        %v3339 = vunpack.c.l.b16 %v3243
        %v3340 = vunpack.c.l.b16 %v3244
        %v3341 = vunpack.c.l.b16 %v3245
        %v3342 = vunpack.c.l.b16 %v3246
        %v3343 = vunpack.c.l.b16 %v3247
        %v3344 = vunpack.c.l.b16 %v3248
        %v3345 = vunpack.c.l.b16 %v3249
        %v3346 = vunpack.c.l.b16 %v3250
        %v3347 = vunpack.c.l.b16 %v3251
        %v3348 = vunpack.c.l.b16 %v3252
        %v3349 = vunpack.c.l.b16 %v3253
        %v3350 = vunpack.c.l.b16 %v3254
        %v3351 = vunpack.c.l.b16 %v3255
        %v3352 = vunpack.c.l.b16 %v3256
        %v3353 = vunpack.c.l.b16 %v3257
        %v3354 = vunpack.c.l.b16 %v3258
        %v3355 = vunpack.c.l.b16 %v3259
        %v3356 = vunpack.c.l.b16 %v3260
        %v3357 = vunpack.c.l.b16 %v3261
        %v3358 = vunpack.c.l.b16 %v3262
        %v3359 = vunpack.c.l.b16 %v3263
        %v3360 = vunpack.c.l.b16 %v3264
        %v3361 = vunpack.c.l.b16 %v3265
        %v3362 = vunpack.c.l.b16 %v3266
        %v3363 = vunpack.c.l.b16 %v3267
        %v3364 = vunpack.c.l.b16 %v3268
        %v3365 = vunpack.c.l.b16 %v3269
        %v3366 = vpack.c.b16 %v3319, %v3318
        %v3367 = vpack.c.b16 %v3321, %v3320
        %v3368 = vpack.c.b16 %v3323, %v3322
        %v3369 = vpack.c.b16 %v3325, %v3324
        %v3370 = vpack.c.b16 %v3327, %v3326
        %v3371 = vpack.c.b16 %v3329, %v3328
        %v3372 = vpack.c.b16 %v3331, %v3330
        %v3373 = vpack.c.b16 %v3333, %v3332
        %v3374 = vpack.c.b16 %v3335, %v3334
        %v3375 = vpack.c.b16 %v3337, %v3336
        %v3376 = vpack.c.b16 %v3339, %v3338
        %v3377 = vpack.c.b16 %v3341, %v3340
        %v3378 = vpack.c.b16 %v3343, %v3342
        %v3379 = vpack.c.b16 %v3345, %v3344
        %v3380 = vpack.c.b16 %v3347, %v3346
        %v3381 = vpack.c.b16 %v3349, %v3348
        %v3382 = vpack.c.b16 %v3351, %v3350
        %v3383 = vpack.c.b16 %v3353, %v3352
        %v3384 = vpack.c.b16 %v3355, %v3354
        %v3385 = vpack.c.b16 %v3357, %v3356
        %v3386 = vpack.c.b16 %v3359, %v3358
        %v3387 = vpack.c.b16 %v3361, %v3360
        %v3388 = vpack.c.b16 %v3363, %v3362
        %v3389 = vpack.c.b16 %v3365, %v3364
        %3414 = vmatprep.subr.bf16.mxu0 0
        %3415 = vmatpush1.bf16.msra.mxu0 %v3366
        %3416 = vmatprep.subr.bf16.mxu0 0
        %3417 = vmatpush1.bf16.msra.mxu0 %v3367
        %3418 = vmatprep.subr.bf16.mxu0 0
        %3419 = vmatpush1.bf16.msra.mxu0 %v3368
        %3420 = vmatprep.subr.bf16.mxu0 0
        %3421 = vmatpush1.bf16.msra.mxu0 %v3369
        %3422 = vmatprep.subr.bf16.mxu0 0
        %3423 = vmatpush1.bf16.msra.mxu0 %v3370
        %3424 = vmatprep.subr.bf16.mxu0 0
        %3425 = vmatpush1.bf16.msra.mxu0 %v3371
        %3426 = vmatprep.subr.bf16.mxu0 0
        %3427 = vmatpush1.bf16.msra.mxu0 %v3372
        %3428 = vmatprep.subr.bf16.mxu0 0
        %3429 = vmatpush1.bf16.msra.mxu0 %v3373
        %3430 = vmatprep.subr.bf16.mxu0 0
        %3431 = vmatpush1.bf16.msra.mxu0 %v3374
        %3432 = vmatprep.subr.bf16.mxu0 0
        %3433 = vmatpush1.bf16.msra.mxu0 %v3375
        %3434 = vmatprep.subr.bf16.mxu0 0
        %3435 = vmatpush1.bf16.msra.mxu0 %v3376
        %3436 = vmatprep.subr.bf16.mxu0 0
        %3437 = vmatpush1.bf16.msra.mxu0 %v3377
        %3438 = vmatprep.subr.bf16.mxu0 0
        %3439 = vmatpush1.bf16.msra.mxu0 %v3378
        %3440 = vmatprep.subr.bf16.mxu0 0
        %3441 = vmatpush1.bf16.msra.mxu0 %v3379
        %3442 = vmatprep.subr.bf16.mxu0 0
        %3443 = vmatpush1.bf16.msra.mxu0 %v3380
        %3444 = vmatprep.subr.bf16.mxu0 0
        %3445 = vmatpush1.bf16.msra.mxu0 %v3381
        %3446 = vmatprep.mubr.bf16.mxu0 %v2537
        %3447 = vmatmul.mubr.bf16.gmra.mrb[0].mxu0 %v2536
        %v3448 = vpop.f32.mrb[0].mxu0
        %v3449 = vadd.f32 0.0, %v3448
        %v3450 = vpop.f32.mrb[0].mxu0
        %v3451 = vpop.f32.mrb[0].mxu0
        %v3452 = vadd.f32 0.0, %v3451
        %v3453 = vpop.f32.mrb[0].mxu0
        %3454 = vmatprep.mubr.bf16.mxu0 %v2540
        %3455 = vmatmul.mubr.bf16.gmra.mrb[0].mxu0 %v2539
        %v3456 = vpop.f32.mrb[0].mxu0
        %v3457 = vadd.f32 0.0, %v3456
        %v3458 = vpop.f32.mrb[0].mxu0
        %v3459 = vpop.f32.mrb[0].mxu0
        %v3460 = vadd.f32 0.0, %v3459
        %v3461 = vpop.f32.mrb[0].mxu0
        %3462 = vmatprep.mubr.bf16.mxu0 %v2543
        %3463 = vmatmul.mubr.bf16.gmra.mrb[0].mxu0 %v2542
        %v3464 = vpop.f32.mrb[0].mxu0
        %v3465 = vadd.f32 0.0, %v3464
        %v3466 = vpop.f32.mrb[0].mxu0
        %v3467 = vpop.f32.mrb[0].mxu0
        %v3468 = vadd.f32 0.0, %v3467
        %v3469 = vpop.f32.mrb[0].mxu0
        %3470 = vmatprep.mubr.bf16.mxu0 %v3219
        %3471 = vmatmul.mubr.bf16.gmra.mrb[0].mxu0 %v3218
        %v3472 = vpop.f32.mrb[0].mxu0
        %v3473 = vadd.f32 0.0, %v3472
        %v3474 = vpop.f32.mrb[0].mxu0
        %v3475 = vpop.f32.mrb[0].mxu0
        %v3476 = vadd.f32 0.0, %v3475
        %v3477 = vpop.f32.mrb[0].mxu0
        %3478 = vdwg.mxu0
        %3479 = vmatprep.subr.bf16.mxu0 0
        %3480 = vmatpush1.bf16.msra.mxu0 %v3382
        %3481 = vmatprep.subr.bf16.mxu0 0
        %3482 = vmatpush1.bf16.msra.mxu0 %v3383
        %3483 = vmatprep.subr.bf16.mxu0 0
        %3484 = vmatpush1.bf16.msra.mxu0 %v3384
        %3485 = vmatprep.subr.bf16.mxu0 0
        %3486 = vmatpush1.bf16.msra.mxu0 %v3385
        %3487 = vmatprep.subr.bf16.mxu0 0
        %3488 = vmatpush1.bf16.msra.mxu0 %v3386
        %3489 = vmatprep.subr.bf16.mxu0 0
        %3490 = vmatpush1.bf16.msra.mxu0 %v3387
        %3491 = vmatprep.subr.bf16.mxu0 0
        %3492 = vmatpush1.bf16.msra.mxu0 %v3388
        %3493 = vmatprep.subr.bf16.mxu0 0
        %3494 = vmatpush1.bf16.msra.mxu0 %v3389
        %3495 = vmatprep.subr.bf16.mxu0 0
        %3496 = vmatpush1.bf16.msra.mxu0 0
        %3497 = vmatprep.subr.bf16.mxu0 0
        %3498 = vmatpush1.bf16.msra.mxu0 0
        %3499 = vmatprep.subr.bf16.mxu0 0
        %3500 = vmatpush1.bf16.msra.mxu0 0
        %3501 = vmatprep.subr.bf16.mxu0 0
        %3502 = vmatpush1.bf16.msra.mxu0 0
        %3503 = vmatprep.subr.bf16.mxu0 0
        %3504 = vmatpush1.bf16.msra.mxu0 0
        %3505 = vmatprep.subr.bf16.mxu0 0
        %3506 = vmatpush1.bf16.msra.mxu0 0
        %3507 = vmatprep.subr.bf16.mxu0 0
        %3508 = vmatpush1.bf16.msra.mxu0 0
        %3509 = vmatprep.subr.bf16.mxu0 0
        %3510 = vmatpush1.bf16.msra.mxu0 0
        %3511 = vmatprep.mubr.bf16.mxu0 0
        %3512 = vmatmul.mubr.bf16.gmra.mrb[0].mxu0 %v2538
        %v3513 = vpop.f32.mrb[0].mxu0
        %v3514 = vadd.f32 %v3449, %v3513
        %v3515 = vpop.f32.mrb[0].mxu0
        %v3516 = vpop.f32.mrb[0].mxu0
        %v3517 = vadd.f32 %v3452, %v3516
        %v3518 = vpop.f32.mrb[0].mxu0
        %3519 = vmatprep.mubr.bf16.mxu0 0
        %3520 = vmatmul.mubr.bf16.gmra.mrb[0].mxu0 %v2541
        %v3521 = vpop.f32.mrb[0].mxu0
        %v3522 = vadd.f32 %v3457, %v3521
        %v3523 = vpop.f32.mrb[0].mxu0
        %v3524 = vpop.f32.mrb[0].mxu0
        %v3525 = vadd.f32 %v3460, %v3524
        %v3526 = vpop.f32.mrb[0].mxu0
        %3527 = vmatprep.mubr.bf16.mxu0 0
        %3528 = vmatmul.mubr.bf16.gmra.mrb[0].mxu0 %v2544
        %v3529 = vpop.f32.mrb[0].mxu0
        %v3530 = vadd.f32 %v3465, %v3529
        %v3531 = vpop.f32.mrb[0].mxu0
        %v3532 = vpop.f32.mrb[0].mxu0
        %v3533 = vadd.f32 %v3468, %v3532
        %v3534 = vpop.f32.mrb[0].mxu0
        %3535 = vmatprep.mubr.bf16.mxu0 0
        %3536 = vmatmul.mubr.bf16.gmra.mrb[0].mxu0 %v3220
        %v3537 = vpop.f32.mrb[0].mxu0
        %v3538 = vadd.f32 %v3473, %v3537
        %v3539 = vpop.f32.mrb[0].mxu0
        %v3540 = vpop.f32.mrb[0].mxu0
        %v3541 = vadd.f32 %v3476, %v3540
        %v3542 = vpop.f32.mrb[0].mxu0
        %3543 = vdwg.mxu0
        %v3544 = vadd.f32 %v3210, %v3514
        %v3545 = vadd.f32 %v3211, %v3517
        %v3546 = vadd.f32 %v3212, %v3522
        %v3547 = vadd.f32 %v3213, %v3525
        %v3548 = vadd.f32 %v3214, %v3530
        %v3549 = vadd.f32 %v3215, %v3533
        %v3550 = vadd.f32 %v3216, %v3538
        %v3551 = vadd.f32 %v3217, %v3541
        %v3552 = vmax.f32 %v3544, 0.0
        %v3553 = vmax.f32 %v3545, 0.0
        %v3554 = vmax.f32 %v3546, 0.0
        %v3555 = vmax.f32 %v3547, 0.0
        %v3556 = vmax.f32 %v3548, 0.0
        %v3557 = vmax.f32 %v3549, 0.0
        %v3558 = vmax.f32 %v3550, 0.0
        %v3559 = vmax.f32 %v3551, 0.0
        %v3560 = vrot.slane %v3552, 7
        %v3561 = vrot.slane %v3553, 7
        %v3562 = vrot.slane %v3554, 7
        %v3563 = vrot.slane %v3555, 7
        %v3564 = vrot.slane %v3556, 7
        %v3565 = vrot.slane %v3557, 7
        %v3566 = vrot.slane %v3558, 7
        %v3567 = vrot.slane %v3559, 7
        %v3568 = vsel %vm1242, %v3566, %v3567
        %v3569 = vsel %vm1242, %v3565, %v3566
        %v3570 = vsel %vm1242, %v3564, %v3565
        %v3571 = vsel %vm1242, %v3563, %v3564
        %v3572 = vsel %vm1242, %v3562, %v3563
        %v3573 = vsel %vm1242, %v3561, %v3562
        %v3574 = vsel %vm1242, %v3560, %v3561
        %v3575 = vsel %vm1242, %v3567, %v3560
        %v3576 = vsel %vm1226, %v3575, 0.0
        %v3577 = vsel %vm1227, %v3574, 0.0
        %v3578 = vsel %vm1228, %v3573, 0.0
        %v3579 = vsel %vm1229, %v3572, 0.0
        %v3580 = vsel %vm1230, %v3571, 0.0
        %v3581 = vsel %vm1231, %v3570, 0.0
        %v3582 = vsel %vm1232, %v3569, 0.0
        %v3583 = vsel %vm1233, %v3568, 0.0
        %v3584 = vrot.slane %v3552, 1
        %v3585 = vrot.slane %v3553, 1
        %v3586 = vrot.slane %v3554, 1
        %v3587 = vrot.slane %v3555, 1
        %v3588 = vrot.slane %v3556, 1
        %v3589 = vrot.slane %v3557, 1
        %v3590 = vrot.slane %v3558, 1
        %v3591 = vrot.slane %v3559, 1
        %v3592 = vsel %vm1275, %v3590, %v3591
        %v3593 = vsel %vm1275, %v3589, %v3590
        %v3594 = vsel %vm1275, %v3588, %v3589
        %v3595 = vsel %vm1275, %v3587, %v3588
        %v3596 = vsel %vm1275, %v3586, %v3587
        %v3597 = vsel %vm1275, %v3585, %v3586
        %v3598 = vsel %vm1275, %v3584, %v3585
        %v3599 = vsel %vm1275, %v3591, %v3584
        %v3600 = vsel %vm1259, %v3598, 0.0
        %v3601 = vsel %vm1260, %v3597, 0.0
        %v3602 = vsel %vm1261, %v3596, 0.0
        %v3603 = vsel %vm1262, %v3595, 0.0
        %v3604 = vsel %vm1263, %v3594, 0.0
        %v3605 = vsel %vm1264, %v3593, 0.0
        %v3606 = vsel %vm1265, %v3592, 0.0
        %v3607 = vsel %vm1266, %v3599, 0.0
        %v3608 = vld [vmem:[%s11] sm:$0x1]
        %v3610 = vlaneseq
        %v3611 = vshrl.u32 %v3610, 7
        %v3612 = vsub.s32 0, %v3611
        %v3613 = vrot.slane %v3608, %v3612
        %v3615 = vpack.c.bf16 %v3576, 0.0
        %v3616 = vpack.c.bf16 %v3552, 0.0
        %v3617 = vpack.c.bf16 %v3600, 0.0
        %v3618 = vpack.c.bf16 %v3578, %v3577
        %v3619 = vpack.c.bf16 %v3554, %v3553
        %v3620 = vpack.c.bf16 %v3602, %v3601
        %v3621 = vpack.c.bf16 %v3580, %v3579
        %v3622 = vpack.c.bf16 %v3556, %v3555
        %v3623 = vpack.c.bf16 %v3604, %v3603
        %v3624 = vpack.c.bf16 %v3582, %v3581
        %v3625 = vpack.c.bf16 %v3558, %v3557
        %v3626 = vpack.c.bf16 %v3606, %v3605
        %v3627 = vld [vmem:[%s10] sm:$0xf]
        %v3628 = vld [vmem:[%s10 + $0x4] sm:$0xf]
        %v3629 = vld [vmem:[%s10 + $0x8] sm:$0xf]
        %v3630 = vld [vmem:[%s10 + $0xc] sm:$0xf]
        %v3631 = vld [vmem:[%s10 + $0x10] sm:$0xf]
        %v3632 = vld [vmem:[%s10 + $0x14] sm:$0xf]
        %v3633 = vld [vmem:[%s10 + $0x18] sm:$0xf]
        %v3634 = vld [vmem:[%s10 + $0x1c] sm:$0xf]
        %v3635 = vld [vmem:[%s10 + $0x20] sm:$0xf]
        %v3636 = vld [vmem:[%s10 + $0x24] sm:$0xf]
        %v3637 = vld [vmem:[%s10 + $0x28] sm:$0xf]
        %v3638 = vld [vmem:[%s10 + $0x2c] sm:$0xf]
        %v3639 = vld [vmem:[%s10 + $0x30] sm:$0xf]
        %v3640 = vld [vmem:[%s10 + $0x34] sm:$0xf]
        %v3641 = vld [vmem:[%s10 + $0x38] sm:$0xf]
        %v3642 = vld [vmem:[%s10 + $0x3c] sm:$0xf]
        %v3643 = vld [vmem:[%s10 + $0x40] sm:$0xf]
        %v3644 = vld [vmem:[%s10 + $0x44] sm:$0xf]
        %v3645 = vld [vmem:[%s10 + $0x48] sm:$0xf]
        %v3646 = vld [vmem:[%s10 + $0x4c] sm:$0xf]
        %v3647 = vld [vmem:[%s10 + $0x50] sm:$0xf]
        %v3648 = vld [vmem:[%s10 + $0x54] sm:$0xf]
        %v3649 = vld [vmem:[%s10 + $0x58] sm:$0xf]
        %v3650 = vld [vmem:[%s10 + $0x5c] sm:$0xf]
        %v3651 = vld [vmem:[%s10 + $0x60] sm:$0xf]
        %v3652 = vld [vmem:[%s10 + $0x64] sm:$0xf]
        %v3653 = vld [vmem:[%s10 + $0x68] sm:$0xf]
        %v3654 = vld [vmem:[%s10 + $0x6c] sm:$0xf]
        %v3655 = vld [vmem:[%s10 + $0x70] sm:$0xf]
        %v3656 = vld [vmem:[%s10 + $0x74] sm:$0xf]
        %v3657 = vld [vmem:[%s10 + $0x78] sm:$0xf]
        %v3658 = vld [vmem:[%s10 + $0x7c] sm:$0xf]
        %v3659 = vld [vmem:[%s10 + $0x80] sm:$0xf]
        %v3660 = vld [vmem:[%s10 + $0x84] sm:$0xf]
        %v3661 = vld [vmem:[%s10 + $0x88] sm:$0xf]
        %v3662 = vld [vmem:[%s10 + $0x8c] sm:$0xf]
        %v3663 = vld [vmem:[%s10 + $0x90] sm:$0xf]
        %v3664 = vld [vmem:[%s10 + $0x94] sm:$0xf]
        %v3665 = vld [vmem:[%s10 + $0x98] sm:$0xf]
        %v3666 = vld [vmem:[%s10 + $0x9c] sm:$0xf]
        %v3667 = vld [vmem:[%s10 + $0xa0] sm:$0xf]
        %v3668 = vld [vmem:[%s10 + $0xa4] sm:$0xf]
        %v3669 = vld [vmem:[%s10 + $0xa8] sm:$0xf]
        %v3670 = vld [vmem:[%s10 + $0xac] sm:$0xf]
        %v3671 = vld [vmem:[%s10 + $0xb0] sm:$0xf]
        %v3672 = vld [vmem:[%s10 + $0xb4] sm:$0xf]
        %v3673 = vld [vmem:[%s10 + $0xb8] sm:$0xf]
        %v3674 = vld [vmem:[%s10 + $0xbc] sm:$0xf]
        %v3723 = vunpack.c.l.b16 %v3627
        %v3724 = vunpack.c.l.b16 %v3628
        %v3725 = vunpack.c.l.b16 %v3629
        %v3726 = vunpack.c.l.b16 %v3630
        %v3727 = vunpack.c.l.b16 %v3631
        %v3728 = vunpack.c.l.b16 %v3632
        %v3729 = vunpack.c.l.b16 %v3633
        %v3730 = vunpack.c.l.b16 %v3634
        %v3731 = vunpack.c.l.b16 %v3635
        %v3732 = vunpack.c.l.b16 %v3636
        %v3733 = vunpack.c.l.b16 %v3637
        %v3734 = vunpack.c.l.b16 %v3638
        %v3735 = vunpack.c.l.b16 %v3639
        %v3736 = vunpack.c.l.b16 %v3640
        %v3737 = vunpack.c.l.b16 %v3641
        %v3738 = vunpack.c.l.b16 %v3642
        %v3739 = vunpack.c.l.b16 %v3643
        %v3740 = vunpack.c.l.b16 %v3644
        %v3741 = vunpack.c.l.b16 %v3645
        %v3742 = vunpack.c.l.b16 %v3646
        %v3743 = vunpack.c.l.b16 %v3647
        %v3744 = vunpack.c.l.b16 %v3648
        %v3745 = vunpack.c.l.b16 %v3649
        %v3746 = vunpack.c.l.b16 %v3650
        %v3747 = vunpack.c.l.b16 %v3651
        %v3748 = vunpack.c.l.b16 %v3652
        %v3749 = vunpack.c.l.b16 %v3653
        %v3750 = vunpack.c.l.b16 %v3654
        %v3751 = vunpack.c.l.b16 %v3655
        %v3752 = vunpack.c.l.b16 %v3656
        %v3753 = vunpack.c.l.b16 %v3657
        %v3754 = vunpack.c.l.b16 %v3658
        %v3755 = vunpack.c.l.b16 %v3659
        %v3756 = vunpack.c.l.b16 %v3660
        %v3757 = vunpack.c.l.b16 %v3661
        %v3758 = vunpack.c.l.b16 %v3662
        %v3759 = vunpack.c.l.b16 %v3663
        %v3760 = vunpack.c.l.b16 %v3664
        %v3761 = vunpack.c.l.b16 %v3665
        %v3762 = vunpack.c.l.b16 %v3666
        %v3763 = vunpack.c.l.b16 %v3667
        %v3764 = vunpack.c.l.b16 %v3668
        %v3765 = vunpack.c.l.b16 %v3669
        %v3766 = vunpack.c.l.b16 %v3670
        %v3767 = vunpack.c.l.b16 %v3671
        %v3768 = vunpack.c.l.b16 %v3672
        %v3769 = vunpack.c.l.b16 %v3673
        %v3770 = vunpack.c.l.b16 %v3674
        %v3771 = vpack.c.b16 %v3724, %v3723
        %v3772 = vpack.c.b16 %v3726, %v3725
        %v3773 = vpack.c.b16 %v3728, %v3727
        %v3774 = vpack.c.b16 %v3730, %v3729
        %v3775 = vpack.c.b16 %v3732, %v3731
        %v3776 = vpack.c.b16 %v3734, %v3733
        %v3777 = vpack.c.b16 %v3736, %v3735
        %v3778 = vpack.c.b16 %v3738, %v3737
        %v3779 = vpack.c.b16 %v3740, %v3739
        %v3780 = vpack.c.b16 %v3742, %v3741
        %v3781 = vpack.c.b16 %v3744, %v3743
        %v3782 = vpack.c.b16 %v3746, %v3745
        %v3783 = vpack.c.b16 %v3748, %v3747
        %v3784 = vpack.c.b16 %v3750, %v3749
        %v3785 = vpack.c.b16 %v3752, %v3751
        %v3786 = vpack.c.b16 %v3754, %v3753
        %v3787 = vpack.c.b16 %v3756, %v3755
        %v3788 = vpack.c.b16 %v3758, %v3757
        %v3789 = vpack.c.b16 %v3760, %v3759
        %v3790 = vpack.c.b16 %v3762, %v3761
        %v3791 = vpack.c.b16 %v3764, %v3763
        %v3792 = vpack.c.b16 %v3766, %v3765
        %v3793 = vpack.c.b16 %v3768, %v3767
        %v3794 = vpack.c.b16 %v3770, %v3769
        %3819 = vmatprep.subr.bf16.mxu0 0
        %3820 = vmatpush1.bf16.msra.mxu0 %v3771
        %3821 = vmatprep.subr.bf16.mxu0 0
        %3822 = vmatpush1.bf16.msra.mxu0 %v3772
        %3823 = vmatprep.subr.bf16.mxu0 0
        %3824 = vmatpush1.bf16.msra.mxu0 %v3773
        %3825 = vmatprep.subr.bf16.mxu0 0
        %3826 = vmatpush1.bf16.msra.mxu0 %v3774
        %3827 = vmatprep.subr.bf16.mxu0 0
        %3828 = vmatpush1.bf16.msra.mxu0 %v3775
        %3829 = vmatprep.subr.bf16.mxu0 0
        %3830 = vmatpush1.bf16.msra.mxu0 %v3776
        %3831 = vmatprep.subr.bf16.mxu0 0
        %3832 = vmatpush1.bf16.msra.mxu0 %v3777
        %3833 = vmatprep.subr.bf16.mxu0 0
        %3834 = vmatpush1.bf16.msra.mxu0 %v3778
        %3835 = vmatprep.subr.bf16.mxu0 0
        %3836 = vmatpush1.bf16.msra.mxu0 %v3779
        %3837 = vmatprep.subr.bf16.mxu0 0
        %3838 = vmatpush1.bf16.msra.mxu0 %v3780
        %3839 = vmatprep.subr.bf16.mxu0 0
        %3840 = vmatpush1.bf16.msra.mxu0 %v3781
        %3841 = vmatprep.subr.bf16.mxu0 0
        %3842 = vmatpush1.bf16.msra.mxu0 %v3782
        %3843 = vmatprep.subr.bf16.mxu0 0
        %3844 = vmatpush1.bf16.msra.mxu0 %v3783
        %3845 = vmatprep.subr.bf16.mxu0 0
        %3846 = vmatpush1.bf16.msra.mxu0 %v3784
        %3847 = vmatprep.subr.bf16.mxu0 0
        %3848 = vmatpush1.bf16.msra.mxu0 %v3785
        %3849 = vmatprep.subr.bf16.mxu0 0
        %3850 = vmatpush1.bf16.msra.mxu0 %v3786
        %3851 = vmatprep.mubr.bf16.mxu0 %v3616
        %3852 = vmatmul.mubr.bf16.gmra.mrb[0].mxu0 %v3615
        %v3853 = vpop.f32.mrb[0].mxu0
        %v3854 = vadd.f32 0.0, %v3853
        %v3855 = vpop.f32.mrb[0].mxu0
        %v3856 = vpop.f32.mrb[0].mxu0
        %v3857 = vadd.f32 0.0, %v3856
        %v3858 = vpop.f32.mrb[0].mxu0
        %3859 = vmatprep.mubr.bf16.mxu0 %v3619
        %3860 = vmatmul.mubr.bf16.gmra.mrb[0].mxu0 %v3618
        %v3861 = vpop.f32.mrb[0].mxu0
        %v3862 = vadd.f32 0.0, %v3861
        %v3863 = vpop.f32.mrb[0].mxu0
        %v3864 = vpop.f32.mrb[0].mxu0
        %v3865 = vadd.f32 0.0, %v3864
        %v3866 = vpop.f32.mrb[0].mxu0
        %3867 = vmatprep.mubr.bf16.mxu0 %v3622
        %3868 = vmatmul.mubr.bf16.gmra.mrb[0].mxu0 %v3621
        %v3869 = vpop.f32.mrb[0].mxu0
        %v3870 = vadd.f32 0.0, %v3869
        %v3871 = vpop.f32.mrb[0].mxu0
        %v3872 = vpop.f32.mrb[0].mxu0
        %v3873 = vadd.f32 0.0, %v3872
        %v3874 = vpop.f32.mrb[0].mxu0
        %3875 = vmatprep.mubr.bf16.mxu0 %v3625
        %3876 = vmatmul.mubr.bf16.gmra.mrb[0].mxu0 %v3624
        %v3877 = vpop.f32.mrb[0].mxu0
        %v3878 = vadd.f32 0.0, %v3877
        %v3879 = vpop.f32.mrb[0].mxu0
        %v3880 = vpop.f32.mrb[0].mxu0
        %v3881 = vadd.f32 0.0, %v3880
        %v3882 = vpop.f32.mrb[0].mxu0
        %3883 = vdwg.mxu0
        %3884 = vmatprep.subr.bf16.mxu0 0
        %3885 = vmatpush1.bf16.msra.mxu0 %v3787
        %3886 = vmatprep.subr.bf16.mxu0 0
        %3887 = vmatpush1.bf16.msra.mxu0 %v3788
        %3888 = vmatprep.subr.bf16.mxu0 0
        %3889 = vmatpush1.bf16.msra.mxu0 %v3789
        %3890 = vmatprep.subr.bf16.mxu0 0
        %3891 = vmatpush1.bf16.msra.mxu0 %v3790
        %3892 = vmatprep.subr.bf16.mxu0 0
        %3893 = vmatpush1.bf16.msra.mxu0 %v3791
        %3894 = vmatprep.subr.bf16.mxu0 0
        %3895 = vmatpush1.bf16.msra.mxu0 %v3792
        %3896 = vmatprep.subr.bf16.mxu0 0
        %3897 = vmatpush1.bf16.msra.mxu0 %v3793
        %3898 = vmatprep.subr.bf16.mxu0 0
        %3899 = vmatpush1.bf16.msra.mxu0 %v3794
        %3900 = vmatprep.subr.bf16.mxu0 0
        %3901 = vmatpush1.bf16.msra.mxu0 0
        %3902 = vmatprep.subr.bf16.mxu0 0
        %3903 = vmatpush1.bf16.msra.mxu0 0
        %3904 = vmatprep.subr.bf16.mxu0 0
        %3905 = vmatpush1.bf16.msra.mxu0 0
        %3906 = vmatprep.subr.bf16.mxu0 0
        %3907 = vmatpush1.bf16.msra.mxu0 0
        %3908 = vmatprep.subr.bf16.mxu0 0
        %3909 = vmatpush1.bf16.msra.mxu0 0
        %3910 = vmatprep.subr.bf16.mxu0 0
        %3911 = vmatpush1.bf16.msra.mxu0 0
        %3912 = vmatprep.subr.bf16.mxu0 0
        %3913 = vmatpush1.bf16.msra.mxu0 0
        %3914 = vmatprep.subr.bf16.mxu0 0
        %3915 = vmatpush1.bf16.msra.mxu0 0
        %3916 = vmatprep.mubr.bf16.mxu0 0
        %3917 = vmatmul.mubr.bf16.gmra.mrb[0].mxu0 %v3617
        %v3918 = vpop.f32.mrb[0].mxu0
        %v3919 = vadd.f32 %v3854, %v3918
        %v3920 = vpop.f32.mrb[0].mxu0
        %v3921 = vpop.f32.mrb[0].mxu0
        %v3922 = vadd.f32 %v3857, %v3921
        %v3923 = vpop.f32.mrb[0].mxu0
        %3924 = vmatprep.mubr.bf16.mxu0 0
        %3925 = vmatmul.mubr.bf16.gmra.mrb[0].mxu0 %v3620
        %v3926 = vpop.f32.mrb[0].mxu0
        %v3927 = vadd.f32 %v3862, %v3926
        %v3928 = vpop.f32.mrb[0].mxu0
        %v3929 = vpop.f32.mrb[0].mxu0
        %v3930 = vadd.f32 %v3865, %v3929
        %v3931 = vpop.f32.mrb[0].mxu0
        %3932 = vmatprep.mubr.bf16.mxu0 0
        %3933 = vmatmul.mubr.bf16.gmra.mrb[0].mxu0 %v3623
        %v3934 = vpop.f32.mrb[0].mxu0
        %v3935 = vadd.f32 %v3870, %v3934
        %v3936 = vpop.f32.mrb[0].mxu0
        %v3937 = vpop.f32.mrb[0].mxu0
        %v3938 = vadd.f32 %v3873, %v3937
        %v3939 = vpop.f32.mrb[0].mxu0
        %3940 = vmatprep.mubr.bf16.mxu0 0
        %3941 = vmatmul.mubr.bf16.gmra.mrb[0].mxu0 %v3626
        %v3942 = vpop.f32.mrb[0].mxu0
        %v3943 = vadd.f32 %v3878, %v3942
        %v3944 = vpop.f32.mrb[0].mxu0
        %v3945 = vpop.f32.mrb[0].mxu0
        %v3946 = vadd.f32 %v3881, %v3945
        %v3947 = vpop.f32.mrb[0].mxu0
        %3948 = vdwg.mxu0
        %v3949 = vadd.f32 %v3613, %v3919
        %v3950 = vadd.f32 %v3613, %v3922
        %v3951 = vadd.f32 %v3613, %v3927
        %v3952 = vadd.f32 %v3613, %v3930
        %v3953 = vadd.f32 %v3613, %v3935
        %v3954 = vadd.f32 %v3613, %v3938
        %v3955 = vadd.f32 %v3613, %v3943
        %v3956 = vadd.f32 %v3613, %v3946
        %v3957 = vpack.c.bf16 %v3577, %v3576
        %v3958 = vpack.c.bf16 %v3553, %v3552
        %v3959 = vpack.c.bf16 %v3601, %v3600
        %v3960 = vpack.c.bf16 %v3579, %v3578
        %v3961 = vpack.c.bf16 %v3555, %v3554
        %v3962 = vpack.c.bf16 %v3603, %v3602
        %v3963 = vpack.c.bf16 %v3581, %v3580
        %v3964 = vpack.c.bf16 %v3557, %v3556
        %v3965 = vpack.c.bf16 %v3605, %v3604
        %v3966 = vpack.c.bf16 %v3583, %v3582
        %v3967 = vpack.c.bf16 %v3559, %v3558
        %v3968 = vpack.c.bf16 %v3607, %v3606
        %s3969 = scalar_lea.vmem %s10, 192
        %v3970 = vld [vmem:[%s3969] sm:$0xf]
        %v3971 = vld [vmem:[%s3969 + $0x4] sm:$0xf]
        %v3972 = vld [vmem:[%s3969 + $0x8] sm:$0xf]
        %v3973 = vld [vmem:[%s3969 + $0xc] sm:$0xf]
        %v3974 = vld [vmem:[%s3969 + $0x10] sm:$0xf]
        %v3975 = vld [vmem:[%s3969 + $0x14] sm:$0xf]
        %v3976 = vld [vmem:[%s3969 + $0x18] sm:$0xf]
        %v3977 = vld [vmem:[%s3969 + $0x1c] sm:$0xf]
        %v3978 = vld [vmem:[%s3969 + $0x20] sm:$0xf]
        %v3979 = vld [vmem:[%s3969 + $0x24] sm:$0xf]
        %v3980 = vld [vmem:[%s3969 + $0x28] sm:$0xf]
        %v3981 = vld [vmem:[%s3969 + $0x2c] sm:$0xf]
        %v3982 = vld [vmem:[%s3969 + $0x30] sm:$0xf]
        %v3983 = vld [vmem:[%s3969 + $0x34] sm:$0xf]
        %v3984 = vld [vmem:[%s3969 + $0x38] sm:$0xf]
        %v3985 = vld [vmem:[%s3969 + $0x3c] sm:$0xf]
        %v3986 = vld [vmem:[%s3969 + $0x40] sm:$0xf]
        %v3987 = vld [vmem:[%s3969 + $0x44] sm:$0xf]
        %v3988 = vld [vmem:[%s3969 + $0x48] sm:$0xf]
        %v3989 = vld [vmem:[%s3969 + $0x4c] sm:$0xf]
        %v3990 = vld [vmem:[%s3969 + $0x50] sm:$0xf]
        %v3991 = vld [vmem:[%s3969 + $0x54] sm:$0xf]
        %v3992 = vld [vmem:[%s3969 + $0x58] sm:$0xf]
        %v3993 = vld [vmem:[%s3969 + $0x5c] sm:$0xf]
        %v3994 = vld [vmem:[%s3969 + $0x60] sm:$0xf]
        %v3995 = vld [vmem:[%s3969 + $0x64] sm:$0xf]
        %v3996 = vld [vmem:[%s3969 + $0x68] sm:$0xf]
        %v3997 = vld [vmem:[%s3969 + $0x6c] sm:$0xf]
        %v3998 = vld [vmem:[%s3969 + $0x70] sm:$0xf]
        %v3999 = vld [vmem:[%s3969 + $0x74] sm:$0xf]
        %v4000 = vld [vmem:[%s3969 + $0x78] sm:$0xf]
        %v4001 = vld [vmem:[%s3969 + $0x7c] sm:$0xf]
        %v4002 = vld [vmem:[%s3969 + $0x80] sm:$0xf]
        %v4003 = vld [vmem:[%s3969 + $0x84] sm:$0xf]
        %v4004 = vld [vmem:[%s3969 + $0x88] sm:$0xf]
        %v4005 = vld [vmem:[%s3969 + $0x8c] sm:$0xf]
        %v4006 = vld [vmem:[%s3969 + $0x90] sm:$0xf]
        %v4007 = vld [vmem:[%s3969 + $0x94] sm:$0xf]
        %v4008 = vld [vmem:[%s3969 + $0x98] sm:$0xf]
        %v4009 = vld [vmem:[%s3969 + $0x9c] sm:$0xf]
        %v4010 = vld [vmem:[%s3969 + $0xa0] sm:$0xf]
        %v4011 = vld [vmem:[%s3969 + $0xa4] sm:$0xf]
        %v4012 = vld [vmem:[%s3969 + $0xa8] sm:$0xf]
        %v4013 = vld [vmem:[%s3969 + $0xac] sm:$0xf]
        %v4014 = vld [vmem:[%s3969 + $0xb0] sm:$0xf]
        %v4015 = vld [vmem:[%s3969 + $0xb4] sm:$0xf]
        %v4016 = vld [vmem:[%s3969 + $0xb8] sm:$0xf]
        %v4017 = vld [vmem:[%s3969 + $0xbc] sm:$0xf]
        %v4066 = vunpack.c.l.b16 %v3970
        %v4067 = vunpack.c.l.b16 %v3971
        %v4068 = vunpack.c.l.b16 %v3972
        %v4069 = vunpack.c.l.b16 %v3973
        %v4070 = vunpack.c.l.b16 %v3974
        %v4071 = vunpack.c.l.b16 %v3975
        %v4072 = vunpack.c.l.b16 %v3976
        %v4073 = vunpack.c.l.b16 %v3977
        %v4074 = vunpack.c.l.b16 %v3978
        %v4075 = vunpack.c.l.b16 %v3979
        %v4076 = vunpack.c.l.b16 %v3980
        %v4077 = vunpack.c.l.b16 %v3981
        %v4078 = vunpack.c.l.b16 %v3982
        %v4079 = vunpack.c.l.b16 %v3983
        %v4080 = vunpack.c.l.b16 %v3984
        %v4081 = vunpack.c.l.b16 %v3985
        %v4082 = vunpack.c.l.b16 %v3986
        %v4083 = vunpack.c.l.b16 %v3987
        %v4084 = vunpack.c.l.b16 %v3988
        %v4085 = vunpack.c.l.b16 %v3989
        %v4086 = vunpack.c.l.b16 %v3990
        %v4087 = vunpack.c.l.b16 %v3991
        %v4088 = vunpack.c.l.b16 %v3992
        %v4089 = vunpack.c.l.b16 %v3993
        %v4090 = vunpack.c.l.b16 %v3994
        %v4091 = vunpack.c.l.b16 %v3995
        %v4092 = vunpack.c.l.b16 %v3996
        %v4093 = vunpack.c.l.b16 %v3997
        %v4094 = vunpack.c.l.b16 %v3998
        %v4095 = vunpack.c.l.b16 %v3999
        %v4096 = vunpack.c.l.b16 %v4000
        %v4097 = vunpack.c.l.b16 %v4001
        %v4098 = vunpack.c.l.b16 %v4002
        %v4099 = vunpack.c.l.b16 %v4003
        %v4100 = vunpack.c.l.b16 %v4004
        %v4101 = vunpack.c.l.b16 %v4005
        %v4102 = vunpack.c.l.b16 %v4006
        %v4103 = vunpack.c.l.b16 %v4007
        %v4104 = vunpack.c.l.b16 %v4008
        %v4105 = vunpack.c.l.b16 %v4009
        %v4106 = vunpack.c.l.b16 %v4010
        %v4107 = vunpack.c.l.b16 %v4011
        %v4108 = vunpack.c.l.b16 %v4012
        %v4109 = vunpack.c.l.b16 %v4013
        %v4110 = vunpack.c.l.b16 %v4014
        %v4111 = vunpack.c.l.b16 %v4015
        %v4112 = vunpack.c.l.b16 %v4016
        %v4113 = vunpack.c.l.b16 %v4017
        %v4114 = vpack.c.b16 %v4067, %v4066
        %v4115 = vpack.c.b16 %v4069, %v4068
        %v4116 = vpack.c.b16 %v4071, %v4070
        %v4117 = vpack.c.b16 %v4073, %v4072
        %v4118 = vpack.c.b16 %v4075, %v4074
        %v4119 = vpack.c.b16 %v4077, %v4076
        %v4120 = vpack.c.b16 %v4079, %v4078
        %v4121 = vpack.c.b16 %v4081, %v4080
        %v4122 = vpack.c.b16 %v4083, %v4082
        %v4123 = vpack.c.b16 %v4085, %v4084
        %v4124 = vpack.c.b16 %v4087, %v4086
        %v4125 = vpack.c.b16 %v4089, %v4088
        %v4126 = vpack.c.b16 %v4091, %v4090
        %v4127 = vpack.c.b16 %v4093, %v4092
        %v4128 = vpack.c.b16 %v4095, %v4094
        %v4129 = vpack.c.b16 %v4097, %v4096
        %v4130 = vpack.c.b16 %v4099, %v4098
        %v4131 = vpack.c.b16 %v4101, %v4100
        %v4132 = vpack.c.b16 %v4103, %v4102
        %v4133 = vpack.c.b16 %v4105, %v4104
        %v4134 = vpack.c.b16 %v4107, %v4106
        %v4135 = vpack.c.b16 %v4109, %v4108
        %v4136 = vpack.c.b16 %v4111, %v4110
        %v4137 = vpack.c.b16 %v4113, %v4112
        %4162 = vmatprep.subr.bf16.mxu0 0
        %4163 = vmatpush1.bf16.msra.mxu0 %v4114
        %4164 = vmatprep.subr.bf16.mxu0 0
        %4165 = vmatpush1.bf16.msra.mxu0 %v4115
        %4166 = vmatprep.subr.bf16.mxu0 0
        %4167 = vmatpush1.bf16.msra.mxu0 %v4116
        %4168 = vmatprep.subr.bf16.mxu0 0
        %4169 = vmatpush1.bf16.msra.mxu0 %v4117
        %4170 = vmatprep.subr.bf16.mxu0 0
        %4171 = vmatpush1.bf16.msra.mxu0 %v4118
        %4172 = vmatprep.subr.bf16.mxu0 0
        %4173 = vmatpush1.bf16.msra.mxu0 %v4119
        %4174 = vmatprep.subr.bf16.mxu0 0
        %4175 = vmatpush1.bf16.msra.mxu0 %v4120
        %4176 = vmatprep.subr.bf16.mxu0 0
        %4177 = vmatpush1.bf16.msra.mxu0 %v4121
        %4178 = vmatprep.subr.bf16.mxu0 0
        %4179 = vmatpush1.bf16.msra.mxu0 %v4122
        %4180 = vmatprep.subr.bf16.mxu0 0
        %4181 = vmatpush1.bf16.msra.mxu0 %v4123
        %4182 = vmatprep.subr.bf16.mxu0 0
        %4183 = vmatpush1.bf16.msra.mxu0 %v4124
        %4184 = vmatprep.subr.bf16.mxu0 0
        %4185 = vmatpush1.bf16.msra.mxu0 %v4125
        %4186 = vmatprep.subr.bf16.mxu0 0
        %4187 = vmatpush1.bf16.msra.mxu0 %v4126
        %4188 = vmatprep.subr.bf16.mxu0 0
        %4189 = vmatpush1.bf16.msra.mxu0 %v4127
        %4190 = vmatprep.subr.bf16.mxu0 0
        %4191 = vmatpush1.bf16.msra.mxu0 %v4128
        %4192 = vmatprep.subr.bf16.mxu0 0
        %4193 = vmatpush1.bf16.msra.mxu0 %v4129
        %4194 = vmatprep.mubr.bf16.mxu0 %v3958
        %4195 = vmatmul.mubr.bf16.gmra.mrb[0].mxu0 %v3957
        %v4196 = vpop.f32.mrb[0].mxu0
        %v4197 = vadd.f32 0.0, %v4196
        %v4198 = vpop.f32.mrb[0].mxu0
        %v4199 = vpop.f32.mrb[0].mxu0
        %v4200 = vadd.f32 0.0, %v4199
        %v4201 = vpop.f32.mrb[0].mxu0
        %4202 = vmatprep.mubr.bf16.mxu0 %v3961
        %4203 = vmatmul.mubr.bf16.gmra.mrb[0].mxu0 %v3960
        %v4204 = vpop.f32.mrb[0].mxu0
        %v4205 = vadd.f32 0.0, %v4204
        %v4206 = vpop.f32.mrb[0].mxu0
        %v4207 = vpop.f32.mrb[0].mxu0
        %v4208 = vadd.f32 0.0, %v4207
        %v4209 = vpop.f32.mrb[0].mxu0
        %4210 = vmatprep.mubr.bf16.mxu0 %v3964
        %4211 = vmatmul.mubr.bf16.gmra.mrb[0].mxu0 %v3963
        %v4212 = vpop.f32.mrb[0].mxu0
        %v4213 = vadd.f32 0.0, %v4212
        %v4214 = vpop.f32.mrb[0].mxu0
        %v4215 = vpop.f32.mrb[0].mxu0
        %v4216 = vadd.f32 0.0, %v4215
        %v4217 = vpop.f32.mrb[0].mxu0
        %4218 = vmatprep.mubr.bf16.mxu0 %v3967
        %4219 = vmatmul.mubr.bf16.gmra.mrb[0].mxu0 %v3966
        %v4220 = vpop.f32.mrb[0].mxu0
        %v4221 = vadd.f32 0.0, %v4220
        %v4222 = vpop.f32.mrb[0].mxu0
        %v4223 = vpop.f32.mrb[0].mxu0
        %v4224 = vadd.f32 0.0, %v4223
        %v4225 = vpop.f32.mrb[0].mxu0
        %4226 = vdwg.mxu0
        %4227 = vmatprep.subr.bf16.mxu0 0
        %4228 = vmatpush1.bf16.msra.mxu0 %v4130
        %4229 = vmatprep.subr.bf16.mxu0 0
        %4230 = vmatpush1.bf16.msra.mxu0 %v4131
        %4231 = vmatprep.subr.bf16.mxu0 0
        %4232 = vmatpush1.bf16.msra.mxu0 %v4132
        %4233 = vmatprep.subr.bf16.mxu0 0
        %4234 = vmatpush1.bf16.msra.mxu0 %v4133
        %4235 = vmatprep.subr.bf16.mxu0 0
        %4236 = vmatpush1.bf16.msra.mxu0 %v4134
        %4237 = vmatprep.subr.bf16.mxu0 0
        %4238 = vmatpush1.bf16.msra.mxu0 %v4135
        %4239 = vmatprep.subr.bf16.mxu0 0
        %4240 = vmatpush1.bf16.msra.mxu0 %v4136
        %4241 = vmatprep.subr.bf16.mxu0 0
        %4242 = vmatpush1.bf16.msra.mxu0 %v4137
        %4243 = vmatprep.subr.bf16.mxu0 0
        %4244 = vmatpush1.bf16.msra.mxu0 0
        %4245 = vmatprep.subr.bf16.mxu0 0
        %4246 = vmatpush1.bf16.msra.mxu0 0
        %4247 = vmatprep.subr.bf16.mxu0 0
        %4248 = vmatpush1.bf16.msra.mxu0 0
        %4249 = vmatprep.subr.bf16.mxu0 0
        %4250 = vmatpush1.bf16.msra.mxu0 0
        %4251 = vmatprep.subr.bf16.mxu0 0
        %4252 = vmatpush1.bf16.msra.mxu0 0
        %4253 = vmatprep.subr.bf16.mxu0 0
        %4254 = vmatpush1.bf16.msra.mxu0 0
        %4255 = vmatprep.subr.bf16.mxu0 0
        %4256 = vmatpush1.bf16.msra.mxu0 0
        %4257 = vmatprep.subr.bf16.mxu0 0
        %4258 = vmatpush1.bf16.msra.mxu0 0
        %4259 = vmatprep.mubr.bf16.mxu0 0
        %4260 = vmatmul.mubr.bf16.gmra.mrb[0].mxu0 %v3959
        %v4261 = vpop.f32.mrb[0].mxu0
        %v4262 = vadd.f32 %v4197, %v4261
        %v4263 = vpop.f32.mrb[0].mxu0
        %v4264 = vpop.f32.mrb[0].mxu0
        %v4265 = vadd.f32 %v4200, %v4264
        %v4266 = vpop.f32.mrb[0].mxu0
        %4267 = vmatprep.mubr.bf16.mxu0 0
        %4268 = vmatmul.mubr.bf16.gmra.mrb[0].mxu0 %v3962
        %v4269 = vpop.f32.mrb[0].mxu0
        %v4270 = vadd.f32 %v4205, %v4269
        %v4271 = vpop.f32.mrb[0].mxu0
        %v4272 = vpop.f32.mrb[0].mxu0
        %v4273 = vadd.f32 %v4208, %v4272
        %v4274 = vpop.f32.mrb[0].mxu0
        %4275 = vmatprep.mubr.bf16.mxu0 0
        %4276 = vmatmul.mubr.bf16.gmra.mrb[0].mxu0 %v3965
        %v4277 = vpop.f32.mrb[0].mxu0
        %v4278 = vadd.f32 %v4213, %v4277
        %v4279 = vpop.f32.mrb[0].mxu0
        %v4280 = vpop.f32.mrb[0].mxu0
        %v4281 = vadd.f32 %v4216, %v4280
        %v4282 = vpop.f32.mrb[0].mxu0
        %4283 = vmatprep.mubr.bf16.mxu0 0
        %4284 = vmatmul.mubr.bf16.gmra.mrb[0].mxu0 %v3968
        %v4285 = vpop.f32.mrb[0].mxu0
        %v4286 = vadd.f32 %v4221, %v4285
        %v4287 = vpop.f32.mrb[0].mxu0
        %v4288 = vpop.f32.mrb[0].mxu0
        %v4289 = vadd.f32 %v4224, %v4288
        %v4290 = vpop.f32.mrb[0].mxu0
        %4291 = vdwg.mxu0
        %v4292 = vadd.f32 %v3949, %v4262
        %v4293 = vadd.f32 %v3950, %v4265
        %v4294 = vadd.f32 %v3951, %v4270
        %v4295 = vadd.f32 %v3952, %v4273
        %v4296 = vadd.f32 %v3953, %v4278
        %v4297 = vadd.f32 %v3954, %v4281
        %v4298 = vadd.f32 %v3955, %v4286
        %v4299 = vadd.f32 %v3956, %v4289
        %v4300 = vpack.c.bf16 0.0, %v3583
        %v4301 = vpack.c.bf16 0.0, %v3559
        %v4302 = vpack.c.bf16 0.0, %v3607
        %s4303 = scalar_lea.vmem %s10, 384
        %v4304 = vld [vmem:[%s4303] sm:$0xf]
        %v4305 = vld [vmem:[%s4303 + $0x4] sm:$0xf]
        %v4306 = vld [vmem:[%s4303 + $0x8] sm:$0xf]
        %v4307 = vld [vmem:[%s4303 + $0xc] sm:$0xf]
        %v4308 = vld [vmem:[%s4303 + $0x10] sm:$0xf]
        %v4309 = vld [vmem:[%s4303 + $0x14] sm:$0xf]
        %v4310 = vld [vmem:[%s4303 + $0x18] sm:$0xf]
        %v4311 = vld [vmem:[%s4303 + $0x1c] sm:$0xf]
        %v4312 = vld [vmem:[%s4303 + $0x20] sm:$0xf]
        %v4313 = vld [vmem:[%s4303 + $0x24] sm:$0xf]
        %v4314 = vld [vmem:[%s4303 + $0x28] sm:$0xf]
        %v4315 = vld [vmem:[%s4303 + $0x2c] sm:$0xf]
        %v4316 = vld [vmem:[%s4303 + $0x30] sm:$0xf]
        %v4317 = vld [vmem:[%s4303 + $0x34] sm:$0xf]
        %v4318 = vld [vmem:[%s4303 + $0x38] sm:$0xf]
        %v4319 = vld [vmem:[%s4303 + $0x3c] sm:$0xf]
        %v4320 = vld [vmem:[%s4303 + $0x40] sm:$0xf]
        %v4321 = vld [vmem:[%s4303 + $0x44] sm:$0xf]
        %v4322 = vld [vmem:[%s4303 + $0x48] sm:$0xf]
        %v4323 = vld [vmem:[%s4303 + $0x4c] sm:$0xf]
        %v4324 = vld [vmem:[%s4303 + $0x50] sm:$0xf]
        %v4325 = vld [vmem:[%s4303 + $0x54] sm:$0xf]
        %v4326 = vld [vmem:[%s4303 + $0x58] sm:$0xf]
        %v4327 = vld [vmem:[%s4303 + $0x5c] sm:$0xf]
        %v4328 = vld [vmem:[%s4303 + $0x60] sm:$0xf]
        %v4329 = vld [vmem:[%s4303 + $0x64] sm:$0xf]
        %v4330 = vld [vmem:[%s4303 + $0x68] sm:$0xf]
        %v4331 = vld [vmem:[%s4303 + $0x6c] sm:$0xf]
        %v4332 = vld [vmem:[%s4303 + $0x70] sm:$0xf]
        %v4333 = vld [vmem:[%s4303 + $0x74] sm:$0xf]
        %v4334 = vld [vmem:[%s4303 + $0x78] sm:$0xf]
        %v4335 = vld [vmem:[%s4303 + $0x7c] sm:$0xf]
        %v4336 = vld [vmem:[%s4303 + $0x80] sm:$0xf]
        %v4337 = vld [vmem:[%s4303 + $0x84] sm:$0xf]
        %v4338 = vld [vmem:[%s4303 + $0x88] sm:$0xf]
        %v4339 = vld [vmem:[%s4303 + $0x8c] sm:$0xf]
        %v4340 = vld [vmem:[%s4303 + $0x90] sm:$0xf]
        %v4341 = vld [vmem:[%s4303 + $0x94] sm:$0xf]
        %v4342 = vld [vmem:[%s4303 + $0x98] sm:$0xf]
        %v4343 = vld [vmem:[%s4303 + $0x9c] sm:$0xf]
        %v4344 = vld [vmem:[%s4303 + $0xa0] sm:$0xf]
        %v4345 = vld [vmem:[%s4303 + $0xa4] sm:$0xf]
        %v4346 = vld [vmem:[%s4303 + $0xa8] sm:$0xf]
        %v4347 = vld [vmem:[%s4303 + $0xac] sm:$0xf]
        %v4348 = vld [vmem:[%s4303 + $0xb0] sm:$0xf]
        %v4349 = vld [vmem:[%s4303 + $0xb4] sm:$0xf]
        %v4350 = vld [vmem:[%s4303 + $0xb8] sm:$0xf]
        %v4351 = vld [vmem:[%s4303 + $0xbc] sm:$0xf]
        %v4400 = vunpack.c.l.b16 %v4304
        %v4401 = vunpack.c.l.b16 %v4305
        %v4402 = vunpack.c.l.b16 %v4306
        %v4403 = vunpack.c.l.b16 %v4307
        %v4404 = vunpack.c.l.b16 %v4308
        %v4405 = vunpack.c.l.b16 %v4309
        %v4406 = vunpack.c.l.b16 %v4310
        %v4407 = vunpack.c.l.b16 %v4311
        %v4408 = vunpack.c.l.b16 %v4312
        %v4409 = vunpack.c.l.b16 %v4313
        %v4410 = vunpack.c.l.b16 %v4314
        %v4411 = vunpack.c.l.b16 %v4315
        %v4412 = vunpack.c.l.b16 %v4316
        %v4413 = vunpack.c.l.b16 %v4317
        %v4414 = vunpack.c.l.b16 %v4318
        %v4415 = vunpack.c.l.b16 %v4319
        %v4416 = vunpack.c.l.b16 %v4320
        %v4417 = vunpack.c.l.b16 %v4321
        %v4418 = vunpack.c.l.b16 %v4322
        %v4419 = vunpack.c.l.b16 %v4323
        %v4420 = vunpack.c.l.b16 %v4324
        %v4421 = vunpack.c.l.b16 %v4325
        %v4422 = vunpack.c.l.b16 %v4326
        %v4423 = vunpack.c.l.b16 %v4327
        %v4424 = vunpack.c.l.b16 %v4328
        %v4425 = vunpack.c.l.b16 %v4329
        %v4426 = vunpack.c.l.b16 %v4330
        %v4427 = vunpack.c.l.b16 %v4331
        %v4428 = vunpack.c.l.b16 %v4332
        %v4429 = vunpack.c.l.b16 %v4333
        %v4430 = vunpack.c.l.b16 %v4334
        %v4431 = vunpack.c.l.b16 %v4335
        %v4432 = vunpack.c.l.b16 %v4336
        %v4433 = vunpack.c.l.b16 %v4337
        %v4434 = vunpack.c.l.b16 %v4338
        %v4435 = vunpack.c.l.b16 %v4339
        %v4436 = vunpack.c.l.b16 %v4340
        %v4437 = vunpack.c.l.b16 %v4341
        %v4438 = vunpack.c.l.b16 %v4342
        %v4439 = vunpack.c.l.b16 %v4343
        %v4440 = vunpack.c.l.b16 %v4344
        %v4441 = vunpack.c.l.b16 %v4345
        %v4442 = vunpack.c.l.b16 %v4346
        %v4443 = vunpack.c.l.b16 %v4347
        %v4444 = vunpack.c.l.b16 %v4348
        %v4445 = vunpack.c.l.b16 %v4349
        %v4446 = vunpack.c.l.b16 %v4350
        %v4447 = vunpack.c.l.b16 %v4351
        %v4448 = vpack.c.b16 %v4401, %v4400
        %v4449 = vpack.c.b16 %v4403, %v4402
        %v4450 = vpack.c.b16 %v4405, %v4404
        %v4451 = vpack.c.b16 %v4407, %v4406
        %v4452 = vpack.c.b16 %v4409, %v4408
        %v4453 = vpack.c.b16 %v4411, %v4410
        %v4454 = vpack.c.b16 %v4413, %v4412
        %v4455 = vpack.c.b16 %v4415, %v4414
        %v4456 = vpack.c.b16 %v4417, %v4416
        %v4457 = vpack.c.b16 %v4419, %v4418
        %v4458 = vpack.c.b16 %v4421, %v4420
        %v4459 = vpack.c.b16 %v4423, %v4422
        %v4460 = vpack.c.b16 %v4425, %v4424
        %v4461 = vpack.c.b16 %v4427, %v4426
        %v4462 = vpack.c.b16 %v4429, %v4428
        %v4463 = vpack.c.b16 %v4431, %v4430
        %v4464 = vpack.c.b16 %v4433, %v4432
        %v4465 = vpack.c.b16 %v4435, %v4434
        %v4466 = vpack.c.b16 %v4437, %v4436
        %v4467 = vpack.c.b16 %v4439, %v4438
        %v4468 = vpack.c.b16 %v4441, %v4440
        %v4469 = vpack.c.b16 %v4443, %v4442
        %v4470 = vpack.c.b16 %v4445, %v4444
        %v4471 = vpack.c.b16 %v4447, %v4446
        %4496 = vmatprep.subr.bf16.mxu0 0
        %4497 = vmatpush1.bf16.msra.mxu0 %v4448
        %4498 = vmatprep.subr.bf16.mxu0 0
        %4499 = vmatpush1.bf16.msra.mxu0 %v4449
        %4500 = vmatprep.subr.bf16.mxu0 0
        %4501 = vmatpush1.bf16.msra.mxu0 %v4450
        %4502 = vmatprep.subr.bf16.mxu0 0
        %4503 = vmatpush1.bf16.msra.mxu0 %v4451
        %4504 = vmatprep.subr.bf16.mxu0 0
        %4505 = vmatpush1.bf16.msra.mxu0 %v4452
        %4506 = vmatprep.subr.bf16.mxu0 0
        %4507 = vmatpush1.bf16.msra.mxu0 %v4453
        %4508 = vmatprep.subr.bf16.mxu0 0
        %4509 = vmatpush1.bf16.msra.mxu0 %v4454
        %4510 = vmatprep.subr.bf16.mxu0 0
        %4511 = vmatpush1.bf16.msra.mxu0 %v4455
        %4512 = vmatprep.subr.bf16.mxu0 0
        %4513 = vmatpush1.bf16.msra.mxu0 %v4456
        %4514 = vmatprep.subr.bf16.mxu0 0
        %4515 = vmatpush1.bf16.msra.mxu0 %v4457
        %4516 = vmatprep.subr.bf16.mxu0 0
        %4517 = vmatpush1.bf16.msra.mxu0 %v4458
        %4518 = vmatprep.subr.bf16.mxu0 0
        %4519 = vmatpush1.bf16.msra.mxu0 %v4459
        %4520 = vmatprep.subr.bf16.mxu0 0
        %4521 = vmatpush1.bf16.msra.mxu0 %v4460
        %4522 = vmatprep.subr.bf16.mxu0 0
        %4523 = vmatpush1.bf16.msra.mxu0 %v4461
        %4524 = vmatprep.subr.bf16.mxu0 0
        %4525 = vmatpush1.bf16.msra.mxu0 %v4462
        %4526 = vmatprep.subr.bf16.mxu0 0
        %4527 = vmatpush1.bf16.msra.mxu0 %v4463
        %4528 = vmatprep.mubr.bf16.mxu0 %v3619
        %4529 = vmatmul.mubr.bf16.gmra.mrb[0].mxu0 %v3618
        %v4530 = vpop.f32.mrb[0].mxu0
        %v4531 = vadd.f32 0.0, %v4530
        %v4532 = vpop.f32.mrb[0].mxu0
        %v4533 = vpop.f32.mrb[0].mxu0
        %v4534 = vadd.f32 0.0, %v4533
        %v4535 = vpop.f32.mrb[0].mxu0
        %4536 = vmatprep.mubr.bf16.mxu0 %v3622
        %4537 = vmatmul.mubr.bf16.gmra.mrb[0].mxu0 %v3621
        %v4538 = vpop.f32.mrb[0].mxu0
        %v4539 = vadd.f32 0.0, %v4538
        %v4540 = vpop.f32.mrb[0].mxu0
        %v4541 = vpop.f32.mrb[0].mxu0
        %v4542 = vadd.f32 0.0, %v4541
        %v4543 = vpop.f32.mrb[0].mxu0
        %4544 = vmatprep.mubr.bf16.mxu0 %v3625
        %4545 = vmatmul.mubr.bf16.gmra.mrb[0].mxu0 %v3624
        %v4546 = vpop.f32.mrb[0].mxu0
        %v4547 = vadd.f32 0.0, %v4546
        %v4548 = vpop.f32.mrb[0].mxu0
        %v4549 = vpop.f32.mrb[0].mxu0
        %v4550 = vadd.f32 0.0, %v4549
        %v4551 = vpop.f32.mrb[0].mxu0
        %4552 = vmatprep.mubr.bf16.mxu0 %v4301
        %4553 = vmatmul.mubr.bf16.gmra.mrb[0].mxu0 %v4300
        %v4554 = vpop.f32.mrb[0].mxu0
        %v4555 = vadd.f32 0.0, %v4554
        %v4556 = vpop.f32.mrb[0].mxu0
        %v4557 = vpop.f32.mrb[0].mxu0
        %v4558 = vadd.f32 0.0, %v4557
        %v4559 = vpop.f32.mrb[0].mxu0
        %4560 = vdwg.mxu0
        %4561 = vmatprep.subr.bf16.mxu0 0
        %4562 = vmatpush1.bf16.msra.mxu0 %v4464
        %4563 = vmatprep.subr.bf16.mxu0 0
        %4564 = vmatpush1.bf16.msra.mxu0 %v4465
        %4565 = vmatprep.subr.bf16.mxu0 0
        %4566 = vmatpush1.bf16.msra.mxu0 %v4466
        %4567 = vmatprep.subr.bf16.mxu0 0
        %4568 = vmatpush1.bf16.msra.mxu0 %v4467
        %4569 = vmatprep.subr.bf16.mxu0 0
        %4570 = vmatpush1.bf16.msra.mxu0 %v4468
        %4571 = vmatprep.subr.bf16.mxu0 0
        %4572 = vmatpush1.bf16.msra.mxu0 %v4469
        %4573 = vmatprep.subr.bf16.mxu0 0
        %4574 = vmatpush1.bf16.msra.mxu0 %v4470
        %4575 = vmatprep.subr.bf16.mxu0 0
        %4576 = vmatpush1.bf16.msra.mxu0 %v4471
        %4577 = vmatprep.subr.bf16.mxu0 0
        %4578 = vmatpush1.bf16.msra.mxu0 0
        %4579 = vmatprep.subr.bf16.mxu0 0
        %4580 = vmatpush1.bf16.msra.mxu0 0
        %4581 = vmatprep.subr.bf16.mxu0 0
        %4582 = vmatpush1.bf16.msra.mxu0 0
        %4583 = vmatprep.subr.bf16.mxu0 0
        %4584 = vmatpush1.bf16.msra.mxu0 0
        %4585 = vmatprep.subr.bf16.mxu0 0
        %4586 = vmatpush1.bf16.msra.mxu0 0
        %4587 = vmatprep.subr.bf16.mxu0 0
        %4588 = vmatpush1.bf16.msra.mxu0 0
        %4589 = vmatprep.subr.bf16.mxu0 0
        %4590 = vmatpush1.bf16.msra.mxu0 0
        %4591 = vmatprep.subr.bf16.mxu0 0
        %4592 = vmatpush1.bf16.msra.mxu0 0
        %4593 = vmatprep.mubr.bf16.mxu0 0
        %4594 = vmatmul.mubr.bf16.gmra.mrb[0].mxu0 %v3620
        %v4595 = vpop.f32.mrb[0].mxu0
        %v4596 = vadd.f32 %v4531, %v4595
        %v4597 = vpop.f32.mrb[0].mxu0
        %v4598 = vpop.f32.mrb[0].mxu0
        %v4599 = vadd.f32 %v4534, %v4598
        %v4600 = vpop.f32.mrb[0].mxu0
        %4601 = vmatprep.mubr.bf16.mxu0 0
        %4602 = vmatmul.mubr.bf16.gmra.mrb[0].mxu0 %v3623
        %v4603 = vpop.f32.mrb[0].mxu0
        %v4604 = vadd.f32 %v4539, %v4603
        %v4605 = vpop.f32.mrb[0].mxu0
        %v4606 = vpop.f32.mrb[0].mxu0
        %v4607 = vadd.f32 %v4542, %v4606
        %v4608 = vpop.f32.mrb[0].mxu0
        %4609 = vmatprep.mubr.bf16.mxu0 0
        %4610 = vmatmul.mubr.bf16.gmra.mrb[0].mxu0 %v3626
        %v4611 = vpop.f32.mrb[0].mxu0
        %v4612 = vadd.f32 %v4547, %v4611
        %v4613 = vpop.f32.mrb[0].mxu0
        %v4614 = vpop.f32.mrb[0].mxu0
        %v4615 = vadd.f32 %v4550, %v4614
        %v4616 = vpop.f32.mrb[0].mxu0
        %4617 = vmatprep.mubr.bf16.mxu0 0
        %4618 = vmatmul.mubr.bf16.gmra.mrb[0].mxu0 %v4302
        %v4619 = vpop.f32.mrb[0].mxu0
        %v4620 = vadd.f32 %v4555, %v4619
        %v4621 = vpop.f32.mrb[0].mxu0
        %v4622 = vpop.f32.mrb[0].mxu0
        %v4623 = vadd.f32 %v4558, %v4622
        %v4624 = vpop.f32.mrb[0].mxu0
        %4625 = vdwg.mxu0
        %v4626 = vadd.f32 %v4292, %v4596
        %v4627 = vadd.f32 %v4293, %v4599
        %v4628 = vadd.f32 %v4294, %v4604
        %v4629 = vadd.f32 %v4295, %v4607
        %v4630 = vadd.f32 %v4296, %v4612
        %v4631 = vadd.f32 %v4297, %v4615
        %v4632 = vadd.f32 %v4298, %v4620
        %v4633 = vadd.f32 %v4299, %v4623
        %v4634 = vadd.f32 %v4626, %v2470
        %v4635 = vadd.f32 %v4627, %v2471
        %v4636 = vadd.f32 %v4628, %v2472
        %v4637 = vadd.f32 %v4629, %v2473
        %v4638 = vadd.f32 %v4630, %v2474
        %v4639 = vadd.f32 %v4631, %v2475
        %v4640 = vadd.f32 %v4632, %v2476
        %v4641 = vadd.f32 %v4633, %v2477
        %v4642 = vmax.f32 %v4634, 0.0
        %v4643 = vmax.f32 %v4635, 0.0
        %v4644 = vmax.f32 %v4636, 0.0
        %v4645 = vmax.f32 %v4637, 0.0
        %v4646 = vmax.f32 %v4638, 0.0
        %v4647 = vmax.f32 %v4639, 0.0
        %v4648 = vmax.f32 %v4640, 0.0
        %v4649 = vmax.f32 %v4641, 0.0
        %v4650 = vpack.c.bf16 %v4643, %v4642
        %v4651 = vpack.c.bf16 %v4645, %v4644
        %v4652 = vpack.c.bf16 %v4647, %v4646
        %v4653 = vpack.c.bf16 %v4649, %v4648
        %v4654 = vld [vmem:[%s12] sm:$0xf]
        %v4655 = vld [vmem:[%s12 + $0x4] sm:$0xf]
        %v4656 = vld [vmem:[%s12 + $0x8] sm:$0xf]
        %v4657 = vld [vmem:[%s12 + $0xc] sm:$0xf]
        %v4658 = vld [vmem:[%s12 + $0x10] sm:$0xf]
        %v4659 = vld [vmem:[%s12 + $0x14] sm:$0xf]
        %v4660 = vld [vmem:[%s12 + $0x18] sm:$0xf]
        %v4661 = vld [vmem:[%s12 + $0x1c] sm:$0xf]
        %v4662 = vld [vmem:[%s12 + $0x20] sm:$0xf]
        %v4663 = vld [vmem:[%s12 + $0x24] sm:$0xf]
        %v4664 = vld [vmem:[%s12 + $0x28] sm:$0xf]
        %v4665 = vld [vmem:[%s12 + $0x2c] sm:$0xf]
        %v4666 = vld [vmem:[%s12 + $0x30] sm:$0xf]
        %v4667 = vld [vmem:[%s12 + $0x34] sm:$0xf]
        %v4668 = vld [vmem:[%s12 + $0x38] sm:$0xf]
        %v4669 = vld [vmem:[%s12 + $0x3c] sm:$0xf]
        %v4686 = vunpack.c.l.b16 %v4654
        %v4687 = vunpack.c.l.b16 %v4655
        %v4688 = vunpack.c.l.b16 %v4656
        %v4689 = vunpack.c.l.b16 %v4657
        %v4690 = vunpack.c.l.b16 %v4658
        %v4691 = vunpack.c.l.b16 %v4659
        %v4692 = vunpack.c.l.b16 %v4660
        %v4693 = vunpack.c.l.b16 %v4661
        %v4694 = vunpack.c.l.b16 %v4662
        %v4695 = vunpack.c.l.b16 %v4663
        %v4696 = vunpack.c.l.b16 %v4664
        %v4697 = vunpack.c.l.b16 %v4665
        %v4698 = vunpack.c.l.b16 %v4666
        %v4699 = vunpack.c.l.b16 %v4667
        %v4700 = vunpack.c.l.b16 %v4668
        %v4701 = vunpack.c.l.b16 %v4669
        %v4702 = vpack.c.b16 %v4687, %v4686
        %v4703 = vpack.c.b16 %v4689, %v4688
        %v4704 = vpack.c.b16 %v4691, %v4690
        %v4705 = vpack.c.b16 %v4693, %v4692
        %v4706 = vpack.c.b16 %v4695, %v4694
        %v4707 = vpack.c.b16 %v4697, %v4696
        %v4708 = vpack.c.b16 %v4699, %v4698
        %v4709 = vpack.c.b16 %v4701, %v4700
        %4718 = vmatprep.subr.bf16.mxu0 0
        %4719 = vmatpush1.bf16.msra.mxu0 %v4702
        %4720 = vmatprep.subr.bf16.mxu0 0
        %4721 = vmatpush1.bf16.msra.mxu0 %v4703
        %4722 = vmatprep.subr.bf16.mxu0 0
        %4723 = vmatpush1.bf16.msra.mxu0 %v4704
        %4724 = vmatprep.subr.bf16.mxu0 0
        %4725 = vmatpush1.bf16.msra.mxu0 %v4705
        %4726 = vmatprep.subr.bf16.mxu0 0
        %4727 = vmatpush1.bf16.msra.mxu0 %v4706
        %4728 = vmatprep.subr.bf16.mxu0 0
        %4729 = vmatpush1.bf16.msra.mxu0 %v4707
        %4730 = vmatprep.subr.bf16.mxu0 0
        %4731 = vmatpush1.bf16.msra.mxu0 %v4708
        %4732 = vmatprep.subr.bf16.mxu0 0
        %4733 = vmatpush1.bf16.msra.mxu0 %v4709
        %4734 = vmatprep.subr.bf16.mxu0 0
        %4735 = vmatpush1.bf16.msra.mxu0 0
        %4736 = vmatprep.subr.bf16.mxu0 0
        %4737 = vmatpush1.bf16.msra.mxu0 0
        %4738 = vmatprep.subr.bf16.mxu0 0
        %4739 = vmatpush1.bf16.msra.mxu0 0
        %4740 = vmatprep.subr.bf16.mxu0 0
        %4741 = vmatpush1.bf16.msra.mxu0 0
        %4742 = vmatprep.subr.bf16.mxu0 0
        %4743 = vmatpush1.bf16.msra.mxu0 0
        %4744 = vmatprep.subr.bf16.mxu0 0
        %4745 = vmatpush1.bf16.msra.mxu0 0
        %4746 = vmatprep.subr.bf16.mxu0 0
        %4747 = vmatpush1.bf16.msra.mxu0 0
        %4748 = vmatprep.subr.bf16.mxu0 0
        %4749 = vmatpush1.bf16.msra.mxu0 0
        %4750 = vmatprep.mubr.bf16.mxu0 0
        %4751 = vmatmul.mubr.bf16.gmra.mrb[0].mxu0 %v4650
        %v4752 = vpop.f32.mrb[0].mxu0
        %v4753 = vadd.f32 0.0, %v4752
        %v4754 = vpop.f32.mrb[0].mxu0
        %v4755 = vpop.f32.mrb[0].mxu0
        %v4756 = vadd.f32 0.0, %v4755
        %v4757 = vpop.f32.mrb[0].mxu0
        %4758 = vmatprep.mubr.bf16.mxu0 0
        %4759 = vmatmul.mubr.bf16.gmra.mrb[0].mxu0 %v4651
        %v4760 = vpop.f32.mrb[0].mxu0
        %v4761 = vadd.f32 0.0, %v4760
        %v4762 = vpop.f32.mrb[0].mxu0
        %v4763 = vpop.f32.mrb[0].mxu0
        %v4764 = vadd.f32 0.0, %v4763
        %v4765 = vpop.f32.mrb[0].mxu0
        %4766 = vmatprep.mubr.bf16.mxu0 0
        %4767 = vmatmul.mubr.bf16.gmra.mrb[0].mxu0 %v4652
        %v4768 = vpop.f32.mrb[0].mxu0
        %v4769 = vadd.f32 0.0, %v4768
        %v4770 = vpop.f32.mrb[0].mxu0
        %v4771 = vpop.f32.mrb[0].mxu0
        %v4772 = vadd.f32 0.0, %v4771
        %v4773 = vpop.f32.mrb[0].mxu0
        %4774 = vmatprep.mubr.bf16.mxu0 0
        %4775 = vmatmul.mubr.bf16.gmra.mrb[0].mxu0 %v4653
        %v4776 = vpop.f32.mrb[0].mxu0
        %v4777 = vadd.f32 0.0, %v4776
        %v4778 = vpop.f32.mrb[0].mxu0
        %v4779 = vpop.f32.mrb[0].mxu0
        %v4780 = vadd.f32 0.0, %v4779
        %v4781 = vpop.f32.mrb[0].mxu0
        %4782 = vdwg.mxu0
        %v4783 = vadd.f32 %v4753, %v4756
        %v4784 = vadd.f32 %v4783, %v4761
        %v4785 = vadd.f32 %v4784, %v4764
        %v4786 = vadd.f32 %v4785, %v4769
        %v4787 = vadd.f32 %v4786, %v4772
        %v4788 = vadd.f32 %v4787, %v4777
        %v4789 = vadd.f32 %v4788, %v4780
        %v4790 = vrot.slane %v4789, 4
        %v4791 = vadd.f32 %v4789, %v4790
        %v4792 = vrot.slane %v4791, 2
        %v4793 = vadd.f32 %v4791, %v4792
        %v4794 = vrot.slane %v4793, 1
        %v4795 = vadd.f32 %v4793, %v4794
        %v4796 = vmul.f32 %v4795, 0.015625
        %v4797 = vld [vmem:[%s13] sm:$0x1]
        %v4798 = vadd.f32 %v4796, %v4797
        %4799 = vst [vmem:[%s474] sm:$0x1] %v4798
        %s4800 = sand.u32 %s340, 1
        %s4801 = scalar_lea.sflag [#allocation3], %s4800
        %s4802 = sand.u32 %s340, 1
        %s4803 = scalar_lea.vmem [#allocation2], %s4802
        // Predicated region
        $region77: #{simple_resnet_forward.3} parent=75 // pred_check
          %p4804 = pneg %p350
        $region78: #{simple_resnet_forward.3} parent=75 // pred_check_branch
          %4806 = sbr.rel (%p4804) target = $region80
        $region79: #{simple_resnet_forward.3} parent=75 // pred_region
          %s4808 = ssub.s32 16, 16
          %4809 = vsyncadd %s4801, %s4808
          %s4810 = smul.addr %s28, 16
          %s4811 = scalar_lea.hbm %s14, %s4810
          %s4813 = sshll.u32 %s4803, 4
          %s4814 = int_to_ptr.vmem [resolvable:$true] %s4813
          %4816 = dma.vmem_to_hbm [thread:$0]  %s4814, 16, %s4811, %s4801
        $region80: #{simple_resnet_forward.3} parent=75 // pred_fallthru
          _
      $region76: #{simple_resnet_forward.3} parent=5 // pred_fallthru
        _
      %p4817 = scmp.le.s32.totalorder 2, %s23
      // Predicated region
      $region81: #{simple_resnet_forward.3} parent=5 // pred_check
        %p4818 = pneg %p4817
      $region82: #{simple_resnet_forward.3} parent=5 // pred_check_branch
        %4820 = sbr.rel (%p4818) target = $region84
      $region83: #{simple_resnet_forward.3} parent=5 // pred_region
        %s4821 = ssub.s32 %s23, 2
        // Predicated region
        $region85: #{simple_resnet_forward.3} parent=83 // pred_check
          %p4822 = pneg %p356
        $region86: #{simple_resnet_forward.3} parent=83 // pred_check_branch
          %4824 = sbr.rel (%p4822) target = $region88
        $region87: #{simple_resnet_forward.3} parent=83 // pred_region
          %s4825 = sand.u32 %s341, 1
          %s4826 = scalar_lea.sflag [#allocation3], %s4825
          %s4827 = sand.u32 %s341, 1
          %s4828 = scalar_lea.vmem [#allocation2], %s4827
          %4829 = dma.done %s4826, 16
        $region88: #{simple_resnet_forward.3} parent=83 // pred_fallthru
          _
      $region84: #{simple_resnet_forward.3} parent=5 // pred_fallthru
        _
    $region6: #{simple_resnet_forward.3} parent=1 // loop_footer
      %s27 = sadd.s32 1, %s23
    $region7: #{simple_resnet_forward.3} parent=1 // loop_footer_branch
      %22 = sbr.rel target = $region3
    $region8: #{simple_resnet_forward.3} parent=1 // loop_exit
      _
    %4830 = vsyncpa [#allocation3], 1
    %s4831 = scalar_lea.sflag [#allocation3], 1
    %4832 = vsyncpa %s4831, 1

</llo_original>
